<compile_context>
chip_gen: v6e
topology: v6e:2x2x1
jax: 0.10.0
libtpu: 0.0.40
codegen_flags: <defaults>
</compile_context>

<pallas_src>
import functools
import math

import jax
import jax.numpy as jnp
from jax.experimental import pallas as pl
from jax.experimental.pallas import tpu as pltpu


LANE = 128
_VMEM_LIMIT_BYTES = 48 * 1024 * 1024  # fits v7x (64 MiB phys) and v5e/v6e (128 MiB)


def _round_up(x, m):
    return (x + m - 1) // m * m


def _pad_to_lane(c):
    return _round_up(c, LANE)


def _pick_tile(m, target, align):
    """Row tile: big fixed tile when possible, else round up to `align` (pad rows)."""
    if m >= target:
        return target, _round_up(m, target)
    t = _round_up(max(m, 1), align)
    return t, t


def _pick_div_tile(n, candidates):
    for c in candidates:
        if n >= c and n % c == 0:
            return c
    return n  # falls back to full dim (allowed when block == full array dim)


# ----------------------------------------------------------------------------
# Kernel 1: fused matmul  o = act((x @ w) [* scale] + shift), K-tiled, f32 acc
# ----------------------------------------------------------------------------
def _matmul_kernel(x_ref, w_ref, *rest, act, has_scale):
    if has_scale:
        s_ref, b_ref, o_ref, acc_ref = rest
    else:
        b_ref, o_ref, acc_ref = rest

    @pl.when(pl.program_id(2) == 0)
    def _():
        acc_ref[...] = jnp.zeros_like(acc_ref)

    acc_ref[...] += jnp.dot(x_ref[...], w_ref[...],
                            preferred_element_type=jnp.float32)

    @pl.when(pl.program_id(2) == pl.num_programs(2) - 1)
    def _():
        y = acc_ref[...]
        if has_scale:
            y = y * s_ref[...]
        y = y + b_ref[...]
        if act == "silu":
            y = y * jax.nn.sigmoid(y)
        elif act == "sigmoid":
            y = jax.nn.sigmoid(y)
        o_ref[...] = y.astype(o_ref.dtype)


def matmul_affine_act(x, w, scale, shift, act="none", out_dtype=jnp.float32):
    M, K = x.shape
    Kw, Nn = w.shape
    assert K == Kw
    TM, Mp = _pick_tile(M, 256, 8)
    TN = _pick_div_tile(Nn, (512, 256, 128))
    TK = _pick_div_tile(K, (512, 256, 128))
    if Mp != M:
        x = jnp.pad(x, ((0, Mp - M), (0, 0)))
    x = x.astype(jnp.bfloat16)  # bf16 MXU operands, f32 accumulation
    w = w.astype(jnp.bfloat16)

    has_scale = scale is not None
    ops = [x, w]
    in_specs = [
        pl.BlockSpec((TM, TK), lambda i, j, k: (i, k)),
        pl.BlockSpec((TK, TN), lambda i, j, k: (k, j)),
    ]
    if has_scale:
        ops.append(scale.reshape(1, Nn).astype(jnp.float32))
        in_specs.append(pl.BlockSpec((1, TN), lambda i, j, k: (0, j)))
    ops.append(shift.reshape(1, Nn).astype(jnp.float32))
    in_specs.append(pl.BlockSpec((1, TN), lambda i, j, k: (0, j)))

    out = pl.pallas_call(
        functools.partial(_matmul_kernel, act=act, has_scale=has_scale),
        out_shape=jax.ShapeDtypeStruct((Mp, Nn), out_dtype),
        grid=(Mp // TM, Nn // TN, K // TK),
        in_specs=in_specs,
        out_specs=pl.BlockSpec((TM, TN), lambda i, j, k: (i, j)),
        scratch_shapes=[pltpu.VMEM((TM, TN), jnp.float32)],
        compiler_params=pltpu.CompilerParams(
            dimension_semantics=("parallel", "parallel", "arbitrary"),
            vmem_limit_bytes=_VMEM_LIMIT_BYTES),
    )(*ops)
    return out[:M] if Mp != M else out


# ----------------------------------------------------------------------------
# Kernel 2: depthwise conv (no im2col) + BN + SiLU + SE global average pool
# ----------------------------------------------------------------------------
def _dw_kernel(x_ref, w_ref, s_ref, b_ref, y_ref, pool_ref, *, k, stride, Ho, Wo):
    TC = y_ref.shape[-1]
    acc = jnp.zeros((Ho, Wo, TC), jnp.float32)
    for kh in range(k):
        for kw in range(k):
            ph = (kh % stride) * stride + (kw % stride)
            oh, ow = kh // stride, kw // stride
            win = x_ref[ph, oh:oh + Ho, ow:ow + Wo, :].astype(jnp.float32)
            acc = acc + win * w_ref[kh * k + kw, :]
    y = acc * s_ref[...] + b_ref[...]
    y = y * jax.nn.sigmoid(y)                       # SiLU
    y_ref[...] = y[None].astype(y_ref.dtype)
    pool_ref[...] = jnp.mean(y, axis=(0, 1))[None, None, :]


def dwconv_bn_silu_pool(x, w, scale, shift, k, stride):
    """x: (N,H,W,Cp) bf16 -> (y: (N,Ho,Wo,Cp) bf16, pooled: (N,Cp) f32)."""
    N, H, W, C = x.shape
    pad = (k - 1) // 2
    s = stride
    Ho = (H + 2 * pad - k) // s + 1
    Wo = (W + 2 * pad - k) // s + 1
    Hph = -(-(H + 2 * pad) // s)
    Wph = -(-(W + 2 * pad) // s)
    # zero-pad + phase split (space-to-depth) so every tap is an unstrided slice
    xp = jnp.pad(x, ((0, 0), (pad, s * Hph - H - pad), (pad, s * Wph - W - pad), (0, 0)))
    xph = (xp.reshape(N, Hph, s, Wph, s, C)
             .transpose(0, 2, 4, 1, 3, 5)
             .reshape(N * s * s, Hph, Wph, C))
    TC = 128 if C % 128 == 0 else C
    # TODO(synk): at very large spatial extents add a halo'd H tiling (manual DMA);
    # full-image-per-(sample,channel-tile) blocks fit VMEM at EfficientNet scales.
    y, pooled = pl.pallas_call(
        functools.partial(_dw_kernel, k=k, stride=s, Ho=Ho, Wo=Wo),
        out_shape=(jax.ShapeDtypeStruct((N, Ho, Wo, C), jnp.bfloat16),
                   jax.ShapeDtypeStruct((N, 1, C), jnp.float32)),
        grid=(N, C // TC),
        in_specs=[
            pl.BlockSpec((s * s, Hph, Wph, TC), lambda n, c: (n, 0, 0, c)),
            pl.BlockSpec((k * k, TC), lambda n, c: (0, c)),
            pl.BlockSpec((1, TC), lambda n, c: (0, c)),
            pl.BlockSpec((1, TC), lambda n, c: (0, c)),
        ],
        out_specs=(pl.BlockSpec((1, Ho, Wo, TC), lambda n, c: (n, 0, 0, c)),
                   pl.BlockSpec((1, 1, TC), lambda n, c: (n, 0, c))),
        compiler_params=pltpu.CompilerParams(
            dimension_semantics=("parallel", "parallel"),
            vmem_limit_bytes=_VMEM_LIMIT_BYTES),
    )(xph, w, scale, shift)
    return y, pooled.reshape(N, C)


# ----------------------------------------------------------------------------
# Kernel 3: squeeze-excitation gate (fc1 -> SiLU -> fc2 -> Sigmoid) in one call
# ----------------------------------------------------------------------------
def _se_kernel(p_ref, w1_ref, b1_ref, w2_ref, b2_ref, o_ref):
    h = jnp.dot(p_ref[...].astype(jnp.bfloat16), w1_ref[...],
                preferred_element_type=jnp.float32) + b1_ref[...]
    h = h * jax.nn.sigmoid(h)
    g = jnp.dot(h.astype(jnp.bfloat16), w2_ref[...],
                preferred_element_type=jnp.float32) + b2_ref[...]
    o_ref[...] = jax.nn.sigmoid(g)


def se_gate(pooled, w1, b1, w2, b2):  # tiny (batch-row) kernel, whole-array blocks
    N, Ce = pooled.shape
    return pl.pallas_call(
        _se_kernel,
        out_shape=jax.ShapeDtypeStruct((N, Ce), jnp.float32),
    )(pooled, w1, b1, w2, b2)


# ----------------------------------------------------------------------------
# Kernel 4: projection 1x1 conv fused with SE scaling + BN + residual + FiLM
# ----------------------------------------------------------------------------
def _proj_film_kernel(x_ref, se_ref, w_ref, s_ref, b_ref, g_ref, be_ref, *rest,
                      use_res):
    if use_res:
        r_ref, o_ref, acc_ref = rest
    else:
        o_ref, acc_ref = rest
    kid = pl.program_id(3)

    @pl.when(kid == 0)
    def _():
        acc_ref[...] = jnp.zeros_like(acc_ref)

    xs = x_ref[0].astype(jnp.float32) * se_ref[0]          # SE channel gate
    acc_ref[...] += jnp.dot(xs.astype(jnp.bfloat16), w_ref[...],
                            preferred_element_type=jnp.float32)

    @pl.when(kid == pl.num_programs(3) - 1)
    def _():
        y = acc_ref[...] * s_ref[...] + b_ref[...]         # folded BN (no act)
        if use_res:
            y = y + r_ref[0].astype(jnp.float32)           # residual (eval SD = id)
        y = y * (1.0 + g_ref[0]) + be_ref[0]               # FiLM
        o_ref[...] = y[None].astype(o_ref.dtype)


def proj_se_film(x, se, w, scale, shift, gamma, beta, residual=None):
    N, P, K = x.shape
    _, Cn = w.shape
    TP, Pp = _pick_tile(P, 256, 8)
    TK = _pick_div_tile(K, (512, 256, 128))
    TN = _pick_div_tile(Cn, (256, 128))
    if Pp != P:
        x = jnp.pad(x, ((0, 0), (0, Pp - P), (0, 0)))
        if residual is not None:
            residual = jnp.pad(residual, ((0, 0), (0, Pp - P), (0, 0)))
    x = x.astype(jnp.bfloat16)
    w = w.astype(jnp.bfloat16)
    se3 = se.reshape(N, 1, K).astype(jnp.float32)
    g3 = gamma.reshape(N, 1, Cn).astype(jnp.float32)
    b3 = beta.reshape(N, 1, Cn).astype(jnp.float32)
    use_res = residual is not None

    ops = [x, se3, w, scale, shift, g3, b3]
    in_specs = [
        pl.BlockSpec((1, TP, TK), lambda n, p, j, k: (n, p, k)),
        pl.BlockSpec((1, 1, TK), lambda n, p, j, k: (n, 0, k)),
        pl.BlockSpec((TK, TN), lambda n, p, j, k: (k, j)),
        pl.BlockSpec((1, TN), lambda n, p, j, k: (0, j)),
        pl.BlockSpec((1, TN), lambda n, p, j, k: (0, j)),
        pl.BlockSpec((1, 1, TN), lambda n, p, j, k: (n, 0, j)),
        pl.BlockSpec((1, 1, TN), lambda n, p, j, k: (n, 0, j)),
    ]
    if use_res:
        ops.append(residual.astype(jnp.bfloat16))
        in_specs.append(pl.BlockSpec((1, TP, TN), lambda n, p, j, k: (n, p, j)))

    out = pl.pallas_call(
        functools.partial(_proj_film_kernel, use_res=use_res),
        out_shape=jax.ShapeDtypeStruct((N, Pp, Cn), jnp.bfloat16),
        grid=(N, Pp // TP, Cn // TN, K // TK),
        in_specs=in_specs,
        out_specs=pl.BlockSpec((1, TP, TN), lambda n, p, j, k: (n, p, j)),
        scratch_shapes=[pltpu.VMEM((TP, TN), jnp.float32)],
        compiler_params=pltpu.CompilerParams(
            dimension_semantics=("parallel", "parallel", "parallel", "arbitrary"),
            vmem_limit_bytes=_VMEM_LIMIT_BYTES),
    )(*ops)
    return out[:, :P, :] if Pp != P else out


# ----------------------------------------------------------------------------
# Kernel 5: last 1x1 conv + BN + SiLU fused with AdaptiveAvgPool2d(1)
#           (the full last-layer activation never hits HBM — only the pool)
# ----------------------------------------------------------------------------
def _lastconv_pool_kernel(x_ref, w_ref, s_ref, b_ref, pool_ref, acc_ref):
    kid = pl.program_id(2)

    @pl.when(kid == 0)
    def _():
        acc_ref[...] = jnp.zeros_like(acc_ref)

    acc_ref[...] += jnp.dot(x_ref[0], w_ref[...],
                            preferred_element_type=jnp.float32)

    @pl.when(kid == pl.num_programs(2) - 1)
    def _():
        y = acc_ref[...] * s_ref[...] + b_ref[...]
        y = y * jax.nn.sigmoid(y)                  # SiLU
        pool_ref[...] = jnp.mean(y, axis=0, keepdims=True)[None]


def conv1x1_bn_silu_avgpool(x, w, scale, shift):
    """x: (N,H,W,C) bf16 -> pooled (N,Cout) f32 (AdaptiveAvgPool2d(1) fused)."""
    N, H, W, C = x.shape
    P = H * W
    Cn = w.shape[1]
    TK = _pick_div_tile(C, (512, 256, 128))
    TN = _pick_div_tile(Cn, (512, 256, 128))
    xr = x.reshape(N, P, C).astype(jnp.bfloat16)
    pooled = pl.pallas_call(
        _lastconv_pool_kernel,
        out_shape=jax.ShapeDtypeStruct((N, 1, Cn), jnp.float32),
        grid=(N, Cn // TN, C // TK),
        in_specs=[
            pl.BlockSpec((1, P, TK), lambda n, j, k: (n, 0, k)),
            pl.BlockSpec((TK, TN), lambda n, j, k: (k, j)),
            pl.BlockSpec((1, TN), lambda n, j, k: (0, j)),
            pl.BlockSpec((1, TN), lambda n, j, k: (0, j)),
        ],
        out_specs=pl.BlockSpec((1, 1, TN), lambda n, j, k: (n, 0, j)),
        scratch_shapes=[pltpu.VMEM((P, TN), jnp.float32)],
        compiler_params=pltpu.CompilerParams(
            dimension_semantics=("parallel", "parallel", "arbitrary"),
            vmem_limit_bytes=_VMEM_LIMIT_BYTES),
    )(xr, w.astype(jnp.bfloat16), scale, shift)
    return pooled.reshape(N, Cn)


# ----------------------------------------------------------------------------
# Plain-JAX glue: stem im2col (3-channel input only), layer composition
# ----------------------------------------------------------------------------
def im2col(x, k, stride, pad):
    N, H, W, C = x.shape
    xp = jnp.pad(x, ((0, 0), (pad, pad), (pad, pad), (0, 0)))
    Ho = (H + 2 * pad - k) // stride + 1
    Wo = (W + 2 * pad - k) // stride + 1
    cols = []
    for kh in range(k):
        for kw in range(k):
            cols.append(xp[:, kh:kh + stride * Ho:stride, kw:kw + stride * Wo:stride, :])
    return jnp.stack(cols, axis=3), Ho, Wo


def conv_stem(x, w, s, b):  # 3x3 stride-2 conv on raw 3-channel input + BN + SiLU
    patches, Ho, Wo = im2col(x, 3, 2, 1)
    N = x.shape[0]
    pm = patches.reshape(N * Ho * Wo, -1)
    y = matmul_affine_act(pm, w, s, b, "silu", jnp.bfloat16)
    return y.reshape(N, Ho, Wo, w.shape[1])


def conv1x1_bn_act(x, w, s, b, act):  # k==1: no im2col, just a reshape
    N, H, W, C = x.shape
    y = matmul_affine_act(x.reshape(N * H * W, C), w, s, b, act, jnp.bfloat16)
    return y.reshape(N, H, W, w.shape[1])


def mbconv_forward(x, gamma, beta, p, cfg):
    """[expand 1x1] -> dw kxk (+SE pool) -> SE gate -> project 1x1 (+res, FiLM)."""
    N = x.shape[0]
    inp = x
    y = x
    if "expand" in p:
        y = conv1x1_bn_act(y, p["expand"]["w"], p["expand"]["s"], p["expand"]["b"], "silu")

    y, pooled = dwconv_bn_silu_pool(y, p["dw"]["w"], p["dw"]["s"], p["dw"]["b"],
                                    cfg["kernel"], cfg["stride"])
    _, Ho, Wo, Ce = y.shape

    se = se_gate(pooled, p["se"]["w1"], p["se"]["b1"], p["se"]["w2"], p["se"]["b2"])

    cout_p = p["proj"]["w"].shape[1]
    use_res = (cfg["stride"] == 1) and (cfg["input_channels"] == cfg["out_channels"])
    res = inp.reshape(N, Ho * Wo, cout_p) if use_res else None
    out = proj_se_film(y.reshape(N, Ho * Wo, Ce), se, p["proj"]["w"], p["proj"]["s"],
                       p["proj"]["b"], gamma, beta, res)
    return out.reshape(N, Ho, Wo, cout_p)


# ----------------------------------------------------------------------------
# Configuration / parameter construction (deterministic synthetic init, padded)
# ----------------------------------------------------------------------------
def _make_divisible(v, divisor=8, min_value=None):
    if min_value is None:
        min_value = divisor
    new_v = max(min_value, int(v + divisor / 2) // divisor * divisor)
    if new_v < 0.9 * v:
        new_v += divisor
    return new_v


def expand_setting(setting):
    cfgs = []
    for cnf in setting:
        for layer_idx in range(cnf["num_layers"]):
            c = dict(cnf)
            if layer_idx > 0:
                c["input_channels"] = c["out_channels"]
                c["stride"] = 1
            cfgs.append(c)
    return cfgs


class KeyGen:
    def __init__(self, key):
        self.key = key

    def __call__(self):
        self.key, sub = jax.random.split(self.key)
        return sub


def conv_weight(kg, cout, cin, k):  # kaiming_normal, mode='fan_out'
    std = math.sqrt(2.0 / (cout * k * k))
    return std * jax.random.normal(kg(), (cout, cin, k, k), jnp.float32)


def dw_weight(kg, c, k):
    std = math.sqrt(2.0 / (c * k * k))
    return std * jax.random.normal(kg(), (c, 1, k, k), jnp.float32)


def se_weight(kg, cin, cout):  # 1x1 conv stored directly in (in, out) matmul layout
    std = math.sqrt(2.0 / cout)
    return std * jax.random.normal(kg(), (cin, cout), jnp.float32)


def linear_params(kg, fin, fout):  # uniform(-1/sqrt(fout), 1/sqrt(fout)), zero bias
    r = 1.0 / math.sqrt(fout)
    w = jax.random.uniform(kg(), (fin, fout), jnp.float32, -r, r)
    return w, jnp.zeros((fout,), jnp.float32)


def _pad2(a, rows, cols):
    r, c = a.shape
    return jnp.pad(a, ((0, rows - r), (0, cols - c)))


def folded_bn(c, cp, eps=1e-5):
    """Eval-mode BatchNorm (weight=1, bias=0, mean=0, var=1) folded to affine,
    zero in the lane-padded channels so padded activations stay exactly 0."""
    s = jnp.ones((c,), jnp.float32) / jnp.sqrt(1.0 + eps)
    s = jnp.pad(s, (0, cp - c))
    b = jnp.zeros((cp,), jnp.float32)
    return s.reshape(1, cp), b.reshape(1, cp)


def build_efficientnet_params(key, setting, lang_size, num_classes, last_channel=None):
    kg = KeyGen(key)
    params = {}

    c0 = setting[0]["input_channels"]
    c0p = _pad_to_lane(c0)
    w = conv_weight(kg, c0, 3, 3)
    wmat = jnp.transpose(w, (2, 3, 1, 0)).reshape(9 * 3, c0)
    s, b = folded_bn(c0, c0p)
    params["first"] = dict(w=_pad2(wmat, 9 * 3, c0p).astype(jnp.bfloat16), s=s, b=b)

    blocks = []
    film_ws = []
    for cfg in expand_setting(setting):
        cin, cout = cfg["input_channels"], cfg["out_channels"]
        cexp = _make_divisible(cin * cfg["expand_ratio"], 8)
        k = cfg["kernel"]
        cinp, coutp, cexpp = _pad_to_lane(cin), _pad_to_lane(cout), _pad_to_lane(cexp)
        bp = {}
        if cexp != cin:
            we = conv_weight(kg, cexp, cin, 1)[:, :, 0, 0].T
            s, b = folded_bn(cexp, cexpp)
            bp["expand"] = dict(w=_pad2(we, cinp, cexpp).astype(jnp.bfloat16), s=s, b=b)

        wd = dw_weight(kg, cexp, k)
        wd = jnp.transpose(wd[:, 0], (1, 2, 0)).reshape(k * k, cexp)
        s, b = folded_bn(cexp, cexpp)
        bp["dw"] = dict(w=jnp.pad(wd, ((0, 0), (0, cexpp - cexp))), s=s, b=b)

        csq = max(1, cin // 4)
        csqp = _pad_to_lane(csq)
        w1 = se_weight(kg, cexp, csq)
        w2 = se_weight(kg, csq, cexp)
        bp["se"] = dict(w1=_pad2(w1, cexpp, csqp).astype(jnp.bfloat16),
                        b1=jnp.zeros((1, csqp), jnp.float32),
                        w2=_pad2(w2, csqp, cexpp).astype(jnp.bfloat16),
                        b2=jnp.zeros((1, cexpp), jnp.float32))

        wp_ = conv_weight(kg, cout, cexp, 1)[:, :, 0, 0].T
        s, b = folded_bn(cout, coutp)
        bp["proj"] = dict(w=_pad2(wp_, cexpp, coutp).astype(jnp.bfloat16), s=s, b=b)

        # FiLM: scale Linear is zero-init, shift Linear uniform; [gamma | beta] cols
        shift_w, _ = linear_params(kg, lang_size, cout)
        film_ws.append(jnp.concatenate(
            [jnp.zeros((lang_size, coutp), jnp.float32),
             jnp.pad(shift_w, ((0, 0), (0, coutp - cout)))], axis=1))
        blocks.append(bp)
    params["blocks"] = blocks

    # All blocks' FiLM scale/shift Linears concatenated into one matmul weight.
    film_w_all = jnp.concatenate(film_ws, axis=1)
    params["film"] = dict(w=film_w_all.astype(jnp.bfloat16),
                          b=jnp.zeros((1, film_w_all.shape[1]), jnp.float32))

    last_in = setting[-1]["out_channels"]
    last_out = last_channel if last_channel is not None else 4 * last_in
    lip, lop = _pad_to_lane(last_in), _pad_to_lane(last_out)
    wl = conv_weight(kg, last_out, last_in, 1)[:, :, 0, 0].T
    s, b = folded_bn(last_out, lop)
    params["last"] = dict(w=_pad2(wl, lip, lop).astype(jnp.bfloat16), s=s, b=b)

    ncp = _pad_to_lane(num_classes)
    cls_w, cls_b = linear_params(kg, last_out, num_classes)
    params["classifier"] = dict(w=_pad2(cls_w, lop, ncp).astype(jnp.bfloat16),
                                b=jnp.pad(cls_b, (0, ncp - num_classes)).reshape(1, ncp))
    return params


def make_forward(setting, num_classes):
    cfgs = expand_setting(setting)
    film_widths = [_pad_to_lane(cfg["out_channels"]) for cfg in cfgs]

    def fwd(params, x_nchw, lang):
        x = jnp.transpose(x_nchw, (0, 2, 3, 1))  # NCHW (PyTorch) -> NHWC (kernel layout)
        x = conv_stem(x, params["first"]["w"], params["first"]["s"], params["first"]["b"])

        # One matmul gives FiLM gamma/beta for every MBConv block in the network.
        gb = matmul_affine_act(lang, params["film"]["w"], None, params["film"]["b"],
                               "none", jnp.float32)
        off = 0
        for bp, cfg, cp in zip(params["blocks"], cfgs, film_widths):
            gamma = gb[:, off:off + cp]
            beta = gb[:, off + cp:off + 2 * cp]
            off += 2 * cp
            x = mbconv_forward(x, gamma, beta, bp, cfg)

        pooled = conv1x1_bn_silu_avgpool(x, params["last"]["w"], params["last"]["s"],
                                         params["last"]["b"])
        # TODO(synk): Dropout before the classifier uses eval()/identity semantics.
        logits = matmul_affine_act(pooled, params["classifier"]["w"], None,
                                   params["classifier"]["b"], "none", jnp.float32)
        return logits[:, :num_classes]

    return jax.jit(fwd)


# ----------------------------------------------------------------------------
if __name__ == "__main__":
    key = jax.random.PRNGKey(0)
    k_param, k_x, k_lang = jax.random.split(key, 3)

    # Small synthetic inverted-residual setting (MBConv blocks, like EfficientNet-V1)
    setting = [
        dict(expand_ratio=1, kernel=3, stride=1, input_channels=8, out_channels=8, num_layers=1),
        dict(expand_ratio=4, kernel=3, stride=2, input_channels=8, out_channels=16, num_layers=2),
    ]
    lang_size, num_classes = 32, 10

    params = build_efficientnet_params(k_param, setting, lang_size, num_classes)
    forward = make_forward(setting, num_classes)

    x = jax.random.normal(k_x, (2, 3, 16, 16), jnp.float32)        # NCHW, like PyTorch
    language_embed = jax.random.normal(k_lang, (2, lang_size), jnp.float32)

    out = forward(params, x, language_embed)
    jax.block_until_ready(out)
    assert out.shape == (2, num_classes) and out.dtype == jnp.float32
    print("KERNEL_OK")
</pallas_src>

<mosaic_0001>
module attributes {stable_mosaic.version = 11 : i64} {
  func.func @_matmul_kernel(%arg0: i32, %arg1: i32, %arg2: i32, %arg3: memref<128x27xbf16, #tpu.memory_space<vmem>>, %arg4: memref<27x128xbf16, #tpu.memory_space<vmem>>, %arg5: memref<1x128xf32, #tpu.memory_space<vmem>>, %arg6: memref<1x128xf32, #tpu.memory_space<vmem>>, %arg7: memref<128x128xbf16, #tpu.memory_space<vmem>>, %arg8: memref<128x128xf32, #tpu.memory_space<vmem>>) attributes {dimension_semantics = [#tpu.dimension_semantics<parallel>, #tpu.dimension_semantics<parallel>, #tpu.dimension_semantics<arbitrary>], iteration_bounds = array<i64: 1, 1, 1>, scalar_prefetch = 0 : i64, scratch_operands = 1 : i64, tpu.core_type = #tpu.core_type<tc>, window_params = [{transform_indices = @transform_0, window_bounds = array<i64: 128, 27>}, {transform_indices = @transform_1, window_bounds = array<i64: 27, 128>}, {transform_indices = @transform_2, window_bounds = array<i64: 1, 128>}, {transform_indices = @transform_3, window_bounds = array<i64: 1, 128>}, {transform_indices = @transform_4, window_bounds = array<i64: 128, 128>}]} {
    %c0_i32 = arith.constant 0 : i32
    %0 = arith.cmpi eq, %arg2, %c0_i32 : i32
    %1 = arith.extui %0 : i1 to i32
    %c0_i32_0 = arith.constant 0 : i32
    %2 = arith.cmpi ne, %1, %c0_i32_0 : i32
    scf.if %2 {
      %cst_10 = arith.constant 0.000000e+00 : f32
      %12 = vector.broadcast %cst_10 : f32 to vector<128x128xf32>
      %c0_11 = arith.constant 0 : index
      %c0_12 = arith.constant 0 : index
      %13 = vector.load %arg8[%c0_11, %c0_12] : memref<128x128xf32, #tpu.memory_space<vmem>>, vector<128x128xf32>
      tpu.vector_store %arg8[%c0_11, %c0_12], %12 {strides = array<i32>} : memref<128x128xf32, #tpu.memory_space<vmem>>, vector<128x128xf32>,
    } else {
    }
    %c0 = arith.constant 0 : index
    %c0_1 = arith.constant 0 : index
    %3 = vector.load %arg8[%c0, %c0_1] : memref<128x128xf32, #tpu.memory_space<vmem>>, vector<128x128xf32>
    %c0_2 = arith.constant 0 : index
    %c0_3 = arith.constant 0 : index
    %4 = vector.load %arg3[%c0_2, %c0_3] : memref<128x27xbf16, #tpu.memory_space<vmem>>, vector<128x27xbf16>
    %c0_4 = arith.constant 0 : index
    %c0_5 = arith.constant 0 : index
    %5 = vector.load %arg4[%c0_4, %c0_5] : memref<27x128xbf16, #tpu.memory_space<vmem>>, vector<27x128xbf16>
    %cst = arith.constant dense<0.000000e+00> : vector<128x128xf32>
    %6 = tpu.matmul %4, %5, %cst {dimension_numbers = #tpu.dot_dimension_numbers<[1], [0], [0], [1], [0, 0, 1, 1], [], []>} : vector<128x27xbf16>, vector<27x128xbf16>, vector<128x128xf32> -> vector<128x128xf32>
    %7 = arith.addf %3, %6 : vector<128x128xf32>
    %c0_6 = arith.constant 0 : index
    %c0_7 = arith.constant 0 : index
    %8 = vector.load %arg8[%c0_6, %c0_7] : memref<128x128xf32, #tpu.memory_space<vmem>>, vector<128x128xf32>
    tpu.vector_store %arg8[%c0_6, %c0_7], %7 {strides = array<i32>} : memref<128x128xf32, #tpu.memory_space<vmem>>, vector<128x128xf32>,
    %c0_i32_8 = arith.constant 0 : i32
    %9 = arith.cmpi eq, %arg2, %c0_i32_8 : i32
    %10 = arith.extui %9 : i1 to i32
    %c0_i32_9 = arith.constant 0 : i32
    %11 = arith.cmpi ne, %10, %c0_i32_9 : i32
    scf.if %11 {
      %c0_10 = arith.constant 0 : index
      %c0_11 = arith.constant 0 : index
      %12 = vector.load %arg8[%c0_10, %c0_11] : memref<128x128xf32, #tpu.memory_space<vmem>>, vector<128x128xf32>
      %c0_12 = arith.constant 0 : index
      %c0_13 = arith.constant 0 : index
      %13 = vector.load %arg5[%c0_12, %c0_13] : memref<1x128xf32, #tpu.memory_space<vmem>>, vector<1x128xf32>
      %14 = vector.broadcast %13 : vector<1x128xf32> to vector<128x128xf32>
      %15 = arith.mulf %12, %14 : vector<128x128xf32>
      %c0_14 = arith.constant 0 : index
      %c0_15 = arith.constant 0 : index
      %16 = vector.load %arg6[%c0_14, %c0_15] : memref<1x128xf32, #tpu.memory_space<vmem>>, vector<1x128xf32>
      %17 = vector.broadcast %16 : vector<1x128xf32> to vector<128x128xf32>
      %18 = arith.addf %15, %17 : vector<128x128xf32>
      %19 = arith.negf %18 : vector<128x128xf32>
      %20 = math.exp %19 : vector<128x128xf32>
      %cst_16 = arith.constant 1.000000e+00 : f32
      %21 = vector.broadcast %cst_16 : f32 to vector<128x128xf32>
      %22 = arith.addf %21, %20 : vector<128x128xf32>
      %23 = arith.divf %21, %22 : vector<128x128xf32>
      %24 = arith.mulf %18, %23 : vector<128x128xf32>
      %25 = arith.truncf %24 : vector<128x128xf32> to vector<128x128xbf16>
      %c0_17 = arith.constant 0 : index
      %c0_18 = arith.constant 0 : index
      %26 = vector.load %arg7[%c0_17, %c0_18] : memref<128x128xbf16, #tpu.memory_space<vmem>>, vector<128x128xbf16>
      tpu.vector_store %arg7[%c0_17, %c0_18], %25 {strides = array<i32>} : memref<128x128xbf16, #tpu.memory_space<vmem>>, vector<128x128xbf16>,
    } else {
    }
    return
  }
  func.func @transform_0(%arg0: i32, %arg1: i32, %arg2: i32) -> (i32, i32) {
    %c0_i32 = arith.constant 0 : i32
    return %arg0, %arg2 : i32, i32
  }
  func.func @transform_1(%arg0: i32, %arg1: i32, %arg2: i32) -> (i32, i32) {
    %c0_i32 = arith.constant 0 : i32
    return %arg2, %arg1 : i32, i32
  }
  func.func @transform_2(%arg0: i32, %arg1: i32, %arg2: i32) -> (i32, i32) {
    %c0_i32 = arith.constant 0 : i32
    %c0_i32_0 = arith.constant 0 : i32
    return %c0_i32, %arg1 : i32, i32
  }
  func.func @transform_3(%arg0: i32, %arg1: i32, %arg2: i32) -> (i32, i32) {
    %c0_i32 = arith.constant 0 : i32
    %c0_i32_0 = arith.constant 0 : i32
    return %c0_i32, %arg1 : i32, i32
  }
  func.func @transform_4(%arg0: i32, %arg1: i32, %arg2: i32) -> (i32, i32) {
    %c0_i32 = arith.constant 0 : i32
    return %arg0, %arg1 : i32, i32
  }
}

module attributes {stable_mosaic.version = 11 : i64} {
  func.func @_dw_kernel(%arg0: i32, %arg1: i32, %arg2: memref<1x10x10x128xbf16, #tpu.memory_space<vmem>>, %arg3: memref<9x128xf32, #tpu.memory_space<vmem>>, %arg4: memref<1x128xf32, #tpu.memory_space<vmem>>, %arg5: memref<1x128xf32, #tpu.memory_space<vmem>>, %arg6: memref<1x8x8x128xbf16, #tpu.memory_space<vmem>>, %arg7: memref<1x1x128xf32, #tpu.memory_space<vmem>>) attributes {dimension_semantics = [#tpu.dimension_semantics<parallel>, #tpu.dimension_semantics<parallel>], iteration_bounds = array<i64: 2, 1>, scalar_prefetch = 0 : i64, scratch_operands = 0 : i64, tpu.core_type = #tpu.core_type<tc>, window_params = [{transform_indices = @transform_0, window_bounds = array<i64: 1, 10, 10, 128>}, {transform_indices = @transform_1, window_bounds = array<i64: 9, 128>}, {transform_indices = @transform_2, window_bounds = array<i64: 1, 128>}, {transform_indices = @transform_3, window_bounds = array<i64: 1, 128>}, {transform_indices = @transform_4, window_bounds = array<i64: 1, 8, 8, 128>}, {transform_indices = @transform_5, window_bounds = array<i64: 1, 1, 128>}]} {
    %cst = arith.constant 0.000000e+00 : f32
    %0 = vector.broadcast %cst : f32 to vector<8x8x128xf32>
    %c0 = arith.constant 0 : index
    %c0_0 = arith.constant 0 : index
    %c0_1 = arith.constant 0 : index
    %c0_2 = arith.constant 0 : index
    %1 = vector.load %arg2[%c0, %c0_0, %c0_1, %c0_2] : memref<1x10x10x128xbf16, #tpu.memory_space<vmem>>, vector<1x8x8x128xbf16>
    %2 = vector.shape_cast %1 : vector<1x8x8x128xbf16> to vector<8x8x128xbf16>
    %3 = arith.extf %2 : vector<8x8x128xbf16> to vector<8x8x128xf32>
    %c0_3 = arith.constant 0 : index
    %c0_4 = arith.constant 0 : index
    %4 = vector.load %arg3[%c0_3, %c0_4] : memref<9x128xf32, #tpu.memory_space<vmem>>, vector<1x128xf32>
    %5 = vector.shape_cast %4 : vector<1x128xf32> to vector<128xf32>
    %6 = vector.shape_cast %5 : vector<128xf32> to vector<1x1x128xf32>
    %7 = vector.broadcast %6 : vector<1x1x128xf32> to vector<8x8x128xf32>
    %8 = arith.mulf %3, %7 : vector<8x8x128xf32>
    %9 = arith.addf %0, %8 : vector<8x8x128xf32>
    %c0_5 = arith.constant 0 : index
    %c0_6 = arith.constant 0 : index
    %c1 = arith.constant 1 : index
    %c0_7 = arith.constant 0 : index
    %10 = vector.load %arg2[%c0_5, %c0_6, %c1, %c0_7] : memref<1x10x10x128xbf16, #tpu.memory_space<vmem>>, vector<1x8x8x128xbf16>
    %11 = vector.shape_cast %10 : vector<1x8x8x128xbf16> to vector<8x8x128xbf16>
    %12 = arith.extf %11 : vector<8x8x128xbf16> to vector<8x8x128xf32>
    %c1_8 = arith.constant 1 : index
    %c0_9 = arith.constant 0 : index
    %13 = vector.load %arg3[%c1_8, %c0_9] : memref<9x128xf32, #tpu.memory_space<vmem>>, vector<1x128xf32>
    %14 = vector.shape_cast %13 : vector<1x128xf32> to vector<128xf32>
    %15 = vector.shape_cast %14 : vector<128xf32> to vector<1x1x128xf32>
    %16 = vector.broadcast %15 : vector<1x1x128xf32> to vector<8x8x128xf32>
    %17 = arith.mulf %12, %16 : vector<8x8x128xf32>
    %18 = arith.addf %9, %17 : vector<8x8x128xf32>
    %c0_10 = arith.constant 0 : index
    %c0_11 = arith.constant 0 : index
    %c2 = arith.constant 2 : index
    %c0_12 = arith.constant 0 : index
    %19 = vector.load %arg2[%c0_10, %c0_11, %c2, %c0_12] : memref<1x10x10x128xbf16, #tpu.memory_space<vmem>>, vector<1x8x8x128xbf16>
    %20 = vector.shape_cast %19 : vector<1x8x8x128xbf16> to vector<8x8x128xbf16>
    %21 = arith.extf %20 : vector<8x8x128xbf16> to vector<8x8x128xf32>
    %c2_13 = arith.constant 2 : index
    %c0_14 = arith.constant 0 : index
    %22 = vector.load %arg3[%c2_13, %c0_14] : memref<9x128xf32, #tpu.memory_space<vmem>>, vector<1x128xf32>
    %23 = vector.shape_cast %22 : vector<1x128xf32> to vector<128xf32>
    %24 = vector.shape_cast %23 : vector<128xf32> to vector<1x1x128xf32>
    %25 = vector.broadcast %24 : vector<1x1x128xf32> to vector<8x8x128xf32>
    %26 = arith.mulf %21, %25 : vector<8x8x128xf32>
    %27 = arith.addf %18, %26 : vector<8x8x128xf32>
    %c0_15 = arith.constant 0 : index
    %c1_16 = arith.constant 1 : index
    %c0_17 = arith.constant 0 : index
    %c0_18 = arith.constant 0 : index
    %28 = vector.load %arg2[%c0_15, %c1_16, %c0_17, %c0_18] : memref<1x10x10x128xbf16, #tpu.memory_space<vmem>>, vector<1x8x8x128xbf16>
    %29 = vector.shape_cast %28 : vector<1x8x8x128xbf16> to vector<8x8x128xbf16>
    %30 = arith.extf %29 : vector<8x8x128xbf16> to vector<8x8x128xf32>
    %c3 = arith.constant 3 : index
    %c0_19 = arith.constant 0 : index
    %31 = vector.load %arg3[%c3, %c0_19] : memref<9x128xf32, #tpu.memory_space<vmem>>, vector<1x128xf32>
    %32 = vector.shape_cast %31 : vector<1x128xf32> to vector<128xf32>
    %33 = vector.shape_cast %32 : vector<128xf32> to vector<1x1x128xf32>
    %34 = vector.broadcast %33 : vector<1x1x128xf32> to vector<8x8x128xf32>
    %35 = arith.mulf %30, %34 : vector<8x8x128xf32>
    %36 = arith.addf %27, %35 : vector<8x8x128xf32>
    %c0_20 = arith.constant 0 : index
    %c1_21 = arith.constant 1 : index
    %c1_22 = arith.constant 1 : index
    %c0_23 = arith.constant 0 : index
    %37 = vector.load %arg2[%c0_20, %c1_21, %c1_22, %c0_23] : memref<1x10x10x128xbf16, #tpu.memory_space<vmem>>, vector<1x8x8x128xbf16>
    %38 = vector.shape_cast %37 : vector<1x8x8x128xbf16> to vector<8x8x128xbf16>
    %39 = arith.extf %38 : vector<8x8x128xbf16> to vector<8x8x128xf32>
    %c4 = arith.constant 4 : index
    %c0_24 = arith.constant 0 : index
    %40 = vector.load %arg3[%c4, %c0_24] : memref<9x128xf32, #tpu.memory_space<vmem>>, vector<1x128xf32>
    %41 = vector.shape_cast %40 : vector<1x128xf32> to vector<128xf32>
    %42 = vector.shape_cast %41 : vector<128xf32> to vector<1x1x128xf32>
    %43 = vector.broadcast %42 : vector<1x1x128xf32> to vector<8x8x128xf32>
    %44 = arith.mulf %39, %43 : vector<8x8x128xf32>
    %45 = arith.addf %36, %44 : vector<8x8x128xf32>
    %c0_25 = arith.constant 0 : index
    %c1_26 = arith.constant 1 : index
    %c2_27 = arith.constant 2 : index
    %c0_28 = arith.constant 0 : index
    %46 = vector.load %arg2[%c0_25, %c1_26, %c2_27, %c0_28] : memref<1x10x10x128xbf16, #tpu.memory_space<vmem>>, vector<1x8x8x128xbf16>
    %47 = vector.shape_cast %46 : vector<1x8x8x128xbf16> to vector<8x8x128xbf16>
    %48 = arith.extf %47 : vector<8x8x128xbf16> to vector<8x8x128xf32>
    %c5 = arith.constant 5 : index
    %c0_29 = arith.constant 0 : index
    %49 = vector.load %arg3[%c5, %c0_29] : memref<9x128xf32, #tpu.memory_space<vmem>>, vector<1x128xf32>
    %50 = vector.shape_cast %49 : vector<1x128xf32> to vector<128xf32>
    %51 = vector.shape_cast %50 : vector<128xf32> to vector<1x1x128xf32>
    %52 = vector.broadcast %51 : vector<1x1x128xf32> to vector<8x8x128xf32>
    %53 = arith.mulf %48, %52 : vector<8x8x128xf32>
    %54 = arith.addf %45, %53 : vector<8x8x128xf32>
    %c0_30 = arith.constant 0 : index
    %c2_31 = arith.constant 2 : index
    %c0_32 = arith.constant 0 : index
    %c0_33 = arith.constant 0 : index
    %55 = vector.load %arg2[%c0_30, %c2_31, %c0_32, %c0_33] : memref<1x10x10x128xbf16, #tpu.memory_space<vmem>>, vector<1x8x8x128xbf16>
    %56 = vector.shape_cast %55 : vector<1x8x8x128xbf16> to vector<8x8x128xbf16>
    %57 = arith.extf %56 : vector<8x8x128xbf16> to vector<8x8x128xf32>
    %c6 = arith.constant 6 : index
    %c0_34 = arith.constant 0 : index
    %58 = vector.load %arg3[%c6, %c0_34] : memref<9x128xf32, #tpu.memory_space<vmem>>, vector<1x128xf32>
    %59 = vector.shape_cast %58 : vector<1x128xf32> to vector<128xf32>
    %60 = vector.shape_cast %59 : vector<128xf32> to vector<1x1x128xf32>
    %61 = vector.broadcast %60 : vector<1x1x128xf32> to vector<8x8x128xf32>
    %62 = arith.mulf %57, %61 : vector<8x8x128xf32>
    %63 = arith.addf %54, %62 : vector<8x8x128xf32>
    %c0_35 = arith.constant 0 : index
    %c2_36 = arith.constant 2 : index
    %c1_37 = arith.constant 1 : index
    %c0_38 = arith.constant 0 : index
    %64 = vector.load %arg2[%c0_35, %c2_36, %c1_37, %c0_38] : memref<1x10x10x128xbf16, #tpu.memory_space<vmem>>, vector<1x8x8x128xbf16>
    %65 = vector.shape_cast %64 : vector<1x8x8x128xbf16> to vector<8x8x128xbf16>
    %66 = arith.extf %65 : vector<8x8x128xbf16> to vector<8x8x128xf32>
    %c7 = arith.constant 7 : index
    %c0_39 = arith.constant 0 : index
    %67 = vector.load %arg3[%c7, %c0_39] : memref<9x128xf32, #tpu.memory_space<vmem>>, vector<1x128xf32>
    %68 = vector.shape_cast %67 : vector<1x128xf32> to vector<128xf32>
    %69 = vector.shape_cast %68 : vector<128xf32> to vector<1x1x128xf32>
    %70 = vector.broadcast %69 : vector<1x1x128xf32> to vector<8x8x128xf32>
    %71 = arith.mulf %66, %70 : vector<8x8x128xf32>
    %72 = arith.addf %63, %71 : vector<8x8x128xf32>
    %c0_40 = arith.constant 0 : index
    %c2_41 = arith.constant 2 : index
    %c2_42 = arith.constant 2 : index
    %c0_43 = arith.constant 0 : index
    %73 = vector.load %arg2[%c0_40, %c2_41, %c2_42, %c0_43] : memref<1x10x10x128xbf16, #tpu.memory_space<vmem>>, vector<1x8x8x128xbf16>
    %74 = vector.shape_cast %73 : vector<1x8x8x128xbf16> to vector<8x8x128xbf16>
    %75 = arith.extf %74 : vector<8x8x128xbf16> to vector<8x8x128xf32>
    %c8 = arith.constant 8 : index
    %c0_44 = arith.constant 0 : index
    %76 = vector.load %arg3[%c8, %c0_44] : memref<9x128xf32, #tpu.memory_space<vmem>>, vector<1x128xf32>
    %77 = vector.shape_cast %76 : vector<1x128xf32> to vector<128xf32>
    %78 = vector.shape_cast %77 : vector<128xf32> to vector<1x1x128xf32>
    %79 = vector.broadcast %78 : vector<1x1x128xf32> to vector<8x8x128xf32>
    %80 = arith.mulf %75, %79 : vector<8x8x128xf32>
    %81 = arith.addf %72, %80 : vector<8x8x128xf32>
    %c0_45 = arith.constant 0 : index
    %c0_46 = arith.constant 0 : index
    %82 = vector.load %arg4[%c0_45, %c0_46] : memref<1x128xf32, #tpu.memory_space<vmem>>, vector<1x128xf32>
    %83 = vector.shape_cast %82 : vector<1x128xf32> to vector<1x1x128xf32>
    %84 = vector.broadcast %83 : vector<1x1x128xf32> to vector<8x8x128xf32>
    %85 = arith.mulf %81, %84 : vector<8x8x128xf32>
    %c0_47 = arith.constant 0 : index
    %c0_48 = arith.constant 0 : index
    %86 = vector.load %arg5[%c0_47, %c0_48] : memref<1x128xf32, #tpu.memory_space<vmem>>, vector<1x128xf32>
    %87 = vector.shape_cast %86 : vector<1x128xf32> to vector<1x1x128xf32>
    %88 = vector.broadcast %87 : vector<1x1x128xf32> to vector<8x8x128xf32>
    %89 = arith.addf %85, %88 : vector<8x8x128xf32>
    %90 = arith.negf %89 : vector<8x8x128xf32>
    %91 = math.exp %90 : vector<8x8x128xf32>
    %cst_49 = arith.constant 1.000000e+00 : f32
    %92 = vector.broadcast %cst_49 : f32 to vector<8x8x128xf32>
    %93 = arith.addf %92, %91 : vector<8x8x128xf32>
    %94 = arith.divf %92, %93 : vector<8x8x128xf32>
    %95 = arith.mulf %89, %94 : vector<8x8x128xf32>
    %96 = vector.shape_cast %95 : vector<8x8x128xf32> to vector<1x8x8x128xf32>
    %97 = arith.truncf %96 : vector<1x8x8x128xf32> to vector<1x8x8x128xbf16>
    %c0_50 = arith.constant 0 : index
    %c0_51 = arith.constant 0 : index
    %c0_52 = arith.constant 0 : index
    %c0_53 = arith.constant 0 : index
    %98 = vector.load %arg6[%c0_50, %c0_51, %c0_52, %c0_53] : memref<1x8x8x128xbf16, #tpu.memory_space<vmem>>, vector<1x8x8x128xbf16>
    tpu.vector_store %arg6[%c0_50, %c0_51, %c0_52, %c0_53], %97 {strides = array<i32>} : memref<1x8x8x128xbf16, #tpu.memory_space<vmem>>, vector<1x8x8x128xbf16>,
    %cst_54 = arith.constant dense<0.000000e+00> : vector<128xf32>
    %99 = vector.multi_reduction <add>, %95, %cst_54 [0, 1] : vector<8x8x128xf32> to vector<128xf32>
    %cst_55 = arith.constant 6.400000e+01 : f32
    %100 = vector.broadcast %cst_55 : f32 to vector<128xf32>
    %101 = arith.divf %99, %100 : vector<128xf32>
    %102 = vector.shape_cast %101 : vector<128xf32> to vector<1x1x128xf32>
    %c0_56 = arith.constant 0 : index
    %c0_57 = arith.constant 0 : index
    %c0_58 = arith.constant 0 : index
    %103 = vector.load %arg7[%c0_56, %c0_57, %c0_58] : memref<1x1x128xf32, #tpu.memory_space<vmem>>, vector<1x1x128xf32>
    tpu.vector_store %arg7[%c0_56, %c0_57, %c0_58], %102 {strides = array<i32>} : memref<1x1x128xf32, #tpu.memory_space<vmem>>, vector<1x1x128xf32>,
    return
  }
  func.func @transform_0(%arg0: i32, %arg1: i32) -> (i32, i32, i32, i32) {
    %c0_i32 = arith.constant 0 : i32
    %c0_i32_0 = arith.constant 0 : i32
    %c0_i32_1 = arith.constant 0 : i32
    return %arg0, %c0_i32, %c0_i32_0, %arg1 : i32, i32, i32, i32
  }
  func.func @transform_1(%arg0: i32, %arg1: i32) -> (i32, i32) {
    %c0_i32 = arith.constant 0 : i32
    %c0_i32_0 = arith.constant 0 : i32
    return %c0_i32, %arg1 : i32, i32
  }
  func.func @transform_2(%arg0: i32, %arg1: i32) -> (i32, i32) {
    %c0_i32 = arith.constant 0 : i32
    %c0_i32_0 = arith.constant 0 : i32
    return %c0_i32, %arg1 : i32, i32
  }
  func.func @transform_3(%arg0: i32, %arg1: i32) -> (i32, i32) {
    %c0_i32 = arith.constant 0 : i32
    %c0_i32_0 = arith.constant 0 : i32
    return %c0_i32, %arg1 : i32, i32
  }
  func.func @transform_4(%arg0: i32, %arg1: i32) -> (i32, i32, i32, i32) {
    %c0_i32 = arith.constant 0 : i32
    %c0_i32_0 = arith.constant 0 : i32
    %c0_i32_1 = arith.constant 0 : i32
    return %arg0, %c0_i32, %c0_i32_0, %arg1 : i32, i32, i32, i32
  }
  func.func @transform_5(%arg0: i32, %arg1: i32) -> (i32, i32, i32) {
    %c0_i32 = arith.constant 0 : i32
    %c0_i32_0 = arith.constant 0 : i32
    return %arg0, %c0_i32, %arg1 : i32, i32, i32
  }
}

module attributes {stable_mosaic.version = 11 : i64} {
  func.func @_se_kernel(%arg0: memref<2x128xf32, #tpu.memory_space<vmem>>, %arg1: memref<128x128xbf16, #tpu.memory_space<vmem>>, %arg2: memref<1x128xf32, #tpu.memory_space<vmem>>, %arg3: memref<128x128xbf16, #tpu.memory_space<vmem>>, %arg4: memref<1x128xf32, #tpu.memory_space<vmem>>, %arg5: memref<2x128xf32, #tpu.memory_space<vmem>>) attributes {dimension_semantics = [], scalar_prefetch = 0 : i64, scratch_operands = 0 : i64, tpu.core_type = #tpu.core_type<tc>} {
    %c0 = arith.constant 0 : index
    %c0_0 = arith.constant 0 : index
    %0 = vector.load %arg0[%c0, %c0_0] : memref<2x128xf32, #tpu.memory_space<vmem>>, vector<2x128xf32>
    %1 = arith.truncf %0 : vector<2x128xf32> to vector<2x128xbf16>
    %c0_1 = arith.constant 0 : index
    %c0_2 = arith.constant 0 : index
    %2 = vector.load %arg1[%c0_1, %c0_2] : memref<128x128xbf16, #tpu.memory_space<vmem>>, vector<128x128xbf16>
    %cst = arith.constant dense<0.000000e+00> : vector<2x128xf32>
    %3 = tpu.matmul %1, %2, %cst {dimension_numbers = #tpu.dot_dimension_numbers<[1], [0], [0], [1], [0, 0, 1, 1], [], []>} : vector<2x128xbf16>, vector<128x128xbf16>, vector<2x128xf32> -> vector<2x128xf32>
    %c0_3 = arith.constant 0 : index
    %c0_4 = arith.constant 0 : index
    %4 = vector.load %arg2[%c0_3, %c0_4] : memref<1x128xf32, #tpu.memory_space<vmem>>, vector<1x128xf32>
    %5 = vector.broadcast %4 : vector<1x128xf32> to vector<2x128xf32>
    %6 = arith.addf %3, %5 : vector<2x128xf32>
    %7 = arith.negf %6 : vector<2x128xf32>
    %8 = math.exp %7 : vector<2x128xf32>
    %cst_5 = arith.constant 1.000000e+00 : f32
    %9 = vector.broadcast %cst_5 : f32 to vector<2x128xf32>
    %10 = arith.addf %9, %8 : vector<2x128xf32>
    %11 = arith.divf %9, %10 : vector<2x128xf32>
    %12 = arith.mulf %6, %11 : vector<2x128xf32>
    %13 = arith.truncf %12 : vector<2x128xf32> to vector<2x128xbf16>
    %c0_6 = arith.constant 0 : index
    %c0_7 = arith.constant 0 : index
    %14 = vector.load %arg3[%c0_6, %c0_7] : memref<128x128xbf16, #tpu.memory_space<vmem>>, vector<128x128xbf16>
    %cst_8 = arith.constant dense<0.000000e+00> : vector<2x128xf32>
    %15 = tpu.matmul %13, %14, %cst_8 {dimension_numbers = #tpu.dot_dimension_numbers<[1], [0], [0], [1], [0, 0, 1, 1], [], []>} : vector<2x128xbf16>, vector<128x128xbf16>, vector<2x128xf32> -> vector<2x128xf32>
    %c0_9 = arith.constant 0 : index
    %c0_10 = arith.constant 0 : index
    %16 = vector.load %arg4[%c0_9, %c0_10] : memref<1x128xf32, #tpu.memory_space<vmem>>, vector<1x128xf32>
    %17 = vector.broadcast %16 : vector<1x128xf32> to vector<2x128xf32>
    %18 = arith.addf %15, %17 : vector<2x128xf32>
    %19 = arith.negf %18 : vector<2x128xf32>
    %20 = math.exp %19 : vector<2x128xf32>
    %cst_11 = arith.constant 1.000000e+00 : f32
    %21 = vector.broadcast %cst_11 : f32 to vector<2x128xf32>
    %22 = arith.addf %21, %20 : vector<2x128xf32>
    %23 = arith.divf %21, %22 : vector<2x128xf32>
    %c0_12 = arith.constant 0 : index
    %c0_13 = arith.constant 0 : index
    %24 = vector.load %arg5[%c0_12, %c0_13] : memref<2x128xf32, #tpu.memory_space<vmem>>, vector<2x128xf32>
    tpu.vector_store %arg5[%c0_12, %c0_13], %23 {strides = array<i32>} : memref<2x128xf32, #tpu.memory_space<vmem>>, vector<2x128xf32>,
    return
  }
}

module attributes {stable_mosaic.version = 11 : i64} {
  func.func @_matmul_kernel(%arg0: i32, %arg1: i32, %arg2: i32, %arg3: memref<8x32xbf16, #tpu.memory_space<vmem>>, %arg4: memref<32x256xbf16, #tpu.memory_space<vmem>>, %arg5: memref<1x256xf32, #tpu.memory_space<vmem>>, %arg6: memref<8x256xf32, #tpu.memory_space<vmem>>, %arg7: memref<8x256xf32, #tpu.memory_space<vmem>>) attributes {dimension_semantics = [#tpu.dimension_semantics<parallel>, #tpu.dimension_semantics<parallel>, #tpu.dimension_semantics<arbitrary>], iteration_bounds = array<i64: 1, 3, 1>, scalar_prefetch = 0 : i64, scratch_operands = 1 : i64, tpu.core_type = #tpu.core_type<tc>, window_params = [{transform_indices = @transform_0, window_bounds = array<i64: 8, 32>}, {transform_indices = @transform_1, window_bounds = array<i64: 32, 256>}, {transform_indices = @transform_2, window_bounds = array<i64: 1, 256>}, {transform_indices = @transform_3, window_bounds = array<i64: 8, 256>}]} {
    %c0_i32 = arith.constant 0 : i32
    %0 = arith.cmpi eq, %arg2, %c0_i32 : i32
    %1 = arith.extui %0 : i1 to i32
    %c0_i32_0 = arith.constant 0 : i32
    %2 = arith.cmpi ne, %1, %c0_i32_0 : i32
    scf.if %2 {
      %cst_10 = arith.constant 0.000000e+00 : f32
      %12 = vector.broadcast %cst_10 : f32 to vector<8x256xf32>
      %c0_11 = arith.constant 0 : index
      %c0_12 = arith.constant 0 : index
      %13 = vector.load %arg7[%c0_11, %c0_12] : memref<8x256xf32, #tpu.memory_space<vmem>>, vector<8x256xf32>
      tpu.vector_store %arg7[%c0_11, %c0_12], %12 {strides = array<i32>} : memref<8x256xf32, #tpu.memory_space<vmem>>, vector<8x256xf32>,
    } else {
    }
    %c0 = arith.constant 0 : index
    %c0_1 = arith.constant 0 : index
    %3 = vector.load %arg7[%c0, %c0_1] : memref<8x256xf32, #tpu.memory_space<vmem>>, vector<8x256xf32>
    %c0_2 = arith.constant 0 : index
    %c0_3 = arith.constant 0 : index
    %4 = vector.load %arg3[%c0_2, %c0_3] : memref<8x32xbf16, #tpu.memory_space<vmem>>, vector<8x32xbf16>
    %c0_4 = arith.constant 0 : index
    %c0_5 = arith.constant 0 : index
    %5 = vector.load %arg4[%c0_4, %c0_5] : memref<32x256xbf16, #tpu.memory_space<vmem>>, vector<32x256xbf16>
    %cst = arith.constant dense<0.000000e+00> : vector<8x256xf32>
    %6 = tpu.matmul %4, %5, %cst {dimension_numbers = #tpu.dot_dimension_numbers<[1], [0], [0], [1], [0, 0, 1, 1], [], []>} : vector<8x32xbf16>, vector<32x256xbf16>, vector<8x256xf32> -> vector<8x256xf32>
    %7 = arith.addf %3, %6 : vector<8x256xf32>
    %c0_6 = arith.constant 0 : index
    %c0_7 = arith.constant 0 : index
    %8 = vector.load %arg7[%c0_6, %c0_7] : memref<8x256xf32, #tpu.memory_space<vmem>>, vector<8x256xf32>
    tpu.vector_store %arg7[%c0_6, %c0_7], %7 {strides = array<i32>} : memref<8x256xf32, #tpu.memory_space<vmem>>, vector<8x256xf32>,
    %c0_i32_8 = arith.constant 0 : i32
    %9 = arith.cmpi eq, %arg2, %c0_i32_8 : i32
    %10 = arith.extui %9 : i1 to i32
    %c0_i32_9 = arith.constant 0 : i32
    %11 = arith.cmpi ne, %10, %c0_i32_9 : i32
    scf.if %11 {
      %c0_10 = arith.constant 0 : index
      %c0_11 = arith.constant 0 : index
      %12 = vector.load %arg7[%c0_10, %c0_11] : memref<8x256xf32, #tpu.memory_space<vmem>>, vector<8x256xf32>
      %c0_12 = arith.constant 0 : index
      %c0_13 = arith.constant 0 : index
      %13 = vector.load %arg5[%c0_12, %c0_13] : memref<1x256xf32, #tpu.memory_space<vmem>>, vector<1x256xf32>
      %14 = vector.broadcast %13 : vector<1x256xf32> to vector<8x256xf32>
      %15 = arith.addf %12, %14 : vector<8x256xf32>
      %c0_14 = arith.constant 0 : index
      %c0_15 = arith.constant 0 : index
      %16 = vector.load %arg6[%c0_14, %c0_15] : memref<8x256xf32, #tpu.memory_space<vmem>>, vector<8x256xf32>
      tpu.vector_store %arg6[%c0_14, %c0_15], %15 {strides = array<i32>} : memref<8x256xf32, #tpu.memory_space<vmem>>, vector<8x256xf32>,
    } else {
    }
    return
  }
  func.func @transform_0(%arg0: i32, %arg1: i32, %arg2: i32) -> (i32, i32) {
    %c0_i32 = arith.constant 0 : i32
    return %arg0, %arg2 : i32, i32
  }
  func.func @transform_1(%arg0: i32, %arg1: i32, %arg2: i32) -> (i32, i32) {
    %c0_i32 = arith.constant 0 : i32
    return %arg2, %arg1 : i32, i32
  }
  func.func @transform_2(%arg0: i32, %arg1: i32, %arg2: i32) -> (i32, i32) {
    %c0_i32 = arith.constant 0 : i32
    %c0_i32_0 = arith.constant 0 : i32
    return %c0_i32, %arg1 : i32, i32
  }
  func.func @transform_3(%arg0: i32, %arg1: i32, %arg2: i32) -> (i32, i32) {
    %c0_i32 = arith.constant 0 : i32
    return %arg0, %arg1 : i32, i32
  }
}

module attributes {stable_mosaic.version = 11 : i64} {
  func.func @_proj_film_kernel(%arg0: i32, %arg1: i32, %arg2: i32, %arg3: i32, %arg4: memref<1x64x128xbf16, #tpu.memory_space<vmem>>, %arg5: memref<1x1x128xf32, #tpu.memory_space<vmem>>, %arg6: memref<128x128xbf16, #tpu.memory_space<vmem>>, %arg7: memref<1x128xf32, #tpu.memory_space<vmem>>, %arg8: memref<1x128xf32, #tpu.memory_space<vmem>>, %arg9: memref<1x1x128xf32, #tpu.memory_space<vmem>>, %arg10: memref<1x1x128xf32, #tpu.memory_space<vmem>>, %arg11: memref<1x64x128xbf16, #tpu.memory_space<vmem>>, %arg12: memref<1x64x128xbf16, #tpu.memory_space<vmem>>, %arg13: memref<64x128xf32, #tpu.memory_space<vmem>>) attributes {dimension_semantics = [#tpu.dimension_semantics<parallel>, #tpu.dimension_semantics<parallel>, #tpu.dimension_semantics<parallel>, #tpu.dimension_semantics<arbitrary>], iteration_bounds = array<i64: 2, 1, 1, 1>, scalar_prefetch = 0 : i64, scratch_operands = 1 : i64, tpu.core_type = #tpu.core_type<tc>, window_params = [{transform_indices = @transform_0, window_bounds = array<i64: 1, 64, 128>}, {transform_indices = @transform_1, window_bounds = array<i64: 1, 1, 128>}, {transform_indices = @transform_2, window_bounds = array<i64: 128, 128>}, {transform_indices = @transform_3, window_bounds = array<i64: 1, 128>}, {transform_indices = @transform_4, window_bounds = array<i64: 1, 128>}, {transform_indices = @transform_5, window_bounds = array<i64: 1, 1, 128>}, {transform_indices = @transform_6, window_bounds = array<i64: 1, 1, 128>}, {transform_indices = @transform_7, window_bounds = array<i64: 1, 64, 128>}, {transform_indices = @transform_8, window_bounds = array<i64: 1, 64, 128>}]} {
    %c0_i32 = arith.constant 0 : i32
    %0 = arith.cmpi eq, %arg3, %c0_i32 : i32
    %1 = arith.extui %0 : i1 to i32
    %c0_i32_0 = arith.constant 0 : i32
    %2 = arith.cmpi ne, %1, %c0_i32_0 : i32
    scf.if %2 {
      %cst_14 = arith.constant 0.000000e+00 : f32
      %19 = vector.broadcast %cst_14 : f32 to vector<64x128xf32>
      %c0_15 = arith.constant 0 : index
      %c0_16 = arith.constant 0 : index
      %20 = vector.load %arg13[%c0_15, %c0_16] : memref<64x128xf32, #tpu.memory_space<vmem>>, vector<64x128xf32>
      tpu.vector_store %arg13[%c0_15, %c0_16], %19 {strides = array<i32>} : memref<64x128xf32, #tpu.memory_space<vmem>>, vector<64x128xf32>,
    } else {
    }
    %c0 = arith.constant 0 : index
    %c0_1 = arith.constant 0 : index
    %c0_2 = arith.constant 0 : index
    %3 = vector.load %arg4[%c0, %c0_1, %c0_2] : memref<1x64x128xbf16, #tpu.memory_space<vmem>>, vector<1x64x128xbf16>
    %4 = vector.shape_cast %3 : vector<1x64x128xbf16> to vector<64x128xbf16>
    %5 = arith.extf %4 : vector<64x128xbf16> to vector<64x128xf32>
    %c0_3 = arith.constant 0 : index
    %c0_4 = arith.constant 0 : index
    %c0_5 = arith.constant 0 : index
    %6 = vector.load %arg5[%c0_3, %c0_4, %c0_5] : memref<1x1x128xf32, #tpu.memory_space<vmem>>, vector<1x1x128xf32>
    %7 = vector.shape_cast %6 : vector<1x1x128xf32> to vector<1x128xf32>
    %8 = vector.broadcast %7 : vector<1x128xf32> to vector<64x128xf32>
    %9 = arith.mulf %5, %8 : vector<64x128xf32>
    %c0_6 = arith.constant 0 : index
    %c0_7 = arith.constant 0 : index
    %10 = vector.load %arg13[%c0_6, %c0_7] : memref<64x128xf32, #tpu.memory_space<vmem>>, vector<64x128xf32>
    %11 = arith.truncf %9 : vector<64x128xf32> to vector<64x128xbf16>
    %c0_8 = arith.constant 0 : index
    %c0_9 = arith.constant 0 : index
    %12 = vector.load %arg6[%c0_8, %c0_9] : memref<128x128xbf16, #tpu.memory_space<vmem>>, vector<128x128xbf16>
    %cst = arith.constant dense<0.000000e+00> : vector<64x128xf32>
    %13 = tpu.matmul %11, %12, %cst {dimension_numbers = #tpu.dot_dimension_numbers<[1], [0], [0], [1], [0, 0, 1, 1], [], []>} : vector<64x128xbf16>, vector<128x128xbf16>, vector<64x128xf32> -> vector<64x128xf32>
    %14 = arith.addf %10, %13 : vector<64x128xf32>
    %c0_10 = arith.constant 0 : index
    %c0_11 = arith.constant 0 : index
    %15 = vector.load %arg13[%c0_10, %c0_11] : memref<64x128xf32, #tpu.memory_space<vmem>>, vector<64x128xf32>
    tpu.vector_store %arg13[%c0_10, %c0_11], %14 {strides = array<i32>} : memref<64x128xf32, #tpu.memory_space<vmem>>, vector<64x128xf32>,
    %c0_i32_12 = arith.constant 0 : i32
    %16 = arith.cmpi eq, %arg3, %c0_i32_12 : i32
    %17 = arith.extui %16 : i1 to i32
    %c0_i32_13 = arith.constant 0 : i32
    %18 = arith.cmpi ne, %17, %c0_i32_13 : i32
    scf.if %18 {
      %c0_14 = arith.constant 0 : index
      %c0_15 = arith.constant 0 : index
      %19 = vector.load %arg13[%c0_14, %c0_15] : memref<64x128xf32, #tpu.memory_space<vmem>>, vector<64x128xf32>
      %c0_16 = arith.constant 0 : index
      %c0_17 = arith.constant 0 : index
      %20 = vector.load %arg7[%c0_16, %c0_17] : memref<1x128xf32, #tpu.memory_space<vmem>>, vector<1x128xf32>
      %21 = vector.broadcast %20 : vector<1x128xf32> to vector<64x128xf32>
      %22 = arith.mulf %19, %21 : vector<64x128xf32>
      %c0_18 = arith.constant 0 : index
      %c0_19 = arith.constant 0 : index
      %23 = vector.load %arg8[%c0_18, %c0_19] : memref<1x128xf32, #tpu.memory_space<vmem>>, vector<1x128xf32>
      %24 = vector.broadcast %23 : vector<1x128xf32> to vector<64x128xf32>
      %25 = arith.addf %22, %24 : vector<64x128xf32>
      %c0_20 = arith.constant 0 : index
      %c0_21 = arith.constant 0 : index
      %c0_22 = arith.constant 0 : index
      %26 = vector.load %arg11[%c0_20, %c0_21, %c0_22] : memref<1x64x128xbf16, #tpu.memory_space<vmem>>, vector<1x64x128xbf16>
      %27 = vector.shape_cast %26 : vector<1x64x128xbf16> to vector<64x128xbf16>
      %28 = arith.extf %27 : vector<64x128xbf16> to vector<64x128xf32>
      %29 = arith.addf %25, %28 : vector<64x128xf32>
      %c0_23 = arith.constant 0 : index
      %c0_24 = arith.constant 0 : index
      %c0_25 = arith.constant 0 : index
      %30 = vector.load %arg9[%c0_23, %c0_24, %c0_25] : memref<1x1x128xf32, #tpu.memory_space<vmem>>, vector<1x1x128xf32>
      %31 = vector.shape_cast %30 : vector<1x1x128xf32> to vector<1x128xf32>
      %cst_26 = arith.constant 1.000000e+00 : f32
      %32 = vector.broadcast %cst_26 : f32 to vector<1x128xf32>
      %33 = arith.addf %32, %31 : vector<1x128xf32>
      %34 = vector.broadcast %33 : vector<1x128xf32> to vector<64x128xf32>
      %35 = arith.mulf %29, %34 : vector<64x128xf32>
      %c0_27 = arith.constant 0 : index
      %c0_28 = arith.constant 0 : index
      %c0_29 = arith.constant 0 : index
      %36 = vector.load %arg10[%c0_27, %c0_28, %c0_29] : memref<1x1x128xf32, #tpu.memory_space<vmem>>, vector<1x1x128xf32>
      %37 = vector.shape_cast %36 : vector<1x1x128xf32> to vector<1x128xf32>
      %38 = vector.broadcast %37 : vector<1x128xf32> to vector<64x128xf32>
      %39 = arith.addf %35, %38 : vector<64x128xf32>
      %40 = vector.shape_cast %39 : vector<64x128xf32> to vector<1x64x128xf32>
      %41 = arith.truncf %40 : vector<1x64x128xf32> to vector<1x64x128xbf16>
      %c0_30 = arith.constant 0 : index
      %c0_31 = arith.constant 0 : index
      %c0_32 = arith.constant 0 : index
      %42 = vector.load %arg12[%c0_30, %c0_31, %c0_32] : memref<1x64x128xbf16, #tpu.memory_space<vmem>>, vector<1x64x128xbf16>
      tpu.vector_store %arg12[%c0_30, %c0_31, %c0_32], %41 {strides = array<i32>} : memref<1x64x128xbf16, #tpu.memory_space<vmem>>, vector<1x64x128xbf16>,
    } else {
    }
    return
  }
  func.func @transform_0(%arg0: i32, %arg1: i32, %arg2: i32, %arg3: i32) -> (i32, i32, i32) {
    %c0_i32 = arith.constant 0 : i32
    return %arg0, %arg1, %arg3 : i32, i32, i32
  }
  func.func @transform_1(%arg0: i32, %arg1: i32, %arg2: i32, %arg3: i32) -> (i32, i32, i32) {
    %c0_i32 = arith.constant 0 : i32
    %c0_i32_0 = arith.constant 0 : i32
    return %arg0, %c0_i32, %arg3 : i32, i32, i32
  }
  func.func @transform_2(%arg0: i32, %arg1: i32, %arg2: i32, %arg3: i32) -> (i32, i32) {
    %c0_i32 = arith.constant 0 : i32
    return %arg3, %arg2 : i32, i32
  }
  func.func @transform_3(%arg0: i32, %arg1: i32, %arg2: i32, %arg3: i32) -> (i32, i32) {
    %c0_i32 = arith.constant 0 : i32
    %c0_i32_0 = arith.constant 0 : i32
    return %c0_i32, %arg2 : i32, i32
  }
  func.func @transform_4(%arg0: i32, %arg1: i32, %arg2: i32, %arg3: i32) -> (i32, i32) {
    %c0_i32 = arith.constant 0 : i32
    %c0_i32_0 = arith.constant 0 : i32
    return %c0_i32, %arg2 : i32, i32
  }
  func.func @transform_5(%arg0: i32, %arg1: i32, %arg2: i32, %arg3: i32) -> (i32, i32, i32) {
    %c0_i32 = arith.constant 0 : i32
    %c0_i32_0 = arith.constant 0 : i32
    return %arg0, %c0_i32, %arg2 : i32, i32, i32
  }
  func.func @transform_6(%arg0: i32, %arg1: i32, %arg2: i32, %arg3: i32) -> (i32, i32, i32) {
    %c0_i32 = arith.constant 0 : i32
    %c0_i32_0 = arith.constant 0 : i32
    return %arg0, %c0_i32, %arg2 : i32, i32, i32
  }
  func.func @transform_7(%arg0: i32, %arg1: i32, %arg2: i32, %arg3: i32) -> (i32, i32, i32) {
    %c0_i32 = arith.constant 0 : i32
    return %arg0, %arg1, %arg2 : i32, i32, i32
  }
  func.func @transform_8(%arg0: i32, %arg1: i32, %arg2: i32, %arg3: i32) -> (i32, i32, i32) {
    %c0_i32 = arith.constant 0 : i32
    return %arg0, %arg1, %arg2 : i32, i32, i32
  }
}

module attributes {stable_mosaic.version = 11 : i64} {
  func.func @_matmul_kernel(%arg0: i32, %arg1: i32, %arg2: i32, %arg3: memref<128x128xbf16, #tpu.memory_space<vmem>>, %arg4: memref<128x128xbf16, #tpu.memory_space<vmem>>, %arg5: memref<1x128xf32, #tpu.memory_space<vmem>>, %arg6: memref<1x128xf32, #tpu.memory_space<vmem>>, %arg7: memref<128x128xbf16, #tpu.memory_space<vmem>>, %arg8: memref<128x128xf32, #tpu.memory_space<vmem>>) attributes {dimension_semantics = [#tpu.dimension_semantics<parallel>, #tpu.dimension_semantics<parallel>, #tpu.dimension_semantics<arbitrary>], iteration_bounds = array<i64: 1, 1, 1>, scalar_prefetch = 0 : i64, scratch_operands = 1 : i64, tpu.core_type = #tpu.core_type<tc>, window_params = [{transform_indices = @transform_0, window_bounds = array<i64: 128, 128>}, {transform_indices = @transform_1, window_bounds = array<i64: 128, 128>}, {transform_indices = @transform_2, window_bounds = array<i64: 1, 128>}, {transform_indices = @transform_3, window_bounds = array<i64: 1, 128>}, {transform_indices = @transform_4, window_bounds = array<i64: 128, 128>}]} {
    %c0_i32 = arith.constant 0 : i32
    %0 = arith.cmpi eq, %arg2, %c0_i32 : i32
    %1 = arith.extui %0 : i1 to i32
    %c0_i32_0 = arith.constant 0 : i32
    %2 = arith.cmpi ne, %1, %c0_i32_0 : i32
    scf.if %2 {
      %cst_10 = arith.constant 0.000000e+00 : f32
      %12 = vector.broadcast %cst_10 : f32 to vector<128x128xf32>
      %c0_11 = arith.constant 0 : index
      %c0_12 = arith.constant 0 : index
      %13 = vector.load %arg8[%c0_11, %c0_12] : memref<128x128xf32, #tpu.memory_space<vmem>>, vector<128x128xf32>
      tpu.vector_store %arg8[%c0_11, %c0_12], %12 {strides = array<i32>} : memref<128x128xf32, #tpu.memory_space<vmem>>, vector<128x128xf32>,
    } else {
    }
    %c0 = arith.constant 0 : index
    %c0_1 = arith.constant 0 : index
    %3 = vector.load %arg8[%c0, %c0_1] : memref<128x128xf32, #tpu.memory_space<vmem>>, vector<128x128xf32>
    %c0_2 = arith.constant 0 : index
    %c0_3 = arith.constant 0 : index
    %4 = vector.load %arg3[%c0_2, %c0_3] : memref<128x128xbf16, #tpu.memory_space<vmem>>, vector<128x128xbf16>
    %c0_4 = arith.constant 0 : index
    %c0_5 = arith.constant 0 : index
    %5 = vector.load %arg4[%c0_4, %c0_5] : memref<128x128xbf16, #tpu.memory_space<vmem>>, vector<128x128xbf16>
    %cst = arith.constant dense<0.000000e+00> : vector<128x128xf32>
    %6 = tpu.matmul %4, %5, %cst {dimension_numbers = #tpu.dot_dimension_numbers<[1], [0], [0], [1], [0, 0, 1, 1], [], []>} : vector<128x128xbf16>, vector<128x128xbf16>, vector<128x128xf32> -> vector<128x128xf32>
    %7 = arith.addf %3, %6 : vector<128x128xf32>
    %c0_6 = arith.constant 0 : index
    %c0_7 = arith.constant 0 : index
    %8 = vector.load %arg8[%c0_6, %c0_7] : memref<128x128xf32, #tpu.memory_space<vmem>>, vector<128x128xf32>
    tpu.vector_store %arg8[%c0_6, %c0_7], %7 {strides = array<i32>} : memref<128x128xf32, #tpu.memory_space<vmem>>, vector<128x128xf32>,
    %c0_i32_8 = arith.constant 0 : i32
    %9 = arith.cmpi eq, %arg2, %c0_i32_8 : i32
    %10 = arith.extui %9 : i1 to i32
    %c0_i32_9 = arith.constant 0 : i32
    %11 = arith.cmpi ne, %10, %c0_i32_9 : i32
    scf.if %11 {
      %c0_10 = arith.constant 0 : index
      %c0_11 = arith.constant 0 : index
      %12 = vector.load %arg8[%c0_10, %c0_11] : memref<128x128xf32, #tpu.memory_space<vmem>>, vector<128x128xf32>
      %c0_12 = arith.constant 0 : index
      %c0_13 = arith.constant 0 : index
      %13 = vector.load %arg5[%c0_12, %c0_13] : memref<1x128xf32, #tpu.memory_space<vmem>>, vector<1x128xf32>
      %14 = vector.broadcast %13 : vector<1x128xf32> to vector<128x128xf32>
      %15 = arith.mulf %12, %14 : vector<128x128xf32>
      %c0_14 = arith.constant 0 : index
      %c0_15 = arith.constant 0 : index
      %16 = vector.load %arg6[%c0_14, %c0_15] : memref<1x128xf32, #tpu.memory_space<vmem>>, vector<1x128xf32>
      %17 = vector.broadcast %16 : vector<1x128xf32> to vector<128x128xf32>
      %18 = arith.addf %15, %17 : vector<128x128xf32>
      %19 = arith.negf %18 : vector<128x128xf32>
      %20 = math.exp %19 : vector<128x128xf32>
      %cst_16 = arith.constant 1.000000e+00 : f32
      %21 = vector.broadcast %cst_16 : f32 to vector<128x128xf32>
      %22 = arith.addf %21, %20 : vector<128x128xf32>
      %23 = arith.divf %21, %22 : vector<128x128xf32>
      %24 = arith.mulf %18, %23 : vector<128x128xf32>
      %25 = arith.truncf %24 : vector<128x128xf32> to vector<128x128xbf16>
      %c0_17 = arith.constant 0 : index
      %c0_18 = arith.constant 0 : index
      %26 = vector.load %arg7[%c0_17, %c0_18] : memref<128x128xbf16, #tpu.memory_space<vmem>>, vector<128x128xbf16>
      tpu.vector_store %arg7[%c0_17, %c0_18], %25 {strides = array<i32>} : memref<128x128xbf16, #tpu.memory_space<vmem>>, vector<128x128xbf16>,
    } else {
    }
    return
  }
  func.func @transform_0(%arg0: i32, %arg1: i32, %arg2: i32) -> (i32, i32) {
    %c0_i32 = arith.constant 0 : i32
    return %arg0, %arg2 : i32, i32
  }
  func.func @transform_1(%arg0: i32, %arg1: i32, %arg2: i32) -> (i32, i32) {
    %c0_i32 = arith.constant 0 : i32
    return %arg2, %arg1 : i32, i32
  }
  func.func @transform_2(%arg0: i32, %arg1: i32, %arg2: i32) -> (i32, i32) {
    %c0_i32 = arith.constant 0 : i32
    %c0_i32_0 = arith.constant 0 : i32
    return %c0_i32, %arg1 : i32, i32
  }
  func.func @transform_3(%arg0: i32, %arg1: i32, %arg2: i32) -> (i32, i32) {
    %c0_i32 = arith.constant 0 : i32
    %c0_i32_0 = arith.constant 0 : i32
    return %c0_i32, %arg1 : i32, i32
  }
  func.func @transform_4(%arg0: i32, %arg1: i32, %arg2: i32) -> (i32, i32) {
    %c0_i32 = arith.constant 0 : i32
    return %arg0, %arg1 : i32, i32
  }
}

module attributes {stable_mosaic.version = 11 : i64} {
  func.func @_proj_film_kernel(%arg0: i32, %arg1: i32, %arg2: i32, %arg3: i32, %arg4: memref<1x16x128xbf16, #tpu.memory_space<vmem>>, %arg5: memref<1x1x128xf32, #tpu.memory_space<vmem>>, %arg6: memref<128x128xbf16, #tpu.memory_space<vmem>>, %arg7: memref<1x128xf32, #tpu.memory_space<vmem>>, %arg8: memref<1x128xf32, #tpu.memory_space<vmem>>, %arg9: memref<1x1x128xf32, #tpu.memory_space<vmem>>, %arg10: memref<1x1x128xf32, #tpu.memory_space<vmem>>, %arg11: memref<1x16x128xbf16, #tpu.memory_space<vmem>>, %arg12: memref<16x128xf32, #tpu.memory_space<vmem>>) attributes {dimension_semantics = [#tpu.dimension_semantics<parallel>, #tpu.dimension_semantics<parallel>, #tpu.dimension_semantics<parallel>, #tpu.dimension_semantics<arbitrary>], iteration_bounds = array<i64: 2, 1, 1, 1>, scalar_prefetch = 0 : i64, scratch_operands = 1 : i64, tpu.core_type = #tpu.core_type<tc>, window_params = [{transform_indices = @transform_0, window_bounds = array<i64: 1, 16, 128>}, {transform_indices = @transform_1, window_bounds = array<i64: 1, 1, 128>}, {transform_indices = @transform_2, window_bounds = array<i64: 128, 128>}, {transform_indices = @transform_3, window_bounds = array<i64: 1, 128>}, {transform_indices = @transform_4, window_bounds = array<i64: 1, 128>}, {transform_indices = @transform_5, window_bounds = array<i64: 1, 1, 128>}, {transform_indices = @transform_6, window_bounds = array<i64: 1, 1, 128>}, {transform_indices = @transform_7, window_bounds = array<i64: 1, 16, 128>}]} {
    %c0_i32 = arith.constant 0 : i32
    %0 = arith.cmpi eq, %arg3, %c0_i32 : i32
    %1 = arith.extui %0 : i1 to i32
    %c0_i32_0 = arith.constant 0 : i32
    %2 = arith.cmpi ne, %1, %c0_i32_0 : i32
    scf.if %2 {
      %cst_14 = arith.constant 0.000000e+00 : f32
      %19 = vector.broadcast %cst_14 : f32 to vector<16x128xf32>
      %c0_15 = arith.constant 0 : index
      %c0_16 = arith.constant 0 : index
      %20 = vector.load %arg12[%c0_15, %c0_16] : memref<16x128xf32, #tpu.memory_space<vmem>>, vector<16x128xf32>
      tpu.vector_store %arg12[%c0_15, %c0_16], %19 {strides = array<i32>} : memref<16x128xf32, #tpu.memory_space<vmem>>, vector<16x128xf32>,
    } else {
    }
    %c0 = arith.constant 0 : index
    %c0_1 = arith.constant 0 : index
    %c0_2 = arith.constant 0 : index
    %3 = vector.load %arg4[%c0, %c0_1, %c0_2] : memref<1x16x128xbf16, #tpu.memory_space<vmem>>, vector<1x16x128xbf16>
    %4 = vector.shape_cast %3 : vector<1x16x128xbf16> to vector<16x128xbf16>
    %5 = arith.extf %4 : vector<16x128xbf16> to vector<16x128xf32>
    %c0_3 = arith.constant 0 : index
    %c0_4 = arith.constant 0 : index
    %c0_5 = arith.constant 0 : index
    %6 = vector.load %arg5[%c0_3, %c0_4, %c0_5] : memref<1x1x128xf32, #tpu.memory_space<vmem>>, vector<1x1x128xf32>
    %7 = vector.shape_cast %6 : vector<1x1x128xf32> to vector<1x128xf32>
    %8 = vector.broadcast %7 : vector<1x128xf32> to vector<16x128xf32>
    %9 = arith.mulf %5, %8 : vector<16x128xf32>
    %c0_6 = arith.constant 0 : index
    %c0_7 = arith.constant 0 : index
    %10 = vector.load %arg12[%c0_6, %c0_7] : memref<16x128xf32, #tpu.memory_space<vmem>>, vector<16x128xf32>
    %11 = arith.truncf %9 : vector<16x128xf32> to vector<16x128xbf16>
    %c0_8 = arith.constant 0 : index
    %c0_9 = arith.constant 0 : index
    %12 = vector.load %arg6[%c0_8, %c0_9] : memref<128x128xbf16, #tpu.memory_space<vmem>>, vector<128x128xbf16>
    %cst = arith.constant dense<0.000000e+00> : vector<16x128xf32>
    %13 = tpu.matmul %11, %12, %cst {dimension_numbers = #tpu.dot_dimension_numbers<[1], [0], [0], [1], [0, 0, 1, 1], [], []>} : vector<16x128xbf16>, vector<128x128xbf16>, vector<16x128xf32> -> vector<16x128xf32>
    %14 = arith.addf %10, %13 : vector<16x128xf32>
    %c0_10 = arith.constant 0 : index
    %c0_11 = arith.constant 0 : index
    %15 = vector.load %arg12[%c0_10, %c0_11] : memref<16x128xf32, #tpu.memory_space<vmem>>, vector<16x128xf32>
    tpu.vector_store %arg12[%c0_10, %c0_11], %14 {strides = array<i32>} : memref<16x128xf32, #tpu.memory_space<vmem>>, vector<16x128xf32>,
    %c0_i32_12 = arith.constant 0 : i32
    %16 = arith.cmpi eq, %arg3, %c0_i32_12 : i32
    %17 = arith.extui %16 : i1 to i32
    %c0_i32_13 = arith.constant 0 : i32
    %18 = arith.cmpi ne, %17, %c0_i32_13 : i32
    scf.if %18 {
      %c0_14 = arith.constant 0 : index
      %c0_15 = arith.constant 0 : index
      %19 = vector.load %arg12[%c0_14, %c0_15] : memref<16x128xf32, #tpu.memory_space<vmem>>, vector<16x128xf32>
      %c0_16 = arith.constant 0 : index
      %c0_17 = arith.constant 0 : index
      %20 = vector.load %arg7[%c0_16, %c0_17] : memref<1x128xf32, #tpu.memory_space<vmem>>, vector<1x128xf32>
      %21 = vector.broadcast %20 : vector<1x128xf32> to vector<16x128xf32>
      %22 = arith.mulf %19, %21 : vector<16x128xf32>
      %c0_18 = arith.constant 0 : index
      %c0_19 = arith.constant 0 : index
      %23 = vector.load %arg8[%c0_18, %c0_19] : memref<1x128xf32, #tpu.memory_space<vmem>>, vector<1x128xf32>
      %24 = vector.broadcast %23 : vector<1x128xf32> to vector<16x128xf32>
      %25 = arith.addf %22, %24 : vector<16x128xf32>
      %c0_20 = arith.constant 0 : index
      %c0_21 = arith.constant 0 : index
      %c0_22 = arith.constant 0 : index
      %26 = vector.load %arg9[%c0_20, %c0_21, %c0_22] : memref<1x1x128xf32, #tpu.memory_space<vmem>>, vector<1x1x128xf32>
      %27 = vector.shape_cast %26 : vector<1x1x128xf32> to vector<1x128xf32>
      %cst_23 = arith.constant 1.000000e+00 : f32
      %28 = vector.broadcast %cst_23 : f32 to vector<1x128xf32>
      %29 = arith.addf %28, %27 : vector<1x128xf32>
      %30 = vector.broadcast %29 : vector<1x128xf32> to vector<16x128xf32>
      %31 = arith.mulf %25, %30 : vector<16x128xf32>
      %c0_24 = arith.constant 0 : index
      %c0_25 = arith.constant 0 : index
      %c0_26 = arith.constant 0 : index
      %32 = vector.load %arg10[%c0_24, %c0_25, %c0_26] : memref<1x1x128xf32, #tpu.memory_space<vmem>>, vector<1x1x128xf32>
      %33 = vector.shape_cast %32 : vector<1x1x128xf32> to vector<1x128xf32>
      %34 = vector.broadcast %33 : vector<1x128xf32> to vector<16x128xf32>
      %35 = arith.addf %31, %34 : vector<16x128xf32>
      %36 = vector.shape_cast %35 : vector<16x128xf32> to vector<1x16x128xf32>
      %37 = arith.truncf %36 : vector<1x16x128xf32> to vector<1x16x128xbf16>
      %c0_27 = arith.constant 0 : index
      %c0_28 = arith.constant 0 : index
      %c0_29 = arith.constant 0 : index
      %38 = vector.load %arg11[%c0_27, %c0_28, %c0_29] : memref<1x16x128xbf16, #tpu.memory_space<vmem>>, vector<1x16x128xbf16>
      tpu.vector_store %arg11[%c0_27, %c0_28, %c0_29], %37 {strides = array<i32>} : memref<1x16x128xbf16, #tpu.memory_space<vmem>>, vector<1x16x128xbf16>,
    } else {
    }
    return
  }
  func.func @transform_0(%arg0: i32, %arg1: i32, %arg2: i32, %arg3: i32) -> (i32, i32, i32) {
    %c0_i32 = arith.constant 0 : i32
    return %arg0, %arg1, %arg3 : i32, i32, i32
  }
  func.func @transform_1(%arg0: i32, %arg1: i32, %arg2: i32, %arg3: i32) -> (i32, i32, i32) {
    %c0_i32 = arith.constant 0 : i32
    %c0_i32_0 = arith.constant 0 : i32
    return %arg0, %c0_i32, %arg3 : i32, i32, i32
  }
  func.func @transform_2(%arg0: i32, %arg1: i32, %arg2: i32, %arg3: i32) -> (i32, i32) {
    %c0_i32 = arith.constant 0 : i32
    return %arg3, %arg2 : i32, i32
  }
  func.func @transform_3(%arg0: i32, %arg1: i32, %arg2: i32, %arg3: i32) -> (i32, i32) {
    %c0_i32 = arith.constant 0 : i32
    %c0_i32_0 = arith.constant 0 : i32
    return %c0_i32, %arg2 : i32, i32
  }
  func.func @transform_4(%arg0: i32, %arg1: i32, %arg2: i32, %arg3: i32) -> (i32, i32) {
    %c0_i32 = arith.constant 0 : i32
    %c0_i32_0 = arith.constant 0 : i32
    return %c0_i32, %arg2 : i32, i32
  }
  func.func @transform_5(%arg0: i32, %arg1: i32, %arg2: i32, %arg3: i32) -> (i32, i32, i32) {
    %c0_i32 = arith.constant 0 : i32
    %c0_i32_0 = arith.constant 0 : i32
    return %arg0, %c0_i32, %arg2 : i32, i32, i32
  }
  func.func @transform_6(%arg0: i32, %arg1: i32, %arg2: i32, %arg3: i32) -> (i32, i32, i32) {
    %c0_i32 = arith.constant 0 : i32
    %c0_i32_0 = arith.constant 0 : i32
    return %arg0, %c0_i32, %arg2 : i32, i32, i32
  }
  func.func @transform_7(%arg0: i32, %arg1: i32, %arg2: i32, %arg3: i32) -> (i32, i32, i32) {
    %c0_i32 = arith.constant 0 : i32
    return %arg0, %arg1, %arg2 : i32, i32, i32
  }
}

module attributes {stable_mosaic.version = 11 : i64} {
  func.func @_dw_kernel(%arg0: i32, %arg1: i32, %arg2: memref<4x5x5x128xbf16, #tpu.memory_space<vmem>>, %arg3: memref<9x128xf32, #tpu.memory_space<vmem>>, %arg4: memref<1x128xf32, #tpu.memory_space<vmem>>, %arg5: memref<1x128xf32, #tpu.memory_space<vmem>>, %arg6: memref<1x4x4x128xbf16, #tpu.memory_space<vmem>>, %arg7: memref<1x1x128xf32, #tpu.memory_space<vmem>>) attributes {dimension_semantics = [#tpu.dimension_semantics<parallel>, #tpu.dimension_semantics<parallel>], iteration_bounds = array<i64: 2, 1>, scalar_prefetch = 0 : i64, scratch_operands = 0 : i64, tpu.core_type = #tpu.core_type<tc>, window_params = [{transform_indices = @transform_0, window_bounds = array<i64: 4, 5, 5, 128>}, {transform_indices = @transform_1, window_bounds = array<i64: 9, 128>}, {transform_indices = @transform_2, window_bounds = array<i64: 1, 128>}, {transform_indices = @transform_3, window_bounds = array<i64: 1, 128>}, {transform_indices = @transform_4, window_bounds = array<i64: 1, 4, 4, 128>}, {transform_indices = @transform_5, window_bounds = array<i64: 1, 1, 128>}]} {
    %cst = arith.constant 0.000000e+00 : f32
    %0 = vector.broadcast %cst : f32 to vector<4x4x128xf32>
    %c0 = arith.constant 0 : index
    %c0_0 = arith.constant 0 : index
    %c0_1 = arith.constant 0 : index
    %c0_2 = arith.constant 0 : index
    %1 = vector.load %arg2[%c0, %c0_0, %c0_1, %c0_2] : memref<4x5x5x128xbf16, #tpu.memory_space<vmem>>, vector<1x4x4x128xbf16>
    %2 = vector.shape_cast %1 : vector<1x4x4x128xbf16> to vector<4x4x128xbf16>
    %3 = arith.extf %2 : vector<4x4x128xbf16> to vector<4x4x128xf32>
    %c0_3 = arith.constant 0 : index
    %c0_4 = arith.constant 0 : index
    %4 = vector.load %arg3[%c0_3, %c0_4] : memref<9x128xf32, #tpu.memory_space<vmem>>, vector<1x128xf32>
    %5 = vector.shape_cast %4 : vector<1x128xf32> to vector<128xf32>
    %6 = vector.shape_cast %5 : vector<128xf32> to vector<1x1x128xf32>
    %7 = vector.broadcast %6 : vector<1x1x128xf32> to vector<4x4x128xf32>
    %8 = arith.mulf %3, %7 : vector<4x4x128xf32>
    %9 = arith.addf %0, %8 : vector<4x4x128xf32>
    %c1 = arith.constant 1 : index
    %c0_5 = arith.constant 0 : index
    %c0_6 = arith.constant 0 : index
    %c0_7 = arith.constant 0 : index
    %10 = vector.load %arg2[%c1, %c0_5, %c0_6, %c0_7] : memref<4x5x5x128xbf16, #tpu.memory_space<vmem>>, vector<1x4x4x128xbf16>
    %11 = vector.shape_cast %10 : vector<1x4x4x128xbf16> to vector<4x4x128xbf16>
    %12 = arith.extf %11 : vector<4x4x128xbf16> to vector<4x4x128xf32>
    %c1_8 = arith.constant 1 : index
    %c0_9 = arith.constant 0 : index
    %13 = vector.load %arg3[%c1_8, %c0_9] : memref<9x128xf32, #tpu.memory_space<vmem>>, vector<1x128xf32>
    %14 = vector.shape_cast %13 : vector<1x128xf32> to vector<128xf32>
    %15 = vector.shape_cast %14 : vector<128xf32> to vector<1x1x128xf32>
    %16 = vector.broadcast %15 : vector<1x1x128xf32> to vector<4x4x128xf32>
    %17 = arith.mulf %12, %16 : vector<4x4x128xf32>
    %18 = arith.addf %9, %17 : vector<4x4x128xf32>
    %c0_10 = arith.constant 0 : index
    %c0_11 = arith.constant 0 : index
    %c1_12 = arith.constant 1 : index
    %c0_13 = arith.constant 0 : index
    %19 = vector.load %arg2[%c0_10, %c0_11, %c1_12, %c0_13] : memref<4x5x5x128xbf16, #tpu.memory_space<vmem>>, vector<1x4x4x128xbf16>
    %20 = vector.shape_cast %19 : vector<1x4x4x128xbf16> to vector<4x4x128xbf16>
    %21 = arith.extf %20 : vector<4x4x128xbf16> to vector<4x4x128xf32>
    %c2 = arith.constant 2 : index
    %c0_14 = arith.constant 0 : index
    %22 = vector.load %arg3[%c2, %c0_14] : memref<9x128xf32, #tpu.memory_space<vmem>>, vector<1x128xf32>
    %23 = vector.shape_cast %22 : vector<1x128xf32> to vector<128xf32>
    %24 = vector.shape_cast %23 : vector<128xf32> to vector<1x1x128xf32>
    %25 = vector.broadcast %24 : vector<1x1x128xf32> to vector<4x4x128xf32>
    %26 = arith.mulf %21, %25 : vector<4x4x128xf32>
    %27 = arith.addf %18, %26 : vector<4x4x128xf32>
    %c2_15 = arith.constant 2 : index
    %c0_16 = arith.constant 0 : index
    %c0_17 = arith.constant 0 : index
    %c0_18 = arith.constant 0 : index
    %28 = vector.load %arg2[%c2_15, %c0_16, %c0_17, %c0_18] : memref<4x5x5x128xbf16, #tpu.memory_space<vmem>>, vector<1x4x4x128xbf16>
    %29 = vector.shape_cast %28 : vector<1x4x4x128xbf16> to vector<4x4x128xbf16>
    %30 = arith.extf %29 : vector<4x4x128xbf16> to vector<4x4x128xf32>
    %c3 = arith.constant 3 : index
    %c0_19 = arith.constant 0 : index
    %31 = vector.load %arg3[%c3, %c0_19] : memref<9x128xf32, #tpu.memory_space<vmem>>, vector<1x128xf32>
    %32 = vector.shape_cast %31 : vector<1x128xf32> to vector<128xf32>
    %33 = vector.shape_cast %32 : vector<128xf32> to vector<1x1x128xf32>
    %34 = vector.broadcast %33 : vector<1x1x128xf32> to vector<4x4x128xf32>
    %35 = arith.mulf %30, %34 : vector<4x4x128xf32>
    %36 = arith.addf %27, %35 : vector<4x4x128xf32>
    %c3_20 = arith.constant 3 : index
    %c0_21 = arith.constant 0 : index
    %c0_22 = arith.constant 0 : index
    %c0_23 = arith.constant 0 : index
    %37 = vector.load %arg2[%c3_20, %c0_21, %c0_22, %c0_23] : memref<4x5x5x128xbf16, #tpu.memory_space<vmem>>, vector<1x4x4x128xbf16>
    %38 = vector.shape_cast %37 : vector<1x4x4x128xbf16> to vector<4x4x128xbf16>
    %39 = arith.extf %38 : vector<4x4x128xbf16> to vector<4x4x128xf32>
    %c4 = arith.constant 4 : index
    %c0_24 = arith.constant 0 : index
    %40 = vector.load %arg3[%c4, %c0_24] : memref<9x128xf32, #tpu.memory_space<vmem>>, vector<1x128xf32>
    %41 = vector.shape_cast %40 : vector<1x128xf32> to vector<128xf32>
    %42 = vector.shape_cast %41 : vector<128xf32> to vector<1x1x128xf32>
    %43 = vector.broadcast %42 : vector<1x1x128xf32> to vector<4x4x128xf32>
    %44 = arith.mulf %39, %43 : vector<4x4x128xf32>
    %45 = arith.addf %36, %44 : vector<4x4x128xf32>
    %c2_25 = arith.constant 2 : index
    %c0_26 = arith.constant 0 : index
    %c1_27 = arith.constant 1 : index
    %c0_28 = arith.constant 0 : index
    %46 = vector.load %arg2[%c2_25, %c0_26, %c1_27, %c0_28] : memref<4x5x5x128xbf16, #tpu.memory_space<vmem>>, vector<1x4x4x128xbf16>
    %47 = vector.shape_cast %46 : vector<1x4x4x128xbf16> to vector<4x4x128xbf16>
    %48 = arith.extf %47 : vector<4x4x128xbf16> to vector<4x4x128xf32>
    %c5 = arith.constant 5 : index
    %c0_29 = arith.constant 0 : index
    %49 = vector.load %arg3[%c5, %c0_29] : memref<9x128xf32, #tpu.memory_space<vmem>>, vector<1x128xf32>
    %50 = vector.shape_cast %49 : vector<1x128xf32> to vector<128xf32>
    %51 = vector.shape_cast %50 : vector<128xf32> to vector<1x1x128xf32>
    %52 = vector.broadcast %51 : vector<1x1x128xf32> to vector<4x4x128xf32>
    %53 = arith.mulf %48, %52 : vector<4x4x128xf32>
    %54 = arith.addf %45, %53 : vector<4x4x128xf32>
    %c0_30 = arith.constant 0 : index
    %c1_31 = arith.constant 1 : index
    %c0_32 = arith.constant 0 : index
    %c0_33 = arith.constant 0 : index
    %55 = vector.load %arg2[%c0_30, %c1_31, %c0_32, %c0_33] : memref<4x5x5x128xbf16, #tpu.memory_space<vmem>>, vector<1x4x4x128xbf16>
    %56 = vector.shape_cast %55 : vector<1x4x4x128xbf16> to vector<4x4x128xbf16>
    %57 = arith.extf %56 : vector<4x4x128xbf16> to vector<4x4x128xf32>
    %c6 = arith.constant 6 : index
    %c0_34 = arith.constant 0 : index
    %58 = vector.load %arg3[%c6, %c0_34] : memref<9x128xf32, #tpu.memory_space<vmem>>, vector<1x128xf32>
    %59 = vector.shape_cast %58 : vector<1x128xf32> to vector<128xf32>
    %60 = vector.shape_cast %59 : vector<128xf32> to vector<1x1x128xf32>
    %61 = vector.broadcast %60 : vector<1x1x128xf32> to vector<4x4x128xf32>
    %62 = arith.mulf %57, %61 : vector<4x4x128xf32>
    %63 = arith.addf %54, %62 : vector<4x4x128xf32>
    %c1_35 = arith.constant 1 : index
    %c1_36 = arith.constant 1 : index
    %c0_37 = arith.constant 0 : index
    %c0_38 = arith.constant 0 : index
    %64 = vector.load %arg2[%c1_35, %c1_36, %c0_37, %c0_38] : memref<4x5x5x128xbf16, #tpu.memory_space<vmem>>, vector<1x4x4x128xbf16>
    %65 = vector.shape_cast %64 : vector<1x4x4x128xbf16> to vector<4x4x128xbf16>
    %66 = arith.extf %65 : vector<4x4x128xbf16> to vector<4x4x128xf32>
    %c7 = arith.constant 7 : index
    %c0_39 = arith.constant 0 : index
    %67 = vector.load %arg3[%c7, %c0_39] : memref<9x128xf32, #tpu.memory_space<vmem>>, vector<1x128xf32>
    %68 = vector.shape_cast %67 : vector<1x128xf32> to vector<128xf32>
    %69 = vector.shape_cast %68 : vector<128xf32> to vector<1x1x128xf32>
    %70 = vector.broadcast %69 : vector<1x1x128xf32> to vector<4x4x128xf32>
    %71 = arith.mulf %66, %70 : vector<4x4x128xf32>
    %72 = arith.addf %63, %71 : vector<4x4x128xf32>
    %c0_40 = arith.constant 0 : index
    %c1_41 = arith.constant 1 : index
    %c1_42 = arith.constant 1 : index
    %c0_43 = arith.constant 0 : index
    %73 = vector.load %arg2[%c0_40, %c1_41, %c1_42, %c0_43] : memref<4x5x5x128xbf16, #tpu.memory_space<vmem>>, vector<1x4x4x128xbf16>
    %74 = vector.shape_cast %73 : vector<1x4x4x128xbf16> to vector<4x4x128xbf16>
    %75 = arith.extf %74 : vector<4x4x128xbf16> to vector<4x4x128xf32>
    %c8 = arith.constant 8 : index
    %c0_44 = arith.constant 0 : index
    %76 = vector.load %arg3[%c8, %c0_44] : memref<9x128xf32, #tpu.memory_space<vmem>>, vector<1x128xf32>
    %77 = vector.shape_cast %76 : vector<1x128xf32> to vector<128xf32>
    %78 = vector.shape_cast %77 : vector<128xf32> to vector<1x1x128xf32>
    %79 = vector.broadcast %78 : vector<1x1x128xf32> to vector<4x4x128xf32>
    %80 = arith.mulf %75, %79 : vector<4x4x128xf32>
    %81 = arith.addf %72, %80 : vector<4x4x128xf32>
    %c0_45 = arith.constant 0 : index
    %c0_46 = arith.constant 0 : index
    %82 = vector.load %arg4[%c0_45, %c0_46] : memref<1x128xf32, #tpu.memory_space<vmem>>, vector<1x128xf32>
    %83 = vector.shape_cast %82 : vector<1x128xf32> to vector<1x1x128xf32>
    %84 = vector.broadcast %83 : vector<1x1x128xf32> to vector<4x4x128xf32>
    %85 = arith.mulf %81, %84 : vector<4x4x128xf32>
    %c0_47 = arith.constant 0 : index
    %c0_48 = arith.constant 0 : index
    %86 = vector.load %arg5[%c0_47, %c0_48] : memref<1x128xf32, #tpu.memory_space<vmem>>, vector<1x128xf32>
    %87 = vector.shape_cast %86 : vector<1x128xf32> to vector<1x1x128xf32>
    %88 = vector.broadcast %87 : vector<1x1x128xf32> to vector<4x4x128xf32>
    %89 = arith.addf %85, %88 : vector<4x4x128xf32>
    %90 = arith.negf %89 : vector<4x4x128xf32>
    %91 = math.exp %90 : vector<4x4x128xf32>
    %cst_49 = arith.constant 1.000000e+00 : f32
    %92 = vector.broadcast %cst_49 : f32 to vector<4x4x128xf32>
    %93 = arith.addf %92, %91 : vector<4x4x128xf32>
    %94 = arith.divf %92, %93 : vector<4x4x128xf32>
    %95 = arith.mulf %89, %94 : vector<4x4x128xf32>
    %96 = vector.shape_cast %95 : vector<4x4x128xf32> to vector<1x4x4x128xf32>
    %97 = arith.truncf %96 : vector<1x4x4x128xf32> to vector<1x4x4x128xbf16>
    %c0_50 = arith.constant 0 : index
    %c0_51 = arith.constant 0 : index
    %c0_52 = arith.constant 0 : index
    %c0_53 = arith.constant 0 : index
    %98 = vector.load %arg6[%c0_50, %c0_51, %c0_52, %c0_53] : memref<1x4x4x128xbf16, #tpu.memory_space<vmem>>, vector<1x4x4x128xbf16>
    tpu.vector_store %arg6[%c0_50, %c0_51, %c0_52, %c0_53], %97 {strides = array<i32>} : memref<1x4x4x128xbf16, #tpu.memory_space<vmem>>, vector<1x4x4x128xbf16>,
    %cst_54 = arith.constant dense<0.000000e+00> : vector<128xf32>
    %99 = vector.multi_reduction <add>, %95, %cst_54 [0, 1] : vector<4x4x128xf32> to vector<128xf32>
    %cst_55 = arith.constant 1.600000e+01 : f32
    %100 = vector.broadcast %cst_55 : f32 to vector<128xf32>
    %101 = arith.divf %99, %100 : vector<128xf32>
    %102 = vector.shape_cast %101 : vector<128xf32> to vector<1x1x128xf32>
    %c0_56 = arith.constant 0 : index
    %c0_57 = arith.constant 0 : index
    %c0_58 = arith.constant 0 : index
    %103 = vector.load %arg7[%c0_56, %c0_57, %c0_58] : memref<1x1x128xf32, #tpu.memory_space<vmem>>, vector<1x1x128xf32>
    tpu.vector_store %arg7[%c0_56, %c0_57, %c0_58], %102 {strides = array<i32>} : memref<1x1x128xf32, #tpu.memory_space<vmem>>, vector<1x1x128xf32>,
    return
  }
  func.func @transform_0(%arg0: i32, %arg1: i32) -> (i32, i32, i32, i32) {
    %c0_i32 = arith.constant 0 : i32
    %c0_i32_0 = arith.constant 0 : i32
    %c0_i32_1 = arith.constant 0 : i32
    return %arg0, %c0_i32, %c0_i32_0, %arg1 : i32, i32, i32, i32
  }
  func.func @transform_1(%arg0: i32, %arg1: i32) -> (i32, i32) {
    %c0_i32 = arith.constant 0 : i32
    %c0_i32_0 = arith.constant 0 : i32
    return %c0_i32, %arg1 : i32, i32
  }
  func.func @transform_2(%arg0: i32, %arg1: i32) -> (i32, i32) {
    %c0_i32 = arith.constant 0 : i32
    %c0_i32_0 = arith.constant 0 : i32
    return %c0_i32, %arg1 : i32, i32
  }
  func.func @transform_3(%arg0: i32, %arg1: i32) -> (i32, i32) {
    %c0_i32 = arith.constant 0 : i32
    %c0_i32_0 = arith.constant 0 : i32
    return %c0_i32, %arg1 : i32, i32
  }
  func.func @transform_4(%arg0: i32, %arg1: i32) -> (i32, i32, i32, i32) {
    %c0_i32 = arith.constant 0 : i32
    %c0_i32_0 = arith.constant 0 : i32
    %c0_i32_1 = arith.constant 0 : i32
    return %arg0, %c0_i32, %c0_i32_0, %arg1 : i32, i32, i32, i32
  }
  func.func @transform_5(%arg0: i32, %arg1: i32) -> (i32, i32, i32) {
    %c0_i32 = arith.constant 0 : i32
    %c0_i32_0 = arith.constant 0 : i32
    return %arg0, %c0_i32, %arg1 : i32, i32, i32
  }
}

module attributes {stable_mosaic.version = 11 : i64} {
  func.func @_matmul_kernel(%arg0: i32, %arg1: i32, %arg2: i32, %arg3: memref<32x128xbf16, #tpu.memory_space<vmem>>, %arg4: memref<128x128xbf16, #tpu.memory_space<vmem>>, %arg5: memref<1x128xf32, #tpu.memory_space<vmem>>, %arg6: memref<1x128xf32, #tpu.memory_space<vmem>>, %arg7: memref<32x128xbf16, #tpu.memory_space<vmem>>, %arg8: memref<32x128xf32, #tpu.memory_space<vmem>>) attributes {dimension_semantics = [#tpu.dimension_semantics<parallel>, #tpu.dimension_semantics<parallel>, #tpu.dimension_semantics<arbitrary>], iteration_bounds = array<i64: 1, 1, 1>, scalar_prefetch = 0 : i64, scratch_operands = 1 : i64, tpu.core_type = #tpu.core_type<tc>, window_params = [{transform_indices = @transform_0, window_bounds = array<i64: 32, 128>}, {transform_indices = @transform_1, window_bounds = array<i64: 128, 128>}, {transform_indices = @transform_2, window_bounds = array<i64: 1, 128>}, {transform_indices = @transform_3, window_bounds = array<i64: 1, 128>}, {transform_indices = @transform_4, window_bounds = array<i64: 32, 128>}]} {
    %c0_i32 = arith.constant 0 : i32
    %0 = arith.cmpi eq, %arg2, %c0_i32 : i32
    %1 = arith.extui %0 : i1 to i32
    %c0_i32_0 = arith.constant 0 : i32
    %2 = arith.cmpi ne, %1, %c0_i32_0 : i32
    scf.if %2 {
      %cst_10 = arith.constant 0.000000e+00 : f32
      %12 = vector.broadcast %cst_10 : f32 to vector<32x128xf32>
      %c0_11 = arith.constant 0 : index
      %c0_12 = arith.constant 0 : index
      %13 = vector.load %arg8[%c0_11, %c0_12] : memref<32x128xf32, #tpu.memory_space<vmem>>, vector<32x128xf32>
      tpu.vector_store %arg8[%c0_11, %c0_12], %12 {strides = array<i32>} : memref<32x128xf32, #tpu.memory_space<vmem>>, vector<32x128xf32>,
    } else {
    }
    %c0 = arith.constant 0 : index
    %c0_1 = arith.constant 0 : index
    %3 = vector.load %arg8[%c0, %c0_1] : memref<32x128xf32, #tpu.memory_space<vmem>>, vector<32x128xf32>
    %c0_2 = arith.constant 0 : index
    %c0_3 = arith.constant 0 : index
    %4 = vector.load %arg3[%c0_2, %c0_3] : memref<32x128xbf16, #tpu.memory_space<vmem>>, vector<32x128xbf16>
    %c0_4 = arith.constant 0 : index
    %c0_5 = arith.constant 0 : index
    %5 = vector.load %arg4[%c0_4, %c0_5] : memref<128x128xbf16, #tpu.memory_space<vmem>>, vector<128x128xbf16>
    %cst = arith.constant dense<0.000000e+00> : vector<32x128xf32>
    %6 = tpu.matmul %4, %5, %cst {dimension_numbers = #tpu.dot_dimension_numbers<[1], [0], [0], [1], [0, 0, 1, 1], [], []>} : vector<32x128xbf16>, vector<128x128xbf16>, vector<32x128xf32> -> vector<32x128xf32>
    %7 = arith.addf %3, %6 : vector<32x128xf32>
    %c0_6 = arith.constant 0 : index
    %c0_7 = arith.constant 0 : index
    %8 = vector.load %arg8[%c0_6, %c0_7] : memref<32x128xf32, #tpu.memory_space<vmem>>, vector<32x128xf32>
    tpu.vector_store %arg8[%c0_6, %c0_7], %7 {strides = array<i32>} : memref<32x128xf32, #tpu.memory_space<vmem>>, vector<32x128xf32>,
    %c0_i32_8 = arith.constant 0 : i32
    %9 = arith.cmpi eq, %arg2, %c0_i32_8 : i32
    %10 = arith.extui %9 : i1 to i32
    %c0_i32_9 = arith.constant 0 : i32
    %11 = arith.cmpi ne, %10, %c0_i32_9 : i32
    scf.if %11 {
      %c0_10 = arith.constant 0 : index
      %c0_11 = arith.constant 0 : index
      %12 = vector.load %arg8[%c0_10, %c0_11] : memref<32x128xf32, #tpu.memory_space<vmem>>, vector<32x128xf32>
      %c0_12 = arith.constant 0 : index
      %c0_13 = arith.constant 0 : index
      %13 = vector.load %arg5[%c0_12, %c0_13] : memref<1x128xf32, #tpu.memory_space<vmem>>, vector<1x128xf32>
      %14 = vector.broadcast %13 : vector<1x128xf32> to vector<32x128xf32>
      %15 = arith.mulf %12, %14 : vector<32x128xf32>
      %c0_14 = arith.constant 0 : index
      %c0_15 = arith.constant 0 : index
      %16 = vector.load %arg6[%c0_14, %c0_15] : memref<1x128xf32, #tpu.memory_space<vmem>>, vector<1x128xf32>
      %17 = vector.broadcast %16 : vector<1x128xf32> to vector<32x128xf32>
      %18 = arith.addf %15, %17 : vector<32x128xf32>
      %19 = arith.negf %18 : vector<32x128xf32>
      %20 = math.exp %19 : vector<32x128xf32>
      %cst_16 = arith.constant 1.000000e+00 : f32
      %21 = vector.broadcast %cst_16 : f32 to vector<32x128xf32>
      %22 = arith.addf %21, %20 : vector<32x128xf32>
      %23 = arith.divf %21, %22 : vector<32x128xf32>
      %24 = arith.mulf %18, %23 : vector<32x128xf32>
      %25 = arith.truncf %24 : vector<32x128xf32> to vector<32x128xbf16>
      %c0_17 = arith.constant 0 : index
      %c0_18 = arith.constant 0 : index
      %26 = vector.load %arg7[%c0_17, %c0_18] : memref<32x128xbf16, #tpu.memory_space<vmem>>, vector<32x128xbf16>
      tpu.vector_store %arg7[%c0_17, %c0_18], %25 {strides = array<i32>} : memref<32x128xbf16, #tpu.memory_space<vmem>>, vector<32x128xbf16>,
    } else {
    }
    return
  }
  func.func @transform_0(%arg0: i32, %arg1: i32, %arg2: i32) -> (i32, i32) {
    %c0_i32 = arith.constant 0 : i32
    return %arg0, %arg2 : i32, i32
  }
  func.func @transform_1(%arg0: i32, %arg1: i32, %arg2: i32) -> (i32, i32) {
    %c0_i32 = arith.constant 0 : i32
    return %arg2, %arg1 : i32, i32
  }
  func.func @transform_2(%arg0: i32, %arg1: i32, %arg2: i32) -> (i32, i32) {
    %c0_i32 = arith.constant 0 : i32
    %c0_i32_0 = arith.constant 0 : i32
    return %c0_i32, %arg1 : i32, i32
  }
  func.func @transform_3(%arg0: i32, %arg1: i32, %arg2: i32) -> (i32, i32) {
    %c0_i32 = arith.constant 0 : i32
    %c0_i32_0 = arith.constant 0 : i32
    return %c0_i32, %arg1 : i32, i32
  }
  func.func @transform_4(%arg0: i32, %arg1: i32, %arg2: i32) -> (i32, i32) {
    %c0_i32 = arith.constant 0 : i32
    return %arg0, %arg1 : i32, i32
  }
}

module attributes {stable_mosaic.version = 11 : i64} {
  func.func @_dw_kernel(%arg0: i32, %arg1: i32, %arg2: memref<1x6x6x128xbf16, #tpu.memory_space<vmem>>, %arg3: memref<9x128xf32, #tpu.memory_space<vmem>>, %arg4: memref<1x128xf32, #tpu.memory_space<vmem>>, %arg5: memref<1x128xf32, #tpu.memory_space<vmem>>, %arg6: memref<1x4x4x128xbf16, #tpu.memory_space<vmem>>, %arg7: memref<1x1x128xf32, #tpu.memory_space<vmem>>) attributes {dimension_semantics = [#tpu.dimension_semantics<parallel>, #tpu.dimension_semantics<parallel>], iteration_bounds = array<i64: 2, 1>, scalar_prefetch = 0 : i64, scratch_operands = 0 : i64, tpu.core_type = #tpu.core_type<tc>, window_params = [{transform_indices = @transform_0, window_bounds = array<i64: 1, 6, 6, 128>}, {transform_indices = @transform_1, window_bounds = array<i64: 9, 128>}, {transform_indices = @transform_2, window_bounds = array<i64: 1, 128>}, {transform_indices = @transform_3, window_bounds = array<i64: 1, 128>}, {transform_indices = @transform_4, window_bounds = array<i64: 1, 4, 4, 128>}, {transform_indices = @transform_5, window_bounds = array<i64: 1, 1, 128>}]} {
    %cst = arith.constant 0.000000e+00 : f32
    %0 = vector.broadcast %cst : f32 to vector<4x4x128xf32>
    %c0 = arith.constant 0 : index
    %c0_0 = arith.constant 0 : index
    %c0_1 = arith.constant 0 : index
    %c0_2 = arith.constant 0 : index
    %1 = vector.load %arg2[%c0, %c0_0, %c0_1, %c0_2] : memref<1x6x6x128xbf16, #tpu.memory_space<vmem>>, vector<1x4x4x128xbf16>
    %2 = vector.shape_cast %1 : vector<1x4x4x128xbf16> to vector<4x4x128xbf16>
    %3 = arith.extf %2 : vector<4x4x128xbf16> to vector<4x4x128xf32>
    %c0_3 = arith.constant 0 : index
    %c0_4 = arith.constant 0 : index
    %4 = vector.load %arg3[%c0_3, %c0_4] : memref<9x128xf32, #tpu.memory_space<vmem>>, vector<1x128xf32>
    %5 = vector.shape_cast %4 : vector<1x128xf32> to vector<128xf32>
    %6 = vector.shape_cast %5 : vector<128xf32> to vector<1x1x128xf32>
    %7 = vector.broadcast %6 : vector<1x1x128xf32> to vector<4x4x128xf32>
    %8 = arith.mulf %3, %7 : vector<4x4x128xf32>
    %9 = arith.addf %0, %8 : vector<4x4x128xf32>
    %c0_5 = arith.constant 0 : index
    %c0_6 = arith.constant 0 : index
    %c1 = arith.constant 1 : index
    %c0_7 = arith.constant 0 : index
    %10 = vector.load %arg2[%c0_5, %c0_6, %c1, %c0_7] : memref<1x6x6x128xbf16, #tpu.memory_space<vmem>>, vector<1x4x4x128xbf16>
    %11 = vector.shape_cast %10 : vector<1x4x4x128xbf16> to vector<4x4x128xbf16>
    %12 = arith.extf %11 : vector<4x4x128xbf16> to vector<4x4x128xf32>
    %c1_8 = arith.constant 1 : index
    %c0_9 = arith.constant 0 : index
    %13 = vector.load %arg3[%c1_8, %c0_9] : memref<9x128xf32, #tpu.memory_space<vmem>>, vector<1x128xf32>
    %14 = vector.shape_cast %13 : vector<1x128xf32> to vector<128xf32>
    %15 = vector.shape_cast %14 : vector<128xf32> to vector<1x1x128xf32>
    %16 = vector.broadcast %15 : vector<1x1x128xf32> to vector<4x4x128xf32>
    %17 = arith.mulf %12, %16 : vector<4x4x128xf32>
    %18 = arith.addf %9, %17 : vector<4x4x128xf32>
    %c0_10 = arith.constant 0 : index
    %c0_11 = arith.constant 0 : index
    %c2 = arith.constant 2 : index
    %c0_12 = arith.constant 0 : index
    %19 = vector.load %arg2[%c0_10, %c0_11, %c2, %c0_12] : memref<1x6x6x128xbf16, #tpu.memory_space<vmem>>, vector<1x4x4x128xbf16>
    %20 = vector.shape_cast %19 : vector<1x4x4x128xbf16> to vector<4x4x128xbf16>
    %21 = arith.extf %20 : vector<4x4x128xbf16> to vector<4x4x128xf32>
    %c2_13 = arith.constant 2 : index
    %c0_14 = arith.constant 0 : index
    %22 = vector.load %arg3[%c2_13, %c0_14] : memref<9x128xf32, #tpu.memory_space<vmem>>, vector<1x128xf32>
    %23 = vector.shape_cast %22 : vector<1x128xf32> to vector<128xf32>
    %24 = vector.shape_cast %23 : vector<128xf32> to vector<1x1x128xf32>
    %25 = vector.broadcast %24 : vector<1x1x128xf32> to vector<4x4x128xf32>
    %26 = arith.mulf %21, %25 : vector<4x4x128xf32>
    %27 = arith.addf %18, %26 : vector<4x4x128xf32>
    %c0_15 = arith.constant 0 : index
    %c1_16 = arith.constant 1 : index
    %c0_17 = arith.constant 0 : index
    %c0_18 = arith.constant 0 : index
    %28 = vector.load %arg2[%c0_15, %c1_16, %c0_17, %c0_18] : memref<1x6x6x128xbf16, #tpu.memory_space<vmem>>, vector<1x4x4x128xbf16>
    %29 = vector.shape_cast %28 : vector<1x4x4x128xbf16> to vector<4x4x128xbf16>
    %30 = arith.extf %29 : vector<4x4x128xbf16> to vector<4x4x128xf32>
    %c3 = arith.constant 3 : index
    %c0_19 = arith.constant 0 : index
    %31 = vector.load %arg3[%c3, %c0_19] : memref<9x128xf32, #tpu.memory_space<vmem>>, vector<1x128xf32>
    %32 = vector.shape_cast %31 : vector<1x128xf32> to vector<128xf32>
    %33 = vector.shape_cast %32 : vector<128xf32> to vector<1x1x128xf32>
    %34 = vector.broadcast %33 : vector<1x1x128xf32> to vector<4x4x128xf32>
    %35 = arith.mulf %30, %34 : vector<4x4x128xf32>
    %36 = arith.addf %27, %35 : vector<4x4x128xf32>
    %c0_20 = arith.constant 0 : index
    %c1_21 = arith.constant 1 : index
    %c1_22 = arith.constant 1 : index
    %c0_23 = arith.constant 0 : index
    %37 = vector.load %arg2[%c0_20, %c1_21, %c1_22, %c0_23] : memref<1x6x6x128xbf16, #tpu.memory_space<vmem>>, vector<1x4x4x128xbf16>
    %38 = vector.shape_cast %37 : vector<1x4x4x128xbf16> to vector<4x4x128xbf16>
    %39 = arith.extf %38 : vector<4x4x128xbf16> to vector<4x4x128xf32>
    %c4 = arith.constant 4 : index
    %c0_24 = arith.constant 0 : index
    %40 = vector.load %arg3[%c4, %c0_24] : memref<9x128xf32, #tpu.memory_space<vmem>>, vector<1x128xf32>
    %41 = vector.shape_cast %40 : vector<1x128xf32> to vector<128xf32>
    %42 = vector.shape_cast %41 : vector<128xf32> to vector<1x1x128xf32>
    %43 = vector.broadcast %42 : vector<1x1x128xf32> to vector<4x4x128xf32>
    %44 = arith.mulf %39, %43 : vector<4x4x128xf32>
    %45 = arith.addf %36, %44 : vector<4x4x128xf32>
    %c0_25 = arith.constant 0 : index
    %c1_26 = arith.constant 1 : index
    %c2_27 = arith.constant 2 : index
    %c0_28 = arith.constant 0 : index
    %46 = vector.load %arg2[%c0_25, %c1_26, %c2_27, %c0_28] : memref<1x6x6x128xbf16, #tpu.memory_space<vmem>>, vector<1x4x4x128xbf16>
    %47 = vector.shape_cast %46 : vector<1x4x4x128xbf16> to vector<4x4x128xbf16>
    %48 = arith.extf %47 : vector<4x4x128xbf16> to vector<4x4x128xf32>
    %c5 = arith.constant 5 : index
    %c0_29 = arith.constant 0 : index
    %49 = vector.load %arg3[%c5, %c0_29] : memref<9x128xf32, #tpu.memory_space<vmem>>, vector<1x128xf32>
    %50 = vector.shape_cast %49 : vector<1x128xf32> to vector<128xf32>
    %51 = vector.shape_cast %50 : vector<128xf32> to vector<1x1x128xf32>
    %52 = vector.broadcast %51 : vector<1x1x128xf32> to vector<4x4x128xf32>
    %53 = arith.mulf %48, %52 : vector<4x4x128xf32>
    %54 = arith.addf %45, %53 : vector<4x4x128xf32>
    %c0_30 = arith.constant 0 : index
    %c2_31 = arith.constant 2 : index
    %c0_32 = arith.constant 0 : index
    %c0_33 = arith.constant 0 : index
    %55 = vector.load %arg2[%c0_30, %c2_31, %c0_32, %c0_33] : memref<1x6x6x128xbf16, #tpu.memory_space<vmem>>, vector<1x4x4x128xbf16>
    %56 = vector.shape_cast %55 : vector<1x4x4x128xbf16> to vector<4x4x128xbf16>
    %57 = arith.extf %56 : vector<4x4x128xbf16> to vector<4x4x128xf32>
    %c6 = arith.constant 6 : index
    %c0_34 = arith.constant 0 : index
    %58 = vector.load %arg3[%c6, %c0_34] : memref<9x128xf32, #tpu.memory_space<vmem>>, vector<1x128xf32>
    %59 = vector.shape_cast %58 : vector<1x128xf32> to vector<128xf32>
    %60 = vector.shape_cast %59 : vector<128xf32> to vector<1x1x128xf32>
    %61 = vector.broadcast %60 : vector<1x1x128xf32> to vector<4x4x128xf32>
    %62 = arith.mulf %57, %61 : vector<4x4x128xf32>
    %63 = arith.addf %54, %62 : vector<4x4x128xf32>
    %c0_35 = arith.constant 0 : index
    %c2_36 = arith.constant 2 : index
    %c1_37 = arith.constant 1 : index
    %c0_38 = arith.constant 0 : index
    %64 = vector.load %arg2[%c0_35, %c2_36, %c1_37, %c0_38] : memref<1x6x6x128xbf16, #tpu.memory_space<vmem>>, vector<1x4x4x128xbf16>
    %65 = vector.shape_cast %64 : vector<1x4x4x128xbf16> to vector<4x4x128xbf16>
    %66 = arith.extf %65 : vector<4x4x128xbf16> to vector<4x4x128xf32>
    %c7 = arith.constant 7 : index
    %c0_39 = arith.constant 0 : index
    %67 = vector.load %arg3[%c7, %c0_39] : memref<9x128xf32, #tpu.memory_space<vmem>>, vector<1x128xf32>
    %68 = vector.shape_cast %67 : vector<1x128xf32> to vector<128xf32>
    %69 = vector.shape_cast %68 : vector<128xf32> to vector<1x1x128xf32>
    %70 = vector.broadcast %69 : vector<1x1x128xf32> to vector<4x4x128xf32>
    %71 = arith.mulf %66, %70 : vector<4x4x128xf32>
    %72 = arith.addf %63, %71 : vector<4x4x128xf32>
    %c0_40 = arith.constant 0 : index
    %c2_41 = arith.constant 2 : index
    %c2_42 = arith.constant 2 : index
    %c0_43 = arith.constant 0 : index
    %73 = vector.load %arg2[%c0_40, %c2_41, %c2_42, %c0_43] : memref<1x6x6x128xbf16, #tpu.memory_space<vmem>>, vector<1x4x4x128xbf16>
    %74 = vector.shape_cast %73 : vector<1x4x4x128xbf16> to vector<4x4x128xbf16>
    %75 = arith.extf %74 : vector<4x4x128xbf16> to vector<4x4x128xf32>
    %c8 = arith.constant 8 : index
    %c0_44 = arith.constant 0 : index
    %76 = vector.load %arg3[%c8, %c0_44] : memref<9x128xf32, #tpu.memory_space<vmem>>, vector<1x128xf32>
    %77 = vector.shape_cast %76 : vector<1x128xf32> to vector<128xf32>
    %78 = vector.shape_cast %77 : vector<128xf32> to vector<1x1x128xf32>
    %79 = vector.broadcast %78 : vector<1x1x128xf32> to vector<4x4x128xf32>
    %80 = arith.mulf %75, %79 : vector<4x4x128xf32>
    %81 = arith.addf %72, %80 : vector<4x4x128xf32>
    %c0_45 = arith.constant 0 : index
    %c0_46 = arith.constant 0 : index
    %82 = vector.load %arg4[%c0_45, %c0_46] : memref<1x128xf32, #tpu.memory_space<vmem>>, vector<1x128xf32>
    %83 = vector.shape_cast %82 : vector<1x128xf32> to vector<1x1x128xf32>
    %84 = vector.broadcast %83 : vector<1x1x128xf32> to vector<4x4x128xf32>
    %85 = arith.mulf %81, %84 : vector<4x4x128xf32>
    %c0_47 = arith.constant 0 : index
    %c0_48 = arith.constant 0 : index
    %86 = vector.load %arg5[%c0_47, %c0_48] : memref<1x128xf32, #tpu.memory_space<vmem>>, vector<1x128xf32>
    %87 = vector.shape_cast %86 : vector<1x128xf32> to vector<1x1x128xf32>
    %88 = vector.broadcast %87 : vector<1x1x128xf32> to vector<4x4x128xf32>
    %89 = arith.addf %85, %88 : vector<4x4x128xf32>
    %90 = arith.negf %89 : vector<4x4x128xf32>
    %91 = math.exp %90 : vector<4x4x128xf32>
    %cst_49 = arith.constant 1.000000e+00 : f32
    %92 = vector.broadcast %cst_49 : f32 to vector<4x4x128xf32>
    %93 = arith.addf %92, %91 : vector<4x4x128xf32>
    %94 = arith.divf %92, %93 : vector<4x4x128xf32>
    %95 = arith.mulf %89, %94 : vector<4x4x128xf32>
    %96 = vector.shape_cast %95 : vector<4x4x128xf32> to vector<1x4x4x128xf32>
    %97 = arith.truncf %96 : vector<1x4x4x128xf32> to vector<1x4x4x128xbf16>
    %c0_50 = arith.constant 0 : index
    %c0_51 = arith.constant 0 : index
    %c0_52 = arith.constant 0 : index
    %c0_53 = arith.constant 0 : index
    %98 = vector.load %arg6[%c0_50, %c0_51, %c0_52, %c0_53] : memref<1x4x4x128xbf16, #tpu.memory_space<vmem>>, vector<1x4x4x128xbf16>
    tpu.vector_store %arg6[%c0_50, %c0_51, %c0_52, %c0_53], %97 {strides = array<i32>} : memref<1x4x4x128xbf16, #tpu.memory_space<vmem>>, vector<1x4x4x128xbf16>,
    %cst_54 = arith.constant dense<0.000000e+00> : vector<128xf32>
    %99 = vector.multi_reduction <add>, %95, %cst_54 [0, 1] : vector<4x4x128xf32> to vector<128xf32>
    %cst_55 = arith.constant 1.600000e+01 : f32
    %100 = vector.broadcast %cst_55 : f32 to vector<128xf32>
    %101 = arith.divf %99, %100 : vector<128xf32>
    %102 = vector.shape_cast %101 : vector<128xf32> to vector<1x1x128xf32>
    %c0_56 = arith.constant 0 : index
    %c0_57 = arith.constant 0 : index
    %c0_58 = arith.constant 0 : index
    %103 = vector.load %arg7[%c0_56, %c0_57, %c0_58] : memref<1x1x128xf32, #tpu.memory_space<vmem>>, vector<1x1x128xf32>
    tpu.vector_store %arg7[%c0_56, %c0_57, %c0_58], %102 {strides = array<i32>} : memref<1x1x128xf32, #tpu.memory_space<vmem>>, vector<1x1x128xf32>,
    return
  }
  func.func @transform_0(%arg0: i32, %arg1: i32) -> (i32, i32, i32, i32) {
    %c0_i32 = arith.constant 0 : i32
    %c0_i32_0 = arith.constant 0 : i32
    %c0_i32_1 = arith.constant 0 : i32
    return %arg0, %c0_i32, %c0_i32_0, %arg1 : i32, i32, i32, i32
  }
  func.func @transform_1(%arg0: i32, %arg1: i32) -> (i32, i32) {
    %c0_i32 = arith.constant 0 : i32
    %c0_i32_0 = arith.constant 0 : i32
    return %c0_i32, %arg1 : i32, i32
  }
  func.func @transform_2(%arg0: i32, %arg1: i32) -> (i32, i32) {
    %c0_i32 = arith.constant 0 : i32
    %c0_i32_0 = arith.constant 0 : i32
    return %c0_i32, %arg1 : i32, i32
  }
  func.func @transform_3(%arg0: i32, %arg1: i32) -> (i32, i32) {
    %c0_i32 = arith.constant 0 : i32
    %c0_i32_0 = arith.constant 0 : i32
    return %c0_i32, %arg1 : i32, i32
  }
  func.func @transform_4(%arg0: i32, %arg1: i32) -> (i32, i32, i32, i32) {
    %c0_i32 = arith.constant 0 : i32
    %c0_i32_0 = arith.constant 0 : i32
    %c0_i32_1 = arith.constant 0 : i32
    return %arg0, %c0_i32, %c0_i32_0, %arg1 : i32, i32, i32, i32
  }
  func.func @transform_5(%arg0: i32, %arg1: i32) -> (i32, i32, i32) {
    %c0_i32 = arith.constant 0 : i32
    %c0_i32_0 = arith.constant 0 : i32
    return %arg0, %c0_i32, %arg1 : i32, i32, i32
  }
}

module attributes {stable_mosaic.version = 11 : i64} {
  func.func @_proj_film_kernel(%arg0: i32, %arg1: i32, %arg2: i32, %arg3: i32, %arg4: memref<1x16x128xbf16, #tpu.memory_space<vmem>>, %arg5: memref<1x1x128xf32, #tpu.memory_space<vmem>>, %arg6: memref<128x128xbf16, #tpu.memory_space<vmem>>, %arg7: memref<1x128xf32, #tpu.memory_space<vmem>>, %arg8: memref<1x128xf32, #tpu.memory_space<vmem>>, %arg9: memref<1x1x128xf32, #tpu.memory_space<vmem>>, %arg10: memref<1x1x128xf32, #tpu.memory_space<vmem>>, %arg11: memref<1x16x128xbf16, #tpu.memory_space<vmem>>, %arg12: memref<1x16x128xbf16, #tpu.memory_space<vmem>>, %arg13: memref<16x128xf32, #tpu.memory_space<vmem>>) attributes {dimension_semantics = [#tpu.dimension_semantics<parallel>, #tpu.dimension_semantics<parallel>, #tpu.dimension_semantics<parallel>, #tpu.dimension_semantics<arbitrary>], iteration_bounds = array<i64: 2, 1, 1, 1>, scalar_prefetch = 0 : i64, scratch_operands = 1 : i64, tpu.core_type = #tpu.core_type<tc>, window_params = [{transform_indices = @transform_0, window_bounds = array<i64: 1, 16, 128>}, {transform_indices = @transform_1, window_bounds = array<i64: 1, 1, 128>}, {transform_indices = @transform_2, window_bounds = array<i64: 128, 128>}, {transform_indices = @transform_3, window_bounds = array<i64: 1, 128>}, {transform_indices = @transform_4, window_bounds = array<i64: 1, 128>}, {transform_indices = @transform_5, window_bounds = array<i64: 1, 1, 128>}, {transform_indices = @transform_6, window_bounds = array<i64: 1, 1, 128>}, {transform_indices = @transform_7, window_bounds = array<i64: 1, 16, 128>}, {transform_indices = @transform_8, window_bounds = array<i64: 1, 16, 128>}]} {
    %c0_i32 = arith.constant 0 : i32
    %0 = arith.cmpi eq, %arg3, %c0_i32 : i32
    %1 = arith.extui %0 : i1 to i32
    %c0_i32_0 = arith.constant 0 : i32
    %2 = arith.cmpi ne, %1, %c0_i32_0 : i32
    scf.if %2 {
      %cst_14 = arith.constant 0.000000e+00 : f32
      %19 = vector.broadcast %cst_14 : f32 to vector<16x128xf32>
      %c0_15 = arith.constant 0 : index
      %c0_16 = arith.constant 0 : index
      %20 = vector.load %arg13[%c0_15, %c0_16] : memref<16x128xf32, #tpu.memory_space<vmem>>, vector<16x128xf32>
      tpu.vector_store %arg13[%c0_15, %c0_16], %19 {strides = array<i32>} : memref<16x128xf32, #tpu.memory_space<vmem>>, vector<16x128xf32>,
    } else {
    }
    %c0 = arith.constant 0 : index
    %c0_1 = arith.constant 0 : index
    %c0_2 = arith.constant 0 : index
    %3 = vector.load %arg4[%c0, %c0_1, %c0_2] : memref<1x16x128xbf16, #tpu.memory_space<vmem>>, vector<1x16x128xbf16>
    %4 = vector.shape_cast %3 : vector<1x16x128xbf16> to vector<16x128xbf16>
    %5 = arith.extf %4 : vector<16x128xbf16> to vector<16x128xf32>
    %c0_3 = arith.constant 0 : index
    %c0_4 = arith.constant 0 : index
    %c0_5 = arith.constant 0 : index
    %6 = vector.load %arg5[%c0_3, %c0_4, %c0_5] : memref<1x1x128xf32, #tpu.memory_space<vmem>>, vector<1x1x128xf32>
    %7 = vector.shape_cast %6 : vector<1x1x128xf32> to vector<1x128xf32>
    %8 = vector.broadcast %7 : vector<1x128xf32> to vector<16x128xf32>
    %9 = arith.mulf %5, %8 : vector<16x128xf32>
    %c0_6 = arith.constant 0 : index
    %c0_7 = arith.constant 0 : index
    %10 = vector.load %arg13[%c0_6, %c0_7] : memref<16x128xf32, #tpu.memory_space<vmem>>, vector<16x128xf32>
    %11 = arith.truncf %9 : vector<16x128xf32> to vector<16x128xbf16>
    %c0_8 = arith.constant 0 : index
    %c0_9 = arith.constant 0 : index
    %12 = vector.load %arg6[%c0_8, %c0_9] : memref<128x128xbf16, #tpu.memory_space<vmem>>, vector<128x128xbf16>
    %cst = arith.constant dense<0.000000e+00> : vector<16x128xf32>
    %13 = tpu.matmul %11, %12, %cst {dimension_numbers = #tpu.dot_dimension_numbers<[1], [0], [0], [1], [0, 0, 1, 1], [], []>} : vector<16x128xbf16>, vector<128x128xbf16>, vector<16x128xf32> -> vector<16x128xf32>
    %14 = arith.addf %10, %13 : vector<16x128xf32>
    %c0_10 = arith.constant 0 : index
    %c0_11 = arith.constant 0 : index
    %15 = vector.load %arg13[%c0_10, %c0_11] : memref<16x128xf32, #tpu.memory_space<vmem>>, vector<16x128xf32>
    tpu.vector_store %arg13[%c0_10, %c0_11], %14 {strides = array<i32>} : memref<16x128xf32, #tpu.memory_space<vmem>>, vector<16x128xf32>,
    %c0_i32_12 = arith.constant 0 : i32
    %16 = arith.cmpi eq, %arg3, %c0_i32_12 : i32
    %17 = arith.extui %16 : i1 to i32
    %c0_i32_13 = arith.constant 0 : i32
    %18 = arith.cmpi ne, %17, %c0_i32_13 : i32
    scf.if %18 {
      %c0_14 = arith.constant 0 : index
      %c0_15 = arith.constant 0 : index
      %19 = vector.load %arg13[%c0_14, %c0_15] : memref<16x128xf32, #tpu.memory_space<vmem>>, vector<16x128xf32>
      %c0_16 = arith.constant 0 : index
      %c0_17 = arith.constant 0 : index
      %20 = vector.load %arg7[%c0_16, %c0_17] : memref<1x128xf32, #tpu.memory_space<vmem>>, vector<1x128xf32>
      %21 = vector.broadcast %20 : vector<1x128xf32> to vector<16x128xf32>
      %22 = arith.mulf %19, %21 : vector<16x128xf32>
      %c0_18 = arith.constant 0 : index
      %c0_19 = arith.constant 0 : index
      %23 = vector.load %arg8[%c0_18, %c0_19] : memref<1x128xf32, #tpu.memory_space<vmem>>, vector<1x128xf32>
      %24 = vector.broadcast %23 : vector<1x128xf32> to vector<16x128xf32>
      %25 = arith.addf %22, %24 : vector<16x128xf32>
      %c0_20 = arith.constant 0 : index
      %c0_21 = arith.constant 0 : index
      %c0_22 = arith.constant 0 : index
      %26 = vector.load %arg11[%c0_20, %c0_21, %c0_22] : memref<1x16x128xbf16, #tpu.memory_space<vmem>>, vector<1x16x128xbf16>
      %27 = vector.shape_cast %26 : vector<1x16x128xbf16> to vector<16x128xbf16>
      %28 = arith.extf %27 : vector<16x128xbf16> to vector<16x128xf32>
      %29 = arith.addf %25, %28 : vector<16x128xf32>
      %c0_23 = arith.constant 0 : index
      %c0_24 = arith.constant 0 : index
      %c0_25 = arith.constant 0 : index
      %30 = vector.load %arg9[%c0_23, %c0_24, %c0_25] : memref<1x1x128xf32, #tpu.memory_space<vmem>>, vector<1x1x128xf32>
      %31 = vector.shape_cast %30 : vector<1x1x128xf32> to vector<1x128xf32>
      %cst_26 = arith.constant 1.000000e+00 : f32
      %32 = vector.broadcast %cst_26 : f32 to vector<1x128xf32>
      %33 = arith.addf %32, %31 : vector<1x128xf32>
      %34 = vector.broadcast %33 : vector<1x128xf32> to vector<16x128xf32>
      %35 = arith.mulf %29, %34 : vector<16x128xf32>
      %c0_27 = arith.constant 0 : index
      %c0_28 = arith.constant 0 : index
      %c0_29 = arith.constant 0 : index
      %36 = vector.load %arg10[%c0_27, %c0_28, %c0_29] : memref<1x1x128xf32, #tpu.memory_space<vmem>>, vector<1x1x128xf32>
      %37 = vector.shape_cast %36 : vector<1x1x128xf32> to vector<1x128xf32>
      %38 = vector.broadcast %37 : vector<1x128xf32> to vector<16x128xf32>
      %39 = arith.addf %35, %38 : vector<16x128xf32>
      %40 = vector.shape_cast %39 : vector<16x128xf32> to vector<1x16x128xf32>
      %41 = arith.truncf %40 : vector<1x16x128xf32> to vector<1x16x128xbf16>
      %c0_30 = arith.constant 0 : index
      %c0_31 = arith.constant 0 : index
      %c0_32 = arith.constant 0 : index
      %42 = vector.load %arg12[%c0_30, %c0_31, %c0_32] : memref<1x16x128xbf16, #tpu.memory_space<vmem>>, vector<1x16x128xbf16>
      tpu.vector_store %arg12[%c0_30, %c0_31, %c0_32], %41 {strides = array<i32>} : memref<1x16x128xbf16, #tpu.memory_space<vmem>>, vector<1x16x128xbf16>,
    } else {
    }
    return
  }
  func.func @transform_0(%arg0: i32, %arg1: i32, %arg2: i32, %arg3: i32) -> (i32, i32, i32) {
    %c0_i32 = arith.constant 0 : i32
    return %arg0, %arg1, %arg3 : i32, i32, i32
  }
  func.func @transform_1(%arg0: i32, %arg1: i32, %arg2: i32, %arg3: i32) -> (i32, i32, i32) {
    %c0_i32 = arith.constant 0 : i32
    %c0_i32_0 = arith.constant 0 : i32
    return %arg0, %c0_i32, %arg3 : i32, i32, i32
  }
  func.func @transform_2(%arg0: i32, %arg1: i32, %arg2: i32, %arg3: i32) -> (i32, i32) {
    %c0_i32 = arith.constant 0 : i32
    return %arg3, %arg2 : i32, i32
  }
  func.func @transform_3(%arg0: i32, %arg1: i32, %arg2: i32, %arg3: i32) -> (i32, i32) {
    %c0_i32 = arith.constant 0 : i32
    %c0_i32_0 = arith.constant 0 : i32
    return %c0_i32, %arg2 : i32, i32
  }
  func.func @transform_4(%arg0: i32, %arg1: i32, %arg2: i32, %arg3: i32) -> (i32, i32) {
    %c0_i32 = arith.constant 0 : i32
    %c0_i32_0 = arith.constant 0 : i32
    return %c0_i32, %arg2 : i32, i32
  }
  func.func @transform_5(%arg0: i32, %arg1: i32, %arg2: i32, %arg3: i32) -> (i32, i32, i32) {
    %c0_i32 = arith.constant 0 : i32
    %c0_i32_0 = arith.constant 0 : i32
    return %arg0, %c0_i32, %arg2 : i32, i32, i32
  }
  func.func @transform_6(%arg0: i32, %arg1: i32, %arg2: i32, %arg3: i32) -> (i32, i32, i32) {
    %c0_i32 = arith.constant 0 : i32
    %c0_i32_0 = arith.constant 0 : i32
    return %arg0, %c0_i32, %arg2 : i32, i32, i32
  }
  func.func @transform_7(%arg0: i32, %arg1: i32, %arg2: i32, %arg3: i32) -> (i32, i32, i32) {
    %c0_i32 = arith.constant 0 : i32
    return %arg0, %arg1, %arg2 : i32, i32, i32
  }
  func.func @transform_8(%arg0: i32, %arg1: i32, %arg2: i32, %arg3: i32) -> (i32, i32, i32) {
    %c0_i32 = arith.constant 0 : i32
    return %arg0, %arg1, %arg2 : i32, i32, i32
  }
}

module attributes {stable_mosaic.version = 11 : i64} {
  func.func @_matmul_kernel(%arg0: i32, %arg1: i32, %arg2: i32, %arg3: memref<8x128xbf16, #tpu.memory_space<vmem>>, %arg4: memref<128x128xbf16, #tpu.memory_space<vmem>>, %arg5: memref<1x128xf32, #tpu.memory_space<vmem>>, %arg6: memref<8x128xf32, #tpu.memory_space<vmem>>, %arg7: memref<8x128xf32, #tpu.memory_space<vmem>>) attributes {dimension_semantics = [#tpu.dimension_semantics<parallel>, #tpu.dimension_semantics<parallel>, #tpu.dimension_semantics<arbitrary>], iteration_bounds = array<i64: 1, 1, 1>, scalar_prefetch = 0 : i64, scratch_operands = 1 : i64, tpu.core_type = #tpu.core_type<tc>, window_params = [{transform_indices = @transform_0, window_bounds = array<i64: 8, 128>}, {transform_indices = @transform_1, window_bounds = array<i64: 128, 128>}, {transform_indices = @transform_2, window_bounds = array<i64: 1, 128>}, {transform_indices = @transform_3, window_bounds = array<i64: 8, 128>}]} {
    %c0_i32 = arith.constant 0 : i32
    %0 = arith.cmpi eq, %arg2, %c0_i32 : i32
    %1 = arith.extui %0 : i1 to i32
    %c0_i32_0 = arith.constant 0 : i32
    %2 = arith.cmpi ne, %1, %c0_i32_0 : i32
    scf.if %2 {
      %cst_10 = arith.constant 0.000000e+00 : f32
      %12 = vector.broadcast %cst_10 : f32 to vector<8x128xf32>
      %c0_11 = arith.constant 0 : index
      %c0_12 = arith.constant 0 : index
      %13 = vector.load %arg7[%c0_11, %c0_12] : memref<8x128xf32, #tpu.memory_space<vmem>>, vector<8x128xf32>
      tpu.vector_store %arg7[%c0_11, %c0_12], %12 {strides = array<i32>} : memref<8x128xf32, #tpu.memory_space<vmem>>, vector<8x128xf32>,
    } else {
    }
    %c0 = arith.constant 0 : index
    %c0_1 = arith.constant 0 : index
    %3 = vector.load %arg7[%c0, %c0_1] : memref<8x128xf32, #tpu.memory_space<vmem>>, vector<8x128xf32>
    %c0_2 = arith.constant 0 : index
    %c0_3 = arith.constant 0 : index
    %4 = vector.load %arg3[%c0_2, %c0_3] : memref<8x128xbf16, #tpu.memory_space<vmem>>, vector<8x128xbf16>
    %c0_4 = arith.constant 0 : index
    %c0_5 = arith.constant 0 : index
    %5 = vector.load %arg4[%c0_4, %c0_5] : memref<128x128xbf16, #tpu.memory_space<vmem>>, vector<128x128xbf16>
    %cst = arith.constant dense<0.000000e+00> : vector<8x128xf32>
    %6 = tpu.matmul %4, %5, %cst {dimension_numbers = #tpu.dot_dimension_numbers<[1], [0], [0], [1], [0, 0, 1, 1], [], []>} : vector<8x128xbf16>, vector<128x128xbf16>, vector<8x128xf32> -> vector<8x128xf32>
    %7 = arith.addf %3, %6 : vector<8x128xf32>
    %c0_6 = arith.constant 0 : index
    %c0_7 = arith.constant 0 : index
    %8 = vector.load %arg7[%c0_6, %c0_7] : memref<8x128xf32, #tpu.memory_space<vmem>>, vector<8x128xf32>
    tpu.vector_store %arg7[%c0_6, %c0_7], %7 {strides = array<i32>} : memref<8x128xf32, #tpu.memory_space<vmem>>, vector<8x128xf32>,
    %c0_i32_8 = arith.constant 0 : i32
    %9 = arith.cmpi eq, %arg2, %c0_i32_8 : i32
    %10 = arith.extui %9 : i1 to i32
    %c0_i32_9 = arith.constant 0 : i32
    %11 = arith.cmpi ne, %10, %c0_i32_9 : i32
    scf.if %11 {
      %c0_10 = arith.constant 0 : index
      %c0_11 = arith.constant 0 : index
      %12 = vector.load %arg7[%c0_10, %c0_11] : memref<8x128xf32, #tpu.memory_space<vmem>>, vector<8x128xf32>
      %c0_12 = arith.constant 0 : index
      %c0_13 = arith.constant 0 : index
      %13 = vector.load %arg5[%c0_12, %c0_13] : memref<1x128xf32, #tpu.memory_space<vmem>>, vector<1x128xf32>
      %14 = vector.broadcast %13 : vector<1x128xf32> to vector<8x128xf32>
      %15 = arith.addf %12, %14 : vector<8x128xf32>
      %c0_14 = arith.constant 0 : index
      %c0_15 = arith.constant 0 : index
      %16 = vector.load %arg6[%c0_14, %c0_15] : memref<8x128xf32, #tpu.memory_space<vmem>>, vector<8x128xf32>
      tpu.vector_store %arg6[%c0_14, %c0_15], %15 {strides = array<i32>} : memref<8x128xf32, #tpu.memory_space<vmem>>, vector<8x128xf32>,
    } else {
    }
    return
  }
  func.func @transform_0(%arg0: i32, %arg1: i32, %arg2: i32) -> (i32, i32) {
    %c0_i32 = arith.constant 0 : i32
    return %arg0, %arg2 : i32, i32
  }
  func.func @transform_1(%arg0: i32, %arg1: i32, %arg2: i32) -> (i32, i32) {
    %c0_i32 = arith.constant 0 : i32
    return %arg2, %arg1 : i32, i32
  }
  func.func @transform_2(%arg0: i32, %arg1: i32, %arg2: i32) -> (i32, i32) {
    %c0_i32 = arith.constant 0 : i32
    %c0_i32_0 = arith.constant 0 : i32
    return %c0_i32, %arg1 : i32, i32
  }
  func.func @transform_3(%arg0: i32, %arg1: i32, %arg2: i32) -> (i32, i32) {
    %c0_i32 = arith.constant 0 : i32
    return %arg0, %arg1 : i32, i32
  }
}

module attributes {stable_mosaic.version = 11 : i64} {
  func.func @_lastconv_pool_kernel(%arg0: i32, %arg1: i32, %arg2: i32, %arg3: memref<1x16x128xbf16, #tpu.memory_space<vmem>>, %arg4: memref<128x128xbf16, #tpu.memory_space<vmem>>, %arg5: memref<1x128xf32, #tpu.memory_space<vmem>>, %arg6: memref<1x128xf32, #tpu.memory_space<vmem>>, %arg7: memref<1x1x128xf32, #tpu.memory_space<vmem>>, %arg8: memref<16x128xf32, #tpu.memory_space<vmem>>) attributes {dimension_semantics = [#tpu.dimension_semantics<parallel>, #tpu.dimension_semantics<parallel>, #tpu.dimension_semantics<arbitrary>], iteration_bounds = array<i64: 2, 1, 1>, scalar_prefetch = 0 : i64, scratch_operands = 1 : i64, tpu.core_type = #tpu.core_type<tc>, window_params = [{transform_indices = @transform_0, window_bounds = array<i64: 1, 16, 128>}, {transform_indices = @transform_1, window_bounds = array<i64: 128, 128>}, {transform_indices = @transform_2, window_bounds = array<i64: 1, 128>}, {transform_indices = @transform_3, window_bounds = array<i64: 1, 128>}, {transform_indices = @transform_4, window_bounds = array<i64: 1, 1, 128>}]} {
    %c0_i32 = arith.constant 0 : i32
    %0 = arith.cmpi eq, %arg2, %c0_i32 : i32
    %1 = arith.extui %0 : i1 to i32
    %c0_i32_0 = arith.constant 0 : i32
    %2 = arith.cmpi ne, %1, %c0_i32_0 : i32
    scf.if %2 {
      %cst_11 = arith.constant 0.000000e+00 : f32
      %13 = vector.broadcast %cst_11 : f32 to vector<16x128xf32>
      %c0_12 = arith.constant 0 : index
      %c0_13 = arith.constant 0 : index
      %14 = vector.load %arg8[%c0_12, %c0_13] : memref<16x128xf32, #tpu.memory_space<vmem>>, vector<16x128xf32>
      tpu.vector_store %arg8[%c0_12, %c0_13], %13 {strides = array<i32>} : memref<16x128xf32, #tpu.memory_space<vmem>>, vector<16x128xf32>,
    } else {
    }
    %c0 = arith.constant 0 : index
    %c0_1 = arith.constant 0 : index
    %3 = vector.load %arg8[%c0, %c0_1] : memref<16x128xf32, #tpu.memory_space<vmem>>, vector<16x128xf32>
    %c0_2 = arith.constant 0 : index
    %c0_3 = arith.constant 0 : index
    %c0_4 = arith.constant 0 : index
    %4 = vector.load %arg3[%c0_2, %c0_3, %c0_4] : memref<1x16x128xbf16, #tpu.memory_space<vmem>>, vector<1x16x128xbf16>
    %5 = vector.shape_cast %4 : vector<1x16x128xbf16> to vector<16x128xbf16>
    %c0_5 = arith.constant 0 : index
    %c0_6 = arith.constant 0 : index
    %6 = vector.load %arg4[%c0_5, %c0_6] : memref<128x128xbf16, #tpu.memory_space<vmem>>, vector<128x128xbf16>
    %cst = arith.constant dense<0.000000e+00> : vector<16x128xf32>
    %7 = tpu.matmul %5, %6, %cst {dimension_numbers = #tpu.dot_dimension_numbers<[1], [0], [0], [1], [0, 0, 1, 1], [], []>} : vector<16x128xbf16>, vector<128x128xbf16>, vector<16x128xf32> -> vector<16x128xf32>
    %8 = arith.addf %3, %7 : vector<16x128xf32>
    %c0_7 = arith.constant 0 : index
    %c0_8 = arith.constant 0 : index
    %9 = vector.load %arg8[%c0_7, %c0_8] : memref<16x128xf32, #tpu.memory_space<vmem>>, vector<16x128xf32>
    tpu.vector_store %arg8[%c0_7, %c0_8], %8 {strides = array<i32>} : memref<16x128xf32, #tpu.memory_space<vmem>>, vector<16x128xf32>,
    %c0_i32_9 = arith.constant 0 : i32
    %10 = arith.cmpi eq, %arg2, %c0_i32_9 : i32
    %11 = arith.extui %10 : i1 to i32
    %c0_i32_10 = arith.constant 0 : i32
    %12 = arith.cmpi ne, %11, %c0_i32_10 : i32
    scf.if %12 {
      %c0_11 = arith.constant 0 : index
      %c0_12 = arith.constant 0 : index
      %13 = vector.load %arg8[%c0_11, %c0_12] : memref<16x128xf32, #tpu.memory_space<vmem>>, vector<16x128xf32>
      %c0_13 = arith.constant 0 : index
      %c0_14 = arith.constant 0 : index
      %14 = vector.load %arg5[%c0_13, %c0_14] : memref<1x128xf32, #tpu.memory_space<vmem>>, vector<1x128xf32>
      %15 = vector.broadcast %14 : vector<1x128xf32> to vector<16x128xf32>
      %16 = arith.mulf %13, %15 : vector<16x128xf32>
      %c0_15 = arith.constant 0 : index
      %c0_16 = arith.constant 0 : index
      %17 = vector.load %arg6[%c0_15, %c0_16] : memref<1x128xf32, #tpu.memory_space<vmem>>, vector<1x128xf32>
      %18 = vector.broadcast %17 : vector<1x128xf32> to vector<16x128xf32>
      %19 = arith.addf %16, %18 : vector<16x128xf32>
      %20 = arith.negf %19 : vector<16x128xf32>
      %21 = math.exp %20 : vector<16x128xf32>
      %cst_17 = arith.constant 1.000000e+00 : f32
      %22 = vector.broadcast %cst_17 : f32 to vector<16x128xf32>
      %23 = arith.addf %22, %21 : vector<16x128xf32>
      %24 = arith.divf %22, %23 : vector<16x128xf32>
      %25 = arith.mulf %19, %24 : vector<16x128xf32>
      %cst_18 = arith.constant dense<0.000000e+00> : vector<128xf32>
      %26 = vector.multi_reduction <add>, %25, %cst_18 [0] : vector<16x128xf32> to vector<128xf32>
      %27 = vector.shape_cast %26 : vector<128xf32> to vector<1x128xf32>
      %cst_19 = arith.constant 1.600000e+01 : f32
      %28 = vector.broadcast %cst_19 : f32 to vector<1x128xf32>
      %29 = arith.divf %27, %28 : vector<1x128xf32>
      %30 = vector.shape_cast %29 : vector<1x128xf32> to vector<1x1x128xf32>
      %c0_20 = arith.constant 0 : index
      %c0_21 = arith.constant 0 : index
      %c0_22 = arith.constant 0 : index
      %31 = vector.load %arg7[%c0_20, %c0_21, %c0_22] : memref<1x1x128xf32, #tpu.memory_space<vmem>>, vector<1x1x128xf32>
      tpu.vector_store %arg7[%c0_20, %c0_21, %c0_22], %30 {strides = array<i32>} : memref<1x1x128xf32, #tpu.memory_space<vmem>>, vector<1x1x128xf32>,
    } else {
    }
    return
  }
  func.func @transform_0(%arg0: i32, %arg1: i32, %arg2: i32) -> (i32, i32, i32) {
    %c0_i32 = arith.constant 0 : i32
    %c0_i32_0 = arith.constant 0 : i32
    return %arg0, %c0_i32, %arg2 : i32, i32, i32
  }
  func.func @transform_1(%arg0: i32, %arg1: i32, %arg2: i32) -> (i32, i32) {
    %c0_i32 = arith.constant 0 : i32
    return %arg2, %arg1 : i32, i32
  }
  func.func @transform_2(%arg0: i32, %arg1: i32, %arg2: i32) -> (i32, i32) {
    %c0_i32 = arith.constant 0 : i32
    %c0_i32_0 = arith.constant 0 : i32
    return %c0_i32, %arg1 : i32, i32
  }
  func.func @transform_3(%arg0: i32, %arg1: i32, %arg2: i32) -> (i32, i32) {
    %c0_i32 = arith.constant 0 : i32
    %c0_i32_0 = arith.constant 0 : i32
    return %c0_i32, %arg1 : i32, i32
  }
  func.func @transform_4(%arg0: i32, %arg1: i32, %arg2: i32) -> (i32, i32, i32) {
    %c0_i32 = arith.constant 0 : i32
    %c0_i32_0 = arith.constant 0 : i32
    return %arg0, %c0_i32, %arg1 : i32, i32, i32
  }
}

</mosaic_0001>

<llo_original>
// kernel: fwd.16
$region0: #{fwd.16}
  #allocation0 [shape = 'u32[]', space=smem, size = 0x4, offset = 0x4, fixed_abs, tag = 'smem constant byte address 0x4 - core index']
  #allocation1 [shape = 'u32[144,128]{1,0:T(1,128)}', space=vmem, size = 0x12000, scoped, tag = 'internal scratch']
  #allocation2 [shape = 'f32[8,256]{1,0:T(8,128)}', space=vmem, size = 0x2000, scoped, tag = 'scratch operand']
  %s0 = inlined_call_operand.vmem [shape: bf16[8,32], index: 0, kind: input, shape index: {}]
  %s1 = inlined_call_operand.vmem [shape: bf16[32,768], index: 1, kind: input, shape index: {}]
  %s2 = inlined_call_operand.vmem [shape: f32[1,768], index: 2, kind: input, shape index: {}]
  %s3 = inlined_call_operand.vmem [shape: f32[8,768], index: 3, kind: output, shape index: {}]
  %s4 = sld [smem:[#allocation0]]
  $region91: #{fwd.16} parent=0
    _
  %s6 = ssub.s32 1, %s4
  %s7 = scalar_select 0, %s6, %s4
  $region1: #{fwd.16} parent=0
    #allocation3 [shape = 'u8[32768]{0}', space=vmem, size = 0x8000, scoped, tag = 'input window, operand 1']
    loop: start=0, step=1, limit=5
    $region2: #{fwd.16} parent=1 // loop_pre_header
      _
    $region3: #{fwd.16} parent=1 // loop_header
      %s9 = sphi 0, %s13
      %p10 = scmp.ge.s32.totalorder %s9, 5
      %s16 = sphi 0, %s35
      %s17 = sphi 0, %s31
      %s18 = sphi 0, %s27
      %s19 = sphi 0, %s16
      %s20 = sphi 0, %s17
      %s21 = sphi 0, %s18
      %s22 = sphi 0, %s19
      %s23 = sphi 0, %s20
      %s24 = sphi 0, %s21
      %s40 = sphi 0, %s42
      %s43 = sphi 0, %s40
      %s44 = sphi 0, %s43
      %s60 = sphi 0, %s44
      %s68 = sphi 0, %s70
      %s71 = sphi 0, %s68
      %s72 = sphi 0, %s71
      %s88 = sphi 0, %s72
      %s94 = sphi 0, %s96
      %s97 = sphi 0, %s94
      %s98 = sphi 0, %s97
      %s114 = sphi 0, %s98
      %s122 = sphi 0, %s124
      %s125 = sphi 0, %s122
      %s126 = sphi 0, %s125
      %s142 = sphi 0, %s126
    $region4: #{fwd.16} parent=1 // loop_header_branch
      %12 = sbr.rel (%p10) target = $region8
    $region5: #{fwd.16} parent=1 // loop_body
      %s14 = ssub.s32 %s9, 1
      %s15 = ssub.s32 %s9, 2
      %s25 = sadd.s32 1, %s18
      %p26 = scmp.ge.s32.totalorder %s25, 1
      %s27 = scalar_select %p26, 0, %s25
      %s28 = sadd.s32 1, %s17
      %s29 = scalar_select %p26, %s28, %s17
      %p30 = scmp.ge.s32.totalorder %s29, 3
      %s31 = scalar_select %p30, 0, %s29
      %s32 = sadd.s32 1, %s16
      %s33 = scalar_select %p30, %s32, %s16
      %p34 = scmp.ge.s32.totalorder %s33, 1
      %s35 = scalar_select %p34, 0, %s33
      %s36 = ssub.s32 %s16, %s35
      %s37 = ssub.s32 %s18, %s27
      %s38 = sor.u32 %s36, %s37
      %p39 = scmp.eq.s32.totalorder %s38, 0
      %s41 = sadd.s32 %s40, 1
      %s42 = scalar_select %p39, %s40, %s41
      %p45 = pneg %p39
      %p46 = scmp.eq.s32.totalorder %s9, 2
      %p47 = por %p45, %p46
      %p48 = scmp.ne.s32.totalorder %s40, %s43
      %p49 = scmp.eq.s32.totalorder %s9, 0
      %p50 = por %p48, %p49
      %p51 = scmp.ne.s32.totalorder %s40, %s43
      %p52 = scmp.eq.s32.totalorder %s14, 2
      %p53 = por %p51, %p52
      %p54 = scmp.ne.s32.totalorder %s43, %s44
      %p55 = scmp.eq.s32.totalorder %s14, 0
      %p56 = por %p54, %p55
      %p57 = scmp.ne.s32.totalorder %s43, %s44
      %p58 = scmp.eq.s32.totalorder %s15, 2
      %p59 = por %p57, %p58
      %p61 = scmp.ne.s32.totalorder %s44, %s60
      %p62 = scmp.eq.s32.totalorder %s15, 0
      %p63 = por %p61, %p62
      %s64 = ssub.s32 %s18, %s27
      %s65 = ssub.s32 %s17, %s31
      %s66 = sor.u32 %s64, %s65
      %p67 = scmp.eq.s32.totalorder %s66, 0
      %s69 = sadd.s32 %s68, 1
      %s70 = scalar_select %p67, %s68, %s69
      %p73 = pneg %p67
      %p74 = scmp.eq.s32.totalorder %s9, 2
      %p75 = por %p73, %p74
      %p76 = scmp.ne.s32.totalorder %s68, %s71
      %p77 = scmp.eq.s32.totalorder %s9, 0
      %p78 = por %p76, %p77
      %p79 = scmp.ne.s32.totalorder %s68, %s71
      %p80 = scmp.eq.s32.totalorder %s14, 2
      %p81 = por %p79, %p80
      %p82 = scmp.ne.s32.totalorder %s71, %s72
      %p83 = scmp.eq.s32.totalorder %s14, 0
      %p84 = por %p82, %p83
      %p85 = scmp.ne.s32.totalorder %s71, %s72
      %p86 = scmp.eq.s32.totalorder %s15, 2
      %p87 = por %p85, %p86
      %p89 = scmp.ne.s32.totalorder %s72, %s88
      %p90 = scmp.eq.s32.totalorder %s15, 0
      %p91 = por %p89, %p90
      %s92 = ssub.s32 %s17, %s31
      %p93 = scmp.eq.s32.totalorder %s92, 0
      %s95 = sadd.s32 %s94, 1
      %s96 = scalar_select %p93, %s94, %s95
      %p99 = pneg %p93
      %p100 = scmp.eq.s32.totalorder %s9, 2
      %p101 = por %p99, %p100
      %p102 = scmp.ne.s32.totalorder %s94, %s97
      %p103 = scmp.eq.s32.totalorder %s9, 0
      %p104 = por %p102, %p103
      %p105 = scmp.ne.s32.totalorder %s94, %s97
      %p106 = scmp.eq.s32.totalorder %s14, 2
      %p107 = por %p105, %p106
      %p108 = scmp.ne.s32.totalorder %s97, %s98
      %p109 = scmp.eq.s32.totalorder %s14, 0
      %p110 = por %p108, %p109
      %p111 = scmp.ne.s32.totalorder %s97, %s98
      %p112 = scmp.eq.s32.totalorder %s15, 2
      %p113 = por %p111, %p112
      %p115 = scmp.ne.s32.totalorder %s98, %s114
      %p116 = scmp.eq.s32.totalorder %s15, 0
      %p117 = por %p115, %p116
      %s118 = ssub.s32 %s16, %s35
      %s119 = ssub.s32 %s17, %s31
      %s120 = sor.u32 %s118, %s119
      %p121 = scmp.eq.s32.totalorder %s120, 0
      %s123 = sadd.s32 %s122, 1
      %s124 = scalar_select %p121, %s122, %s123
      %p127 = pneg %p121
      %p128 = scmp.eq.s32.totalorder %s9, 2
      %p129 = por %p127, %p128
      %p130 = scmp.ne.s32.totalorder %s122, %s125
      %p131 = scmp.eq.s32.totalorder %s9, 0
      %p132 = por %p130, %p131
      %p133 = scmp.ne.s32.totalorder %s122, %s125
      %p134 = scmp.eq.s32.totalorder %s14, 2
      %p135 = por %p133, %p134
      %p136 = scmp.ne.s32.totalorder %s125, %s126
      %p137 = scmp.eq.s32.totalorder %s14, 0
      %p138 = por %p136, %p137
      %p139 = scmp.ne.s32.totalorder %s125, %s126
      %p140 = scmp.eq.s32.totalorder %s15, 2
      %p141 = por %p139, %p140
      %p143 = scmp.ne.s32.totalorder %s126, %s142
      %p144 = scmp.eq.s32.totalorder %s15, 0
      %p145 = por %p143, %p144
      %p146 = scmp.le.s32.totalorder 1, %s9
      %p147 = scmp.lt.s32.totalorder %s9, 4
      %p148 = pnand %p146, %p147
      %p149 = pneg %p148
      // Predicated region
      $region9: #{fwd.16} parent=5 // pred_check
        _
      $region10: #{fwd.16} parent=5 // pred_check_branch
        %151 = sbr.rel (%p148) target = $region12
      $region11: #{fwd.16} parent=5 // pred_region
        %s152 = ssub.s32 %s9, 1
        // Predicated region
        $region13: #{fwd.16} parent=11 // pred_check
          %p153 = pneg %p56
        $region14: #{fwd.16} parent=11 // pred_check_branch
          %155 = sbr.rel (%p153) target = $region16
        $region15: #{fwd.16} parent=11 // pred_region
          %p156 = scmp.lt.s32.totalorder %s19, 0
          %s157 = scalar_select %p156, %s19, 0
          %p158 = scmp.lt.s32.totalorder %s21, 0
          %s159 = scalar_select %p158, %s21, 0
          %s160 = sadd.s32 %s159, %s157
          %s161 = smul.addr %s160, 4
          %s162 = scalar_lea.vmem %s0, %s161
        $region16: #{fwd.16} parent=11 // pred_fallthru
          _
      $region12: #{fwd.16} parent=5 // pred_fallthru
        _
      %p163 = scmp.lt.s32.totalorder %s9, 3
      // Predicated region
      $region17: #{fwd.16} parent=5 // pred_check
        %p164 = pneg %p163
      $region18: #{fwd.16} parent=5 // pred_check_branch
        %166 = sbr.rel (%p164) target = $region20
      $region19: #{fwd.16} parent=5 // pred_region
        // Predicated region
        $region21: #{fwd.16} parent=19 // pred_check
          %p167 = pneg %p78
        $region22: #{fwd.16} parent=19 // pred_check_branch
          %169 = sbr.rel (%p167) target = $region24
        $region23: #{fwd.16} parent=19 // pred_region
          %s170 = sand.u32 %s68, 1
          %s171 = sand.u32 %s68, 1
          %s172 = smul.addr %s171, 32
          %s173 = scalar_lea.vmem [#allocation3], %s172
          %s174 = smul.u32 4, %s18
          %s175 = smul.u32 2, %s17
          %s176 = smul.addr %s174, 6
          %s177 = sadd.s32 %s175, %s176
          %s178 = smul.addr %s177, 4
          %s179 = scalar_lea.vmem %s1, %s178
          // Predicated region
          $region25: #{fwd.16} parent=23 // pred_check
            _
          $region26: #{fwd.16} parent=23 // pred_check_branch
            %181 = sbr.rel (0) target = $region28
          $region27: #{fwd.16} parent=23 // pred_region
            // Predicated region
            $region29: #{fwd.16} parent=27 // pred_check
              _
            $region30: #{fwd.16} parent=27 // pred_check_branch
              %183 = sbr.rel (0) target = $region32
            $region31: #{fwd.16} parent=27 // pred_region
              // Predicated region
              $region44: #{fwd.16} parent=31 // pred_check
                _
              $region45: #{fwd.16} parent=31 // pred_check_branch
                %205 = sbr.rel (0) target = $region47
              $region46: #{fwd.16} parent=31 // pred_region
                loop: start=0, step=1, limit=1
                $region48: #{fwd.16} parent=46 // loop_pre_header
                  _
                $region49: #{fwd.16} parent=46 // loop_header
                  %s207 = sphi 0, %s211
                  %p208 = scmp.ge.s32.totalorder %s207, 1
                  %s212 = sphi %s179, %s179
                  %s213 = sphi %s173, %s173
                $region50: #{fwd.16} parent=46 // loop_header_branch
                  %210 = sbr.rel (%p208) target = $region54
                $region51: #{fwd.16} parent=46 // loop_body
                  %v214 = vld [vmem:[%s212] sm:$0xff]
                  %215 = vst [vmem:[%s213] sm:$0xff] %v214
                  %v216 = vld [vmem:[%s212 + $0x18] sm:$0xff]
                  %217 = vst [vmem:[%s213 + $0x8] sm:$0xff] %v216
                  %v218 = vld [vmem:[%s212 + $0x30] sm:$0xff]
                  %219 = vst [vmem:[%s213 + $0x10] sm:$0xff] %v218
                  %v220 = vld [vmem:[%s212 + $0x48] sm:$0xff]
                  %221 = vst [vmem:[%s213 + $0x18] sm:$0xff] %v220
                $region52: #{fwd.16} parent=46 // loop_footer
                  %s211 = sadd.s32 1, %s207
                $region53: #{fwd.16} parent=46 // loop_footer_branch
                  %206 = sbr.rel target = $region49
                $region54: #{fwd.16} parent=46 // loop_exit
                  _
              $region47: #{fwd.16} parent=31 // pred_fallthru
                _
              // Predicated region
              $region55: #{fwd.16} parent=31 // pred_check
                _
              $region56: #{fwd.16} parent=31 // pred_check_branch
                %223 = sbr.rel target = $region58
              $region57: #{fwd.16} parent=31 // pred_region
                _
              $region58: #{fwd.16} parent=31 // pred_fallthru
                _
            $region32: #{fwd.16} parent=27 // pred_fallthru
              _
            // Predicated region
            $region33: #{fwd.16} parent=27 // pred_check
              _
            $region34: #{fwd.16} parent=27 // pred_check_branch
              %185 = sbr.rel target = $region36
            $region35: #{fwd.16} parent=27 // pred_region
              %s187 = ssub.s32 256, 1
              loop: start=0, step=1, limit=1
              $region37: #{fwd.16} parent=35 // loop_pre_header
                _
              $region38: #{fwd.16} parent=35 // loop_header
                %s189 = sphi 0, %s193
                %p190 = scmp.ge.s32.totalorder %s189, 1
                %s194 = sphi %s179, %s179
                %s195 = sphi %s173, %s173
              $region39: #{fwd.16} parent=35 // loop_header_branch
                %192 = sbr.rel (%p190) target = $region43
              $region40: #{fwd.16} parent=35 // loop_body
                %v196 = vld [vmem:[%s194] sm:%s187]
                %197 = vst [vmem:[%s195] sm:%s187] %v196
                %v198 = vld [vmem:[%s194 + $0x18] sm:%s187]
                %199 = vst [vmem:[%s195 + $0x8] sm:%s187] %v198
                %v200 = vld [vmem:[%s194 + $0x30] sm:%s187]
                %201 = vst [vmem:[%s195 + $0x10] sm:%s187] %v200
                %v202 = vld [vmem:[%s194 + $0x48] sm:%s187]
                %203 = vst [vmem:[%s195 + $0x18] sm:%s187] %v202
              $region41: #{fwd.16} parent=35 // loop_footer
                %s193 = sadd.s32 1, %s189
              $region42: #{fwd.16} parent=35 // loop_footer_branch
                %188 = sbr.rel target = $region38
              $region43: #{fwd.16} parent=35 // loop_exit
                _
            $region36: #{fwd.16} parent=27 // pred_fallthru
              _
          $region28: #{fwd.16} parent=23 // pred_fallthru
            _
          %224 = vnop
        $region24: #{fwd.16} parent=19 // pred_fallthru
          _
        // Predicated region
        $region59: #{fwd.16} parent=19 // pred_check
          %p225 = pneg %p104
        $region60: #{fwd.16} parent=19 // pred_check_branch
          %227 = sbr.rel (%p225) target = $region62
        $region61: #{fwd.16} parent=19 // pred_region
          %s228 = smul.u32 2, %s17
          %p229 = scmp.lt.s32.totalorder %s228, 5
          %s230 = scalar_select %p229, %s228, 5
          %s231 = scalar_lea.vmem %s2, %s230
          %s232 = smul.u32 2, %s17
        $region62: #{fwd.16} parent=19 // pred_fallthru
          _
      $region20: #{fwd.16} parent=5 // pred_fallthru
        _
      %p233 = scmp.le.s32.totalorder 1, %s9
      %p234 = scmp.lt.s32.totalorder %s9, 4
      %p235 = pnand %p233, %p234
      %p236 = pneg %p235
      // Predicated region
      $region63: #{fwd.16} parent=5 // pred_check
        _
      $region64: #{fwd.16} parent=5 // pred_check_branch
        %238 = sbr.rel (%p235) target = $region66
      $region65: #{fwd.16} parent=5 // pred_region
        %s239 = ssub.s32 %s9, 1
        %s240 = sand.u32 %s71, 1
        %s241 = sand.u32 %s71, 1
        %s242 = smul.addr %s241, 32
        %s243 = scalar_lea.vmem [#allocation3], %s242
        // Predicated region
        $region67: #{fwd.16} parent=65 // pred_check
          %p244 = pneg %p84
        $region68: #{fwd.16} parent=65 // pred_check_branch
          %246 = sbr.rel (%p244) target = $region70
        $region69: #{fwd.16} parent=65 // pred_region
          _
        $region70: #{fwd.16} parent=65 // pred_fallthru
          _
        %p247 = scmp.lt.s32.totalorder %s19, 0
        %s248 = scalar_select %p247, %s19, 0
        %p249 = scmp.lt.s32.totalorder %s21, 0
        %s250 = scalar_select %p249, %s21, 0
        %s251 = sadd.s32 %s250, %s248
        %s252 = smul.addr %s251, 4
        %s253 = scalar_lea.vmem %s0, %s252
        %p254 = pneg %p56
        %p255 = pneg %p53
        %s256 = sand.u32 %s71, 1
        %s257 = sand.u32 %s71, 1
        %s258 = smul.addr %s257, 32
        %s259 = scalar_lea.vmem [#allocation3], %s258
        %p260 = pneg %p84
        %p261 = pneg %p81
        %s262 = smul.u32 2, %s20
        %p263 = scmp.lt.s32.totalorder %s262, 5
        %s264 = scalar_select %p263, %s262, 5
        %s265 = scalar_lea.vmem %s2, %s264
        %p266 = pneg %p110
        %p267 = pneg %p107
        %p268 = pneg %p138
        %p269 = pneg %p135
        %s270 = smul.u32 2, %s20
        %p271 = scmp.lt.s32.totalorder %s19, 0
        %s272 = scalar_select %p271, %s19, 0
        %p273 = scmp.lt.s32.totalorder %s270, 5
        %s274 = scalar_select %p273, %s270, 5
        %s275 = smul.addr %s272, 6
        %s276 = sadd.s32 %s274, %s275
        %s277 = smul.addr %s276, 8
        %s278 = scalar_lea.vmem %s3, %s277
        %p279 = scmp.lt.s32.totalorder %s19, 0
        %s280 = scalar_select %p279, %s19, 0
        %p281 = scmp.lt.s32.totalorder %s21, 0
        %s282 = scalar_select %p281, %s21, 0
        %s283 = sadd.s32 %s282, %s280
        %s284 = smul.addr %s283, 4
        %s285 = scalar_lea.vmem %s0, %s284
        %s286 = smul.u32 4, %s21
        %s287 = smul.u32 2, %s20
        %s288 = smul.u32 2, %s20
        %p289 = scmp.lt.s32.totalorder %s288, 5
        %s290 = scalar_select %p289, %s288, 5
        %s291 = scalar_lea.vmem %s2, %s290
        %s292 = smul.u32 2, %s20
        %s293 = smul.u32 2, %s20
        %p294 = scmp.lt.s32.totalorder %s19, 0
        %s295 = scalar_select %p294, %s19, 0
        %p296 = scmp.lt.s32.totalorder %s293, 5
        %s297 = scalar_select %p296, %s293, 5
        %s298 = smul.addr %s295, 6
        %s299 = sadd.s32 %s297, %s298
        %s300 = smul.addr %s299, 8
        %s301 = scalar_lea.vmem %s3, %s300
        %s302 = smul.u32 2, %s20
        %p304 = scmp.eq.s32.totalorder %s21, 0
        // Predicated region
        $region71: #{fwd.16} parent=65 // pred_check
          %p305 = pneg %p304
        $region72: #{fwd.16} parent=65 // pred_check_branch
          %307 = sbr.rel (%p305) target = $region74
        $region73: #{fwd.16} parent=65 // pred_region
          %308 = vst [vmem:[#allocation2] sm:$0xff] 0.0
          %309 = vst [vmem:[#allocation2 + $0x8] sm:$0xff] 0.0
        $region74: #{fwd.16} parent=65 // pred_fallthru
          _
        %v310 = vld [vmem:[#allocation2] sm:$0xff]
        %v311 = vld [vmem:[#allocation2 + $0x8] sm:$0xff]
        %v312 = vld [vmem:[%s285] sm:$0xf]
        %v313 = vld [vmem:[%s243] sm:$0xff]
        %v314 = vld [vmem:[%s243 + $0x8] sm:$0xff]
        %v315 = vld [vmem:[%s243 + $0x10] sm:$0xff]
        %v316 = vld [vmem:[%s243 + $0x18] sm:$0xff]
        %v321 = vunpack.c.l.b16 %v313
        %v322 = vunpack.c.h.b16 %v313
        %v323 = vunpack.c.l.b16 %v314
        %v324 = vunpack.c.h.b16 %v314
        %v325 = vunpack.c.l.b16 %v315
        %v326 = vunpack.c.h.b16 %v315
        %v327 = vunpack.c.l.b16 %v316
        %v328 = vunpack.c.h.b16 %v316
        %v329 = vpack.c.b16 %v323, %v321
        %v330 = vpack.c.b16 %v324, %v322
        %v331 = vpack.c.b16 %v327, %v325
        %v332 = vpack.c.b16 %v328, %v326
        %vm337 = vcmask 261120
        %v339 = vsel %vm337, %v312, 0
        %341 = vmatprep.subr.bf16.mxu0 0
        %342 = vmatpush1.bf16.msra.mxu0 0
        %343 = vmatprep.subr.bf16.mxu0 0
        %344 = vmatpush1.bf16.msra.mxu0 0
        %345 = vmatprep.subr.bf16.mxu0 0
        %346 = vmatpush1.bf16.msra.mxu0 0
        %347 = vmatprep.subr.bf16.mxu0 0
        %348 = vmatpush1.bf16.msra.mxu0 0
        %349 = vmatprep.subr.bf16.mxu0 0
        %350 = vmatpush1.bf16.msra.mxu0 0
        %351 = vmatprep.subr.bf16.mxu0 0
        %352 = vmatpush1.bf16.msra.mxu0 0
        %353 = vmatprep.subr.bf16.mxu0 %v332
        %354 = vmatpush1.bf16.msra.mxu0 %v331
        %355 = vmatprep.subr.bf16.mxu0 %v330
        %356 = vmatpush1.bf16.msra.mxu0 %v329
        %357 = vmatprep.subr.bf16.mxu0 0
        %358 = vmatpush2.bf16.msra.mxu0 0
        %359 = vmatprep.subr.bf16.mxu0 0
        %360 = vmatpush2.bf16.msra.mxu0 0
        %361 = vmatprep.subr.bf16.mxu0 0
        %362 = vmatpush2.bf16.msra.mxu0 0
        %363 = vmatprep.subr.bf16.mxu0 0
        %364 = vmatpush2.bf16.msra.mxu0 0
        %365 = vmatprep.subr.bf16.mxu0 0
        %366 = vmatpush2.bf16.msra.mxu0 0
        %367 = vmatprep.subr.bf16.mxu0 0
        %368 = vmatpush2.bf16.msra.mxu0 0
        %369 = vmatprep.subr.bf16.mxu0 0
        %370 = vmatpush2.bf16.msra.mxu0 0
        %371 = vmatprep.subr.bf16.mxu0 0
        %372 = vmatpush2.bf16.msra.mxu0 0
        %373 = vmatprep.mubr.bf16.mxu0 0
        %374 = vmatmul.mubr.bf16.gmra.mxu0 %v339
        %v375 = vpop.f32.mrf.mxu0
        %v376 = vadd.f32 0.0, %v375
        %v377 = vpop.f32.mrf.mxu0
        %v378 = vadd.f32 0.0, %v377
        %v379 = vpop.f32.mrf.mxu0
        %v380 = vpop.f32.mrf.mxu0
        %381 = vdwg.mxu0
        %v382 = vadd.f32 %v310, %v376
        %v383 = vadd.f32 %v311, %v378
        %384 = vst [vmem:[#allocation2] sm:$0xff] %v382
        %385 = vst [vmem:[#allocation2 + $0x8] sm:$0xff] %v383
        // Predicated region
        $region75: #{fwd.16} parent=65 // pred_check
          %p386 = pneg %p304
        $region76: #{fwd.16} parent=65 // pred_check_branch
          %388 = sbr.rel (%p386) target = $region78
        $region77: #{fwd.16} parent=65 // pred_region
          %v389 = vld [vmem:[#allocation2] sm:$0xff]
          %v390 = vld [vmem:[#allocation2 + $0x8] sm:$0xff]
          %v391 = vld [vmem:[%s291] sm:$0x3]
          %v393 = vlaneseq
          %v394 = vshrl.u32 %v393, 7
          %v395 = vsub.s32 0, %v394
          %v396 = vrot.slane %v391, %v395
          %v397 = vlaneseq
          %v398 = vshrl.u32 %v397, 7
          %v399 = vsub.s32 1, %v398
          %v400 = vrot.slane %v391, %v399
          %v403 = vadd.f32 %v389, %v396
          %v404 = vadd.f32 %v390, %v400
          %405 = vst [vmem:[%s301] sm:$0xff] %v403
          %406 = vst [vmem:[%s301 + $0x8] sm:$0xff] %v404
        $region78: #{fwd.16} parent=65 // pred_fallthru
          _
        %s407 = smul.u32 2, %s20
        %p408 = scmp.lt.s32.totalorder %s19, 0
        %s409 = scalar_select %p408, %s19, 0
        %p410 = scmp.lt.s32.totalorder %s407, 5
        %s411 = scalar_select %p410, %s407, 5
        %s412 = smul.addr %s409, 6
        %s413 = sadd.s32 %s411, %s412
        %s414 = smul.addr %s413, 8
        %s415 = scalar_lea.vmem %s3, %s414
        // Predicated region
        $region79: #{fwd.16} parent=65 // pred_check
          %p416 = pneg %p135
        $region80: #{fwd.16} parent=65 // pred_check_branch
          %418 = sbr.rel (%p416) target = $region82
        $region81: #{fwd.16} parent=65 // pred_region
          %s419 = smul.u32 2, %s20
        $region82: #{fwd.16} parent=65 // pred_fallthru
          _
      $region66: #{fwd.16} parent=5 // pred_fallthru
        _
      %p420 = scmp.le.s32.totalorder 2, %s9
      // Predicated region
      $region83: #{fwd.16} parent=5 // pred_check
        %p421 = pneg %p420
      $region84: #{fwd.16} parent=5 // pred_check_branch
        %423 = sbr.rel (%p421) target = $region86
      $region85: #{fwd.16} parent=5 // pred_region
        %s424 = ssub.s32 %s9, 2
        // Predicated region
        $region87: #{fwd.16} parent=85 // pred_check
          %p425 = pneg %p141
        $region88: #{fwd.16} parent=85 // pred_check_branch
          %427 = sbr.rel (%p425) target = $region90
        $region89: #{fwd.16} parent=85 // pred_region
          %s428 = smul.u32 2, %s23
          %p429 = scmp.lt.s32.totalorder %s22, 0
          %s430 = scalar_select %p429, %s22, 0
          %p431 = scmp.lt.s32.totalorder %s428, 5
          %s432 = scalar_select %p431, %s428, 5
          %s433 = smul.addr %s430, 6
          %s434 = sadd.s32 %s432, %s433
          %s435 = smul.addr %s434, 8
          %s436 = scalar_lea.vmem %s3, %s435
        $region90: #{fwd.16} parent=85 // pred_fallthru
          _
      $region86: #{fwd.16} parent=5 // pred_fallthru
        _
    $region6: #{fwd.16} parent=1 // loop_footer
      %s13 = sadd.s32 1, %s9
    $region7: #{fwd.16} parent=1 // loop_footer_branch
      %8 = sbr.rel target = $region3
    $region8: #{fwd.16} parent=1 // loop_exit
      _

// kernel: fwd.18
$region0: #{fwd.18}
  #allocation0 [shape = 'u32[]', space=smem, size = 0x4, offset = 0x4, fixed_abs, tag = 'smem constant byte address 0x4 - core index']
  #allocation1 [shape = 'u32[144,128]{1,0:T(1,128)}', space=vmem, size = 0x12000, scoped, tag = 'internal scratch']
  %s0 = inlined_call_operand.vmem [shape: f32[2,128], index: 0, kind: input, shape index: {}]
  %s1 = inlined_call_operand.vmem [shape: bf16[128,128], index: 1, kind: input, shape index: {}]
  %s2 = inlined_call_operand.vmem [shape: f32[1,128], index: 2, kind: input, shape index: {}]
  %s3 = inlined_call_operand.vmem [shape: bf16[128,128], index: 3, kind: input, shape index: {}]
  %s4 = inlined_call_operand.vmem [shape: f32[1,128], index: 4, kind: input, shape index: {}]
  %s5 = inlined_call_operand.vmem [shape: f32[2,128], index: 5, kind: output, shape index: {}]
  %s6 = sld [smem:[#allocation0]]
  $region30: #{fwd.18} parent=0
    _
  %s8 = ssub.s32 1, %s6
  %s9 = scalar_select 0, %s8, %s6
  // Predicated region
  $region2: #{fwd.18} parent=0 // pred_check
    _
  $region3: #{fwd.18} parent=0 // pred_check_branch
    %11 = sbr.rel (0) target = $region5
  $region4: #{fwd.18} parent=0 // pred_region
    _
  $region5: #{fwd.18} parent=0 // pred_fallthru
    _
  // Predicated region
  $region6: #{fwd.18} parent=0 // pred_check
    _
  $region7: #{fwd.18} parent=0 // pred_check_branch
    %13 = sbr.rel (0) target = $region9
  $region8: #{fwd.18} parent=0 // pred_region
    _
  $region9: #{fwd.18} parent=0 // pred_fallthru
    _
  // Predicated region
  $region10: #{fwd.18} parent=0 // pred_check
    _
  $region11: #{fwd.18} parent=0 // pred_check_branch
    %15 = sbr.rel (0) target = $region13
  $region12: #{fwd.18} parent=0 // pred_region
    _
  $region13: #{fwd.18} parent=0 // pred_fallthru
    _
  // Predicated region
  $region14: #{fwd.18} parent=0 // pred_check
    _
  $region15: #{fwd.18} parent=0 // pred_check_branch
    %17 = sbr.rel (0) target = $region17
  $region16: #{fwd.18} parent=0 // pred_region
    _
  $region17: #{fwd.18} parent=0 // pred_fallthru
    _
  // Predicated region
  $region18: #{fwd.18} parent=0 // pred_check
    _
  $region19: #{fwd.18} parent=0 // pred_check_branch
    %19 = sbr.rel (0) target = $region21
  $region20: #{fwd.18} parent=0 // pred_region
    _
  $region21: #{fwd.18} parent=0 // pred_fallthru
    _
  %v21 = vld [vmem:[%s0] sm:$0x3]
  %v22 = vpack.c.bf16 %v21, %v21
  %v23 = vld [vmem:[%s1] sm:$0xf]
  %v24 = vld [vmem:[%s1 + $0x4] sm:$0xf]
  %v25 = vld [vmem:[%s1 + $0x8] sm:$0xf]
  %v26 = vld [vmem:[%s1 + $0xc] sm:$0xf]
  %v27 = vld [vmem:[%s1 + $0x10] sm:$0xf]
  %v28 = vld [vmem:[%s1 + $0x14] sm:$0xf]
  %v29 = vld [vmem:[%s1 + $0x18] sm:$0xf]
  %v30 = vld [vmem:[%s1 + $0x1c] sm:$0xf]
  %v31 = vld [vmem:[%s1 + $0x20] sm:$0xf]
  %v32 = vld [vmem:[%s1 + $0x24] sm:$0xf]
  %v33 = vld [vmem:[%s1 + $0x28] sm:$0xf]
  %v34 = vld [vmem:[%s1 + $0x2c] sm:$0xf]
  %v35 = vld [vmem:[%s1 + $0x30] sm:$0xf]
  %v36 = vld [vmem:[%s1 + $0x34] sm:$0xf]
  %v37 = vld [vmem:[%s1 + $0x38] sm:$0xf]
  %v38 = vld [vmem:[%s1 + $0x3c] sm:$0xf]
  %v39 = vld [vmem:[%s2] sm:$0x1]
  %v41 = vlaneseq
  %v42 = vshrl.u32 %v41, 7
  %v43 = vsub.s32 0, %v42
  %v44 = vrot.slane %v39, %v43
  %v62 = vunpack.c.l.b16 %v23
  %v63 = vunpack.c.l.b16 %v24
  %v64 = vunpack.c.l.b16 %v25
  %v65 = vunpack.c.l.b16 %v26
  %v66 = vunpack.c.l.b16 %v27
  %v67 = vunpack.c.l.b16 %v28
  %v68 = vunpack.c.l.b16 %v29
  %v69 = vunpack.c.l.b16 %v30
  %v70 = vunpack.c.l.b16 %v31
  %v71 = vunpack.c.l.b16 %v32
  %v72 = vunpack.c.l.b16 %v33
  %v73 = vunpack.c.l.b16 %v34
  %v74 = vunpack.c.l.b16 %v35
  %v75 = vunpack.c.l.b16 %v36
  %v76 = vunpack.c.l.b16 %v37
  %v77 = vunpack.c.l.b16 %v38
  %v78 = vpack.c.b16 %v63, %v62
  %v79 = vpack.c.b16 %v65, %v64
  %v80 = vpack.c.b16 %v67, %v66
  %v81 = vpack.c.b16 %v69, %v68
  %v82 = vpack.c.b16 %v71, %v70
  %v83 = vpack.c.b16 %v73, %v72
  %v84 = vpack.c.b16 %v75, %v74
  %v85 = vpack.c.b16 %v77, %v76
  %94 = vmatprep.subr.bf16.mxu0 0
  %95 = vmatpush1.bf16.msra.mxu0 %v85
  %96 = vmatprep.subr.bf16.mxu0 0
  %97 = vmatpush1.bf16.msra.mxu0 %v84
  %98 = vmatprep.subr.bf16.mxu0 0
  %99 = vmatpush1.bf16.msra.mxu0 %v83
  %100 = vmatprep.subr.bf16.mxu0 0
  %101 = vmatpush1.bf16.msra.mxu0 %v82
  %102 = vmatprep.subr.bf16.mxu0 0
  %103 = vmatpush1.bf16.msra.mxu0 %v81
  %104 = vmatprep.subr.bf16.mxu0 0
  %105 = vmatpush1.bf16.msra.mxu0 %v80
  %106 = vmatprep.subr.bf16.mxu0 0
  %107 = vmatpush1.bf16.msra.mxu0 %v79
  %108 = vmatprep.subr.bf16.mxu0 0
  %109 = vmatpush1.bf16.msra.mxu0 %v78
  %110 = vmatprep.subr.bf16.mxu0 0
  %111 = vmatpush2.bf16.msra.mxu0 0
  %112 = vmatprep.subr.bf16.mxu0 0
  %113 = vmatpush2.bf16.msra.mxu0 0
  %114 = vmatprep.subr.bf16.mxu0 0
  %115 = vmatpush2.bf16.msra.mxu0 0
  %116 = vmatprep.subr.bf16.mxu0 0
  %117 = vmatpush2.bf16.msra.mxu0 0
  %118 = vmatprep.subr.bf16.mxu0 0
  %119 = vmatpush2.bf16.msra.mxu0 0
  %120 = vmatprep.subr.bf16.mxu0 0
  %121 = vmatpush2.bf16.msra.mxu0 0
  %122 = vmatprep.subr.bf16.mxu0 0
  %123 = vmatpush2.bf16.msra.mxu0 0
  %124 = vmatprep.subr.bf16.mxu0 0
  %125 = vmatpush2.bf16.msra.mxu0 0
  %126 = vmatprep.mubr.bf16.mxu0 0
  %127 = vmatmul.mubr.bf16.gmra.mxu0 %v22
  %v128 = vpop.f32.mrf.mxu0
  %v129 = vadd.f32 %v44, %v128
  %v130 = vpop.f32.mrf.mxu0
  %v131 = vpop.f32.mrf.mxu0
  %v132 = vpop.f32.mrf.mxu0
  %133 = vdwg.mxu0
  %v134 = vxor.u32 %v129, 2147483648
  %v135 = vmul.f32 %v134, 1.442695
  %v136 = vpow.pop %v135
  %v137 = vadd.f32 %v136, 1.0
  %v138 = vrcp.pop %v137
  %v139 = vmul.f32 1.0, %v138
  %v140 = vmul.f32 %v129, %v139
  %v141 = vpack.c.bf16 %v140, %v140
  %v142 = vld [vmem:[%s3] sm:$0xf]
  %v143 = vld [vmem:[%s3 + $0x4] sm:$0xf]
  %v144 = vld [vmem:[%s3 + $0x8] sm:$0xf]
  %v145 = vld [vmem:[%s3 + $0xc] sm:$0xf]
  %v146 = vld [vmem:[%s3 + $0x10] sm:$0xf]
  %v147 = vld [vmem:[%s3 + $0x14] sm:$0xf]
  %v148 = vld [vmem:[%s3 + $0x18] sm:$0xf]
  %v149 = vld [vmem:[%s3 + $0x1c] sm:$0xf]
  %v150 = vld [vmem:[%s3 + $0x20] sm:$0xf]
  %v151 = vld [vmem:[%s3 + $0x24] sm:$0xf]
  %v152 = vld [vmem:[%s3 + $0x28] sm:$0xf]
  %v153 = vld [vmem:[%s3 + $0x2c] sm:$0xf]
  %v154 = vld [vmem:[%s3 + $0x30] sm:$0xf]
  %v155 = vld [vmem:[%s3 + $0x34] sm:$0xf]
  %v156 = vld [vmem:[%s3 + $0x38] sm:$0xf]
  %v157 = vld [vmem:[%s3 + $0x3c] sm:$0xf]
  %v158 = vld [vmem:[%s4] sm:$0x1]
  %v160 = vlaneseq
  %v161 = vshrl.u32 %v160, 7
  %v162 = vsub.s32 0, %v161
  %v163 = vrot.slane %v158, %v162
  %v181 = vunpack.c.l.b16 %v142
  %v182 = vunpack.c.l.b16 %v143
  %v183 = vunpack.c.l.b16 %v144
  %v184 = vunpack.c.l.b16 %v145
  %v185 = vunpack.c.l.b16 %v146
  %v186 = vunpack.c.l.b16 %v147
  %v187 = vunpack.c.l.b16 %v148
  %v188 = vunpack.c.l.b16 %v149
  %v189 = vunpack.c.l.b16 %v150
  %v190 = vunpack.c.l.b16 %v151
  %v191 = vunpack.c.l.b16 %v152
  %v192 = vunpack.c.l.b16 %v153
  %v193 = vunpack.c.l.b16 %v154
  %v194 = vunpack.c.l.b16 %v155
  %v195 = vunpack.c.l.b16 %v156
  %v196 = vunpack.c.l.b16 %v157
  %v197 = vpack.c.b16 %v182, %v181
  %v198 = vpack.c.b16 %v184, %v183
  %v199 = vpack.c.b16 %v186, %v185
  %v200 = vpack.c.b16 %v188, %v187
  %v201 = vpack.c.b16 %v190, %v189
  %v202 = vpack.c.b16 %v192, %v191
  %v203 = vpack.c.b16 %v194, %v193
  %v204 = vpack.c.b16 %v196, %v195
  %213 = vmatprep.subr.bf16.mxu0 0
  %214 = vmatpush1.bf16.msra.mxu0 %v204
  %215 = vmatprep.subr.bf16.mxu0 0
  %216 = vmatpush1.bf16.msra.mxu0 %v203
  %217 = vmatprep.subr.bf16.mxu0 0
  %218 = vmatpush1.bf16.msra.mxu0 %v202
  %219 = vmatprep.subr.bf16.mxu0 0
  %220 = vmatpush1.bf16.msra.mxu0 %v201
  %221 = vmatprep.subr.bf16.mxu0 0
  %222 = vmatpush1.bf16.msra.mxu0 %v200
  %223 = vmatprep.subr.bf16.mxu0 0
  %224 = vmatpush1.bf16.msra.mxu0 %v199
  %225 = vmatprep.subr.bf16.mxu0 0
  %226 = vmatpush1.bf16.msra.mxu0 %v198
  %227 = vmatprep.subr.bf16.mxu0 0
  %228 = vmatpush1.bf16.msra.mxu0 %v197
  %229 = vmatprep.subr.bf16.mxu0 0
  %230 = vmatpush2.bf16.msra.mxu0 0
  %231 = vmatprep.subr.bf16.mxu0 0
  %232 = vmatpush2.bf16.msra.mxu0 0
  %233 = vmatprep.subr.bf16.mxu0 0
  %234 = vmatpush2.bf16.msra.mxu0 0
  %235 = vmatprep.subr.bf16.mxu0 0
  %236 = vmatpush2.bf16.msra.mxu0 0
  %237 = vmatprep.subr.bf16.mxu0 0
  %238 = vmatpush2.bf16.msra.mxu0 0
  %239 = vmatprep.subr.bf16.mxu0 0
  %240 = vmatpush2.bf16.msra.mxu0 0
  %241 = vmatprep.subr.bf16.mxu0 0
  %242 = vmatpush2.bf16.msra.mxu0 0
  %243 = vmatprep.subr.bf16.mxu0 0
  %244 = vmatpush2.bf16.msra.mxu0 0
  %245 = vmatprep.mubr.bf16.mxu0 0
  %246 = vmatmul.mubr.bf16.gmra.mxu0 %v141
  %v247 = vpop.f32.mrf.mxu0
  %v248 = vadd.f32 %v163, %v247
  %v249 = vpop.f32.mrf.mxu0
  %v250 = vpop.f32.mrf.mxu0
  %v251 = vpop.f32.mrf.mxu0
  %252 = vdwg.mxu0
  %v253 = vxor.u32 %v248, 2147483648
  %v254 = vmul.f32 %v253, 1.442695
  %v255 = vpow.pop %v254
  %v256 = vadd.f32 %v255, 1.0
  %v257 = vrcp.pop %v256
  %v258 = vmul.f32 1.0, %v257
  %259 = vst [vmem:[%s5] sm:$0x3] %v258
  // Predicated region
  $region22: #{fwd.18} parent=0 // pred_check
    _
  $region23: #{fwd.18} parent=0 // pred_check_branch
    %261 = sbr.rel (0) target = $region25
  $region24: #{fwd.18} parent=0 // pred_region
    _
  $region25: #{fwd.18} parent=0 // pred_fallthru
    _
  // Predicated region
  $region26: #{fwd.18} parent=0 // pred_check
    _
  $region27: #{fwd.18} parent=0 // pred_check_branch
    %263 = sbr.rel (0) target = $region29
  $region28: #{fwd.18} parent=0 // pred_region
    _
  $region29: #{fwd.18} parent=0 // pred_fallthru
    _

// kernel: fwd.15
$region0: #{fwd.15}
  #allocation0 [shape = 'u32[]', space=smem, size = 0x4, offset = 0x4, fixed_abs, tag = 'smem constant byte address 0x4 - core index']
  #allocation1 [shape = 'u32[144,128]{1,0:T(1,128)}', space=vmem, size = 0x12000, scoped, tag = 'internal scratch']
  #allocation2 [shape = 'f32[128,128]{1,0:T(8,128)}', space=vmem, size = 0x10000, scoped, tag = 'scratch operand']
  %s0 = inlined_call_operand.vmem [shape: bf16[128,27], index: 0, kind: input, shape index: {}]
  %s1 = inlined_call_operand.vmem [shape: bf16[27,128], index: 1, kind: input, shape index: {}]
  %s2 = inlined_call_operand.vmem [shape: f32[1,128], index: 2, kind: input, shape index: {}]
  %s3 = inlined_call_operand.vmem [shape: f32[1,128], index: 3, kind: input, shape index: {}]
  %s4 = inlined_call_operand.vmem [shape: bf16[128,128], index: 4, kind: output, shape index: {}]
  %s5 = sld [smem:[#allocation0]]
  $region34: #{fwd.15} parent=0
    _
  %s7 = ssub.s32 1, %s5
  %s8 = scalar_select 0, %s7, %s5
  // Predicated region
  $region2: #{fwd.15} parent=0 // pred_check
    _
  $region3: #{fwd.15} parent=0 // pred_check_branch
    %10 = sbr.rel (0) target = $region5
  $region4: #{fwd.15} parent=0 // pred_region
    _
  $region5: #{fwd.15} parent=0 // pred_fallthru
    _
  // Predicated region
  $region6: #{fwd.15} parent=0 // pred_check
    _
  $region7: #{fwd.15} parent=0 // pred_check_branch
    %12 = sbr.rel (0) target = $region9
  $region8: #{fwd.15} parent=0 // pred_region
    _
  $region9: #{fwd.15} parent=0 // pred_fallthru
    _
  // Predicated region
  $region10: #{fwd.15} parent=0 // pred_check
    _
  $region11: #{fwd.15} parent=0 // pred_check_branch
    %14 = sbr.rel (0) target = $region13
  $region12: #{fwd.15} parent=0 // pred_region
    _
  $region13: #{fwd.15} parent=0 // pred_fallthru
    _
  // Predicated region
  $region14: #{fwd.15} parent=0 // pred_check
    _
  $region15: #{fwd.15} parent=0 // pred_check_branch
    %16 = sbr.rel (0) target = $region17
  $region16: #{fwd.15} parent=0 // pred_region
    _
  $region17: #{fwd.15} parent=0 // pred_fallthru
    _
  %p18 = scmp.eq.s32.totalorder 0, 0
  // Predicated region
  $region18: #{fwd.15} parent=0 // pred_check
    %p19 = pneg %p18
  $region19: #{fwd.15} parent=0 // pred_check_branch
    %21 = sbr.rel (%p19) target = $region21
  $region20: #{fwd.15} parent=0 // pred_region
    %22 = vst [vmem:[#allocation2] sm:$0xff] 0.0
    %23 = vst [vmem:[#allocation2 + $0x8] sm:$0xff] 0.0
    %24 = vst [vmem:[#allocation2 + $0x10] sm:$0xff] 0.0
    %25 = vst [vmem:[#allocation2 + $0x18] sm:$0xff] 0.0
    %26 = vst [vmem:[#allocation2 + $0x20] sm:$0xff] 0.0
    %27 = vst [vmem:[#allocation2 + $0x28] sm:$0xff] 0.0
    %28 = vst [vmem:[#allocation2 + $0x30] sm:$0xff] 0.0
    %29 = vst [vmem:[#allocation2 + $0x38] sm:$0xff] 0.0
    %30 = vst [vmem:[#allocation2 + $0x40] sm:$0xff] 0.0
    %31 = vst [vmem:[#allocation2 + $0x48] sm:$0xff] 0.0
    %32 = vst [vmem:[#allocation2 + $0x50] sm:$0xff] 0.0
    %33 = vst [vmem:[#allocation2 + $0x58] sm:$0xff] 0.0
    %34 = vst [vmem:[#allocation2 + $0x60] sm:$0xff] 0.0
    %35 = vst [vmem:[#allocation2 + $0x68] sm:$0xff] 0.0
    %36 = vst [vmem:[#allocation2 + $0x70] sm:$0xff] 0.0
    %37 = vst [vmem:[#allocation2 + $0x78] sm:$0xff] 0.0
  $region21: #{fwd.15} parent=0 // pred_fallthru
    _
  %v38 = vld [vmem:[#allocation2] sm:$0xff]
  %v39 = vld [vmem:[#allocation2 + $0x8] sm:$0xff]
  %v40 = vld [vmem:[#allocation2 + $0x10] sm:$0xff]
  %v41 = vld [vmem:[#allocation2 + $0x18] sm:$0xff]
  %v42 = vld [vmem:[#allocation2 + $0x20] sm:$0xff]
  %v43 = vld [vmem:[#allocation2 + $0x28] sm:$0xff]
  %v44 = vld [vmem:[#allocation2 + $0x30] sm:$0xff]
  %v45 = vld [vmem:[#allocation2 + $0x38] sm:$0xff]
  %v46 = vld [vmem:[#allocation2 + $0x40] sm:$0xff]
  %v47 = vld [vmem:[#allocation2 + $0x48] sm:$0xff]
  %v48 = vld [vmem:[#allocation2 + $0x50] sm:$0xff]
  %v49 = vld [vmem:[#allocation2 + $0x58] sm:$0xff]
  %v50 = vld [vmem:[#allocation2 + $0x60] sm:$0xff]
  %v51 = vld [vmem:[#allocation2 + $0x68] sm:$0xff]
  %v52 = vld [vmem:[#allocation2 + $0x70] sm:$0xff]
  %v53 = vld [vmem:[#allocation2 + $0x78] sm:$0xff]
  %v54 = vld [vmem:[%s0] sm:$0xf]
  %v55 = vld [vmem:[%s0 + $0x4] sm:$0xf]
  %v56 = vld [vmem:[%s0 + $0x8] sm:$0xf]
  %v57 = vld [vmem:[%s0 + $0xc] sm:$0xf]
  %v58 = vld [vmem:[%s0 + $0x10] sm:$0xf]
  %v59 = vld [vmem:[%s0 + $0x14] sm:$0xf]
  %v60 = vld [vmem:[%s0 + $0x18] sm:$0xf]
  %v61 = vld [vmem:[%s0 + $0x1c] sm:$0xf]
  %v62 = vld [vmem:[%s0 + $0x20] sm:$0xf]
  %v63 = vld [vmem:[%s0 + $0x24] sm:$0xf]
  %v64 = vld [vmem:[%s0 + $0x28] sm:$0xf]
  %v65 = vld [vmem:[%s0 + $0x2c] sm:$0xf]
  %v66 = vld [vmem:[%s0 + $0x30] sm:$0xf]
  %v67 = vld [vmem:[%s0 + $0x34] sm:$0xf]
  %v68 = vld [vmem:[%s0 + $0x38] sm:$0xf]
  %v69 = vld [vmem:[%s0 + $0x3c] sm:$0xf]
  %v70 = vld [vmem:[%s1] sm:$0xf]
  %v71 = vld [vmem:[%s1 + $0x4] sm:$0xf]
  %v72 = vld [vmem:[%s1 + $0x8] sm:$0xf]
  %v73 = vld [vmem:[%s1 + $0xc] sm:$0x3]
  %v90 = vunpack.c.l.b16 %v54
  %v91 = vunpack.c.l.b16 %v55
  %v92 = vunpack.c.l.b16 %v56
  %v93 = vunpack.c.l.b16 %v57
  %v94 = vunpack.c.l.b16 %v58
  %v95 = vunpack.c.l.b16 %v59
  %v96 = vunpack.c.l.b16 %v60
  %v97 = vunpack.c.l.b16 %v61
  %v98 = vunpack.c.l.b16 %v62
  %v99 = vunpack.c.l.b16 %v63
  %v100 = vunpack.c.l.b16 %v64
  %v101 = vunpack.c.l.b16 %v65
  %v102 = vunpack.c.l.b16 %v66
  %v103 = vunpack.c.l.b16 %v67
  %v104 = vunpack.c.l.b16 %v68
  %v105 = vunpack.c.l.b16 %v69
  %v106 = vpack.c.b16 %v91, %v90
  %v107 = vpack.c.b16 %v93, %v92
  %v108 = vpack.c.b16 %v95, %v94
  %v109 = vpack.c.b16 %v97, %v96
  %v110 = vpack.c.b16 %v99, %v98
  %v111 = vpack.c.b16 %v101, %v100
  %v112 = vpack.c.b16 %v103, %v102
  %v113 = vpack.c.b16 %v105, %v104
  %v118 = vunpack.c.l.b16 %v70
  %v119 = vunpack.c.l.b16 %v71
  %v120 = vunpack.c.l.b16 %v72
  %v121 = vunpack.c.l.b16 %v73
  %v122 = vpack.c.b16 %v119, %v118
  %v123 = vpack.c.b16 %v121, %v120
  %vm125 = vcmask 220160
  %v127 = vsel %vm125, %v106, 0
  %v130 = vsel %vm125, %v107, 0
  %v133 = vsel %vm125, %v108, 0
  %v136 = vsel %vm125, %v109, 0
  %v139 = vsel %vm125, %v110, 0
  %v142 = vsel %vm125, %v111, 0
  %v145 = vsel %vm125, %v112, 0
  %v148 = vsel %vm125, %v113, 0
  %vm150 = vcmask 1044480
  %vm151 = vcmask 1045504
  %v152 = vsel %vm150, 4294967295, 65535
  %v153 = vsel %vm151, %v152, 0
  %v155 = vand.u32 %v123, %v153
  %157 = vmatprep.subr.bf16.mxu0 0
  %158 = vmatpush1.bf16.msra.mxu0 0
  %159 = vmatprep.subr.bf16.mxu0 0
  %160 = vmatpush1.bf16.msra.mxu0 0
  %161 = vmatprep.subr.bf16.mxu0 0
  %162 = vmatpush1.bf16.msra.mxu0 0
  %163 = vmatprep.subr.bf16.mxu0 0
  %164 = vmatpush1.bf16.msra.mxu0 0
  %165 = vmatprep.subr.bf16.mxu0 0
  %166 = vmatpush1.bf16.msra.mxu0 0
  %167 = vmatprep.subr.bf16.mxu0 0
  %168 = vmatpush1.bf16.msra.mxu0 0
  %169 = vmatprep.subr.bf16.mxu0 0
  %170 = vmatpush1.bf16.msra.mxu0 %v155
  %171 = vmatprep.subr.bf16.mxu0 0
  %172 = vmatpush1.bf16.msra.mxu0 %v122
  %173 = vmatprep.subr.bf16.mxu0 0
  %174 = vmatpush2.bf16.msra.mxu0 0
  %175 = vmatprep.subr.bf16.mxu0 0
  %176 = vmatpush2.bf16.msra.mxu0 0
  %177 = vmatprep.subr.bf16.mxu0 0
  %178 = vmatpush2.bf16.msra.mxu0 0
  %179 = vmatprep.subr.bf16.mxu0 0
  %180 = vmatpush2.bf16.msra.mxu0 0
  %181 = vmatprep.subr.bf16.mxu0 0
  %182 = vmatpush2.bf16.msra.mxu0 0
  %183 = vmatprep.subr.bf16.mxu0 0
  %184 = vmatpush2.bf16.msra.mxu0 0
  %185 = vmatprep.subr.bf16.mxu0 0
  %186 = vmatpush2.bf16.msra.mxu0 0
  %187 = vmatprep.subr.bf16.mxu0 0
  %188 = vmatpush2.bf16.msra.mxu0 0
  %189 = vmatprep.mubr.bf16.mxu0 0
  %190 = vmatmul.mubr.bf16.gmra.mxu0 %v127
  %v191 = vpop.f32.mrf.mxu0
  %v192 = vadd.f32 0.0, %v191
  %v193 = vpop.f32.mrf.mxu0
  %v194 = vpop.f32.mrf.mxu0
  %v195 = vadd.f32 0.0, %v194
  %v196 = vpop.f32.mrf.mxu0
  %197 = vmatprep.mubr.bf16.mxu0 0
  %198 = vmatmul.mubr.bf16.gmra.mxu0 %v130
  %v199 = vpop.f32.mrf.mxu0
  %v200 = vadd.f32 0.0, %v199
  %v201 = vpop.f32.mrf.mxu0
  %v202 = vpop.f32.mrf.mxu0
  %v203 = vadd.f32 0.0, %v202
  %v204 = vpop.f32.mrf.mxu0
  %205 = vmatprep.mubr.bf16.mxu0 0
  %206 = vmatmul.mubr.bf16.gmra.mxu0 %v133
  %v207 = vpop.f32.mrf.mxu0
  %v208 = vadd.f32 0.0, %v207
  %v209 = vpop.f32.mrf.mxu0
  %v210 = vpop.f32.mrf.mxu0
  %v211 = vadd.f32 0.0, %v210
  %v212 = vpop.f32.mrf.mxu0
  %213 = vmatprep.mubr.bf16.mxu0 0
  %214 = vmatmul.mubr.bf16.gmra.mxu0 %v136
  %v215 = vpop.f32.mrf.mxu0
  %v216 = vadd.f32 0.0, %v215
  %v217 = vpop.f32.mrf.mxu0
  %v218 = vpop.f32.mrf.mxu0
  %v219 = vadd.f32 0.0, %v218
  %v220 = vpop.f32.mrf.mxu0
  %221 = vmatprep.mubr.bf16.mxu0 0
  %222 = vmatmul.mubr.bf16.gmra.mxu0 %v139
  %v223 = vpop.f32.mrf.mxu0
  %v224 = vadd.f32 0.0, %v223
  %v225 = vpop.f32.mrf.mxu0
  %v226 = vpop.f32.mrf.mxu0
  %v227 = vadd.f32 0.0, %v226
  %v228 = vpop.f32.mrf.mxu0
  %229 = vmatprep.mubr.bf16.mxu0 0
  %230 = vmatmul.mubr.bf16.gmra.mxu0 %v142
  %v231 = vpop.f32.mrf.mxu0
  %v232 = vadd.f32 0.0, %v231
  %v233 = vpop.f32.mrf.mxu0
  %v234 = vpop.f32.mrf.mxu0
  %v235 = vadd.f32 0.0, %v234
  %v236 = vpop.f32.mrf.mxu0
  %237 = vmatprep.mubr.bf16.mxu0 0
  %238 = vmatmul.mubr.bf16.gmra.mxu0 %v145
  %v239 = vpop.f32.mrf.mxu0
  %v240 = vadd.f32 0.0, %v239
  %v241 = vpop.f32.mrf.mxu0
  %v242 = vpop.f32.mrf.mxu0
  %v243 = vadd.f32 0.0, %v242
  %v244 = vpop.f32.mrf.mxu0
  %245 = vmatprep.mubr.bf16.mxu0 0
  %246 = vmatmul.mubr.bf16.gmra.mxu0 %v148
  %v247 = vpop.f32.mrf.mxu0
  %v248 = vadd.f32 0.0, %v247
  %v249 = vpop.f32.mrf.mxu0
  %v250 = vpop.f32.mrf.mxu0
  %v251 = vadd.f32 0.0, %v250
  %v252 = vpop.f32.mrf.mxu0
  %253 = vdwg.mxu0
  %v254 = vadd.f32 %v38, %v192
  %v255 = vadd.f32 %v39, %v195
  %v256 = vadd.f32 %v40, %v200
  %v257 = vadd.f32 %v41, %v203
  %v258 = vadd.f32 %v42, %v208
  %v259 = vadd.f32 %v43, %v211
  %v260 = vadd.f32 %v44, %v216
  %v261 = vadd.f32 %v45, %v219
  %v262 = vadd.f32 %v46, %v224
  %v263 = vadd.f32 %v47, %v227
  %v264 = vadd.f32 %v48, %v232
  %v265 = vadd.f32 %v49, %v235
  %v266 = vadd.f32 %v50, %v240
  %v267 = vadd.f32 %v51, %v243
  %v268 = vadd.f32 %v52, %v248
  %v269 = vadd.f32 %v53, %v251
  %270 = vst [vmem:[#allocation2] sm:$0xff] %v254
  %271 = vst [vmem:[#allocation2 + $0x8] sm:$0xff] %v255
  %272 = vst [vmem:[#allocation2 + $0x10] sm:$0xff] %v256
  %273 = vst [vmem:[#allocation2 + $0x18] sm:$0xff] %v257
  %274 = vst [vmem:[#allocation2 + $0x20] sm:$0xff] %v258
  %275 = vst [vmem:[#allocation2 + $0x28] sm:$0xff] %v259
  %276 = vst [vmem:[#allocation2 + $0x30] sm:$0xff] %v260
  %277 = vst [vmem:[#allocation2 + $0x38] sm:$0xff] %v261
  %278 = vst [vmem:[#allocation2 + $0x40] sm:$0xff] %v262
  %279 = vst [vmem:[#allocation2 + $0x48] sm:$0xff] %v263
  %280 = vst [vmem:[#allocation2 + $0x50] sm:$0xff] %v264
  %281 = vst [vmem:[#allocation2 + $0x58] sm:$0xff] %v265
  %282 = vst [vmem:[#allocation2 + $0x60] sm:$0xff] %v266
  %283 = vst [vmem:[#allocation2 + $0x68] sm:$0xff] %v267
  %284 = vst [vmem:[#allocation2 + $0x70] sm:$0xff] %v268
  %285 = vst [vmem:[#allocation2 + $0x78] sm:$0xff] %v269
  // Predicated region
  $region22: #{fwd.15} parent=0 // pred_check
    %p286 = pneg %p18
  $region23: #{fwd.15} parent=0 // pred_check_branch
    %288 = sbr.rel (%p286) target = $region25
  $region24: #{fwd.15} parent=0 // pred_region
    %v289 = vld [vmem:[#allocation2] sm:$0xff]
    %v290 = vld [vmem:[#allocation2 + $0x8] sm:$0xff]
    %v291 = vld [vmem:[#allocation2 + $0x10] sm:$0xff]
    %v292 = vld [vmem:[#allocation2 + $0x18] sm:$0xff]
    %v293 = vld [vmem:[#allocation2 + $0x20] sm:$0xff]
    %v294 = vld [vmem:[#allocation2 + $0x28] sm:$0xff]
    %v295 = vld [vmem:[#allocation2 + $0x30] sm:$0xff]
    %v296 = vld [vmem:[#allocation2 + $0x38] sm:$0xff]
    %v297 = vld [vmem:[#allocation2 + $0x40] sm:$0xff]
    %v298 = vld [vmem:[#allocation2 + $0x48] sm:$0xff]
    %v299 = vld [vmem:[#allocation2 + $0x50] sm:$0xff]
    %v300 = vld [vmem:[#allocation2 + $0x58] sm:$0xff]
    %v301 = vld [vmem:[#allocation2 + $0x60] sm:$0xff]
    %v302 = vld [vmem:[#allocation2 + $0x68] sm:$0xff]
    %v303 = vld [vmem:[#allocation2 + $0x70] sm:$0xff]
    %v304 = vld [vmem:[#allocation2 + $0x78] sm:$0xff]
    %v305 = vld [vmem:[%s2] sm:$0x1]
    %v307 = vlaneseq
    %v308 = vshrl.u32 %v307, 7
    %v309 = vsub.s32 0, %v308
    %v310 = vrot.slane %v305, %v309
    %v312 = vmul.f32 %v289, %v310
    %v313 = vmul.f32 %v290, %v310
    %v314 = vmul.f32 %v291, %v310
    %v315 = vmul.f32 %v292, %v310
    %v316 = vmul.f32 %v293, %v310
    %v317 = vmul.f32 %v294, %v310
    %v318 = vmul.f32 %v295, %v310
    %v319 = vmul.f32 %v296, %v310
    %v320 = vmul.f32 %v297, %v310
    %v321 = vmul.f32 %v298, %v310
    %v322 = vmul.f32 %v299, %v310
    %v323 = vmul.f32 %v300, %v310
    %v324 = vmul.f32 %v301, %v310
    %v325 = vmul.f32 %v302, %v310
    %v326 = vmul.f32 %v303, %v310
    %v327 = vmul.f32 %v304, %v310
    %v328 = vld [vmem:[%s3] sm:$0x1]
    %v330 = vlaneseq
    %v331 = vshrl.u32 %v330, 7
    %v332 = vsub.s32 0, %v331
    %v333 = vrot.slane %v328, %v332
    %v335 = vadd.f32 %v312, %v333
    %v336 = vadd.f32 %v313, %v333
    %v337 = vadd.f32 %v314, %v333
    %v338 = vadd.f32 %v315, %v333
    %v339 = vadd.f32 %v316, %v333
    %v340 = vadd.f32 %v317, %v333
    %v341 = vadd.f32 %v318, %v333
    %v342 = vadd.f32 %v319, %v333
    %v343 = vadd.f32 %v320, %v333
    %v344 = vadd.f32 %v321, %v333
    %v345 = vadd.f32 %v322, %v333
    %v346 = vadd.f32 %v323, %v333
    %v347 = vadd.f32 %v324, %v333
    %v348 = vadd.f32 %v325, %v333
    %v349 = vadd.f32 %v326, %v333
    %v350 = vadd.f32 %v327, %v333
    %v351 = vxor.u32 %v335, 2147483648
    %v352 = vxor.u32 %v336, 2147483648
    %v353 = vxor.u32 %v337, 2147483648
    %v354 = vxor.u32 %v338, 2147483648
    %v355 = vxor.u32 %v339, 2147483648
    %v356 = vxor.u32 %v340, 2147483648
    %v357 = vxor.u32 %v341, 2147483648
    %v358 = vxor.u32 %v342, 2147483648
    %v359 = vxor.u32 %v343, 2147483648
    %v360 = vxor.u32 %v344, 2147483648
    %v361 = vxor.u32 %v345, 2147483648
    %v362 = vxor.u32 %v346, 2147483648
    %v363 = vxor.u32 %v347, 2147483648
    %v364 = vxor.u32 %v348, 2147483648
    %v365 = vxor.u32 %v349, 2147483648
    %v366 = vxor.u32 %v350, 2147483648
    %v367 = vmul.f32 %v351, 1.442695
    %v368 = vpow.pop %v367
    %v369 = vmul.f32 %v352, 1.442695
    %v370 = vpow.pop %v369
    %v371 = vmul.f32 %v353, 1.442695
    %v372 = vpow.pop %v371
    %v373 = vmul.f32 %v354, 1.442695
    %v374 = vpow.pop %v373
    %v375 = vmul.f32 %v355, 1.442695
    %v376 = vpow.pop %v375
    %v377 = vmul.f32 %v356, 1.442695
    %v378 = vpow.pop %v377
    %v379 = vmul.f32 %v357, 1.442695
    %v380 = vpow.pop %v379
    %v381 = vmul.f32 %v358, 1.442695
    %v382 = vpow.pop %v381
    %v383 = vmul.f32 %v359, 1.442695
    %v384 = vpow.pop %v383
    %v385 = vmul.f32 %v360, 1.442695
    %v386 = vpow.pop %v385
    %v387 = vmul.f32 %v361, 1.442695
    %v388 = vpow.pop %v387
    %v389 = vmul.f32 %v362, 1.442695
    %v390 = vpow.pop %v389
    %v391 = vmul.f32 %v363, 1.442695
    %v392 = vpow.pop %v391
    %v393 = vmul.f32 %v364, 1.442695
    %v394 = vpow.pop %v393
    %v395 = vmul.f32 %v365, 1.442695
    %v396 = vpow.pop %v395
    %v397 = vmul.f32 %v366, 1.442695
    %v398 = vpow.pop %v397
    %v399 = vadd.f32 %v368, 1.0
    %v400 = vadd.f32 %v370, 1.0
    %v401 = vadd.f32 %v372, 1.0
    %v402 = vadd.f32 %v374, 1.0
    %v403 = vadd.f32 %v376, 1.0
    %v404 = vadd.f32 %v378, 1.0
    %v405 = vadd.f32 %v380, 1.0
    %v406 = vadd.f32 %v382, 1.0
    %v407 = vadd.f32 %v384, 1.0
    %v408 = vadd.f32 %v386, 1.0
    %v409 = vadd.f32 %v388, 1.0
    %v410 = vadd.f32 %v390, 1.0
    %v411 = vadd.f32 %v392, 1.0
    %v412 = vadd.f32 %v394, 1.0
    %v413 = vadd.f32 %v396, 1.0
    %v414 = vadd.f32 %v398, 1.0
    %v415 = vrcp.pop %v399
    %v416 = vmul.f32 1.0, %v415
    %v417 = vrcp.pop %v400
    %v418 = vmul.f32 1.0, %v417
    %v419 = vrcp.pop %v401
    %v420 = vmul.f32 1.0, %v419
    %v421 = vrcp.pop %v402
    %v422 = vmul.f32 1.0, %v421
    %v423 = vrcp.pop %v403
    %v424 = vmul.f32 1.0, %v423
    %v425 = vrcp.pop %v404
    %v426 = vmul.f32 1.0, %v425
    %v427 = vrcp.pop %v405
    %v428 = vmul.f32 1.0, %v427
    %v429 = vrcp.pop %v406
    %v430 = vmul.f32 1.0, %v429
    %v431 = vrcp.pop %v407
    %v432 = vmul.f32 1.0, %v431
    %v433 = vrcp.pop %v408
    %v434 = vmul.f32 1.0, %v433
    %v435 = vrcp.pop %v409
    %v436 = vmul.f32 1.0, %v435
    %v437 = vrcp.pop %v410
    %v438 = vmul.f32 1.0, %v437
    %v439 = vrcp.pop %v411
    %v440 = vmul.f32 1.0, %v439
    %v441 = vrcp.pop %v412
    %v442 = vmul.f32 1.0, %v441
    %v443 = vrcp.pop %v413
    %v444 = vmul.f32 1.0, %v443
    %v445 = vrcp.pop %v414
    %v446 = vmul.f32 1.0, %v445
    %v447 = vmul.f32 %v335, %v416
    %v448 = vmul.f32 %v336, %v418
    %v449 = vmul.f32 %v337, %v420
    %v450 = vmul.f32 %v338, %v422
    %v451 = vmul.f32 %v339, %v424
    %v452 = vmul.f32 %v340, %v426
    %v453 = vmul.f32 %v341, %v428
    %v454 = vmul.f32 %v342, %v430
    %v455 = vmul.f32 %v343, %v432
    %v456 = vmul.f32 %v344, %v434
    %v457 = vmul.f32 %v345, %v436
    %v458 = vmul.f32 %v346, %v438
    %v459 = vmul.f32 %v347, %v440
    %v460 = vmul.f32 %v348, %v442
    %v461 = vmul.f32 %v349, %v444
    %v462 = vmul.f32 %v350, %v446
    %v463 = vpack.c.bf16 %v448, %v447
    %v464 = vpack.c.bf16 %v450, %v449
    %v465 = vpack.c.bf16 %v452, %v451
    %v466 = vpack.c.bf16 %v454, %v453
    %v467 = vpack.c.bf16 %v456, %v455
    %v468 = vpack.c.bf16 %v458, %v457
    %v469 = vpack.c.bf16 %v460, %v459
    %v470 = vpack.c.bf16 %v462, %v461
    %v479 = vunpack.c.l.b16 %v463
    %v480 = vunpack.c.h.b16 %v463
    %v481 = vunpack.c.l.b16 %v464
    %v482 = vunpack.c.h.b16 %v464
    %v483 = vunpack.c.l.b16 %v465
    %v484 = vunpack.c.h.b16 %v465
    %v485 = vunpack.c.l.b16 %v466
    %v486 = vunpack.c.h.b16 %v466
    %v487 = vunpack.c.l.b16 %v467
    %v488 = vunpack.c.h.b16 %v467
    %v489 = vunpack.c.l.b16 %v468
    %v490 = vunpack.c.h.b16 %v468
    %v491 = vunpack.c.l.b16 %v469
    %v492 = vunpack.c.h.b16 %v469
    %v493 = vunpack.c.l.b16 %v470
    %v494 = vunpack.c.h.b16 %v470
    %v495 = vpack.c.b16 %v479, %v479
    %v496 = vpack.c.b16 %v480, %v480
    %v497 = vpack.c.b16 %v481, %v481
    %v498 = vpack.c.b16 %v482, %v482
    %v499 = vpack.c.b16 %v483, %v483
    %v500 = vpack.c.b16 %v484, %v484
    %v501 = vpack.c.b16 %v485, %v485
    %v502 = vpack.c.b16 %v486, %v486
    %v503 = vpack.c.b16 %v487, %v487
    %v504 = vpack.c.b16 %v488, %v488
    %v505 = vpack.c.b16 %v489, %v489
    %v506 = vpack.c.b16 %v490, %v490
    %v507 = vpack.c.b16 %v491, %v491
    %v508 = vpack.c.b16 %v492, %v492
    %v509 = vpack.c.b16 %v493, %v493
    %v510 = vpack.c.b16 %v494, %v494
    %527 = vst [vmem:[%s4] sm:$0xf] %v495
    %528 = vst [vmem:[%s4 + $0x4] sm:$0xf] %v496
    %529 = vst [vmem:[%s4 + $0x8] sm:$0xf] %v497
    %530 = vst [vmem:[%s4 + $0xc] sm:$0xf] %v498
    %531 = vst [vmem:[%s4 + $0x10] sm:$0xf] %v499
    %532 = vst [vmem:[%s4 + $0x14] sm:$0xf] %v500
    %533 = vst [vmem:[%s4 + $0x18] sm:$0xf] %v501
    %534 = vst [vmem:[%s4 + $0x1c] sm:$0xf] %v502
    %535 = vst [vmem:[%s4 + $0x20] sm:$0xf] %v503
    %536 = vst [vmem:[%s4 + $0x24] sm:$0xf] %v504
    %537 = vst [vmem:[%s4 + $0x28] sm:$0xf] %v505
    %538 = vst [vmem:[%s4 + $0x2c] sm:$0xf] %v506
    %539 = vst [vmem:[%s4 + $0x30] sm:$0xf] %v507
    %540 = vst [vmem:[%s4 + $0x34] sm:$0xf] %v508
    %541 = vst [vmem:[%s4 + $0x38] sm:$0xf] %v509
    %542 = vst [vmem:[%s4 + $0x3c] sm:$0xf] %v510
  $region25: #{fwd.15} parent=0 // pred_fallthru
    _
  // Predicated region
  $region26: #{fwd.15} parent=0 // pred_check
    _
  $region27: #{fwd.15} parent=0 // pred_check_branch
    %544 = sbr.rel (0) target = $region29
  $region28: #{fwd.15} parent=0 // pred_region
    _
  $region29: #{fwd.15} parent=0 // pred_fallthru
    _
  // Predicated region
  $region30: #{fwd.15} parent=0 // pred_check
    _
  $region31: #{fwd.15} parent=0 // pred_check_branch
    %546 = sbr.rel (0) target = $region33
  $region32: #{fwd.15} parent=0 // pred_region
    _
  $region33: #{fwd.15} parent=0 // pred_fallthru
    _

// kernel: fwd.17
$region0: #{fwd.17}
  #allocation0 [shape = 'u32[]', space=smem, size = 0x4, offset = 0x4, fixed_abs, tag = 'smem constant byte address 0x4 - core index']
  #allocation1 [shape = 'u32[144,128]{1,0:T(1,128)}', space=vmem, size = 0x12000, scoped, tag = 'internal scratch']
  %s0 = inlined_call_operand.vmem [shape: bf16[2,10,10,128], index: 0, kind: input, shape index: {}]
  %s1 = inlined_call_operand.vmem [shape: f32[9,128], index: 1, kind: input, shape index: {}]
  %s2 = inlined_call_operand.vmem [shape: f32[1,128], index: 2, kind: input, shape index: {}]
  %s3 = inlined_call_operand.vmem [shape: f32[1,128], index: 3, kind: input, shape index: {}]
  %s4 = inlined_call_operand.vmem [shape: bf16[2,8,8,128], index: 4, kind: output, shape index: {0}]
  %s5 = inlined_call_operand.vmem [shape: f32[2,1,128], index: 5, kind: output, shape index: {1}]
  %6 = xla_tuple %s4, %s5
  %s7 = sld [smem:[#allocation0]]
  $region57: #{fwd.17} parent=0
    _
  %s9 = ssub.s32 1, %s7
  %s10 = scalar_select 0, %s9, %s7
  loop: start=0, step=1, limit=4
  $region2: #{fwd.17} parent=0 // loop_pre_header
    _
  $region3: #{fwd.17} parent=0 // loop_header
    %s12 = sphi 0, %s16
    %p13 = scmp.ge.s32.totalorder %s12, 4
    %s19 = sphi 0, %s31
    %s20 = sphi 0, %s27
    %s21 = sphi 0, %s19
    %s22 = sphi 0, %s20
    %s23 = sphi 0, %s21
    %s24 = sphi 0, %s22
    %s36 = sphi 0, %s38
    %s39 = sphi 0, %s36
    %s40 = sphi 0, %s39
    %s56 = sphi 0, %s40
    %s62 = sphi 0, %s64
    %s65 = sphi 0, %s62
    %s66 = sphi 0, %s65
    %s82 = sphi 0, %s66
    %s88 = sphi 0, %s90
    %s91 = sphi 0, %s88
    %s92 = sphi 0, %s91
    %s108 = sphi 0, %s92
    %s114 = sphi 0, %s116
    %s117 = sphi 0, %s114
    %s118 = sphi 0, %s117
    %s134 = sphi 0, %s118
    %s142 = sphi 0, %s144
    %s145 = sphi 0, %s142
    %s146 = sphi 0, %s145
    %s162 = sphi 0, %s146
    %s170 = sphi 0, %s172
    %s173 = sphi 0, %s170
    %s174 = sphi 0, %s173
    %s190 = sphi 0, %s174
  $region4: #{fwd.17} parent=0 // loop_header_branch
    %15 = sbr.rel (%p13) target = $region8
  $region5: #{fwd.17} parent=0 // loop_body
    %s17 = ssub.s32 %s12, 1
    %s18 = ssub.s32 %s12, 2
    %s25 = sadd.s32 1, %s20
    %p26 = scmp.ge.s32.totalorder %s25, 1
    %s27 = scalar_select %p26, 0, %s25
    %s28 = sadd.s32 1, %s19
    %s29 = scalar_select %p26, %s28, %s19
    %p30 = scmp.ge.s32.totalorder %s29, 2
    %s31 = scalar_select %p30, 0, %s29
    %s32 = ssub.s32 %s19, %s31
    %s33 = ssub.s32 %s20, %s27
    %s34 = sor.u32 %s32, %s33
    %p35 = scmp.eq.s32.totalorder %s34, 0
    %s37 = sadd.s32 %s36, 1
    %s38 = scalar_select %p35, %s36, %s37
    %p41 = pneg %p35
    %p42 = scmp.eq.s32.totalorder %s12, 1
    %p43 = por %p41, %p42
    %p44 = scmp.ne.s32.totalorder %s36, %s39
    %p45 = scmp.eq.s32.totalorder %s12, 0
    %p46 = por %p44, %p45
    %p47 = scmp.ne.s32.totalorder %s36, %s39
    %p48 = scmp.eq.s32.totalorder %s17, 1
    %p49 = por %p47, %p48
    %p50 = scmp.ne.s32.totalorder %s39, %s40
    %p51 = scmp.eq.s32.totalorder %s17, 0
    %p52 = por %p50, %p51
    %p53 = scmp.ne.s32.totalorder %s39, %s40
    %p54 = scmp.eq.s32.totalorder %s18, 1
    %p55 = por %p53, %p54
    %p57 = scmp.ne.s32.totalorder %s40, %s56
    %p58 = scmp.eq.s32.totalorder %s18, 0
    %p59 = por %p57, %p58
    %s60 = ssub.s32 %s20, %s27
    %p61 = scmp.eq.s32.totalorder %s60, 0
    %s63 = sadd.s32 %s62, 1
    %s64 = scalar_select %p61, %s62, %s63
    %p67 = pneg %p61
    %p68 = scmp.eq.s32.totalorder %s12, 1
    %p69 = por %p67, %p68
    %p70 = scmp.ne.s32.totalorder %s62, %s65
    %p71 = scmp.eq.s32.totalorder %s12, 0
    %p72 = por %p70, %p71
    %p73 = scmp.ne.s32.totalorder %s62, %s65
    %p74 = scmp.eq.s32.totalorder %s17, 1
    %p75 = por %p73, %p74
    %p76 = scmp.ne.s32.totalorder %s65, %s66
    %p77 = scmp.eq.s32.totalorder %s17, 0
    %p78 = por %p76, %p77
    %p79 = scmp.ne.s32.totalorder %s65, %s66
    %p80 = scmp.eq.s32.totalorder %s18, 1
    %p81 = por %p79, %p80
    %p83 = scmp.ne.s32.totalorder %s66, %s82
    %p84 = scmp.eq.s32.totalorder %s18, 0
    %p85 = por %p83, %p84
    %s86 = ssub.s32 %s20, %s27
    %p87 = scmp.eq.s32.totalorder %s86, 0
    %s89 = sadd.s32 %s88, 1
    %s90 = scalar_select %p87, %s88, %s89
    %p93 = pneg %p87
    %p94 = scmp.eq.s32.totalorder %s12, 1
    %p95 = por %p93, %p94
    %p96 = scmp.ne.s32.totalorder %s88, %s91
    %p97 = scmp.eq.s32.totalorder %s12, 0
    %p98 = por %p96, %p97
    %p99 = scmp.ne.s32.totalorder %s88, %s91
    %p100 = scmp.eq.s32.totalorder %s17, 1
    %p101 = por %p99, %p100
    %p102 = scmp.ne.s32.totalorder %s91, %s92
    %p103 = scmp.eq.s32.totalorder %s17, 0
    %p104 = por %p102, %p103
    %p105 = scmp.ne.s32.totalorder %s91, %s92
    %p106 = scmp.eq.s32.totalorder %s18, 1
    %p107 = por %p105, %p106
    %p109 = scmp.ne.s32.totalorder %s92, %s108
    %p110 = scmp.eq.s32.totalorder %s18, 0
    %p111 = por %p109, %p110
    %s112 = ssub.s32 %s20, %s27
    %p113 = scmp.eq.s32.totalorder %s112, 0
    %s115 = sadd.s32 %s114, 1
    %s116 = scalar_select %p113, %s114, %s115
    %p119 = pneg %p113
    %p120 = scmp.eq.s32.totalorder %s12, 1
    %p121 = por %p119, %p120
    %p122 = scmp.ne.s32.totalorder %s114, %s117
    %p123 = scmp.eq.s32.totalorder %s12, 0
    %p124 = por %p122, %p123
    %p125 = scmp.ne.s32.totalorder %s114, %s117
    %p126 = scmp.eq.s32.totalorder %s17, 1
    %p127 = por %p125, %p126
    %p128 = scmp.ne.s32.totalorder %s117, %s118
    %p129 = scmp.eq.s32.totalorder %s17, 0
    %p130 = por %p128, %p129
    %p131 = scmp.ne.s32.totalorder %s117, %s118
    %p132 = scmp.eq.s32.totalorder %s18, 1
    %p133 = por %p131, %p132
    %p135 = scmp.ne.s32.totalorder %s118, %s134
    %p136 = scmp.eq.s32.totalorder %s18, 0
    %p137 = por %p135, %p136
    %s138 = ssub.s32 %s19, %s31
    %s139 = ssub.s32 %s20, %s27
    %s140 = sor.u32 %s138, %s139
    %p141 = scmp.eq.s32.totalorder %s140, 0
    %s143 = sadd.s32 %s142, 1
    %s144 = scalar_select %p141, %s142, %s143
    %p147 = pneg %p141
    %p148 = scmp.eq.s32.totalorder %s12, 1
    %p149 = por %p147, %p148
    %p150 = scmp.ne.s32.totalorder %s142, %s145
    %p151 = scmp.eq.s32.totalorder %s12, 0
    %p152 = por %p150, %p151
    %p153 = scmp.ne.s32.totalorder %s142, %s145
    %p154 = scmp.eq.s32.totalorder %s17, 1
    %p155 = por %p153, %p154
    %p156 = scmp.ne.s32.totalorder %s145, %s146
    %p157 = scmp.eq.s32.totalorder %s17, 0
    %p158 = por %p156, %p157
    %p159 = scmp.ne.s32.totalorder %s145, %s146
    %p160 = scmp.eq.s32.totalorder %s18, 1
    %p161 = por %p159, %p160
    %p163 = scmp.ne.s32.totalorder %s146, %s162
    %p164 = scmp.eq.s32.totalorder %s18, 0
    %p165 = por %p163, %p164
    %s166 = ssub.s32 %s19, %s31
    %s167 = ssub.s32 %s20, %s27
    %s168 = sor.u32 %s166, %s167
    %p169 = scmp.eq.s32.totalorder %s168, 0
    %s171 = sadd.s32 %s170, 1
    %s172 = scalar_select %p169, %s170, %s171
    %p175 = pneg %p169
    %p176 = scmp.eq.s32.totalorder %s12, 1
    %p177 = por %p175, %p176
    %p178 = scmp.ne.s32.totalorder %s170, %s173
    %p179 = scmp.eq.s32.totalorder %s12, 0
    %p180 = por %p178, %p179
    %p181 = scmp.ne.s32.totalorder %s170, %s173
    %p182 = scmp.eq.s32.totalorder %s17, 1
    %p183 = por %p181, %p182
    %p184 = scmp.ne.s32.totalorder %s173, %s174
    %p185 = scmp.eq.s32.totalorder %s17, 0
    %p186 = por %p184, %p185
    %p187 = scmp.ne.s32.totalorder %s173, %s174
    %p188 = scmp.eq.s32.totalorder %s18, 1
    %p189 = por %p187, %p188
    %p191 = scmp.ne.s32.totalorder %s174, %s190
    %p192 = scmp.eq.s32.totalorder %s18, 0
    %p193 = por %p191, %p192
    %p194 = scmp.le.s32.totalorder 1, %s12
    %p195 = scmp.lt.s32.totalorder %s12, 3
    %p196 = pnand %p194, %p195
    %p197 = pneg %p196
    // Predicated region
    $region9: #{fwd.17} parent=5 // pred_check
      _
    $region10: #{fwd.17} parent=5 // pred_check_branch
      %199 = sbr.rel (%p196) target = $region12
    $region11: #{fwd.17} parent=5 // pred_region
      %s200 = ssub.s32 %s12, 1
      // Predicated region
      $region13: #{fwd.17} parent=11 // pred_check
        %p201 = pneg %p78
      $region14: #{fwd.17} parent=11 // pred_check_branch
        %203 = sbr.rel (%p201) target = $region16
      $region15: #{fwd.17} parent=11 // pred_region
        %p204 = scmp.lt.s32.totalorder %s22, 0
        %s205 = scalar_select %p204, %s22, 0
        %s206 = smul.addr %s205, 8
        %s207 = scalar_lea.vmem %s1, %s206
      $region16: #{fwd.17} parent=11 // pred_fallthru
        _
      // Predicated region
      $region17: #{fwd.17} parent=11 // pred_check
        %p208 = pneg %p104
      $region18: #{fwd.17} parent=11 // pred_check_branch
        %210 = sbr.rel (%p208) target = $region20
      $region19: #{fwd.17} parent=11 // pred_region
        %p211 = scmp.lt.s32.totalorder %s22, 0
        %s212 = scalar_select %p211, %s22, 0
        %s213 = scalar_lea.vmem %s2, %s212
      $region20: #{fwd.17} parent=11 // pred_fallthru
        _
      // Predicated region
      $region21: #{fwd.17} parent=11 // pred_check
        %p214 = pneg %p130
      $region22: #{fwd.17} parent=11 // pred_check_branch
        %216 = sbr.rel (%p214) target = $region24
      $region23: #{fwd.17} parent=11 // pred_region
        %p217 = scmp.lt.s32.totalorder %s22, 0
        %s218 = scalar_select %p217, %s22, 0
        %s219 = scalar_lea.vmem %s3, %s218
      $region24: #{fwd.17} parent=11 // pred_fallthru
        _
    $region12: #{fwd.17} parent=5 // pred_fallthru
      _
    %p220 = scmp.lt.s32.totalorder %s12, 2
    // Predicated region
    $region25: #{fwd.17} parent=5 // pred_check
      %p221 = pneg %p220
    $region26: #{fwd.17} parent=5 // pred_check_branch
      %223 = sbr.rel (%p221) target = $region28
    $region27: #{fwd.17} parent=5 // pred_region
      // Predicated region
      $region29: #{fwd.17} parent=27 // pred_check
        %p224 = pneg %p46
      $region30: #{fwd.17} parent=27 // pred_check_branch
        %226 = sbr.rel (%p224) target = $region32
      $region31: #{fwd.17} parent=27 // pred_region
        %p227 = scmp.lt.s32.totalorder %s19, 1
        %s228 = scalar_select %p227, %s19, 1
        %p229 = scmp.lt.s32.totalorder %s20, 0
        %s230 = scalar_select %p229, %s20, 0
        %s231 = smul.addr %s228, 20
        %s232 = sadd.s32 %s230, %s231
        %s233 = smul.addr %s232, 4
        %s234 = scalar_lea.vmem %s0, %s233
      $region32: #{fwd.17} parent=27 // pred_fallthru
        _
    $region28: #{fwd.17} parent=5 // pred_fallthru
      _
    %p235 = scmp.le.s32.totalorder 1, %s12
    %p236 = scmp.lt.s32.totalorder %s12, 3
    %p237 = pnand %p235, %p236
    %p238 = pneg %p237
    // Predicated region
    $region33: #{fwd.17} parent=5 // pred_check
      _
    $region34: #{fwd.17} parent=5 // pred_check_branch
      %240 = sbr.rel (%p237) target = $region36
    $region35: #{fwd.17} parent=5 // pred_region
      %s241 = ssub.s32 %s12, 1
      %p242 = scmp.lt.s32.totalorder %s21, 1
      %s243 = scalar_select %p242, %s21, 1
      %p244 = scmp.lt.s32.totalorder %s22, 0
      %s245 = scalar_select %p244, %s22, 0
      %s246 = smul.addr %s243, 20
      %s247 = sadd.s32 %s245, %s246
      %s248 = smul.addr %s247, 4
      %s249 = scalar_lea.vmem %s0, %s248
      %p250 = pneg %p52
      %p251 = pneg %p49
      %p252 = scmp.lt.s32.totalorder %s22, 0
      %s253 = scalar_select %p252, %s22, 0
      %s254 = smul.addr %s253, 8
      %s255 = scalar_lea.vmem %s1, %s254
      %p256 = pneg %p78
      %p257 = pneg %p75
      %p258 = scmp.lt.s32.totalorder %s22, 0
      %s259 = scalar_select %p258, %s22, 0
      %s260 = scalar_lea.vmem %s2, %s259
      %p261 = pneg %p104
      %p262 = pneg %p101
      %p263 = scmp.lt.s32.totalorder %s22, 0
      %s264 = scalar_select %p263, %s22, 0
      %s265 = scalar_lea.vmem %s3, %s264
      %p266 = pneg %p130
      %p267 = pneg %p127
      %p268 = pneg %p158
      %p269 = pneg %p155
      %p270 = scmp.lt.s32.totalorder %s21, 1
      %s271 = scalar_select %p270, %s21, 1
      %p272 = scmp.lt.s32.totalorder %s22, 0
      %s273 = scalar_select %p272, %s22, 0
      %s274 = smul.addr %s271, 8
      %s275 = sadd.s32 %s273, %s274
      %s276 = smul.addr %s275, 4
      %s277 = scalar_lea.vmem %s4, %s276
      %p278 = pneg %p186
      %p279 = pneg %p183
      %p280 = scmp.lt.s32.totalorder %s21, 1
      %s281 = scalar_select %p280, %s21, 1
      %p282 = scmp.lt.s32.totalorder %s22, 0
      %s283 = scalar_select %p282, %s22, 0
      %s284 = sadd.s32 %s283, %s281
      %s285 = scalar_lea.vmem %s5, %s284
      %p286 = scmp.lt.s32.totalorder %s21, 1
      %s287 = scalar_select %p286, %s21, 1
      %p288 = scmp.lt.s32.totalorder %s22, 0
      %s289 = scalar_select %p288, %s22, 0
      %s290 = smul.addr %s287, 20
      %s291 = sadd.s32 %s289, %s290
      %s292 = smul.addr %s291, 4
      %s293 = scalar_lea.vmem %s0, %s292
      %p294 = scmp.lt.s32.totalorder %s22, 0
      %s295 = scalar_select %p294, %s22, 0
      %s296 = smul.addr %s295, 8
      %s297 = scalar_lea.vmem %s1, %s296
      %p298 = scmp.lt.s32.totalorder %s22, 0
      %s299 = scalar_select %p298, %s22, 0
      %s300 = scalar_lea.vmem %s2, %s299
      %p301 = scmp.lt.s32.totalorder %s22, 0
      %s302 = scalar_select %p301, %s22, 0
      %s303 = scalar_lea.vmem %s3, %s302
      %p304 = scmp.lt.s32.totalorder %s21, 1
      %s305 = scalar_select %p304, %s21, 1
      %p306 = scmp.lt.s32.totalorder %s22, 0
      %s307 = scalar_select %p306, %s22, 0
      %s308 = smul.addr %s305, 8
      %s309 = sadd.s32 %s307, %s308
      %s310 = smul.addr %s309, 4
      %s311 = scalar_lea.vmem %s4, %s310
      %p312 = scmp.lt.s32.totalorder %s21, 1
      %s313 = scalar_select %p312, %s21, 1
      %p314 = scmp.lt.s32.totalorder %s22, 0
      %s315 = scalar_select %p314, %s22, 0
      %s316 = sadd.s32 %s315, %s313
      %s317 = scalar_lea.vmem %s5, %s316
      %v318 = vld [vmem:[%s293] sm:$0xf]
      %v319 = vld [vmem:[%s293 + $0x8] sm:$0xf]
      %v320 = vld [vmem:[%s293 + $0x10] sm:$0xf]
      %v321 = vld [vmem:[%s293 + $0x18] sm:$0xf]
      %v322 = vld [vmem:[%s293 + $0x20] sm:$0xf]
      %v323 = vld [vmem:[%s293 + $0x28] sm:$0xf]
      %v324 = vld [vmem:[%s293 + $0x30] sm:$0xf]
      %v325 = vld [vmem:[%s293 + $0x38] sm:$0xf]
      %v326 = vunpack.c.l.bf16 %v318
      %v327 = vunpack.c.l.bf16 %v319
      %v328 = vunpack.c.l.bf16 %v320
      %v329 = vunpack.c.l.bf16 %v321
      %v330 = vunpack.c.l.bf16 %v322
      %v331 = vunpack.c.l.bf16 %v323
      %v332 = vunpack.c.l.bf16 %v324
      %v333 = vunpack.c.l.bf16 %v325
      %v334 = vld [vmem:[%s297] sm:$0x1]
      %v335 = vlaneseq
      %v336 = vshrl.u32 %v335, 7
      %v337 = vsub.s32 0, %v336
      %v338 = vrot.slane %v334, %v337
      %v339 = vmul.f32 %v326, %v338
      %v340 = vmul.f32 %v327, %v338
      %v341 = vmul.f32 %v328, %v338
      %v342 = vmul.f32 %v329, %v338
      %v343 = vmul.f32 %v330, %v338
      %v344 = vmul.f32 %v331, %v338
      %v345 = vmul.f32 %v332, %v338
      %v346 = vmul.f32 %v333, %v338
      %v347 = vadd.f32 %v339, 0.0
      %v348 = vadd.f32 %v340, 0.0
      %v349 = vadd.f32 %v341, 0.0
      %v350 = vadd.f32 %v342, 0.0
      %v351 = vadd.f32 %v343, 0.0
      %v352 = vadd.f32 %v344, 0.0
      %v353 = vadd.f32 %v345, 0.0
      %v354 = vadd.f32 %v346, 0.0
      %v355 = vld [vmem:[%s293 + $0x4] sm:$0x1]
      %v356 = vld [vmem:[%s293 + $0xc] sm:$0x1]
      %v357 = vld [vmem:[%s293 + $0x14] sm:$0x1]
      %v358 = vld [vmem:[%s293 + $0x1c] sm:$0x1]
      %v359 = vld [vmem:[%s293 + $0x24] sm:$0x1]
      %v360 = vld [vmem:[%s293 + $0x2c] sm:$0x1]
      %v361 = vld [vmem:[%s293 + $0x34] sm:$0x1]
      %v362 = vld [vmem:[%s293 + $0x3c] sm:$0x1]
      %v363 = vunpack.c.l.bf16 %v355
      %v364 = vunpack.c.l.bf16 %v356
      %v365 = vunpack.c.l.bf16 %v357
      %v366 = vunpack.c.l.bf16 %v358
      %v367 = vunpack.c.l.bf16 %v359
      %v368 = vunpack.c.l.bf16 %v360
      %v369 = vunpack.c.l.bf16 %v361
      %v370 = vunpack.c.l.bf16 %v362
      %v371 = vld [vmem:[%s297 + $0x1] sm:$0x1]
      %v372 = vlaneseq
      %v373 = vshrl.u32 %v372, 7
      %v374 = vsub.s32 0, %v373
      %v375 = vrot.slane %v371, %v374
      %v376 = vmul.f32 %v326, %v375
      %v377 = vmul.f32 %v363, %v375
      %v378 = vmul.f32 %v327, %v375
      %v379 = vmul.f32 %v364, %v375
      %v380 = vmul.f32 %v328, %v375
      %v381 = vmul.f32 %v365, %v375
      %v382 = vmul.f32 %v329, %v375
      %v383 = vmul.f32 %v366, %v375
      %v384 = vmul.f32 %v330, %v375
      %v385 = vmul.f32 %v367, %v375
      %v386 = vmul.f32 %v331, %v375
      %v387 = vmul.f32 %v368, %v375
      %v388 = vmul.f32 %v332, %v375
      %v389 = vmul.f32 %v369, %v375
      %v390 = vmul.f32 %v333, %v375
      %v391 = vmul.f32 %v370, %v375
      %vm408 = vcmask 1046528
      %v409 = vrot.slane %v376, 1
      %v410 = vrot.slane %v377, 1
      %v411 = vsel %vm408, %v409, %v410
      %v412 = vrot.slane %v378, 1
      %v413 = vrot.slane %v379, 1
      %v414 = vsel %vm408, %v412, %v413
      %v415 = vrot.slane %v380, 1
      %v416 = vrot.slane %v381, 1
      %v417 = vsel %vm408, %v415, %v416
      %v418 = vrot.slane %v382, 1
      %v419 = vrot.slane %v383, 1
      %v420 = vsel %vm408, %v418, %v419
      %v421 = vrot.slane %v384, 1
      %v422 = vrot.slane %v385, 1
      %v423 = vsel %vm408, %v421, %v422
      %v424 = vrot.slane %v386, 1
      %v425 = vrot.slane %v387, 1
      %v426 = vsel %vm408, %v424, %v425
      %v427 = vrot.slane %v388, 1
      %v428 = vrot.slane %v389, 1
      %v429 = vsel %vm408, %v427, %v428
      %v430 = vrot.slane %v390, 1
      %v431 = vrot.slane %v391, 1
      %v432 = vsel %vm408, %v430, %v431
      %v441 = vadd.f32 %v347, %v411
      %v442 = vadd.f32 %v348, %v414
      %v443 = vadd.f32 %v349, %v417
      %v444 = vadd.f32 %v350, %v420
      %v445 = vadd.f32 %v351, %v423
      %v446 = vadd.f32 %v352, %v426
      %v447 = vadd.f32 %v353, %v429
      %v448 = vadd.f32 %v354, %v432
      %v449 = vld [vmem:[%s293] sm:$0xe]
      %v450 = vld [vmem:[%s293 + $0x8] sm:$0xe]
      %v451 = vld [vmem:[%s293 + $0x10] sm:$0xe]
      %v452 = vld [vmem:[%s293 + $0x18] sm:$0xe]
      %v453 = vld [vmem:[%s293 + $0x20] sm:$0xe]
      %v454 = vld [vmem:[%s293 + $0x28] sm:$0xe]
      %v455 = vld [vmem:[%s293 + $0x30] sm:$0xe]
      %v456 = vld [vmem:[%s293 + $0x38] sm:$0xe]
      %v457 = vunpack.c.l.bf16 %v449
      %v458 = vunpack.c.l.bf16 %v450
      %v459 = vunpack.c.l.bf16 %v451
      %v460 = vunpack.c.l.bf16 %v452
      %v461 = vunpack.c.l.bf16 %v453
      %v462 = vunpack.c.l.bf16 %v454
      %v463 = vunpack.c.l.bf16 %v455
      %v464 = vunpack.c.l.bf16 %v456
      %v465 = vld [vmem:[%s297 + $0x2] sm:$0x1]
      %v466 = vlaneseq
      %v467 = vshrl.u32 %v466, 7
      %v468 = vsub.s32 0, %v467
      %v469 = vrot.slane %v465, %v468
      %v470 = vmul.f32 %v457, %v469
      %v471 = vmul.f32 %v363, %v469
      %v472 = vmul.f32 %v458, %v469
      %v473 = vmul.f32 %v364, %v469
      %v474 = vmul.f32 %v459, %v469
      %v475 = vmul.f32 %v365, %v469
      %v476 = vmul.f32 %v460, %v469
      %v477 = vmul.f32 %v366, %v469
      %v478 = vmul.f32 %v461, %v469
      %v479 = vmul.f32 %v367, %v469
      %v480 = vmul.f32 %v462, %v469
      %v481 = vmul.f32 %v368, %v469
      %v482 = vmul.f32 %v463, %v469
      %v483 = vmul.f32 %v369, %v469
      %v484 = vmul.f32 %v464, %v469
      %v485 = vmul.f32 %v370, %v469
      %vm502 = vcmask 1045504
      %v503 = vrot.slane %v470, 2
      %v504 = vrot.slane %v471, 2
      %v505 = vsel %vm502, %v503, %v504
      %v506 = vrot.slane %v472, 2
      %v507 = vrot.slane %v473, 2
      %v508 = vsel %vm502, %v506, %v507
      %v509 = vrot.slane %v474, 2
      %v510 = vrot.slane %v475, 2
      %v511 = vsel %vm502, %v509, %v510
      %v512 = vrot.slane %v476, 2
      %v513 = vrot.slane %v477, 2
      %v514 = vsel %vm502, %v512, %v513
      %v515 = vrot.slane %v478, 2
      %v516 = vrot.slane %v479, 2
      %v517 = vsel %vm502, %v515, %v516
      %v518 = vrot.slane %v480, 2
      %v519 = vrot.slane %v481, 2
      %v520 = vsel %vm502, %v518, %v519
      %v521 = vrot.slane %v482, 2
      %v522 = vrot.slane %v483, 2
      %v523 = vsel %vm502, %v521, %v522
      %v524 = vrot.slane %v484, 2
      %v525 = vrot.slane %v485, 2
      %v526 = vsel %vm502, %v524, %v525
      %v535 = vadd.f32 %v441, %v505
      %v536 = vadd.f32 %v442, %v508
      %v537 = vadd.f32 %v443, %v511
      %v538 = vadd.f32 %v444, %v514
      %v539 = vadd.f32 %v445, %v517
      %v540 = vadd.f32 %v446, %v520
      %v541 = vadd.f32 %v447, %v523
      %v542 = vadd.f32 %v448, %v526
      %s543 = scalar_lea.vmem %s293, 8
      %v544 = vld [vmem:[%s543] sm:$0xf]
      %v545 = vld [vmem:[%s543 + $0x8] sm:$0xf]
      %v546 = vld [vmem:[%s543 + $0x10] sm:$0xf]
      %v547 = vld [vmem:[%s543 + $0x18] sm:$0xf]
      %v548 = vld [vmem:[%s543 + $0x20] sm:$0xf]
      %v549 = vld [vmem:[%s543 + $0x28] sm:$0xf]
      %v550 = vld [vmem:[%s543 + $0x30] sm:$0xf]
      %v551 = vld [vmem:[%s543 + $0x38] sm:$0xf]
      %v552 = vunpack.c.l.bf16 %v544
      %v553 = vunpack.c.l.bf16 %v545
      %v554 = vunpack.c.l.bf16 %v546
      %v555 = vunpack.c.l.bf16 %v547
      %v556 = vunpack.c.l.bf16 %v548
      %v557 = vunpack.c.l.bf16 %v549
      %v558 = vunpack.c.l.bf16 %v550
      %v559 = vunpack.c.l.bf16 %v551
      %v560 = vld [vmem:[%s297 + $0x3] sm:$0x1]
      %v561 = vlaneseq
      %v562 = vshrl.u32 %v561, 7
      %v563 = vsub.s32 0, %v562
      %v564 = vrot.slane %v560, %v563
      %v565 = vmul.f32 %v552, %v564
      %v566 = vmul.f32 %v553, %v564
      %v567 = vmul.f32 %v554, %v564
      %v568 = vmul.f32 %v555, %v564
      %v569 = vmul.f32 %v556, %v564
      %v570 = vmul.f32 %v557, %v564
      %v571 = vmul.f32 %v558, %v564
      %v572 = vmul.f32 %v559, %v564
      %v573 = vadd.f32 %v535, %v565
      %v574 = vadd.f32 %v536, %v566
      %v575 = vadd.f32 %v537, %v567
      %v576 = vadd.f32 %v538, %v568
      %v577 = vadd.f32 %v539, %v569
      %v578 = vadd.f32 %v540, %v570
      %v579 = vadd.f32 %v541, %v571
      %v580 = vadd.f32 %v542, %v572
      %v581 = vld [vmem:[%s543 + $0x4] sm:$0x1]
      %v582 = vld [vmem:[%s543 + $0xc] sm:$0x1]
      %v583 = vld [vmem:[%s543 + $0x14] sm:$0x1]
      %v584 = vld [vmem:[%s543 + $0x1c] sm:$0x1]
      %v585 = vld [vmem:[%s543 + $0x24] sm:$0x1]
      %v586 = vld [vmem:[%s543 + $0x2c] sm:$0x1]
      %v587 = vld [vmem:[%s543 + $0x34] sm:$0x1]
      %v588 = vld [vmem:[%s543 + $0x3c] sm:$0x1]
      %v589 = vunpack.c.l.bf16 %v581
      %v590 = vunpack.c.l.bf16 %v582
      %v591 = vunpack.c.l.bf16 %v583
      %v592 = vunpack.c.l.bf16 %v584
      %v593 = vunpack.c.l.bf16 %v585
      %v594 = vunpack.c.l.bf16 %v586
      %v595 = vunpack.c.l.bf16 %v587
      %v596 = vunpack.c.l.bf16 %v588
      %v597 = vld [vmem:[%s297 + $0x4] sm:$0x1]
      %v598 = vlaneseq
      %v599 = vshrl.u32 %v598, 7
      %v600 = vsub.s32 0, %v599
      %v601 = vrot.slane %v597, %v600
      %v602 = vmul.f32 %v552, %v601
      %v603 = vmul.f32 %v589, %v601
      %v604 = vmul.f32 %v553, %v601
      %v605 = vmul.f32 %v590, %v601
      %v606 = vmul.f32 %v554, %v601
      %v607 = vmul.f32 %v591, %v601
      %v608 = vmul.f32 %v555, %v601
      %v609 = vmul.f32 %v592, %v601
      %v610 = vmul.f32 %v556, %v601
      %v611 = vmul.f32 %v593, %v601
      %v612 = vmul.f32 %v557, %v601
      %v613 = vmul.f32 %v594, %v601
      %v614 = vmul.f32 %v558, %v601
      %v615 = vmul.f32 %v595, %v601
      %v616 = vmul.f32 %v559, %v601
      %v617 = vmul.f32 %v596, %v601
      %v634 = vrot.slane %v602, 1
      %v635 = vrot.slane %v603, 1
      %v636 = vsel %vm408, %v634, %v635
      %v637 = vrot.slane %v604, 1
      %v638 = vrot.slane %v605, 1
      %v639 = vsel %vm408, %v637, %v638
      %v640 = vrot.slane %v606, 1
      %v641 = vrot.slane %v607, 1
      %v642 = vsel %vm408, %v640, %v641
      %v643 = vrot.slane %v608, 1
      %v644 = vrot.slane %v609, 1
      %v645 = vsel %vm408, %v643, %v644
      %v646 = vrot.slane %v610, 1
      %v647 = vrot.slane %v611, 1
      %v648 = vsel %vm408, %v646, %v647
      %v649 = vrot.slane %v612, 1
      %v650 = vrot.slane %v613, 1
      %v651 = vsel %vm408, %v649, %v650
      %v652 = vrot.slane %v614, 1
      %v653 = vrot.slane %v615, 1
      %v654 = vsel %vm408, %v652, %v653
      %v655 = vrot.slane %v616, 1
      %v656 = vrot.slane %v617, 1
      %v657 = vsel %vm408, %v655, %v656
      %v666 = vadd.f32 %v573, %v636
      %v667 = vadd.f32 %v574, %v639
      %v668 = vadd.f32 %v575, %v642
      %v669 = vadd.f32 %v576, %v645
      %v670 = vadd.f32 %v577, %v648
      %v671 = vadd.f32 %v578, %v651
      %v672 = vadd.f32 %v579, %v654
      %v673 = vadd.f32 %v580, %v657
      %v674 = vld [vmem:[%s543] sm:$0xe]
      %v675 = vld [vmem:[%s543 + $0x8] sm:$0xe]
      %v676 = vld [vmem:[%s543 + $0x10] sm:$0xe]
      %v677 = vld [vmem:[%s543 + $0x18] sm:$0xe]
      %v678 = vld [vmem:[%s543 + $0x20] sm:$0xe]
      %v679 = vld [vmem:[%s543 + $0x28] sm:$0xe]
      %v680 = vld [vmem:[%s543 + $0x30] sm:$0xe]
      %v681 = vld [vmem:[%s543 + $0x38] sm:$0xe]
      %v682 = vunpack.c.l.bf16 %v674
      %v683 = vunpack.c.l.bf16 %v675
      %v684 = vunpack.c.l.bf16 %v676
      %v685 = vunpack.c.l.bf16 %v677
      %v686 = vunpack.c.l.bf16 %v678
      %v687 = vunpack.c.l.bf16 %v679
      %v688 = vunpack.c.l.bf16 %v680
      %v689 = vunpack.c.l.bf16 %v681
      %v690 = vld [vmem:[%s297 + $0x5] sm:$0x1]
      %v691 = vlaneseq
      %v692 = vshrl.u32 %v691, 7
      %v693 = vsub.s32 0, %v692
      %v694 = vrot.slane %v690, %v693
      %v695 = vmul.f32 %v682, %v694
      %v696 = vmul.f32 %v589, %v694
      %v697 = vmul.f32 %v683, %v694
      %v698 = vmul.f32 %v590, %v694
      %v699 = vmul.f32 %v684, %v694
      %v700 = vmul.f32 %v591, %v694
      %v701 = vmul.f32 %v685, %v694
      %v702 = vmul.f32 %v592, %v694
      %v703 = vmul.f32 %v686, %v694
      %v704 = vmul.f32 %v593, %v694
      %v705 = vmul.f32 %v687, %v694
      %v706 = vmul.f32 %v594, %v694
      %v707 = vmul.f32 %v688, %v694
      %v708 = vmul.f32 %v595, %v694
      %v709 = vmul.f32 %v689, %v694
      %v710 = vmul.f32 %v596, %v694
      %v727 = vrot.slane %v695, 2
      %v728 = vrot.slane %v696, 2
      %v729 = vsel %vm502, %v727, %v728
      %v730 = vrot.slane %v697, 2
      %v731 = vrot.slane %v698, 2
      %v732 = vsel %vm502, %v730, %v731
      %v733 = vrot.slane %v699, 2
      %v734 = vrot.slane %v700, 2
      %v735 = vsel %vm502, %v733, %v734
      %v736 = vrot.slane %v701, 2
      %v737 = vrot.slane %v702, 2
      %v738 = vsel %vm502, %v736, %v737
      %v739 = vrot.slane %v703, 2
      %v740 = vrot.slane %v704, 2
      %v741 = vsel %vm502, %v739, %v740
      %v742 = vrot.slane %v705, 2
      %v743 = vrot.slane %v706, 2
      %v744 = vsel %vm502, %v742, %v743
      %v745 = vrot.slane %v707, 2
      %v746 = vrot.slane %v708, 2
      %v747 = vsel %vm502, %v745, %v746
      %v748 = vrot.slane %v709, 2
      %v749 = vrot.slane %v710, 2
      %v750 = vsel %vm502, %v748, %v749
      %v759 = vadd.f32 %v666, %v729
      %v760 = vadd.f32 %v667, %v732
      %v761 = vadd.f32 %v668, %v735
      %v762 = vadd.f32 %v669, %v738
      %v763 = vadd.f32 %v670, %v741
      %v764 = vadd.f32 %v671, %v744
      %v765 = vadd.f32 %v672, %v747
      %v766 = vadd.f32 %v673, %v750
      %s767 = scalar_lea.vmem %s293, 16
      %v768 = vld [vmem:[%s767] sm:$0xf]
      %v769 = vld [vmem:[%s767 + $0x8] sm:$0xf]
      %v770 = vld [vmem:[%s767 + $0x10] sm:$0xf]
      %v771 = vld [vmem:[%s767 + $0x18] sm:$0xf]
      %v772 = vld [vmem:[%s767 + $0x20] sm:$0xf]
      %v773 = vld [vmem:[%s767 + $0x28] sm:$0xf]
      %v774 = vld [vmem:[%s767 + $0x30] sm:$0xf]
      %v775 = vld [vmem:[%s767 + $0x38] sm:$0xf]
      %v776 = vunpack.c.l.bf16 %v768
      %v777 = vunpack.c.l.bf16 %v769
      %v778 = vunpack.c.l.bf16 %v770
      %v779 = vunpack.c.l.bf16 %v771
      %v780 = vunpack.c.l.bf16 %v772
      %v781 = vunpack.c.l.bf16 %v773
      %v782 = vunpack.c.l.bf16 %v774
      %v783 = vunpack.c.l.bf16 %v775
      %v784 = vld [vmem:[%s297 + $0x6] sm:$0x1]
      %v785 = vlaneseq
      %v786 = vshrl.u32 %v785, 7
      %v787 = vsub.s32 0, %v786
      %v788 = vrot.slane %v784, %v787
      %v789 = vmul.f32 %v776, %v788
      %v790 = vmul.f32 %v777, %v788
      %v791 = vmul.f32 %v778, %v788
      %v792 = vmul.f32 %v779, %v788
      %v793 = vmul.f32 %v780, %v788
      %v794 = vmul.f32 %v781, %v788
      %v795 = vmul.f32 %v782, %v788
      %v796 = vmul.f32 %v783, %v788
      %v797 = vadd.f32 %v759, %v789
      %v798 = vadd.f32 %v760, %v790
      %v799 = vadd.f32 %v761, %v791
      %v800 = vadd.f32 %v762, %v792
      %v801 = vadd.f32 %v763, %v793
      %v802 = vadd.f32 %v764, %v794
      %v803 = vadd.f32 %v765, %v795
      %v804 = vadd.f32 %v766, %v796
      %v805 = vld [vmem:[%s767 + $0x4] sm:$0x1]
      %v806 = vld [vmem:[%s767 + $0xc] sm:$0x1]
      %v807 = vld [vmem:[%s767 + $0x14] sm:$0x1]
      %v808 = vld [vmem:[%s767 + $0x1c] sm:$0x1]
      %v809 = vld [vmem:[%s767 + $0x24] sm:$0x1]
      %v810 = vld [vmem:[%s767 + $0x2c] sm:$0x1]
      %v811 = vld [vmem:[%s767 + $0x34] sm:$0x1]
      %v812 = vld [vmem:[%s767 + $0x3c] sm:$0x1]
      %v813 = vunpack.c.l.bf16 %v805
      %v814 = vunpack.c.l.bf16 %v806
      %v815 = vunpack.c.l.bf16 %v807
      %v816 = vunpack.c.l.bf16 %v808
      %v817 = vunpack.c.l.bf16 %v809
      %v818 = vunpack.c.l.bf16 %v810
      %v819 = vunpack.c.l.bf16 %v811
      %v820 = vunpack.c.l.bf16 %v812
      %v821 = vld [vmem:[%s297 + $0x7] sm:$0x1]
      %v822 = vlaneseq
      %v823 = vshrl.u32 %v822, 7
      %v824 = vsub.s32 0, %v823
      %v825 = vrot.slane %v821, %v824
      %v826 = vmul.f32 %v776, %v825
      %v827 = vmul.f32 %v813, %v825
      %v828 = vmul.f32 %v777, %v825
      %v829 = vmul.f32 %v814, %v825
      %v830 = vmul.f32 %v778, %v825
      %v831 = vmul.f32 %v815, %v825
      %v832 = vmul.f32 %v779, %v825
      %v833 = vmul.f32 %v816, %v825
      %v834 = vmul.f32 %v780, %v825
      %v835 = vmul.f32 %v817, %v825
      %v836 = vmul.f32 %v781, %v825
      %v837 = vmul.f32 %v818, %v825
      %v838 = vmul.f32 %v782, %v825
      %v839 = vmul.f32 %v819, %v825
      %v840 = vmul.f32 %v783, %v825
      %v841 = vmul.f32 %v820, %v825
      %v858 = vrot.slane %v826, 1
      %v859 = vrot.slane %v827, 1
      %v860 = vsel %vm408, %v858, %v859
      %v861 = vrot.slane %v828, 1
      %v862 = vrot.slane %v829, 1
      %v863 = vsel %vm408, %v861, %v862
      %v864 = vrot.slane %v830, 1
      %v865 = vrot.slane %v831, 1
      %v866 = vsel %vm408, %v864, %v865
      %v867 = vrot.slane %v832, 1
      %v868 = vrot.slane %v833, 1
      %v869 = vsel %vm408, %v867, %v868
      %v870 = vrot.slane %v834, 1
      %v871 = vrot.slane %v835, 1
      %v872 = vsel %vm408, %v870, %v871
      %v873 = vrot.slane %v836, 1
      %v874 = vrot.slane %v837, 1
      %v875 = vsel %vm408, %v873, %v874
      %v876 = vrot.slane %v838, 1
      %v877 = vrot.slane %v839, 1
      %v878 = vsel %vm408, %v876, %v877
      %v879 = vrot.slane %v840, 1
      %v880 = vrot.slane %v841, 1
      %v881 = vsel %vm408, %v879, %v880
      %v890 = vadd.f32 %v797, %v860
      %v891 = vadd.f32 %v798, %v863
      %v892 = vadd.f32 %v799, %v866
      %v893 = vadd.f32 %v800, %v869
      %v894 = vadd.f32 %v801, %v872
      %v895 = vadd.f32 %v802, %v875
      %v896 = vadd.f32 %v803, %v878
      %v897 = vadd.f32 %v804, %v881
      %v898 = vld [vmem:[%s767] sm:$0xe]
      %v899 = vld [vmem:[%s767 + $0x8] sm:$0xe]
      %v900 = vld [vmem:[%s767 + $0x10] sm:$0xe]
      %v901 = vld [vmem:[%s767 + $0x18] sm:$0xe]
      %v902 = vld [vmem:[%s767 + $0x20] sm:$0xe]
      %v903 = vld [vmem:[%s767 + $0x28] sm:$0xe]
      %v904 = vld [vmem:[%s767 + $0x30] sm:$0xe]
      %v905 = vld [vmem:[%s767 + $0x38] sm:$0xe]
      %v906 = vunpack.c.l.bf16 %v898
      %v907 = vunpack.c.l.bf16 %v899
      %v908 = vunpack.c.l.bf16 %v900
      %v909 = vunpack.c.l.bf16 %v901
      %v910 = vunpack.c.l.bf16 %v902
      %v911 = vunpack.c.l.bf16 %v903
      %v912 = vunpack.c.l.bf16 %v904
      %v913 = vunpack.c.l.bf16 %v905
      %v914 = vld [vmem:[%s297 + $0x8] sm:$0x1]
      %v915 = vlaneseq
      %v916 = vshrl.u32 %v915, 7
      %v917 = vsub.s32 0, %v916
      %v918 = vrot.slane %v914, %v917
      %v919 = vmul.f32 %v906, %v918
      %v920 = vmul.f32 %v813, %v918
      %v921 = vmul.f32 %v907, %v918
      %v922 = vmul.f32 %v814, %v918
      %v923 = vmul.f32 %v908, %v918
      %v924 = vmul.f32 %v815, %v918
      %v925 = vmul.f32 %v909, %v918
      %v926 = vmul.f32 %v816, %v918
      %v927 = vmul.f32 %v910, %v918
      %v928 = vmul.f32 %v817, %v918
      %v929 = vmul.f32 %v911, %v918
      %v930 = vmul.f32 %v818, %v918
      %v931 = vmul.f32 %v912, %v918
      %v932 = vmul.f32 %v819, %v918
      %v933 = vmul.f32 %v913, %v918
      %v934 = vmul.f32 %v820, %v918
      %v951 = vrot.slane %v919, 2
      %v952 = vrot.slane %v920, 2
      %v953 = vsel %vm502, %v951, %v952
      %v954 = vrot.slane %v921, 2
      %v955 = vrot.slane %v922, 2
      %v956 = vsel %vm502, %v954, %v955
      %v957 = vrot.slane %v923, 2
      %v958 = vrot.slane %v924, 2
      %v959 = vsel %vm502, %v957, %v958
      %v960 = vrot.slane %v925, 2
      %v961 = vrot.slane %v926, 2
      %v962 = vsel %vm502, %v960, %v961
      %v963 = vrot.slane %v927, 2
      %v964 = vrot.slane %v928, 2
      %v965 = vsel %vm502, %v963, %v964
      %v966 = vrot.slane %v929, 2
      %v967 = vrot.slane %v930, 2
      %v968 = vsel %vm502, %v966, %v967
      %v969 = vrot.slane %v931, 2
      %v970 = vrot.slane %v932, 2
      %v971 = vsel %vm502, %v969, %v970
      %v972 = vrot.slane %v933, 2
      %v973 = vrot.slane %v934, 2
      %v974 = vsel %vm502, %v972, %v973
      %v983 = vadd.f32 %v890, %v953
      %v984 = vadd.f32 %v891, %v956
      %v985 = vadd.f32 %v892, %v959
      %v986 = vadd.f32 %v893, %v962
      %v987 = vadd.f32 %v894, %v965
      %v988 = vadd.f32 %v895, %v968
      %v989 = vadd.f32 %v896, %v971
      %v990 = vadd.f32 %v897, %v974
      %v991 = vld [vmem:[%s300] sm:$0x1]
      %v993 = vlaneseq
      %v994 = vshrl.u32 %v993, 7
      %v995 = vsub.s32 0, %v994
      %v996 = vrot.slane %v991, %v995
      %v998 = vmul.f32 %v983, %v996
      %v999 = vmul.f32 %v984, %v996
      %v1000 = vmul.f32 %v985, %v996
      %v1001 = vmul.f32 %v986, %v996
      %v1002 = vmul.f32 %v987, %v996
      %v1003 = vmul.f32 %v988, %v996
      %v1004 = vmul.f32 %v989, %v996
      %v1005 = vmul.f32 %v990, %v996
      %v1006 = vld [vmem:[%s303] sm:$0x1]
      %v1008 = vlaneseq
      %v1009 = vshrl.u32 %v1008, 7
      %v1010 = vsub.s32 0, %v1009
      %v1011 = vrot.slane %v1006, %v1010
      %v1013 = vadd.f32 %v998, %v1011
      %v1014 = vadd.f32 %v999, %v1011
      %v1015 = vadd.f32 %v1000, %v1011
      %v1016 = vadd.f32 %v1001, %v1011
      %v1017 = vadd.f32 %v1002, %v1011
      %v1018 = vadd.f32 %v1003, %v1011
      %v1019 = vadd.f32 %v1004, %v1011
      %v1020 = vadd.f32 %v1005, %v1011
      %v1021 = vxor.u32 %v1013, 2147483648
      %v1022 = vxor.u32 %v1014, 2147483648
      %v1023 = vxor.u32 %v1015, 2147483648
      %v1024 = vxor.u32 %v1016, 2147483648
      %v1025 = vxor.u32 %v1017, 2147483648
      %v1026 = vxor.u32 %v1018, 2147483648
      %v1027 = vxor.u32 %v1019, 2147483648
      %v1028 = vxor.u32 %v1020, 2147483648
      %v1029 = vmul.f32 %v1021, 1.442695
      %v1030 = vpow.pop %v1029
      %v1031 = vmul.f32 %v1022, 1.442695
      %v1032 = vpow.pop %v1031
      %v1033 = vmul.f32 %v1023, 1.442695
      %v1034 = vpow.pop %v1033
      %v1035 = vmul.f32 %v1024, 1.442695
      %v1036 = vpow.pop %v1035
      %v1037 = vmul.f32 %v1025, 1.442695
      %v1038 = vpow.pop %v1037
      %v1039 = vmul.f32 %v1026, 1.442695
      %v1040 = vpow.pop %v1039
      %v1041 = vmul.f32 %v1027, 1.442695
      %v1042 = vpow.pop %v1041
      %v1043 = vmul.f32 %v1028, 1.442695
      %v1044 = vpow.pop %v1043
      %v1045 = vadd.f32 %v1030, 1.0
      %v1046 = vadd.f32 %v1032, 1.0
      %v1047 = vadd.f32 %v1034, 1.0
      %v1048 = vadd.f32 %v1036, 1.0
      %v1049 = vadd.f32 %v1038, 1.0
      %v1050 = vadd.f32 %v1040, 1.0
      %v1051 = vadd.f32 %v1042, 1.0
      %v1052 = vadd.f32 %v1044, 1.0
      %v1053 = vrcp.pop %v1045
      %v1054 = vmul.f32 1.0, %v1053
      %v1055 = vrcp.pop %v1046
      %v1056 = vmul.f32 1.0, %v1055
      %v1057 = vrcp.pop %v1047
      %v1058 = vmul.f32 1.0, %v1057
      %v1059 = vrcp.pop %v1048
      %v1060 = vmul.f32 1.0, %v1059
      %v1061 = vrcp.pop %v1049
      %v1062 = vmul.f32 1.0, %v1061
      %v1063 = vrcp.pop %v1050
      %v1064 = vmul.f32 1.0, %v1063
      %v1065 = vrcp.pop %v1051
      %v1066 = vmul.f32 1.0, %v1065
      %v1067 = vrcp.pop %v1052
      %v1068 = vmul.f32 1.0, %v1067
      %v1069 = vmul.f32 %v1013, %v1054
      %v1070 = vmul.f32 %v1014, %v1056
      %v1071 = vmul.f32 %v1015, %v1058
      %v1072 = vmul.f32 %v1016, %v1060
      %v1073 = vmul.f32 %v1017, %v1062
      %v1074 = vmul.f32 %v1018, %v1064
      %v1075 = vmul.f32 %v1019, %v1066
      %v1076 = vmul.f32 %v1020, %v1068
      %v1077 = vpack.c.bf16 %v1069, %v1069
      %v1078 = vpack.c.bf16 %v1070, %v1070
      %v1079 = vpack.c.bf16 %v1071, %v1071
      %v1080 = vpack.c.bf16 %v1072, %v1072
      %v1081 = vpack.c.bf16 %v1073, %v1073
      %v1082 = vpack.c.bf16 %v1074, %v1074
      %v1083 = vpack.c.bf16 %v1075, %v1075
      %v1084 = vpack.c.bf16 %v1076, %v1076
      %1085 = vst [vmem:[%s311] sm:$0xf] %v1077
      %1086 = vst [vmem:[%s311 + $0x4] sm:$0xf] %v1078
      %1087 = vst [vmem:[%s311 + $0x8] sm:$0xf] %v1079
      %1088 = vst [vmem:[%s311 + $0xc] sm:$0xf] %v1080
      %1089 = vst [vmem:[%s311 + $0x10] sm:$0xf] %v1081
      %1090 = vst [vmem:[%s311 + $0x14] sm:$0xf] %v1082
      %1091 = vst [vmem:[%s311 + $0x18] sm:$0xf] %v1083
      %1092 = vst [vmem:[%s311 + $0x1c] sm:$0xf] %v1084
      %v1093 = vadd.f32 %v1069, %v1070
      %v1094 = vadd.f32 %v1093, %v1071
      %v1095 = vadd.f32 %v1094, %v1072
      %v1096 = vadd.f32 %v1095, %v1073
      %v1097 = vadd.f32 %v1096, %v1074
      %v1098 = vadd.f32 %v1097, %v1075
      %v1099 = vadd.f32 %v1098, %v1076
      %v1100 = vrot.slane %v1099, 4
      %v1101 = vadd.f32 %v1099, %v1100
      %v1102 = vrot.slane %v1101, 2
      %v1103 = vadd.f32 %v1101, %v1102
      %v1104 = vrot.slane %v1103, 1
      %v1105 = vadd.f32 %v1103, %v1104
      %v1106 = vrcp.pop 64.0
      %v1107 = vmul.f32 %v1105, %v1106
      %1108 = vst [vmem:[%s317] sm:$0x1] %v1107
      %p1109 = scmp.lt.s32.totalorder %s21, 1
      %s1110 = scalar_select %p1109, %s21, 1
      %p1111 = scmp.lt.s32.totalorder %s22, 0
      %s1112 = scalar_select %p1111, %s22, 0
      %s1113 = smul.addr %s1110, 8
      %s1114 = sadd.s32 %s1112, %s1113
      %s1115 = smul.addr %s1114, 4
      %s1116 = scalar_lea.vmem %s4, %s1115
      %p1117 = scmp.lt.s32.totalorder %s21, 1
      %s1118 = scalar_select %p1117, %s21, 1
      %p1119 = scmp.lt.s32.totalorder %s22, 0
      %s1120 = scalar_select %p1119, %s22, 0
      %s1121 = sadd.s32 %s1120, %s1118
      %s1122 = scalar_lea.vmem %s5, %s1121
      // Predicated region
      $region37: #{fwd.17} parent=35 // pred_check
        %p1123 = pneg %p155
      $region38: #{fwd.17} parent=35 // pred_check_branch
        %1125 = sbr.rel (%p1123) target = $region40
      $region39: #{fwd.17} parent=35 // pred_region
        _
      $region40: #{fwd.17} parent=35 // pred_fallthru
        _
      // Predicated region
      $region41: #{fwd.17} parent=35 // pred_check
        %p1126 = pneg %p183
      $region42: #{fwd.17} parent=35 // pred_check_branch
        %1128 = sbr.rel (%p1126) target = $region44
      $region43: #{fwd.17} parent=35 // pred_region
        _
      $region44: #{fwd.17} parent=35 // pred_fallthru
        _
    $region36: #{fwd.17} parent=5 // pred_fallthru
      _
    %p1129 = scmp.le.s32.totalorder 2, %s12
    // Predicated region
    $region45: #{fwd.17} parent=5 // pred_check
      %p1130 = pneg %p1129
    $region46: #{fwd.17} parent=5 // pred_check_branch
      %1132 = sbr.rel (%p1130) target = $region48
    $region47: #{fwd.17} parent=5 // pred_region
      %s1133 = ssub.s32 %s12, 2
      // Predicated region
      $region49: #{fwd.17} parent=47 // pred_check
        %p1134 = pneg %p161
      $region50: #{fwd.17} parent=47 // pred_check_branch
        %1136 = sbr.rel (%p1134) target = $region52
      $region51: #{fwd.17} parent=47 // pred_region
        %p1137 = scmp.lt.s32.totalorder %s23, 1
        %s1138 = scalar_select %p1137, %s23, 1
        %p1139 = scmp.lt.s32.totalorder %s24, 0
        %s1140 = scalar_select %p1139, %s24, 0
        %s1141 = smul.addr %s1138, 8
        %s1142 = sadd.s32 %s1140, %s1141
        %s1143 = smul.addr %s1142, 4
        %s1144 = scalar_lea.vmem %s4, %s1143
      $region52: #{fwd.17} parent=47 // pred_fallthru
        _
      // Predicated region
      $region53: #{fwd.17} parent=47 // pred_check
        %p1145 = pneg %p189
      $region54: #{fwd.17} parent=47 // pred_check_branch
        %1147 = sbr.rel (%p1145) target = $region56
      $region55: #{fwd.17} parent=47 // pred_region
        %p1148 = scmp.lt.s32.totalorder %s23, 1
        %s1149 = scalar_select %p1148, %s23, 1
        %p1150 = scmp.lt.s32.totalorder %s24, 0
        %s1151 = scalar_select %p1150, %s24, 0
        %s1152 = sadd.s32 %s1151, %s1149
        %s1153 = scalar_lea.vmem %s5, %s1152
      $region56: #{fwd.17} parent=47 // pred_fallthru
        _
    $region48: #{fwd.17} parent=5 // pred_fallthru
      _
  $region6: #{fwd.17} parent=0 // loop_footer
    %s16 = sadd.s32 1, %s12
  $region7: #{fwd.17} parent=0 // loop_footer_branch
    %11 = sbr.rel target = $region3
  $region8: #{fwd.17} parent=0 // loop_exit
    _

// kernel: fwd.19
$region0: #{fwd.19}
  #allocation0 [shape = 'u32[]', space=smem, size = 0x4, offset = 0x4, fixed_abs, tag = 'smem constant byte address 0x4 - core index']
  #allocation1 [shape = 'u32[144,128]{1,0:T(1,128)}', space=vmem, size = 0x12000, scoped, tag = 'internal scratch']
  #allocation2 [shape = 'f32[64,128]{1,0:T(8,128)}', space=vmem, size = 0x8000, scoped, tag = 'scratch operand']
  %s0 = inlined_call_operand.vmem [shape: bf16[2,64,128], index: 0, kind: input, shape index: {}]
  %s1 = inlined_call_operand.vmem [shape: f32[2,1,128], index: 1, kind: input, shape index: {}]
  %s2 = inlined_call_operand.vmem [shape: bf16[128,128], index: 2, kind: input, shape index: {}]
  %s3 = inlined_call_operand.vmem [shape: f32[1,128], index: 3, kind: input, shape index: {}]
  %s4 = inlined_call_operand.vmem [shape: f32[1,128], index: 4, kind: input, shape index: {}]
  %s5 = inlined_call_operand.vmem [shape: f32[2,1,128], index: 5, kind: input, shape index: {}]
  %s6 = inlined_call_operand.vmem [shape: f32[2,1,128], index: 6, kind: input, shape index: {}]
  %s7 = inlined_call_operand.vmem [shape: bf16[2,64,128], index: 7, kind: input, shape index: {}]
  %s8 = inlined_call_operand.vmem [shape: bf16[2,64,128], index: 8, kind: output, shape index: {}]
  %s9 = sld [smem:[#allocation0]]
  $region73: #{fwd.19} parent=0
    _
  %s11 = ssub.s32 1, %s9
  %s12 = scalar_select 0, %s11, %s9
  loop: start=0, step=1, limit=4
  $region2: #{fwd.19} parent=0 // loop_pre_header
    _
  $region3: #{fwd.19} parent=0 // loop_header
    %s14 = sphi 0, %s18
    %p15 = scmp.ge.s32.totalorder %s14, 4
    %s21 = sphi 0, %s47
    %s22 = sphi 0, %s43
    %s23 = sphi 0, %s39
    %s24 = sphi 0, %s35
    %s25 = sphi 0, %s21
    %s26 = sphi 0, %s22
    %s27 = sphi 0, %s23
    %s28 = sphi 0, %s24
    %s29 = sphi 0, %s25
    %s30 = sphi 0, %s26
    %s31 = sphi 0, %s27
    %s32 = sphi 0, %s28
    %s54 = sphi 0, %s56
    %s57 = sphi 0, %s54
    %s58 = sphi 0, %s57
    %s74 = sphi 0, %s58
    %s82 = sphi 0, %s84
    %s85 = sphi 0, %s82
    %s86 = sphi 0, %s85
    %s102 = sphi 0, %s86
    %s110 = sphi 0, %s112
    %s113 = sphi 0, %s110
    %s114 = sphi 0, %s113
    %s130 = sphi 0, %s114
    %s136 = sphi 0, %s138
    %s139 = sphi 0, %s136
    %s140 = sphi 0, %s139
    %s156 = sphi 0, %s140
    %s162 = sphi 0, %s164
    %s165 = sphi 0, %s162
    %s166 = sphi 0, %s165
    %s182 = sphi 0, %s166
    %s190 = sphi 0, %s192
    %s193 = sphi 0, %s190
    %s194 = sphi 0, %s193
    %s210 = sphi 0, %s194
    %s218 = sphi 0, %s220
    %s221 = sphi 0, %s218
    %s222 = sphi 0, %s221
    %s238 = sphi 0, %s222
    %s248 = sphi 0, %s250
    %s251 = sphi 0, %s248
    %s252 = sphi 0, %s251
    %s268 = sphi 0, %s252
    %s278 = sphi 0, %s280
    %s281 = sphi 0, %s278
    %s282 = sphi 0, %s281
    %s298 = sphi 0, %s282
  $region4: #{fwd.19} parent=0 // loop_header_branch
    %17 = sbr.rel (%p15) target = $region8
  $region5: #{fwd.19} parent=0 // loop_body
    %s19 = ssub.s32 %s14, 1
    %s20 = ssub.s32 %s14, 2
    %s33 = sadd.s32 1, %s24
    %p34 = scmp.ge.s32.totalorder %s33, 1
    %s35 = scalar_select %p34, 0, %s33
    %s36 = sadd.s32 1, %s23
    %s37 = scalar_select %p34, %s36, %s23
    %p38 = scmp.ge.s32.totalorder %s37, 1
    %s39 = scalar_select %p38, 0, %s37
    %s40 = sadd.s32 1, %s22
    %s41 = scalar_select %p38, %s40, %s22
    %p42 = scmp.ge.s32.totalorder %s41, 1
    %s43 = scalar_select %p42, 0, %s41
    %s44 = sadd.s32 1, %s21
    %s45 = scalar_select %p42, %s44, %s21
    %p46 = scmp.ge.s32.totalorder %s45, 2
    %s47 = scalar_select %p46, 0, %s45
    %s48 = ssub.s32 %s21, %s47
    %s49 = ssub.s32 %s22, %s43
    %s50 = sor.u32 %s48, %s49
    %s51 = ssub.s32 %s24, %s35
    %s52 = sor.u32 %s50, %s51
    %p53 = scmp.eq.s32.totalorder %s52, 0
    %s55 = sadd.s32 %s54, 1
    %s56 = scalar_select %p53, %s54, %s55
    %p59 = pneg %p53
    %p60 = scmp.eq.s32.totalorder %s14, 1
    %p61 = por %p59, %p60
    %p62 = scmp.ne.s32.totalorder %s54, %s57
    %p63 = scmp.eq.s32.totalorder %s14, 0
    %p64 = por %p62, %p63
    %p65 = scmp.ne.s32.totalorder %s54, %s57
    %p66 = scmp.eq.s32.totalorder %s19, 1
    %p67 = por %p65, %p66
    %p68 = scmp.ne.s32.totalorder %s57, %s58
    %p69 = scmp.eq.s32.totalorder %s19, 0
    %p70 = por %p68, %p69
    %p71 = scmp.ne.s32.totalorder %s57, %s58
    %p72 = scmp.eq.s32.totalorder %s20, 1
    %p73 = por %p71, %p72
    %p75 = scmp.ne.s32.totalorder %s58, %s74
    %p76 = scmp.eq.s32.totalorder %s20, 0
    %p77 = por %p75, %p76
    %s78 = ssub.s32 %s21, %s47
    %s79 = ssub.s32 %s24, %s35
    %s80 = sor.u32 %s78, %s79
    %p81 = scmp.eq.s32.totalorder %s80, 0
    %s83 = sadd.s32 %s82, 1
    %s84 = scalar_select %p81, %s82, %s83
    %p87 = pneg %p81
    %p88 = scmp.eq.s32.totalorder %s14, 1
    %p89 = por %p87, %p88
    %p90 = scmp.ne.s32.totalorder %s82, %s85
    %p91 = scmp.eq.s32.totalorder %s14, 0
    %p92 = por %p90, %p91
    %p93 = scmp.ne.s32.totalorder %s82, %s85
    %p94 = scmp.eq.s32.totalorder %s19, 1
    %p95 = por %p93, %p94
    %p96 = scmp.ne.s32.totalorder %s85, %s86
    %p97 = scmp.eq.s32.totalorder %s19, 0
    %p98 = por %p96, %p97
    %p99 = scmp.ne.s32.totalorder %s85, %s86
    %p100 = scmp.eq.s32.totalorder %s20, 1
    %p101 = por %p99, %p100
    %p103 = scmp.ne.s32.totalorder %s86, %s102
    %p104 = scmp.eq.s32.totalorder %s20, 0
    %p105 = por %p103, %p104
    %s106 = ssub.s32 %s24, %s35
    %s107 = ssub.s32 %s23, %s39
    %s108 = sor.u32 %s106, %s107
    %p109 = scmp.eq.s32.totalorder %s108, 0
    %s111 = sadd.s32 %s110, 1
    %s112 = scalar_select %p109, %s110, %s111
    %p115 = pneg %p109
    %p116 = scmp.eq.s32.totalorder %s14, 1
    %p117 = por %p115, %p116
    %p118 = scmp.ne.s32.totalorder %s110, %s113
    %p119 = scmp.eq.s32.totalorder %s14, 0
    %p120 = por %p118, %p119
    %p121 = scmp.ne.s32.totalorder %s110, %s113
    %p122 = scmp.eq.s32.totalorder %s19, 1
    %p123 = por %p121, %p122
    %p124 = scmp.ne.s32.totalorder %s113, %s114
    %p125 = scmp.eq.s32.totalorder %s19, 0
    %p126 = por %p124, %p125
    %p127 = scmp.ne.s32.totalorder %s113, %s114
    %p128 = scmp.eq.s32.totalorder %s20, 1
    %p129 = por %p127, %p128
    %p131 = scmp.ne.s32.totalorder %s114, %s130
    %p132 = scmp.eq.s32.totalorder %s20, 0
    %p133 = por %p131, %p132
    %s134 = ssub.s32 %s23, %s39
    %p135 = scmp.eq.s32.totalorder %s134, 0
    %s137 = sadd.s32 %s136, 1
    %s138 = scalar_select %p135, %s136, %s137
    %p141 = pneg %p135
    %p142 = scmp.eq.s32.totalorder %s14, 1
    %p143 = por %p141, %p142
    %p144 = scmp.ne.s32.totalorder %s136, %s139
    %p145 = scmp.eq.s32.totalorder %s14, 0
    %p146 = por %p144, %p145
    %p147 = scmp.ne.s32.totalorder %s136, %s139
    %p148 = scmp.eq.s32.totalorder %s19, 1
    %p149 = por %p147, %p148
    %p150 = scmp.ne.s32.totalorder %s139, %s140
    %p151 = scmp.eq.s32.totalorder %s19, 0
    %p152 = por %p150, %p151
    %p153 = scmp.ne.s32.totalorder %s139, %s140
    %p154 = scmp.eq.s32.totalorder %s20, 1
    %p155 = por %p153, %p154
    %p157 = scmp.ne.s32.totalorder %s140, %s156
    %p158 = scmp.eq.s32.totalorder %s20, 0
    %p159 = por %p157, %p158
    %s160 = ssub.s32 %s23, %s39
    %p161 = scmp.eq.s32.totalorder %s160, 0
    %s163 = sadd.s32 %s162, 1
    %s164 = scalar_select %p161, %s162, %s163
    %p167 = pneg %p161
    %p168 = scmp.eq.s32.totalorder %s14, 1
    %p169 = por %p167, %p168
    %p170 = scmp.ne.s32.totalorder %s162, %s165
    %p171 = scmp.eq.s32.totalorder %s14, 0
    %p172 = por %p170, %p171
    %p173 = scmp.ne.s32.totalorder %s162, %s165
    %p174 = scmp.eq.s32.totalorder %s19, 1
    %p175 = por %p173, %p174
    %p176 = scmp.ne.s32.totalorder %s165, %s166
    %p177 = scmp.eq.s32.totalorder %s19, 0
    %p178 = por %p176, %p177
    %p179 = scmp.ne.s32.totalorder %s165, %s166
    %p180 = scmp.eq.s32.totalorder %s20, 1
    %p181 = por %p179, %p180
    %p183 = scmp.ne.s32.totalorder %s166, %s182
    %p184 = scmp.eq.s32.totalorder %s20, 0
    %p185 = por %p183, %p184
    %s186 = ssub.s32 %s21, %s47
    %s187 = ssub.s32 %s23, %s39
    %s188 = sor.u32 %s186, %s187
    %p189 = scmp.eq.s32.totalorder %s188, 0
    %s191 = sadd.s32 %s190, 1
    %s192 = scalar_select %p189, %s190, %s191
    %p195 = pneg %p189
    %p196 = scmp.eq.s32.totalorder %s14, 1
    %p197 = por %p195, %p196
    %p198 = scmp.ne.s32.totalorder %s190, %s193
    %p199 = scmp.eq.s32.totalorder %s14, 0
    %p200 = por %p198, %p199
    %p201 = scmp.ne.s32.totalorder %s190, %s193
    %p202 = scmp.eq.s32.totalorder %s19, 1
    %p203 = por %p201, %p202
    %p204 = scmp.ne.s32.totalorder %s193, %s194
    %p205 = scmp.eq.s32.totalorder %s19, 0
    %p206 = por %p204, %p205
    %p207 = scmp.ne.s32.totalorder %s193, %s194
    %p208 = scmp.eq.s32.totalorder %s20, 1
    %p209 = por %p207, %p208
    %p211 = scmp.ne.s32.totalorder %s194, %s210
    %p212 = scmp.eq.s32.totalorder %s20, 0
    %p213 = por %p211, %p212
    %s214 = ssub.s32 %s21, %s47
    %s215 = ssub.s32 %s23, %s39
    %s216 = sor.u32 %s214, %s215
    %p217 = scmp.eq.s32.totalorder %s216, 0
    %s219 = sadd.s32 %s218, 1
    %s220 = scalar_select %p217, %s218, %s219
    %p223 = pneg %p217
    %p224 = scmp.eq.s32.totalorder %s14, 1
    %p225 = por %p223, %p224
    %p226 = scmp.ne.s32.totalorder %s218, %s221
    %p227 = scmp.eq.s32.totalorder %s14, 0
    %p228 = por %p226, %p227
    %p229 = scmp.ne.s32.totalorder %s218, %s221
    %p230 = scmp.eq.s32.totalorder %s19, 1
    %p231 = por %p229, %p230
    %p232 = scmp.ne.s32.totalorder %s221, %s222
    %p233 = scmp.eq.s32.totalorder %s19, 0
    %p234 = por %p232, %p233
    %p235 = scmp.ne.s32.totalorder %s221, %s222
    %p236 = scmp.eq.s32.totalorder %s20, 1
    %p237 = por %p235, %p236
    %p239 = scmp.ne.s32.totalorder %s222, %s238
    %p240 = scmp.eq.s32.totalorder %s20, 0
    %p241 = por %p239, %p240
    %s242 = ssub.s32 %s21, %s47
    %s243 = ssub.s32 %s22, %s43
    %s244 = sor.u32 %s242, %s243
    %s245 = ssub.s32 %s23, %s39
    %s246 = sor.u32 %s244, %s245
    %p247 = scmp.eq.s32.totalorder %s246, 0
    %s249 = sadd.s32 %s248, 1
    %s250 = scalar_select %p247, %s248, %s249
    %p253 = pneg %p247
    %p254 = scmp.eq.s32.totalorder %s14, 1
    %p255 = por %p253, %p254
    %p256 = scmp.ne.s32.totalorder %s248, %s251
    %p257 = scmp.eq.s32.totalorder %s14, 0
    %p258 = por %p256, %p257
    %p259 = scmp.ne.s32.totalorder %s248, %s251
    %p260 = scmp.eq.s32.totalorder %s19, 1
    %p261 = por %p259, %p260
    %p262 = scmp.ne.s32.totalorder %s251, %s252
    %p263 = scmp.eq.s32.totalorder %s19, 0
    %p264 = por %p262, %p263
    %p265 = scmp.ne.s32.totalorder %s251, %s252
    %p266 = scmp.eq.s32.totalorder %s20, 1
    %p267 = por %p265, %p266
    %p269 = scmp.ne.s32.totalorder %s252, %s268
    %p270 = scmp.eq.s32.totalorder %s20, 0
    %p271 = por %p269, %p270
    %s272 = ssub.s32 %s21, %s47
    %s273 = ssub.s32 %s22, %s43
    %s274 = sor.u32 %s272, %s273
    %s275 = ssub.s32 %s23, %s39
    %s276 = sor.u32 %s274, %s275
    %p277 = scmp.eq.s32.totalorder %s276, 0
    %s279 = sadd.s32 %s278, 1
    %s280 = scalar_select %p277, %s278, %s279
    %p283 = pneg %p277
    %p284 = scmp.eq.s32.totalorder %s14, 1
    %p285 = por %p283, %p284
    %p286 = scmp.ne.s32.totalorder %s278, %s281
    %p287 = scmp.eq.s32.totalorder %s14, 0
    %p288 = por %p286, %p287
    %p289 = scmp.ne.s32.totalorder %s278, %s281
    %p290 = scmp.eq.s32.totalorder %s19, 1
    %p291 = por %p289, %p290
    %p292 = scmp.ne.s32.totalorder %s281, %s282
    %p293 = scmp.eq.s32.totalorder %s19, 0
    %p294 = por %p292, %p293
    %p295 = scmp.ne.s32.totalorder %s281, %s282
    %p296 = scmp.eq.s32.totalorder %s20, 1
    %p297 = por %p295, %p296
    %p299 = scmp.ne.s32.totalorder %s282, %s298
    %p300 = scmp.eq.s32.totalorder %s20, 0
    %p301 = por %p299, %p300
    %p302 = scmp.le.s32.totalorder 1, %s14
    %p303 = scmp.lt.s32.totalorder %s14, 3
    %p304 = pnand %p302, %p303
    %p305 = pneg %p304
    // Predicated region
    $region9: #{fwd.19} parent=5 // pred_check
      _
    $region10: #{fwd.19} parent=5 // pred_check_branch
      %307 = sbr.rel (%p304) target = $region12
    $region11: #{fwd.19} parent=5 // pred_region
      %s308 = ssub.s32 %s14, 1
      // Predicated region
      $region13: #{fwd.19} parent=11 // pred_check
        %p309 = pneg %p126
      $region14: #{fwd.19} parent=11 // pred_check_branch
        %311 = sbr.rel (%p309) target = $region16
      $region15: #{fwd.19} parent=11 // pred_region
        %s312 = smul.u32 16, %s28
        %p313 = scmp.lt.s32.totalorder %s312, 15
        %s314 = scalar_select %p313, %s312, 15
        %p315 = scmp.lt.s32.totalorder %s27, 0
        %s316 = scalar_select %p315, %s27, 0
        %s317 = sadd.s32 %s316, %s314
        %s318 = smul.addr %s317, 4
        %s319 = scalar_lea.vmem %s2, %s318
        %s320 = smul.u32 16, %s28
      $region16: #{fwd.19} parent=11 // pred_fallthru
        _
      // Predicated region
      $region17: #{fwd.19} parent=11 // pred_check
        %p321 = pneg %p152
      $region18: #{fwd.19} parent=11 // pred_check_branch
        %323 = sbr.rel (%p321) target = $region20
      $region19: #{fwd.19} parent=11 // pred_region
        %p324 = scmp.lt.s32.totalorder %s27, 0
        %s325 = scalar_select %p324, %s27, 0
        %s326 = scalar_lea.vmem %s3, %s325
      $region20: #{fwd.19} parent=11 // pred_fallthru
        _
      // Predicated region
      $region21: #{fwd.19} parent=11 // pred_check
        %p327 = pneg %p178
      $region22: #{fwd.19} parent=11 // pred_check_branch
        %329 = sbr.rel (%p327) target = $region24
      $region23: #{fwd.19} parent=11 // pred_region
        %p330 = scmp.lt.s32.totalorder %s27, 0
        %s331 = scalar_select %p330, %s27, 0
        %s332 = scalar_lea.vmem %s4, %s331
      $region24: #{fwd.19} parent=11 // pred_fallthru
        _
    $region12: #{fwd.19} parent=5 // pred_fallthru
      _
    %p333 = scmp.lt.s32.totalorder %s14, 2
    // Predicated region
    $region25: #{fwd.19} parent=5 // pred_check
      %p334 = pneg %p333
    $region26: #{fwd.19} parent=5 // pred_check_branch
      %336 = sbr.rel (%p334) target = $region28
    $region27: #{fwd.19} parent=5 // pred_region
      // Predicated region
      $region29: #{fwd.19} parent=27 // pred_check
        %p337 = pneg %p64
      $region30: #{fwd.19} parent=27 // pred_check_branch
        %339 = sbr.rel (%p337) target = $region32
      $region31: #{fwd.19} parent=27 // pred_region
        %s340 = smul.u32 8, %s22
        %p341 = scmp.lt.s32.totalorder %s21, 1
        %s342 = scalar_select %p341, %s21, 1
        %p343 = scmp.lt.s32.totalorder %s340, 7
        %s344 = scalar_select %p343, %s340, 7
        %p345 = scmp.lt.s32.totalorder %s24, 0
        %s346 = scalar_select %p345, %s24, 0
        %s347 = sadd.s32 %s346, %s344
        %s348 = smul.addr %s342, 8
        %s349 = sadd.s32 %s347, %s348
        %s350 = smul.addr %s349, 4
        %s351 = scalar_lea.vmem %s0, %s350
        %s352 = smul.u32 8, %s22
      $region32: #{fwd.19} parent=27 // pred_fallthru
        _
      // Predicated region
      $region33: #{fwd.19} parent=27 // pred_check
        %p353 = pneg %p92
      $region34: #{fwd.19} parent=27 // pred_check_branch
        %355 = sbr.rel (%p353) target = $region36
      $region35: #{fwd.19} parent=27 // pred_region
        %p356 = scmp.lt.s32.totalorder %s21, 1
        %s357 = scalar_select %p356, %s21, 1
        %p358 = scmp.lt.s32.totalorder %s24, 0
        %s359 = scalar_select %p358, %s24, 0
        %s360 = sadd.s32 %s359, %s357
        %s361 = scalar_lea.vmem %s1, %s360
      $region36: #{fwd.19} parent=27 // pred_fallthru
        _
      // Predicated region
      $region37: #{fwd.19} parent=27 // pred_check
        %p362 = pneg %p200
      $region38: #{fwd.19} parent=27 // pred_check_branch
        %364 = sbr.rel (%p362) target = $region40
      $region39: #{fwd.19} parent=27 // pred_region
        %p365 = scmp.lt.s32.totalorder %s21, 1
        %s366 = scalar_select %p365, %s21, 1
        %p367 = scmp.lt.s32.totalorder %s23, 0
        %s368 = scalar_select %p367, %s23, 0
        %s369 = sadd.s32 %s368, %s366
        %s370 = scalar_lea.vmem %s5, %s369
      $region40: #{fwd.19} parent=27 // pred_fallthru
        _
      // Predicated region
      $region41: #{fwd.19} parent=27 // pred_check
        %p371 = pneg %p228
      $region42: #{fwd.19} parent=27 // pred_check_branch
        %373 = sbr.rel (%p371) target = $region44
      $region43: #{fwd.19} parent=27 // pred_region
        %p374 = scmp.lt.s32.totalorder %s21, 1
        %s375 = scalar_select %p374, %s21, 1
        %p376 = scmp.lt.s32.totalorder %s23, 0
        %s377 = scalar_select %p376, %s23, 0
        %s378 = sadd.s32 %s377, %s375
        %s379 = scalar_lea.vmem %s6, %s378
      $region44: #{fwd.19} parent=27 // pred_fallthru
        _
      // Predicated region
      $region45: #{fwd.19} parent=27 // pred_check
        %p380 = pneg %p258
      $region46: #{fwd.19} parent=27 // pred_check_branch
        %382 = sbr.rel (%p380) target = $region48
      $region47: #{fwd.19} parent=27 // pred_region
        %s383 = smul.u32 8, %s22
        %p384 = scmp.lt.s32.totalorder %s21, 1
        %s385 = scalar_select %p384, %s21, 1
        %p386 = scmp.lt.s32.totalorder %s383, 7
        %s387 = scalar_select %p386, %s383, 7
        %p388 = scmp.lt.s32.totalorder %s23, 0
        %s389 = scalar_select %p388, %s23, 0
        %s390 = sadd.s32 %s389, %s387
        %s391 = smul.addr %s385, 8
        %s392 = sadd.s32 %s390, %s391
        %s393 = smul.addr %s392, 4
        %s394 = scalar_lea.vmem %s7, %s393
        %s395 = smul.u32 8, %s22
      $region48: #{fwd.19} parent=27 // pred_fallthru
        _
    $region28: #{fwd.19} parent=5 // pred_fallthru
      _
    %p396 = scmp.le.s32.totalorder 1, %s14
    %p397 = scmp.lt.s32.totalorder %s14, 3
    %p398 = pnand %p396, %p397
    %p399 = pneg %p398
    // Predicated region
    $region49: #{fwd.19} parent=5 // pred_check
      _
    $region50: #{fwd.19} parent=5 // pred_check_branch
      %401 = sbr.rel (%p398) target = $region52
    $region51: #{fwd.19} parent=5 // pred_region
      %s402 = ssub.s32 %s14, 1
      %s403 = smul.u32 8, %s26
      %p404 = scmp.lt.s32.totalorder %s25, 1
      %s405 = scalar_select %p404, %s25, 1
      %p406 = scmp.lt.s32.totalorder %s403, 7
      %s407 = scalar_select %p406, %s403, 7
      %p408 = scmp.lt.s32.totalorder %s28, 0
      %s409 = scalar_select %p408, %s28, 0
      %s410 = sadd.s32 %s409, %s407
      %s411 = smul.addr %s405, 8
      %s412 = sadd.s32 %s410, %s411
      %s413 = smul.addr %s412, 4
      %s414 = scalar_lea.vmem %s0, %s413
      %p415 = pneg %p70
      %p416 = pneg %p67
      %p417 = scmp.lt.s32.totalorder %s25, 1
      %s418 = scalar_select %p417, %s25, 1
      %p419 = scmp.lt.s32.totalorder %s28, 0
      %s420 = scalar_select %p419, %s28, 0
      %s421 = sadd.s32 %s420, %s418
      %s422 = scalar_lea.vmem %s1, %s421
      %p423 = pneg %p98
      %p424 = pneg %p95
      %s425 = smul.u32 16, %s28
      %p426 = scmp.lt.s32.totalorder %s425, 15
      %s427 = scalar_select %p426, %s425, 15
      %p428 = scmp.lt.s32.totalorder %s27, 0
      %s429 = scalar_select %p428, %s27, 0
      %s430 = sadd.s32 %s429, %s427
      %s431 = smul.addr %s430, 4
      %s432 = scalar_lea.vmem %s2, %s431
      %p433 = pneg %p126
      %p434 = pneg %p123
      %p435 = scmp.lt.s32.totalorder %s27, 0
      %s436 = scalar_select %p435, %s27, 0
      %s437 = scalar_lea.vmem %s3, %s436
      %p438 = pneg %p152
      %p439 = pneg %p149
      %p440 = scmp.lt.s32.totalorder %s27, 0
      %s441 = scalar_select %p440, %s27, 0
      %s442 = scalar_lea.vmem %s4, %s441
      %p443 = pneg %p178
      %p444 = pneg %p175
      %p445 = scmp.lt.s32.totalorder %s25, 1
      %s446 = scalar_select %p445, %s25, 1
      %p447 = scmp.lt.s32.totalorder %s27, 0
      %s448 = scalar_select %p447, %s27, 0
      %s449 = sadd.s32 %s448, %s446
      %s450 = scalar_lea.vmem %s5, %s449
      %p451 = pneg %p206
      %p452 = pneg %p203
      %p453 = scmp.lt.s32.totalorder %s25, 1
      %s454 = scalar_select %p453, %s25, 1
      %p455 = scmp.lt.s32.totalorder %s27, 0
      %s456 = scalar_select %p455, %s27, 0
      %s457 = sadd.s32 %s456, %s454
      %s458 = scalar_lea.vmem %s6, %s457
      %p459 = pneg %p234
      %p460 = pneg %p231
      %s461 = smul.u32 8, %s26
      %p462 = scmp.lt.s32.totalorder %s25, 1
      %s463 = scalar_select %p462, %s25, 1
      %p464 = scmp.lt.s32.totalorder %s461, 7
      %s465 = scalar_select %p464, %s461, 7
      %p466 = scmp.lt.s32.totalorder %s27, 0
      %s467 = scalar_select %p466, %s27, 0
      %s468 = sadd.s32 %s467, %s465
      %s469 = smul.addr %s463, 8
      %s470 = sadd.s32 %s468, %s469
      %s471 = smul.addr %s470, 4
      %s472 = scalar_lea.vmem %s7, %s471
      %p473 = pneg %p264
      %p474 = pneg %p261
      %p475 = pneg %p294
      %p476 = pneg %p291
      %s477 = smul.u32 8, %s26
      %p478 = scmp.lt.s32.totalorder %s25, 1
      %s479 = scalar_select %p478, %s25, 1
      %p480 = scmp.lt.s32.totalorder %s477, 7
      %s481 = scalar_select %p480, %s477, 7
      %p482 = scmp.lt.s32.totalorder %s27, 0
      %s483 = scalar_select %p482, %s27, 0
      %s484 = sadd.s32 %s483, %s481
      %s485 = smul.addr %s479, 8
      %s486 = sadd.s32 %s484, %s485
      %s487 = smul.addr %s486, 4
      %s488 = scalar_lea.vmem %s8, %s487
      %s489 = smul.u32 8, %s26
      %p490 = scmp.lt.s32.totalorder %s25, 1
      %s491 = scalar_select %p490, %s25, 1
      %p492 = scmp.lt.s32.totalorder %s489, 7
      %s493 = scalar_select %p492, %s489, 7
      %p494 = scmp.lt.s32.totalorder %s28, 0
      %s495 = scalar_select %p494, %s28, 0
      %s496 = sadd.s32 %s495, %s493
      %s497 = smul.addr %s491, 8
      %s498 = sadd.s32 %s496, %s497
      %s499 = smul.addr %s498, 4
      %s500 = scalar_lea.vmem %s0, %s499
      %s501 = smul.u32 8, %s26
      %p502 = scmp.lt.s32.totalorder %s25, 1
      %s503 = scalar_select %p502, %s25, 1
      %p504 = scmp.lt.s32.totalorder %s28, 0
      %s505 = scalar_select %p504, %s28, 0
      %s506 = sadd.s32 %s505, %s503
      %s507 = scalar_lea.vmem %s1, %s506
      %s508 = smul.u32 16, %s28
      %p509 = scmp.lt.s32.totalorder %s508, 15
      %s510 = scalar_select %p509, %s508, 15
      %p511 = scmp.lt.s32.totalorder %s27, 0
      %s512 = scalar_select %p511, %s27, 0
      %s513 = sadd.s32 %s512, %s510
      %s514 = smul.addr %s513, 4
      %s515 = scalar_lea.vmem %s2, %s514
      %s516 = smul.u32 16, %s28
      %p517 = scmp.lt.s32.totalorder %s27, 0
      %s518 = scalar_select %p517, %s27, 0
      %s519 = scalar_lea.vmem %s3, %s518
      %p520 = scmp.lt.s32.totalorder %s27, 0
      %s521 = scalar_select %p520, %s27, 0
      %s522 = scalar_lea.vmem %s4, %s521
      %p523 = scmp.lt.s32.totalorder %s25, 1
      %s524 = scalar_select %p523, %s25, 1
      %p525 = scmp.lt.s32.totalorder %s27, 0
      %s526 = scalar_select %p525, %s27, 0
      %s527 = sadd.s32 %s526, %s524
      %s528 = scalar_lea.vmem %s5, %s527
      %p529 = scmp.lt.s32.totalorder %s25, 1
      %s530 = scalar_select %p529, %s25, 1
      %p531 = scmp.lt.s32.totalorder %s27, 0
      %s532 = scalar_select %p531, %s27, 0
      %s533 = sadd.s32 %s532, %s530
      %s534 = scalar_lea.vmem %s6, %s533
      %s535 = smul.u32 8, %s26
      %p536 = scmp.lt.s32.totalorder %s25, 1
      %s537 = scalar_select %p536, %s25, 1
      %p538 = scmp.lt.s32.totalorder %s535, 7
      %s539 = scalar_select %p538, %s535, 7
      %p540 = scmp.lt.s32.totalorder %s27, 0
      %s541 = scalar_select %p540, %s27, 0
      %s542 = sadd.s32 %s541, %s539
      %s543 = smul.addr %s537, 8
      %s544 = sadd.s32 %s542, %s543
      %s545 = smul.addr %s544, 4
      %s546 = scalar_lea.vmem %s7, %s545
      %s547 = smul.u32 8, %s26
      %s548 = smul.u32 8, %s26
      %p549 = scmp.lt.s32.totalorder %s25, 1
      %s550 = scalar_select %p549, %s25, 1
      %p551 = scmp.lt.s32.totalorder %s548, 7
      %s552 = scalar_select %p551, %s548, 7
      %p553 = scmp.lt.s32.totalorder %s27, 0
      %s554 = scalar_select %p553, %s27, 0
      %s555 = sadd.s32 %s554, %s552
      %s556 = smul.addr %s550, 8
      %s557 = sadd.s32 %s555, %s556
      %s558 = smul.addr %s557, 4
      %s559 = scalar_lea.vmem %s8, %s558
      %s560 = smul.u32 8, %s26
      %p562 = scmp.eq.s32.totalorder %s28, 0
      // Predicated region
      $region53: #{fwd.19} parent=51 // pred_check
        %p563 = pneg %p562
      $region54: #{fwd.19} parent=51 // pred_check_branch
        %565 = sbr.rel (%p563) target = $region56
      $region55: #{fwd.19} parent=51 // pred_region
        %566 = vst [vmem:[#allocation2] sm:$0xff] 0.0
        %567 = vst [vmem:[#allocation2 + $0x8] sm:$0xff] 0.0
        %568 = vst [vmem:[#allocation2 + $0x10] sm:$0xff] 0.0
        %569 = vst [vmem:[#allocation2 + $0x18] sm:$0xff] 0.0
        %570 = vst [vmem:[#allocation2 + $0x20] sm:$0xff] 0.0
        %571 = vst [vmem:[#allocation2 + $0x28] sm:$0xff] 0.0
        %572 = vst [vmem:[#allocation2 + $0x30] sm:$0xff] 0.0
        %573 = vst [vmem:[#allocation2 + $0x38] sm:$0xff] 0.0
      $region56: #{fwd.19} parent=51 // pred_fallthru
        _
      %v574 = vld [vmem:[%s500] sm:$0xf]
      %v575 = vld [vmem:[%s500 + $0x4] sm:$0xf]
      %v576 = vld [vmem:[%s500 + $0x8] sm:$0xf]
      %v577 = vld [vmem:[%s500 + $0xc] sm:$0xf]
      %v578 = vld [vmem:[%s500 + $0x10] sm:$0xf]
      %v579 = vld [vmem:[%s500 + $0x14] sm:$0xf]
      %v580 = vld [vmem:[%s500 + $0x18] sm:$0xf]
      %v581 = vld [vmem:[%s500 + $0x1c] sm:$0xf]
      %v582 = vunpack.c.l.bf16 %v574
      %v583 = vunpack.c.l.bf16 %v575
      %v584 = vunpack.c.l.bf16 %v576
      %v585 = vunpack.c.l.bf16 %v577
      %v586 = vunpack.c.l.bf16 %v578
      %v587 = vunpack.c.l.bf16 %v579
      %v588 = vunpack.c.l.bf16 %v580
      %v589 = vunpack.c.l.bf16 %v581
      %v590 = vld [vmem:[%s507] sm:$0x1]
      %v592 = vlaneseq
      %v593 = vshrl.u32 %v592, 7
      %v594 = vsub.s32 0, %v593
      %v595 = vrot.slane %v590, %v594
      %v597 = vmul.f32 %v582, %v595
      %v598 = vmul.f32 %v583, %v595
      %v599 = vmul.f32 %v584, %v595
      %v600 = vmul.f32 %v585, %v595
      %v601 = vmul.f32 %v586, %v595
      %v602 = vmul.f32 %v587, %v595
      %v603 = vmul.f32 %v588, %v595
      %v604 = vmul.f32 %v589, %v595
      %v605 = vld [vmem:[#allocation2] sm:$0xff]
      %v606 = vld [vmem:[#allocation2 + $0x8] sm:$0xff]
      %v607 = vld [vmem:[#allocation2 + $0x10] sm:$0xff]
      %v608 = vld [vmem:[#allocation2 + $0x18] sm:$0xff]
      %v609 = vld [vmem:[#allocation2 + $0x20] sm:$0xff]
      %v610 = vld [vmem:[#allocation2 + $0x28] sm:$0xff]
      %v611 = vld [vmem:[#allocation2 + $0x30] sm:$0xff]
      %v612 = vld [vmem:[#allocation2 + $0x38] sm:$0xff]
      %v613 = vpack.c.bf16 %v598, %v597
      %v614 = vpack.c.bf16 %v600, %v599
      %v615 = vpack.c.bf16 %v602, %v601
      %v616 = vpack.c.bf16 %v604, %v603
      %v617 = vld [vmem:[%s515] sm:$0xf]
      %v618 = vld [vmem:[%s515 + $0x4] sm:$0xf]
      %v619 = vld [vmem:[%s515 + $0x8] sm:$0xf]
      %v620 = vld [vmem:[%s515 + $0xc] sm:$0xf]
      %v621 = vld [vmem:[%s515 + $0x10] sm:$0xf]
      %v622 = vld [vmem:[%s515 + $0x14] sm:$0xf]
      %v623 = vld [vmem:[%s515 + $0x18] sm:$0xf]
      %v624 = vld [vmem:[%s515 + $0x1c] sm:$0xf]
      %v625 = vld [vmem:[%s515 + $0x20] sm:$0xf]
      %v626 = vld [vmem:[%s515 + $0x24] sm:$0xf]
      %v627 = vld [vmem:[%s515 + $0x28] sm:$0xf]
      %v628 = vld [vmem:[%s515 + $0x2c] sm:$0xf]
      %v629 = vld [vmem:[%s515 + $0x30] sm:$0xf]
      %v630 = vld [vmem:[%s515 + $0x34] sm:$0xf]
      %v631 = vld [vmem:[%s515 + $0x38] sm:$0xf]
      %v632 = vld [vmem:[%s515 + $0x3c] sm:$0xf]
      %v649 = vunpack.c.l.b16 %v617
      %v650 = vunpack.c.l.b16 %v618
      %v651 = vunpack.c.l.b16 %v619
      %v652 = vunpack.c.l.b16 %v620
      %v653 = vunpack.c.l.b16 %v621
      %v654 = vunpack.c.l.b16 %v622
      %v655 = vunpack.c.l.b16 %v623
      %v656 = vunpack.c.l.b16 %v624
      %v657 = vunpack.c.l.b16 %v625
      %v658 = vunpack.c.l.b16 %v626
      %v659 = vunpack.c.l.b16 %v627
      %v660 = vunpack.c.l.b16 %v628
      %v661 = vunpack.c.l.b16 %v629
      %v662 = vunpack.c.l.b16 %v630
      %v663 = vunpack.c.l.b16 %v631
      %v664 = vunpack.c.l.b16 %v632
      %v665 = vpack.c.b16 %v650, %v649
      %v666 = vpack.c.b16 %v652, %v651
      %v667 = vpack.c.b16 %v654, %v653
      %v668 = vpack.c.b16 %v656, %v655
      %v669 = vpack.c.b16 %v658, %v657
      %v670 = vpack.c.b16 %v660, %v659
      %v671 = vpack.c.b16 %v662, %v661
      %v672 = vpack.c.b16 %v664, %v663
      %681 = vmatprep.subr.bf16.mxu0 0
      %682 = vmatpush1.bf16.msra.mxu0 %v672
      %683 = vmatprep.subr.bf16.mxu0 0
      %684 = vmatpush1.bf16.msra.mxu0 %v671
      %685 = vmatprep.subr.bf16.mxu0 0
      %686 = vmatpush1.bf16.msra.mxu0 %v670
      %687 = vmatprep.subr.bf16.mxu0 0
      %688 = vmatpush1.bf16.msra.mxu0 %v669
      %689 = vmatprep.subr.bf16.mxu0 0
      %690 = vmatpush1.bf16.msra.mxu0 %v668
      %691 = vmatprep.subr.bf16.mxu0 0
      %692 = vmatpush1.bf16.msra.mxu0 %v667
      %693 = vmatprep.subr.bf16.mxu0 0
      %694 = vmatpush1.bf16.msra.mxu0 %v666
      %695 = vmatprep.subr.bf16.mxu0 0
      %696 = vmatpush1.bf16.msra.mxu0 %v665
      %697 = vmatprep.subr.bf16.mxu0 0
      %698 = vmatpush2.bf16.msra.mxu0 0
      %699 = vmatprep.subr.bf16.mxu0 0
      %700 = vmatpush2.bf16.msra.mxu0 0
      %701 = vmatprep.subr.bf16.mxu0 0
      %702 = vmatpush2.bf16.msra.mxu0 0
      %703 = vmatprep.subr.bf16.mxu0 0
      %704 = vmatpush2.bf16.msra.mxu0 0
      %705 = vmatprep.subr.bf16.mxu0 0
      %706 = vmatpush2.bf16.msra.mxu0 0
      %707 = vmatprep.subr.bf16.mxu0 0
      %708 = vmatpush2.bf16.msra.mxu0 0
      %709 = vmatprep.subr.bf16.mxu0 0
      %710 = vmatpush2.bf16.msra.mxu0 0
      %711 = vmatprep.subr.bf16.mxu0 0
      %712 = vmatpush2.bf16.msra.mxu0 0
      %713 = vmatprep.mubr.bf16.mxu0 0
      %714 = vmatmul.mubr.bf16.gmra.mxu0 %v613
      %v715 = vpop.f32.mrf.mxu0
      %v716 = vadd.f32 0.0, %v715
      %v717 = vpop.f32.mrf.mxu0
      %v718 = vpop.f32.mrf.mxu0
      %v719 = vadd.f32 0.0, %v718
      %v720 = vpop.f32.mrf.mxu0
      %721 = vmatprep.mubr.bf16.mxu0 0
      %722 = vmatmul.mubr.bf16.gmra.mxu0 %v614
      %v723 = vpop.f32.mrf.mxu0
      %v724 = vadd.f32 0.0, %v723
      %v725 = vpop.f32.mrf.mxu0
      %v726 = vpop.f32.mrf.mxu0
      %v727 = vadd.f32 0.0, %v726
      %v728 = vpop.f32.mrf.mxu0
      %729 = vmatprep.mubr.bf16.mxu0 0
      %730 = vmatmul.mubr.bf16.gmra.mxu0 %v615
      %v731 = vpop.f32.mrf.mxu0
      %v732 = vadd.f32 0.0, %v731
      %v733 = vpop.f32.mrf.mxu0
      %v734 = vpop.f32.mrf.mxu0
      %v735 = vadd.f32 0.0, %v734
      %v736 = vpop.f32.mrf.mxu0
      %737 = vmatprep.mubr.bf16.mxu0 0
      %738 = vmatmul.mubr.bf16.gmra.mxu0 %v616
      %v739 = vpop.f32.mrf.mxu0
      %v740 = vadd.f32 0.0, %v739
      %v741 = vpop.f32.mrf.mxu0
      %v742 = vpop.f32.mrf.mxu0
      %v743 = vadd.f32 0.0, %v742
      %v744 = vpop.f32.mrf.mxu0
      %745 = vdwg.mxu0
      %v746 = vadd.f32 %v605, %v716
      %v747 = vadd.f32 %v606, %v719
      %v748 = vadd.f32 %v607, %v724
      %v749 = vadd.f32 %v608, %v727
      %v750 = vadd.f32 %v609, %v732
      %v751 = vadd.f32 %v610, %v735
      %v752 = vadd.f32 %v611, %v740
      %v753 = vadd.f32 %v612, %v743
      %754 = vst [vmem:[#allocation2] sm:$0xff] %v746
      %755 = vst [vmem:[#allocation2 + $0x8] sm:$0xff] %v747
      %756 = vst [vmem:[#allocation2 + $0x10] sm:$0xff] %v748
      %757 = vst [vmem:[#allocation2 + $0x18] sm:$0xff] %v749
      %758 = vst [vmem:[#allocation2 + $0x20] sm:$0xff] %v750
      %759 = vst [vmem:[#allocation2 + $0x28] sm:$0xff] %v751
      %760 = vst [vmem:[#allocation2 + $0x30] sm:$0xff] %v752
      %761 = vst [vmem:[#allocation2 + $0x38] sm:$0xff] %v753
      // Predicated region
      $region57: #{fwd.19} parent=51 // pred_check
        %p762 = pneg %p562
      $region58: #{fwd.19} parent=51 // pred_check_branch
        %764 = sbr.rel (%p762) target = $region60
      $region59: #{fwd.19} parent=51 // pred_region
        %v765 = vld [vmem:[#allocation2] sm:$0xff]
        %v766 = vld [vmem:[#allocation2 + $0x8] sm:$0xff]
        %v767 = vld [vmem:[#allocation2 + $0x10] sm:$0xff]
        %v768 = vld [vmem:[#allocation2 + $0x18] sm:$0xff]
        %v769 = vld [vmem:[#allocation2 + $0x20] sm:$0xff]
        %v770 = vld [vmem:[#allocation2 + $0x28] sm:$0xff]
        %v771 = vld [vmem:[#allocation2 + $0x30] sm:$0xff]
        %v772 = vld [vmem:[#allocation2 + $0x38] sm:$0xff]
        %v773 = vld [vmem:[%s519] sm:$0x1]
        %v775 = vlaneseq
        %v776 = vshrl.u32 %v775, 7
        %v777 = vsub.s32 0, %v776
        %v778 = vrot.slane %v773, %v777
        %v780 = vmul.f32 %v765, %v778
        %v781 = vmul.f32 %v766, %v778
        %v782 = vmul.f32 %v767, %v778
        %v783 = vmul.f32 %v768, %v778
        %v784 = vmul.f32 %v769, %v778
        %v785 = vmul.f32 %v770, %v778
        %v786 = vmul.f32 %v771, %v778
        %v787 = vmul.f32 %v772, %v778
        %v788 = vld [vmem:[%s522] sm:$0x1]
        %v790 = vlaneseq
        %v791 = vshrl.u32 %v790, 7
        %v792 = vsub.s32 0, %v791
        %v793 = vrot.slane %v788, %v792
        %v795 = vadd.f32 %v780, %v793
        %v796 = vadd.f32 %v781, %v793
        %v797 = vadd.f32 %v782, %v793
        %v798 = vadd.f32 %v783, %v793
        %v799 = vadd.f32 %v784, %v793
        %v800 = vadd.f32 %v785, %v793
        %v801 = vadd.f32 %v786, %v793
        %v802 = vadd.f32 %v787, %v793
        %v803 = vld [vmem:[%s546] sm:$0xf]
        %v804 = vld [vmem:[%s546 + $0x4] sm:$0xf]
        %v805 = vld [vmem:[%s546 + $0x8] sm:$0xf]
        %v806 = vld [vmem:[%s546 + $0xc] sm:$0xf]
        %v807 = vld [vmem:[%s546 + $0x10] sm:$0xf]
        %v808 = vld [vmem:[%s546 + $0x14] sm:$0xf]
        %v809 = vld [vmem:[%s546 + $0x18] sm:$0xf]
        %v810 = vld [vmem:[%s546 + $0x1c] sm:$0xf]
        %v811 = vunpack.c.l.bf16 %v803
        %v812 = vunpack.c.l.bf16 %v804
        %v813 = vunpack.c.l.bf16 %v805
        %v814 = vunpack.c.l.bf16 %v806
        %v815 = vunpack.c.l.bf16 %v807
        %v816 = vunpack.c.l.bf16 %v808
        %v817 = vunpack.c.l.bf16 %v809
        %v818 = vunpack.c.l.bf16 %v810
        %v819 = vadd.f32 %v795, %v811
        %v820 = vadd.f32 %v796, %v812
        %v821 = vadd.f32 %v797, %v813
        %v822 = vadd.f32 %v798, %v814
        %v823 = vadd.f32 %v799, %v815
        %v824 = vadd.f32 %v800, %v816
        %v825 = vadd.f32 %v801, %v817
        %v826 = vadd.f32 %v802, %v818
        %v827 = vld [vmem:[%s528] sm:$0x1]
        %v828 = vadd.f32 %v827, 1.0
        %v830 = vlaneseq
        %v831 = vshrl.u32 %v830, 7
        %v832 = vsub.s32 0, %v831
        %v833 = vrot.slane %v828, %v832
        %v835 = vmul.f32 %v819, %v833
        %v836 = vmul.f32 %v820, %v833
        %v837 = vmul.f32 %v821, %v833
        %v838 = vmul.f32 %v822, %v833
        %v839 = vmul.f32 %v823, %v833
        %v840 = vmul.f32 %v824, %v833
        %v841 = vmul.f32 %v825, %v833
        %v842 = vmul.f32 %v826, %v833
        %v843 = vld [vmem:[%s534] sm:$0x1]
        %v845 = vlaneseq
        %v846 = vshrl.u32 %v845, 7
        %v847 = vsub.s32 0, %v846
        %v848 = vrot.slane %v843, %v847
        %v850 = vadd.f32 %v835, %v848
        %v851 = vadd.f32 %v836, %v848
        %v852 = vadd.f32 %v837, %v848
        %v853 = vadd.f32 %v838, %v848
        %v854 = vadd.f32 %v839, %v848
        %v855 = vadd.f32 %v840, %v848
        %v856 = vadd.f32 %v841, %v848
        %v857 = vadd.f32 %v842, %v848
        %v858 = vpack.c.bf16 %v851, %v850
        %v859 = vpack.c.bf16 %v853, %v852
        %v860 = vpack.c.bf16 %v855, %v854
        %v861 = vpack.c.bf16 %v857, %v856
        %v866 = vunpack.c.l.b16 %v858
        %v867 = vunpack.c.h.b16 %v858
        %v868 = vunpack.c.l.b16 %v859
        %v869 = vunpack.c.h.b16 %v859
        %v870 = vunpack.c.l.b16 %v860
        %v871 = vunpack.c.h.b16 %v860
        %v872 = vunpack.c.l.b16 %v861
        %v873 = vunpack.c.h.b16 %v861
        %v874 = vpack.c.b16 %v866, %v866
        %v875 = vpack.c.b16 %v867, %v867
        %v876 = vpack.c.b16 %v868, %v868
        %v877 = vpack.c.b16 %v869, %v869
        %v878 = vpack.c.b16 %v870, %v870
        %v879 = vpack.c.b16 %v871, %v871
        %v880 = vpack.c.b16 %v872, %v872
        %v881 = vpack.c.b16 %v873, %v873
        %890 = vst [vmem:[%s559] sm:$0xf] %v874
        %891 = vst [vmem:[%s559 + $0x4] sm:$0xf] %v875
        %892 = vst [vmem:[%s559 + $0x8] sm:$0xf] %v876
        %893 = vst [vmem:[%s559 + $0xc] sm:$0xf] %v877
        %894 = vst [vmem:[%s559 + $0x10] sm:$0xf] %v878
        %895 = vst [vmem:[%s559 + $0x14] sm:$0xf] %v879
        %896 = vst [vmem:[%s559 + $0x18] sm:$0xf] %v880
        %897 = vst [vmem:[%s559 + $0x1c] sm:$0xf] %v881
      $region60: #{fwd.19} parent=51 // pred_fallthru
        _
      %s898 = smul.u32 8, %s26
      %p899 = scmp.lt.s32.totalorder %s25, 1
      %s900 = scalar_select %p899, %s25, 1
      %p901 = scmp.lt.s32.totalorder %s898, 7
      %s902 = scalar_select %p901, %s898, 7
      %p903 = scmp.lt.s32.totalorder %s27, 0
      %s904 = scalar_select %p903, %s27, 0
      %s905 = sadd.s32 %s904, %s902
      %s906 = smul.addr %s900, 8
      %s907 = sadd.s32 %s905, %s906
      %s908 = smul.addr %s907, 4
      %s909 = scalar_lea.vmem %s8, %s908
      // Predicated region
      $region61: #{fwd.19} parent=51 // pred_check
        %p910 = pneg %p291
      $region62: #{fwd.19} parent=51 // pred_check_branch
        %912 = sbr.rel (%p910) target = $region64
      $region63: #{fwd.19} parent=51 // pred_region
        %s913 = smul.u32 8, %s26
      $region64: #{fwd.19} parent=51 // pred_fallthru
        _
    $region52: #{fwd.19} parent=5 // pred_fallthru
      _
    %p914 = scmp.le.s32.totalorder 2, %s14
    // Predicated region
    $region65: #{fwd.19} parent=5 // pred_check
      %p915 = pneg %p914
    $region66: #{fwd.19} parent=5 // pred_check_branch
      %917 = sbr.rel (%p915) target = $region68
    $region67: #{fwd.19} parent=5 // pred_region
      %s918 = ssub.s32 %s14, 2
      // Predicated region
      $region69: #{fwd.19} parent=67 // pred_check
        %p919 = pneg %p297
      $region70: #{fwd.19} parent=67 // pred_check_branch
        %921 = sbr.rel (%p919) target = $region72
      $region71: #{fwd.19} parent=67 // pred_region
        %s922 = smul.u32 8, %s30
        %p923 = scmp.lt.s32.totalorder %s29, 1
        %s924 = scalar_select %p923, %s29, 1
        %p925 = scmp.lt.s32.totalorder %s922, 7
        %s926 = scalar_select %p925, %s922, 7
        %p927 = scmp.lt.s32.totalorder %s31, 0
        %s928 = scalar_select %p927, %s31, 0
        %s929 = sadd.s32 %s928, %s926
        %s930 = smul.addr %s924, 8
        %s931 = sadd.s32 %s929, %s930
        %s932 = smul.addr %s931, 4
        %s933 = scalar_lea.vmem %s8, %s932
      $region72: #{fwd.19} parent=67 // pred_fallthru
        _
    $region68: #{fwd.19} parent=5 // pred_fallthru
      _
  $region6: #{fwd.19} parent=0 // loop_footer
    %s18 = sadd.s32 1, %s14
  $region7: #{fwd.19} parent=0 // loop_footer_branch
    %13 = sbr.rel target = $region3
  $region8: #{fwd.19} parent=0 // loop_exit
    _

// kernel: fwd.20
$region0: #{fwd.20}
  #allocation0 [shape = 'u32[]', space=smem, size = 0x4, offset = 0x4, fixed_abs, tag = 'smem constant byte address 0x4 - core index']
  #allocation1 [shape = 'u32[144,128]{1,0:T(1,128)}', space=vmem, size = 0x12000, scoped, tag = 'internal scratch']
  #allocation2 [shape = 'f32[128,128]{1,0:T(8,128)}', space=vmem, size = 0x10000, scoped, tag = 'scratch operand']
  %s0 = inlined_call_operand.vmem [shape: bf16[128,128], index: 0, kind: input, shape index: {}]
  %s1 = inlined_call_operand.vmem [shape: bf16[128,128], index: 1, kind: input, shape index: {}]
  %s2 = inlined_call_operand.vmem [shape: f32[1,128], index: 2, kind: input, shape index: {}]
  %s3 = inlined_call_operand.vmem [shape: f32[1,128], index: 3, kind: input, shape index: {}]
  %s4 = inlined_call_operand.vmem [shape: bf16[128,128], index: 4, kind: output, shape index: {}]
  %s5 = sld [smem:[#allocation0]]
  $region34: #{fwd.20} parent=0
    _
  %s7 = ssub.s32 1, %s5
  %s8 = scalar_select 0, %s7, %s5
  // Predicated region
  $region2: #{fwd.20} parent=0 // pred_check
    _
  $region3: #{fwd.20} parent=0 // pred_check_branch
    %10 = sbr.rel (0) target = $region5
  $region4: #{fwd.20} parent=0 // pred_region
    _
  $region5: #{fwd.20} parent=0 // pred_fallthru
    _
  // Predicated region
  $region6: #{fwd.20} parent=0 // pred_check
    _
  $region7: #{fwd.20} parent=0 // pred_check_branch
    %12 = sbr.rel (0) target = $region9
  $region8: #{fwd.20} parent=0 // pred_region
    _
  $region9: #{fwd.20} parent=0 // pred_fallthru
    _
  // Predicated region
  $region10: #{fwd.20} parent=0 // pred_check
    _
  $region11: #{fwd.20} parent=0 // pred_check_branch
    %14 = sbr.rel (0) target = $region13
  $region12: #{fwd.20} parent=0 // pred_region
    _
  $region13: #{fwd.20} parent=0 // pred_fallthru
    _
  // Predicated region
  $region14: #{fwd.20} parent=0 // pred_check
    _
  $region15: #{fwd.20} parent=0 // pred_check_branch
    %16 = sbr.rel (0) target = $region17
  $region16: #{fwd.20} parent=0 // pred_region
    _
  $region17: #{fwd.20} parent=0 // pred_fallthru
    _
  %p18 = scmp.eq.s32.totalorder 0, 0
  // Predicated region
  $region18: #{fwd.20} parent=0 // pred_check
    %p19 = pneg %p18
  $region19: #{fwd.20} parent=0 // pred_check_branch
    %21 = sbr.rel (%p19) target = $region21
  $region20: #{fwd.20} parent=0 // pred_region
    %22 = vst [vmem:[#allocation2] sm:$0xff] 0.0
    %23 = vst [vmem:[#allocation2 + $0x8] sm:$0xff] 0.0
    %24 = vst [vmem:[#allocation2 + $0x10] sm:$0xff] 0.0
    %25 = vst [vmem:[#allocation2 + $0x18] sm:$0xff] 0.0
    %26 = vst [vmem:[#allocation2 + $0x20] sm:$0xff] 0.0
    %27 = vst [vmem:[#allocation2 + $0x28] sm:$0xff] 0.0
    %28 = vst [vmem:[#allocation2 + $0x30] sm:$0xff] 0.0
    %29 = vst [vmem:[#allocation2 + $0x38] sm:$0xff] 0.0
    %30 = vst [vmem:[#allocation2 + $0x40] sm:$0xff] 0.0
    %31 = vst [vmem:[#allocation2 + $0x48] sm:$0xff] 0.0
    %32 = vst [vmem:[#allocation2 + $0x50] sm:$0xff] 0.0
    %33 = vst [vmem:[#allocation2 + $0x58] sm:$0xff] 0.0
    %34 = vst [vmem:[#allocation2 + $0x60] sm:$0xff] 0.0
    %35 = vst [vmem:[#allocation2 + $0x68] sm:$0xff] 0.0
    %36 = vst [vmem:[#allocation2 + $0x70] sm:$0xff] 0.0
    %37 = vst [vmem:[#allocation2 + $0x78] sm:$0xff] 0.0
  $region21: #{fwd.20} parent=0 // pred_fallthru
    _
  %v38 = vld [vmem:[#allocation2] sm:$0xff]
  %v39 = vld [vmem:[#allocation2 + $0x8] sm:$0xff]
  %v40 = vld [vmem:[#allocation2 + $0x10] sm:$0xff]
  %v41 = vld [vmem:[#allocation2 + $0x18] sm:$0xff]
  %v42 = vld [vmem:[#allocation2 + $0x20] sm:$0xff]
  %v43 = vld [vmem:[#allocation2 + $0x28] sm:$0xff]
  %v44 = vld [vmem:[#allocation2 + $0x30] sm:$0xff]
  %v45 = vld [vmem:[#allocation2 + $0x38] sm:$0xff]
  %v46 = vld [vmem:[#allocation2 + $0x40] sm:$0xff]
  %v47 = vld [vmem:[#allocation2 + $0x48] sm:$0xff]
  %v48 = vld [vmem:[#allocation2 + $0x50] sm:$0xff]
  %v49 = vld [vmem:[#allocation2 + $0x58] sm:$0xff]
  %v50 = vld [vmem:[#allocation2 + $0x60] sm:$0xff]
  %v51 = vld [vmem:[#allocation2 + $0x68] sm:$0xff]
  %v52 = vld [vmem:[#allocation2 + $0x70] sm:$0xff]
  %v53 = vld [vmem:[#allocation2 + $0x78] sm:$0xff]
  %v54 = vld [vmem:[%s0] sm:$0xf]
  %v55 = vld [vmem:[%s0 + $0x4] sm:$0xf]
  %v56 = vld [vmem:[%s0 + $0x8] sm:$0xf]
  %v57 = vld [vmem:[%s0 + $0xc] sm:$0xf]
  %v58 = vld [vmem:[%s0 + $0x10] sm:$0xf]
  %v59 = vld [vmem:[%s0 + $0x14] sm:$0xf]
  %v60 = vld [vmem:[%s0 + $0x18] sm:$0xf]
  %v61 = vld [vmem:[%s0 + $0x1c] sm:$0xf]
  %v62 = vld [vmem:[%s0 + $0x20] sm:$0xf]
  %v63 = vld [vmem:[%s0 + $0x24] sm:$0xf]
  %v64 = vld [vmem:[%s0 + $0x28] sm:$0xf]
  %v65 = vld [vmem:[%s0 + $0x2c] sm:$0xf]
  %v66 = vld [vmem:[%s0 + $0x30] sm:$0xf]
  %v67 = vld [vmem:[%s0 + $0x34] sm:$0xf]
  %v68 = vld [vmem:[%s0 + $0x38] sm:$0xf]
  %v69 = vld [vmem:[%s0 + $0x3c] sm:$0xf]
  %v70 = vld [vmem:[%s1] sm:$0xf]
  %v71 = vld [vmem:[%s1 + $0x4] sm:$0xf]
  %v72 = vld [vmem:[%s1 + $0x8] sm:$0xf]
  %v73 = vld [vmem:[%s1 + $0xc] sm:$0xf]
  %v74 = vld [vmem:[%s1 + $0x10] sm:$0xf]
  %v75 = vld [vmem:[%s1 + $0x14] sm:$0xf]
  %v76 = vld [vmem:[%s1 + $0x18] sm:$0xf]
  %v77 = vld [vmem:[%s1 + $0x1c] sm:$0xf]
  %v78 = vld [vmem:[%s1 + $0x20] sm:$0xf]
  %v79 = vld [vmem:[%s1 + $0x24] sm:$0xf]
  %v80 = vld [vmem:[%s1 + $0x28] sm:$0xf]
  %v81 = vld [vmem:[%s1 + $0x2c] sm:$0xf]
  %v82 = vld [vmem:[%s1 + $0x30] sm:$0xf]
  %v83 = vld [vmem:[%s1 + $0x34] sm:$0xf]
  %v84 = vld [vmem:[%s1 + $0x38] sm:$0xf]
  %v85 = vld [vmem:[%s1 + $0x3c] sm:$0xf]
  %v102 = vunpack.c.l.b16 %v54
  %v103 = vunpack.c.l.b16 %v55
  %v104 = vunpack.c.l.b16 %v56
  %v105 = vunpack.c.l.b16 %v57
  %v106 = vunpack.c.l.b16 %v58
  %v107 = vunpack.c.l.b16 %v59
  %v108 = vunpack.c.l.b16 %v60
  %v109 = vunpack.c.l.b16 %v61
  %v110 = vunpack.c.l.b16 %v62
  %v111 = vunpack.c.l.b16 %v63
  %v112 = vunpack.c.l.b16 %v64
  %v113 = vunpack.c.l.b16 %v65
  %v114 = vunpack.c.l.b16 %v66
  %v115 = vunpack.c.l.b16 %v67
  %v116 = vunpack.c.l.b16 %v68
  %v117 = vunpack.c.l.b16 %v69
  %v118 = vpack.c.b16 %v103, %v102
  %v119 = vpack.c.b16 %v105, %v104
  %v120 = vpack.c.b16 %v107, %v106
  %v121 = vpack.c.b16 %v109, %v108
  %v122 = vpack.c.b16 %v111, %v110
  %v123 = vpack.c.b16 %v113, %v112
  %v124 = vpack.c.b16 %v115, %v114
  %v125 = vpack.c.b16 %v117, %v116
  %v150 = vunpack.c.l.b16 %v70
  %v151 = vunpack.c.l.b16 %v71
  %v152 = vunpack.c.l.b16 %v72
  %v153 = vunpack.c.l.b16 %v73
  %v154 = vunpack.c.l.b16 %v74
  %v155 = vunpack.c.l.b16 %v75
  %v156 = vunpack.c.l.b16 %v76
  %v157 = vunpack.c.l.b16 %v77
  %v158 = vunpack.c.l.b16 %v78
  %v159 = vunpack.c.l.b16 %v79
  %v160 = vunpack.c.l.b16 %v80
  %v161 = vunpack.c.l.b16 %v81
  %v162 = vunpack.c.l.b16 %v82
  %v163 = vunpack.c.l.b16 %v83
  %v164 = vunpack.c.l.b16 %v84
  %v165 = vunpack.c.l.b16 %v85
  %v166 = vpack.c.b16 %v151, %v150
  %v167 = vpack.c.b16 %v153, %v152
  %v168 = vpack.c.b16 %v155, %v154
  %v169 = vpack.c.b16 %v157, %v156
  %v170 = vpack.c.b16 %v159, %v158
  %v171 = vpack.c.b16 %v161, %v160
  %v172 = vpack.c.b16 %v163, %v162
  %v173 = vpack.c.b16 %v165, %v164
  %182 = vmatprep.subr.bf16.mxu0 0
  %183 = vmatpush1.bf16.msra.mxu0 %v173
  %184 = vmatprep.subr.bf16.mxu0 0
  %185 = vmatpush1.bf16.msra.mxu0 %v172
  %186 = vmatprep.subr.bf16.mxu0 0
  %187 = vmatpush1.bf16.msra.mxu0 %v171
  %188 = vmatprep.subr.bf16.mxu0 0
  %189 = vmatpush1.bf16.msra.mxu0 %v170
  %190 = vmatprep.subr.bf16.mxu0 0
  %191 = vmatpush1.bf16.msra.mxu0 %v169
  %192 = vmatprep.subr.bf16.mxu0 0
  %193 = vmatpush1.bf16.msra.mxu0 %v168
  %194 = vmatprep.subr.bf16.mxu0 0
  %195 = vmatpush1.bf16.msra.mxu0 %v167
  %196 = vmatprep.subr.bf16.mxu0 0
  %197 = vmatpush1.bf16.msra.mxu0 %v166
  %198 = vmatprep.subr.bf16.mxu0 0
  %199 = vmatpush2.bf16.msra.mxu0 0
  %200 = vmatprep.subr.bf16.mxu0 0
  %201 = vmatpush2.bf16.msra.mxu0 0
  %202 = vmatprep.subr.bf16.mxu0 0
  %203 = vmatpush2.bf16.msra.mxu0 0
  %204 = vmatprep.subr.bf16.mxu0 0
  %205 = vmatpush2.bf16.msra.mxu0 0
  %206 = vmatprep.subr.bf16.mxu0 0
  %207 = vmatpush2.bf16.msra.mxu0 0
  %208 = vmatprep.subr.bf16.mxu0 0
  %209 = vmatpush2.bf16.msra.mxu0 0
  %210 = vmatprep.subr.bf16.mxu0 0
  %211 = vmatpush2.bf16.msra.mxu0 0
  %212 = vmatprep.subr.bf16.mxu0 0
  %213 = vmatpush2.bf16.msra.mxu0 0
  %214 = vmatprep.mubr.bf16.mxu0 0
  %215 = vmatmul.mubr.bf16.gmra.mxu0 %v118
  %v216 = vpop.f32.mrf.mxu0
  %v217 = vadd.f32 0.0, %v216
  %v218 = vpop.f32.mrf.mxu0
  %v219 = vpop.f32.mrf.mxu0
  %v220 = vadd.f32 0.0, %v219
  %v221 = vpop.f32.mrf.mxu0
  %222 = vmatprep.mubr.bf16.mxu0 0
  %223 = vmatmul.mubr.bf16.gmra.mxu0 %v119
  %v224 = vpop.f32.mrf.mxu0
  %v225 = vadd.f32 0.0, %v224
  %v226 = vpop.f32.mrf.mxu0
  %v227 = vpop.f32.mrf.mxu0
  %v228 = vadd.f32 0.0, %v227
  %v229 = vpop.f32.mrf.mxu0
  %230 = vmatprep.mubr.bf16.mxu0 0
  %231 = vmatmul.mubr.bf16.gmra.mxu0 %v120
  %v232 = vpop.f32.mrf.mxu0
  %v233 = vadd.f32 0.0, %v232
  %v234 = vpop.f32.mrf.mxu0
  %v235 = vpop.f32.mrf.mxu0
  %v236 = vadd.f32 0.0, %v235
  %v237 = vpop.f32.mrf.mxu0
  %238 = vmatprep.mubr.bf16.mxu0 0
  %239 = vmatmul.mubr.bf16.gmra.mxu0 %v121
  %v240 = vpop.f32.mrf.mxu0
  %v241 = vadd.f32 0.0, %v240
  %v242 = vpop.f32.mrf.mxu0
  %v243 = vpop.f32.mrf.mxu0
  %v244 = vadd.f32 0.0, %v243
  %v245 = vpop.f32.mrf.mxu0
  %246 = vmatprep.mubr.bf16.mxu0 0
  %247 = vmatmul.mubr.bf16.gmra.mxu0 %v122
  %v248 = vpop.f32.mrf.mxu0
  %v249 = vadd.f32 0.0, %v248
  %v250 = vpop.f32.mrf.mxu0
  %v251 = vpop.f32.mrf.mxu0
  %v252 = vadd.f32 0.0, %v251
  %v253 = vpop.f32.mrf.mxu0
  %254 = vmatprep.mubr.bf16.mxu0 0
  %255 = vmatmul.mubr.bf16.gmra.mxu0 %v123
  %v256 = vpop.f32.mrf.mxu0
  %v257 = vadd.f32 0.0, %v256
  %v258 = vpop.f32.mrf.mxu0
  %v259 = vpop.f32.mrf.mxu0
  %v260 = vadd.f32 0.0, %v259
  %v261 = vpop.f32.mrf.mxu0
  %262 = vmatprep.mubr.bf16.mxu0 0
  %263 = vmatmul.mubr.bf16.gmra.mxu0 %v124
  %v264 = vpop.f32.mrf.mxu0
  %v265 = vadd.f32 0.0, %v264
  %v266 = vpop.f32.mrf.mxu0
  %v267 = vpop.f32.mrf.mxu0
  %v268 = vadd.f32 0.0, %v267
  %v269 = vpop.f32.mrf.mxu0
  %270 = vmatprep.mubr.bf16.mxu0 0
  %271 = vmatmul.mubr.bf16.gmra.mxu0 %v125
  %v272 = vpop.f32.mrf.mxu0
  %v273 = vadd.f32 0.0, %v272
  %v274 = vpop.f32.mrf.mxu0
  %v275 = vpop.f32.mrf.mxu0
  %v276 = vadd.f32 0.0, %v275
  %v277 = vpop.f32.mrf.mxu0
  %278 = vdwg.mxu0
  %v279 = vadd.f32 %v38, %v217
  %v280 = vadd.f32 %v39, %v220
  %v281 = vadd.f32 %v40, %v225
  %v282 = vadd.f32 %v41, %v228
  %v283 = vadd.f32 %v42, %v233
  %v284 = vadd.f32 %v43, %v236
  %v285 = vadd.f32 %v44, %v241
  %v286 = vadd.f32 %v45, %v244
  %v287 = vadd.f32 %v46, %v249
  %v288 = vadd.f32 %v47, %v252
  %v289 = vadd.f32 %v48, %v257
  %v290 = vadd.f32 %v49, %v260
  %v291 = vadd.f32 %v50, %v265
  %v292 = vadd.f32 %v51, %v268
  %v293 = vadd.f32 %v52, %v273
  %v294 = vadd.f32 %v53, %v276
  %295 = vst [vmem:[#allocation2] sm:$0xff] %v279
  %296 = vst [vmem:[#allocation2 + $0x8] sm:$0xff] %v280
  %297 = vst [vmem:[#allocation2 + $0x10] sm:$0xff] %v281
  %298 = vst [vmem:[#allocation2 + $0x18] sm:$0xff] %v282
  %299 = vst [vmem:[#allocation2 + $0x20] sm:$0xff] %v283
  %300 = vst [vmem:[#allocation2 + $0x28] sm:$0xff] %v284
  %301 = vst [vmem:[#allocation2 + $0x30] sm:$0xff] %v285
  %302 = vst [vmem:[#allocation2 + $0x38] sm:$0xff] %v286
  %303 = vst [vmem:[#allocation2 + $0x40] sm:$0xff] %v287
  %304 = vst [vmem:[#allocation2 + $0x48] sm:$0xff] %v288
  %305 = vst [vmem:[#allocation2 + $0x50] sm:$0xff] %v289
  %306 = vst [vmem:[#allocation2 + $0x58] sm:$0xff] %v290
  %307 = vst [vmem:[#allocation2 + $0x60] sm:$0xff] %v291
  %308 = vst [vmem:[#allocation2 + $0x68] sm:$0xff] %v292
  %309 = vst [vmem:[#allocation2 + $0x70] sm:$0xff] %v293
  %310 = vst [vmem:[#allocation2 + $0x78] sm:$0xff] %v294
  // Predicated region
  $region22: #{fwd.20} parent=0 // pred_check
    %p311 = pneg %p18
  $region23: #{fwd.20} parent=0 // pred_check_branch
    %313 = sbr.rel (%p311) target = $region25
  $region24: #{fwd.20} parent=0 // pred_region
    %v314 = vld [vmem:[#allocation2] sm:$0xff]
    %v315 = vld [vmem:[#allocation2 + $0x8] sm:$0xff]
    %v316 = vld [vmem:[#allocation2 + $0x10] sm:$0xff]
    %v317 = vld [vmem:[#allocation2 + $0x18] sm:$0xff]
    %v318 = vld [vmem:[#allocation2 + $0x20] sm:$0xff]
    %v319 = vld [vmem:[#allocation2 + $0x28] sm:$0xff]
    %v320 = vld [vmem:[#allocation2 + $0x30] sm:$0xff]
    %v321 = vld [vmem:[#allocation2 + $0x38] sm:$0xff]
    %v322 = vld [vmem:[#allocation2 + $0x40] sm:$0xff]
    %v323 = vld [vmem:[#allocation2 + $0x48] sm:$0xff]
    %v324 = vld [vmem:[#allocation2 + $0x50] sm:$0xff]
    %v325 = vld [vmem:[#allocation2 + $0x58] sm:$0xff]
    %v326 = vld [vmem:[#allocation2 + $0x60] sm:$0xff]
    %v327 = vld [vmem:[#allocation2 + $0x68] sm:$0xff]
    %v328 = vld [vmem:[#allocation2 + $0x70] sm:$0xff]
    %v329 = vld [vmem:[#allocation2 + $0x78] sm:$0xff]
    %v330 = vld [vmem:[%s2] sm:$0x1]
    %v332 = vlaneseq
    %v333 = vshrl.u32 %v332, 7
    %v334 = vsub.s32 0, %v333
    %v335 = vrot.slane %v330, %v334
    %v337 = vmul.f32 %v314, %v335
    %v338 = vmul.f32 %v315, %v335
    %v339 = vmul.f32 %v316, %v335
    %v340 = vmul.f32 %v317, %v335
    %v341 = vmul.f32 %v318, %v335
    %v342 = vmul.f32 %v319, %v335
    %v343 = vmul.f32 %v320, %v335
    %v344 = vmul.f32 %v321, %v335
    %v345 = vmul.f32 %v322, %v335
    %v346 = vmul.f32 %v323, %v335
    %v347 = vmul.f32 %v324, %v335
    %v348 = vmul.f32 %v325, %v335
    %v349 = vmul.f32 %v326, %v335
    %v350 = vmul.f32 %v327, %v335
    %v351 = vmul.f32 %v328, %v335
    %v352 = vmul.f32 %v329, %v335
    %v353 = vld [vmem:[%s3] sm:$0x1]
    %v355 = vlaneseq
    %v356 = vshrl.u32 %v355, 7
    %v357 = vsub.s32 0, %v356
    %v358 = vrot.slane %v353, %v357
    %v360 = vadd.f32 %v337, %v358
    %v361 = vadd.f32 %v338, %v358
    %v362 = vadd.f32 %v339, %v358
    %v363 = vadd.f32 %v340, %v358
    %v364 = vadd.f32 %v341, %v358
    %v365 = vadd.f32 %v342, %v358
    %v366 = vadd.f32 %v343, %v358
    %v367 = vadd.f32 %v344, %v358
    %v368 = vadd.f32 %v345, %v358
    %v369 = vadd.f32 %v346, %v358
    %v370 = vadd.f32 %v347, %v358
    %v371 = vadd.f32 %v348, %v358
    %v372 = vadd.f32 %v349, %v358
    %v373 = vadd.f32 %v350, %v358
    %v374 = vadd.f32 %v351, %v358
    %v375 = vadd.f32 %v352, %v358
    %v376 = vxor.u32 %v360, 2147483648
    %v377 = vxor.u32 %v361, 2147483648
    %v378 = vxor.u32 %v362, 2147483648
    %v379 = vxor.u32 %v363, 2147483648
    %v380 = vxor.u32 %v364, 2147483648
    %v381 = vxor.u32 %v365, 2147483648
    %v382 = vxor.u32 %v366, 2147483648
    %v383 = vxor.u32 %v367, 2147483648
    %v384 = vxor.u32 %v368, 2147483648
    %v385 = vxor.u32 %v369, 2147483648
    %v386 = vxor.u32 %v370, 2147483648
    %v387 = vxor.u32 %v371, 2147483648
    %v388 = vxor.u32 %v372, 2147483648
    %v389 = vxor.u32 %v373, 2147483648
    %v390 = vxor.u32 %v374, 2147483648
    %v391 = vxor.u32 %v375, 2147483648
    %v392 = vmul.f32 %v376, 1.442695
    %v393 = vpow.pop %v392
    %v394 = vmul.f32 %v377, 1.442695
    %v395 = vpow.pop %v394
    %v396 = vmul.f32 %v378, 1.442695
    %v397 = vpow.pop %v396
    %v398 = vmul.f32 %v379, 1.442695
    %v399 = vpow.pop %v398
    %v400 = vmul.f32 %v380, 1.442695
    %v401 = vpow.pop %v400
    %v402 = vmul.f32 %v381, 1.442695
    %v403 = vpow.pop %v402
    %v404 = vmul.f32 %v382, 1.442695
    %v405 = vpow.pop %v404
    %v406 = vmul.f32 %v383, 1.442695
    %v407 = vpow.pop %v406
    %v408 = vmul.f32 %v384, 1.442695
    %v409 = vpow.pop %v408
    %v410 = vmul.f32 %v385, 1.442695
    %v411 = vpow.pop %v410
    %v412 = vmul.f32 %v386, 1.442695
    %v413 = vpow.pop %v412
    %v414 = vmul.f32 %v387, 1.442695
    %v415 = vpow.pop %v414
    %v416 = vmul.f32 %v388, 1.442695
    %v417 = vpow.pop %v416
    %v418 = vmul.f32 %v389, 1.442695
    %v419 = vpow.pop %v418
    %v420 = vmul.f32 %v390, 1.442695
    %v421 = vpow.pop %v420
    %v422 = vmul.f32 %v391, 1.442695
    %v423 = vpow.pop %v422
    %v424 = vadd.f32 %v393, 1.0
    %v425 = vadd.f32 %v395, 1.0
    %v426 = vadd.f32 %v397, 1.0
    %v427 = vadd.f32 %v399, 1.0
    %v428 = vadd.f32 %v401, 1.0
    %v429 = vadd.f32 %v403, 1.0
    %v430 = vadd.f32 %v405, 1.0
    %v431 = vadd.f32 %v407, 1.0
    %v432 = vadd.f32 %v409, 1.0
    %v433 = vadd.f32 %v411, 1.0
    %v434 = vadd.f32 %v413, 1.0
    %v435 = vadd.f32 %v415, 1.0
    %v436 = vadd.f32 %v417, 1.0
    %v437 = vadd.f32 %v419, 1.0
    %v438 = vadd.f32 %v421, 1.0
    %v439 = vadd.f32 %v423, 1.0
    %v440 = vrcp.pop %v424
    %v441 = vmul.f32 1.0, %v440
    %v442 = vrcp.pop %v425
    %v443 = vmul.f32 1.0, %v442
    %v444 = vrcp.pop %v426
    %v445 = vmul.f32 1.0, %v444
    %v446 = vrcp.pop %v427
    %v447 = vmul.f32 1.0, %v446
    %v448 = vrcp.pop %v428
    %v449 = vmul.f32 1.0, %v448
    %v450 = vrcp.pop %v429
    %v451 = vmul.f32 1.0, %v450
    %v452 = vrcp.pop %v430
    %v453 = vmul.f32 1.0, %v452
    %v454 = vrcp.pop %v431
    %v455 = vmul.f32 1.0, %v454
    %v456 = vrcp.pop %v432
    %v457 = vmul.f32 1.0, %v456
    %v458 = vrcp.pop %v433
    %v459 = vmul.f32 1.0, %v458
    %v460 = vrcp.pop %v434
    %v461 = vmul.f32 1.0, %v460
    %v462 = vrcp.pop %v435
    %v463 = vmul.f32 1.0, %v462
    %v464 = vrcp.pop %v436
    %v465 = vmul.f32 1.0, %v464
    %v466 = vrcp.pop %v437
    %v467 = vmul.f32 1.0, %v466
    %v468 = vrcp.pop %v438
    %v469 = vmul.f32 1.0, %v468
    %v470 = vrcp.pop %v439
    %v471 = vmul.f32 1.0, %v470
    %v472 = vmul.f32 %v360, %v441
    %v473 = vmul.f32 %v361, %v443
    %v474 = vmul.f32 %v362, %v445
    %v475 = vmul.f32 %v363, %v447
    %v476 = vmul.f32 %v364, %v449
    %v477 = vmul.f32 %v365, %v451
    %v478 = vmul.f32 %v366, %v453
    %v479 = vmul.f32 %v367, %v455
    %v480 = vmul.f32 %v368, %v457
    %v481 = vmul.f32 %v369, %v459
    %v482 = vmul.f32 %v370, %v461
    %v483 = vmul.f32 %v371, %v463
    %v484 = vmul.f32 %v372, %v465
    %v485 = vmul.f32 %v373, %v467
    %v486 = vmul.f32 %v374, %v469
    %v487 = vmul.f32 %v375, %v471
    %v488 = vpack.c.bf16 %v473, %v472
    %v489 = vpack.c.bf16 %v475, %v474
    %v490 = vpack.c.bf16 %v477, %v476
    %v491 = vpack.c.bf16 %v479, %v478
    %v492 = vpack.c.bf16 %v481, %v480
    %v493 = vpack.c.bf16 %v483, %v482
    %v494 = vpack.c.bf16 %v485, %v484
    %v495 = vpack.c.bf16 %v487, %v486
    %v504 = vunpack.c.l.b16 %v488
    %v505 = vunpack.c.h.b16 %v488
    %v506 = vunpack.c.l.b16 %v489
    %v507 = vunpack.c.h.b16 %v489
    %v508 = vunpack.c.l.b16 %v490
    %v509 = vunpack.c.h.b16 %v490
    %v510 = vunpack.c.l.b16 %v491
    %v511 = vunpack.c.h.b16 %v491
    %v512 = vunpack.c.l.b16 %v492
    %v513 = vunpack.c.h.b16 %v492
    %v514 = vunpack.c.l.b16 %v493
    %v515 = vunpack.c.h.b16 %v493
    %v516 = vunpack.c.l.b16 %v494
    %v517 = vunpack.c.h.b16 %v494
    %v518 = vunpack.c.l.b16 %v495
    %v519 = vunpack.c.h.b16 %v495
    %v520 = vpack.c.b16 %v504, %v504
    %v521 = vpack.c.b16 %v505, %v505
    %v522 = vpack.c.b16 %v506, %v506
    %v523 = vpack.c.b16 %v507, %v507
    %v524 = vpack.c.b16 %v508, %v508
    %v525 = vpack.c.b16 %v509, %v509
    %v526 = vpack.c.b16 %v510, %v510
    %v527 = vpack.c.b16 %v511, %v511
    %v528 = vpack.c.b16 %v512, %v512
    %v529 = vpack.c.b16 %v513, %v513
    %v530 = vpack.c.b16 %v514, %v514
    %v531 = vpack.c.b16 %v515, %v515
    %v532 = vpack.c.b16 %v516, %v516
    %v533 = vpack.c.b16 %v517, %v517
    %v534 = vpack.c.b16 %v518, %v518
    %v535 = vpack.c.b16 %v519, %v519
    %552 = vst [vmem:[%s4] sm:$0xf] %v520
    %553 = vst [vmem:[%s4 + $0x4] sm:$0xf] %v521
    %554 = vst [vmem:[%s4 + $0x8] sm:$0xf] %v522
    %555 = vst [vmem:[%s4 + $0xc] sm:$0xf] %v523
    %556 = vst [vmem:[%s4 + $0x10] sm:$0xf] %v524
    %557 = vst [vmem:[%s4 + $0x14] sm:$0xf] %v525
    %558 = vst [vmem:[%s4 + $0x18] sm:$0xf] %v526
    %559 = vst [vmem:[%s4 + $0x1c] sm:$0xf] %v527
    %560 = vst [vmem:[%s4 + $0x20] sm:$0xf] %v528
    %561 = vst [vmem:[%s4 + $0x24] sm:$0xf] %v529
    %562 = vst [vmem:[%s4 + $0x28] sm:$0xf] %v530
    %563 = vst [vmem:[%s4 + $0x2c] sm:$0xf] %v531
    %564 = vst [vmem:[%s4 + $0x30] sm:$0xf] %v532
    %565 = vst [vmem:[%s4 + $0x34] sm:$0xf] %v533
    %566 = vst [vmem:[%s4 + $0x38] sm:$0xf] %v534
    %567 = vst [vmem:[%s4 + $0x3c] sm:$0xf] %v535
  $region25: #{fwd.20} parent=0 // pred_fallthru
    _
  // Predicated region
  $region26: #{fwd.20} parent=0 // pred_check
    _
  $region27: #{fwd.20} parent=0 // pred_check_branch
    %569 = sbr.rel (0) target = $region29
  $region28: #{fwd.20} parent=0 // pred_region
    _
  $region29: #{fwd.20} parent=0 // pred_fallthru
    _
  // Predicated region
  $region30: #{fwd.20} parent=0 // pred_check
    _
  $region31: #{fwd.20} parent=0 // pred_check_branch
    %571 = sbr.rel (0) target = $region33
  $region32: #{fwd.20} parent=0 // pred_region
    _
  $region33: #{fwd.20} parent=0 // pred_fallthru
    _

// kernel: fwd.23
$region0: #{fwd.23}
  #allocation0 [shape = 'u32[]', space=smem, size = 0x4, offset = 0x4, fixed_abs, tag = 'smem constant byte address 0x4 - core index']
  #allocation1 [shape = 'u32[144,128]{1,0:T(1,128)}', space=vmem, size = 0x12000, scoped, tag = 'internal scratch']
  #allocation2 [shape = 'f32[16,128]{1,0:T(8,128)}', space=vmem, size = 0x2000, scoped, tag = 'scratch operand']
  %s0 = inlined_call_operand.vmem [shape: bf16[2,16,128], index: 0, kind: input, shape index: {}]
  %s1 = inlined_call_operand.vmem [shape: f32[2,1,128], index: 1, kind: input, shape index: {}]
  %s2 = inlined_call_operand.vmem [shape: bf16[128,128], index: 2, kind: input, shape index: {}]
  %s3 = inlined_call_operand.vmem [shape: f32[1,128], index: 3, kind: input, shape index: {}]
  %s4 = inlined_call_operand.vmem [shape: f32[1,128], index: 4, kind: input, shape index: {}]
  %s5 = inlined_call_operand.vmem [shape: f32[2,1,128], index: 5, kind: input, shape index: {}]
  %s6 = inlined_call_operand.vmem [shape: f32[2,1,128], index: 6, kind: input, shape index: {}]
  %s7 = inlined_call_operand.vmem [shape: bf16[2,16,128], index: 7, kind: output, shape index: {}]
  %s8 = sld [smem:[#allocation0]]
  $region69: #{fwd.23} parent=0
    _
  %s10 = ssub.s32 1, %s8
  %s11 = scalar_select 0, %s10, %s8
  loop: start=0, step=1, limit=4
  $region2: #{fwd.23} parent=0 // loop_pre_header
    _
  $region3: #{fwd.23} parent=0 // loop_header
    %s13 = sphi 0, %s17
    %p14 = scmp.ge.s32.totalorder %s13, 4
    %s20 = sphi 0, %s46
    %s21 = sphi 0, %s42
    %s22 = sphi 0, %s38
    %s23 = sphi 0, %s34
    %s24 = sphi 0, %s20
    %s25 = sphi 0, %s21
    %s26 = sphi 0, %s22
    %s27 = sphi 0, %s23
    %s28 = sphi 0, %s24
    %s29 = sphi 0, %s25
    %s30 = sphi 0, %s26
    %s31 = sphi 0, %s27
    %s53 = sphi 0, %s55
    %s56 = sphi 0, %s53
    %s57 = sphi 0, %s56
    %s73 = sphi 0, %s57
    %s81 = sphi 0, %s83
    %s84 = sphi 0, %s81
    %s85 = sphi 0, %s84
    %s101 = sphi 0, %s85
    %s109 = sphi 0, %s111
    %s112 = sphi 0, %s109
    %s113 = sphi 0, %s112
    %s129 = sphi 0, %s113
    %s135 = sphi 0, %s137
    %s138 = sphi 0, %s135
    %s139 = sphi 0, %s138
    %s155 = sphi 0, %s139
    %s161 = sphi 0, %s163
    %s164 = sphi 0, %s161
    %s165 = sphi 0, %s164
    %s181 = sphi 0, %s165
    %s189 = sphi 0, %s191
    %s192 = sphi 0, %s189
    %s193 = sphi 0, %s192
    %s209 = sphi 0, %s193
    %s217 = sphi 0, %s219
    %s220 = sphi 0, %s217
    %s221 = sphi 0, %s220
    %s237 = sphi 0, %s221
    %s247 = sphi 0, %s249
    %s250 = sphi 0, %s247
    %s251 = sphi 0, %s250
    %s267 = sphi 0, %s251
  $region4: #{fwd.23} parent=0 // loop_header_branch
    %16 = sbr.rel (%p14) target = $region8
  $region5: #{fwd.23} parent=0 // loop_body
    %s18 = ssub.s32 %s13, 1
    %s19 = ssub.s32 %s13, 2
    %s32 = sadd.s32 1, %s23
    %p33 = scmp.ge.s32.totalorder %s32, 1
    %s34 = scalar_select %p33, 0, %s32
    %s35 = sadd.s32 1, %s22
    %s36 = scalar_select %p33, %s35, %s22
    %p37 = scmp.ge.s32.totalorder %s36, 1
    %s38 = scalar_select %p37, 0, %s36
    %s39 = sadd.s32 1, %s21
    %s40 = scalar_select %p37, %s39, %s21
    %p41 = scmp.ge.s32.totalorder %s40, 1
    %s42 = scalar_select %p41, 0, %s40
    %s43 = sadd.s32 1, %s20
    %s44 = scalar_select %p41, %s43, %s20
    %p45 = scmp.ge.s32.totalorder %s44, 2
    %s46 = scalar_select %p45, 0, %s44
    %s47 = ssub.s32 %s20, %s46
    %s48 = ssub.s32 %s21, %s42
    %s49 = sor.u32 %s47, %s48
    %s50 = ssub.s32 %s23, %s34
    %s51 = sor.u32 %s49, %s50
    %p52 = scmp.eq.s32.totalorder %s51, 0
    %s54 = sadd.s32 %s53, 1
    %s55 = scalar_select %p52, %s53, %s54
    %p58 = pneg %p52
    %p59 = scmp.eq.s32.totalorder %s13, 1
    %p60 = por %p58, %p59
    %p61 = scmp.ne.s32.totalorder %s53, %s56
    %p62 = scmp.eq.s32.totalorder %s13, 0
    %p63 = por %p61, %p62
    %p64 = scmp.ne.s32.totalorder %s53, %s56
    %p65 = scmp.eq.s32.totalorder %s18, 1
    %p66 = por %p64, %p65
    %p67 = scmp.ne.s32.totalorder %s56, %s57
    %p68 = scmp.eq.s32.totalorder %s18, 0
    %p69 = por %p67, %p68
    %p70 = scmp.ne.s32.totalorder %s56, %s57
    %p71 = scmp.eq.s32.totalorder %s19, 1
    %p72 = por %p70, %p71
    %p74 = scmp.ne.s32.totalorder %s57, %s73
    %p75 = scmp.eq.s32.totalorder %s19, 0
    %p76 = por %p74, %p75
    %s77 = ssub.s32 %s20, %s46
    %s78 = ssub.s32 %s23, %s34
    %s79 = sor.u32 %s77, %s78
    %p80 = scmp.eq.s32.totalorder %s79, 0
    %s82 = sadd.s32 %s81, 1
    %s83 = scalar_select %p80, %s81, %s82
    %p86 = pneg %p80
    %p87 = scmp.eq.s32.totalorder %s13, 1
    %p88 = por %p86, %p87
    %p89 = scmp.ne.s32.totalorder %s81, %s84
    %p90 = scmp.eq.s32.totalorder %s13, 0
    %p91 = por %p89, %p90
    %p92 = scmp.ne.s32.totalorder %s81, %s84
    %p93 = scmp.eq.s32.totalorder %s18, 1
    %p94 = por %p92, %p93
    %p95 = scmp.ne.s32.totalorder %s84, %s85
    %p96 = scmp.eq.s32.totalorder %s18, 0
    %p97 = por %p95, %p96
    %p98 = scmp.ne.s32.totalorder %s84, %s85
    %p99 = scmp.eq.s32.totalorder %s19, 1
    %p100 = por %p98, %p99
    %p102 = scmp.ne.s32.totalorder %s85, %s101
    %p103 = scmp.eq.s32.totalorder %s19, 0
    %p104 = por %p102, %p103
    %s105 = ssub.s32 %s23, %s34
    %s106 = ssub.s32 %s22, %s38
    %s107 = sor.u32 %s105, %s106
    %p108 = scmp.eq.s32.totalorder %s107, 0
    %s110 = sadd.s32 %s109, 1
    %s111 = scalar_select %p108, %s109, %s110
    %p114 = pneg %p108
    %p115 = scmp.eq.s32.totalorder %s13, 1
    %p116 = por %p114, %p115
    %p117 = scmp.ne.s32.totalorder %s109, %s112
    %p118 = scmp.eq.s32.totalorder %s13, 0
    %p119 = por %p117, %p118
    %p120 = scmp.ne.s32.totalorder %s109, %s112
    %p121 = scmp.eq.s32.totalorder %s18, 1
    %p122 = por %p120, %p121
    %p123 = scmp.ne.s32.totalorder %s112, %s113
    %p124 = scmp.eq.s32.totalorder %s18, 0
    %p125 = por %p123, %p124
    %p126 = scmp.ne.s32.totalorder %s112, %s113
    %p127 = scmp.eq.s32.totalorder %s19, 1
    %p128 = por %p126, %p127
    %p130 = scmp.ne.s32.totalorder %s113, %s129
    %p131 = scmp.eq.s32.totalorder %s19, 0
    %p132 = por %p130, %p131
    %s133 = ssub.s32 %s22, %s38
    %p134 = scmp.eq.s32.totalorder %s133, 0
    %s136 = sadd.s32 %s135, 1
    %s137 = scalar_select %p134, %s135, %s136
    %p140 = pneg %p134
    %p141 = scmp.eq.s32.totalorder %s13, 1
    %p142 = por %p140, %p141
    %p143 = scmp.ne.s32.totalorder %s135, %s138
    %p144 = scmp.eq.s32.totalorder %s13, 0
    %p145 = por %p143, %p144
    %p146 = scmp.ne.s32.totalorder %s135, %s138
    %p147 = scmp.eq.s32.totalorder %s18, 1
    %p148 = por %p146, %p147
    %p149 = scmp.ne.s32.totalorder %s138, %s139
    %p150 = scmp.eq.s32.totalorder %s18, 0
    %p151 = por %p149, %p150
    %p152 = scmp.ne.s32.totalorder %s138, %s139
    %p153 = scmp.eq.s32.totalorder %s19, 1
    %p154 = por %p152, %p153
    %p156 = scmp.ne.s32.totalorder %s139, %s155
    %p157 = scmp.eq.s32.totalorder %s19, 0
    %p158 = por %p156, %p157
    %s159 = ssub.s32 %s22, %s38
    %p160 = scmp.eq.s32.totalorder %s159, 0
    %s162 = sadd.s32 %s161, 1
    %s163 = scalar_select %p160, %s161, %s162
    %p166 = pneg %p160
    %p167 = scmp.eq.s32.totalorder %s13, 1
    %p168 = por %p166, %p167
    %p169 = scmp.ne.s32.totalorder %s161, %s164
    %p170 = scmp.eq.s32.totalorder %s13, 0
    %p171 = por %p169, %p170
    %p172 = scmp.ne.s32.totalorder %s161, %s164
    %p173 = scmp.eq.s32.totalorder %s18, 1
    %p174 = por %p172, %p173
    %p175 = scmp.ne.s32.totalorder %s164, %s165
    %p176 = scmp.eq.s32.totalorder %s18, 0
    %p177 = por %p175, %p176
    %p178 = scmp.ne.s32.totalorder %s164, %s165
    %p179 = scmp.eq.s32.totalorder %s19, 1
    %p180 = por %p178, %p179
    %p182 = scmp.ne.s32.totalorder %s165, %s181
    %p183 = scmp.eq.s32.totalorder %s19, 0
    %p184 = por %p182, %p183
    %s185 = ssub.s32 %s20, %s46
    %s186 = ssub.s32 %s22, %s38
    %s187 = sor.u32 %s185, %s186
    %p188 = scmp.eq.s32.totalorder %s187, 0
    %s190 = sadd.s32 %s189, 1
    %s191 = scalar_select %p188, %s189, %s190
    %p194 = pneg %p188
    %p195 = scmp.eq.s32.totalorder %s13, 1
    %p196 = por %p194, %p195
    %p197 = scmp.ne.s32.totalorder %s189, %s192
    %p198 = scmp.eq.s32.totalorder %s13, 0
    %p199 = por %p197, %p198
    %p200 = scmp.ne.s32.totalorder %s189, %s192
    %p201 = scmp.eq.s32.totalorder %s18, 1
    %p202 = por %p200, %p201
    %p203 = scmp.ne.s32.totalorder %s192, %s193
    %p204 = scmp.eq.s32.totalorder %s18, 0
    %p205 = por %p203, %p204
    %p206 = scmp.ne.s32.totalorder %s192, %s193
    %p207 = scmp.eq.s32.totalorder %s19, 1
    %p208 = por %p206, %p207
    %p210 = scmp.ne.s32.totalorder %s193, %s209
    %p211 = scmp.eq.s32.totalorder %s19, 0
    %p212 = por %p210, %p211
    %s213 = ssub.s32 %s20, %s46
    %s214 = ssub.s32 %s22, %s38
    %s215 = sor.u32 %s213, %s214
    %p216 = scmp.eq.s32.totalorder %s215, 0
    %s218 = sadd.s32 %s217, 1
    %s219 = scalar_select %p216, %s217, %s218
    %p222 = pneg %p216
    %p223 = scmp.eq.s32.totalorder %s13, 1
    %p224 = por %p222, %p223
    %p225 = scmp.ne.s32.totalorder %s217, %s220
    %p226 = scmp.eq.s32.totalorder %s13, 0
    %p227 = por %p225, %p226
    %p228 = scmp.ne.s32.totalorder %s217, %s220
    %p229 = scmp.eq.s32.totalorder %s18, 1
    %p230 = por %p228, %p229
    %p231 = scmp.ne.s32.totalorder %s220, %s221
    %p232 = scmp.eq.s32.totalorder %s18, 0
    %p233 = por %p231, %p232
    %p234 = scmp.ne.s32.totalorder %s220, %s221
    %p235 = scmp.eq.s32.totalorder %s19, 1
    %p236 = por %p234, %p235
    %p238 = scmp.ne.s32.totalorder %s221, %s237
    %p239 = scmp.eq.s32.totalorder %s19, 0
    %p240 = por %p238, %p239
    %s241 = ssub.s32 %s20, %s46
    %s242 = ssub.s32 %s21, %s42
    %s243 = sor.u32 %s241, %s242
    %s244 = ssub.s32 %s22, %s38
    %s245 = sor.u32 %s243, %s244
    %p246 = scmp.eq.s32.totalorder %s245, 0
    %s248 = sadd.s32 %s247, 1
    %s249 = scalar_select %p246, %s247, %s248
    %p252 = pneg %p246
    %p253 = scmp.eq.s32.totalorder %s13, 1
    %p254 = por %p252, %p253
    %p255 = scmp.ne.s32.totalorder %s247, %s250
    %p256 = scmp.eq.s32.totalorder %s13, 0
    %p257 = por %p255, %p256
    %p258 = scmp.ne.s32.totalorder %s247, %s250
    %p259 = scmp.eq.s32.totalorder %s18, 1
    %p260 = por %p258, %p259
    %p261 = scmp.ne.s32.totalorder %s250, %s251
    %p262 = scmp.eq.s32.totalorder %s18, 0
    %p263 = por %p261, %p262
    %p264 = scmp.ne.s32.totalorder %s250, %s251
    %p265 = scmp.eq.s32.totalorder %s19, 1
    %p266 = por %p264, %p265
    %p268 = scmp.ne.s32.totalorder %s251, %s267
    %p269 = scmp.eq.s32.totalorder %s19, 0
    %p270 = por %p268, %p269
    %p271 = scmp.le.s32.totalorder 1, %s13
    %p272 = scmp.lt.s32.totalorder %s13, 3
    %p273 = pnand %p271, %p272
    %p274 = pneg %p273
    // Predicated region
    $region9: #{fwd.23} parent=5 // pred_check
      _
    $region10: #{fwd.23} parent=5 // pred_check_branch
      %276 = sbr.rel (%p273) target = $region12
    $region11: #{fwd.23} parent=5 // pred_region
      %s277 = ssub.s32 %s13, 1
      // Predicated region
      $region13: #{fwd.23} parent=11 // pred_check
        %p278 = pneg %p125
      $region14: #{fwd.23} parent=11 // pred_check_branch
        %280 = sbr.rel (%p278) target = $region16
      $region15: #{fwd.23} parent=11 // pred_region
        %s281 = smul.u32 16, %s27
        %p282 = scmp.lt.s32.totalorder %s281, 15
        %s283 = scalar_select %p282, %s281, 15
        %p284 = scmp.lt.s32.totalorder %s26, 0
        %s285 = scalar_select %p284, %s26, 0
        %s286 = sadd.s32 %s285, %s283
        %s287 = smul.addr %s286, 4
        %s288 = scalar_lea.vmem %s2, %s287
        %s289 = smul.u32 16, %s27
      $region16: #{fwd.23} parent=11 // pred_fallthru
        _
      // Predicated region
      $region17: #{fwd.23} parent=11 // pred_check
        %p290 = pneg %p151
      $region18: #{fwd.23} parent=11 // pred_check_branch
        %292 = sbr.rel (%p290) target = $region20
      $region19: #{fwd.23} parent=11 // pred_region
        %p293 = scmp.lt.s32.totalorder %s26, 0
        %s294 = scalar_select %p293, %s26, 0
        %s295 = scalar_lea.vmem %s3, %s294
      $region20: #{fwd.23} parent=11 // pred_fallthru
        _
      // Predicated region
      $region21: #{fwd.23} parent=11 // pred_check
        %p296 = pneg %p177
      $region22: #{fwd.23} parent=11 // pred_check_branch
        %298 = sbr.rel (%p296) target = $region24
      $region23: #{fwd.23} parent=11 // pred_region
        %p299 = scmp.lt.s32.totalorder %s26, 0
        %s300 = scalar_select %p299, %s26, 0
        %s301 = scalar_lea.vmem %s4, %s300
      $region24: #{fwd.23} parent=11 // pred_fallthru
        _
    $region12: #{fwd.23} parent=5 // pred_fallthru
      _
    %p302 = scmp.lt.s32.totalorder %s13, 2
    // Predicated region
    $region25: #{fwd.23} parent=5 // pred_check
      %p303 = pneg %p302
    $region26: #{fwd.23} parent=5 // pred_check_branch
      %305 = sbr.rel (%p303) target = $region28
    $region27: #{fwd.23} parent=5 // pred_region
      // Predicated region
      $region29: #{fwd.23} parent=27 // pred_check
        %p306 = pneg %p63
      $region30: #{fwd.23} parent=27 // pred_check_branch
        %308 = sbr.rel (%p306) target = $region32
      $region31: #{fwd.23} parent=27 // pred_region
        %s309 = smul.u32 2, %s21
        %p310 = scmp.lt.s32.totalorder %s20, 1
        %s311 = scalar_select %p310, %s20, 1
        %p312 = scmp.lt.s32.totalorder %s309, 1
        %s313 = scalar_select %p312, %s309, 1
        %p314 = scmp.lt.s32.totalorder %s23, 0
        %s315 = scalar_select %p314, %s23, 0
        %s316 = sadd.s32 %s315, %s313
        %s317 = smul.addr %s311, 2
        %s318 = sadd.s32 %s316, %s317
        %s319 = smul.addr %s318, 4
        %s320 = scalar_lea.vmem %s0, %s319
        %s321 = smul.u32 2, %s21
      $region32: #{fwd.23} parent=27 // pred_fallthru
        _
      // Predicated region
      $region33: #{fwd.23} parent=27 // pred_check
        %p322 = pneg %p91
      $region34: #{fwd.23} parent=27 // pred_check_branch
        %324 = sbr.rel (%p322) target = $region36
      $region35: #{fwd.23} parent=27 // pred_region
        %p325 = scmp.lt.s32.totalorder %s20, 1
        %s326 = scalar_select %p325, %s20, 1
        %p327 = scmp.lt.s32.totalorder %s23, 0
        %s328 = scalar_select %p327, %s23, 0
        %s329 = sadd.s32 %s328, %s326
        %s330 = scalar_lea.vmem %s1, %s329
      $region36: #{fwd.23} parent=27 // pred_fallthru
        _
      // Predicated region
      $region37: #{fwd.23} parent=27 // pred_check
        %p331 = pneg %p199
      $region38: #{fwd.23} parent=27 // pred_check_branch
        %333 = sbr.rel (%p331) target = $region40
      $region39: #{fwd.23} parent=27 // pred_region
        %p334 = scmp.lt.s32.totalorder %s20, 1
        %s335 = scalar_select %p334, %s20, 1
        %p336 = scmp.lt.s32.totalorder %s22, 0
        %s337 = scalar_select %p336, %s22, 0
        %s338 = sadd.s32 %s337, %s335
        %s339 = scalar_lea.vmem %s5, %s338
      $region40: #{fwd.23} parent=27 // pred_fallthru
        _
      // Predicated region
      $region41: #{fwd.23} parent=27 // pred_check
        %p340 = pneg %p227
      $region42: #{fwd.23} parent=27 // pred_check_branch
        %342 = sbr.rel (%p340) target = $region44
      $region43: #{fwd.23} parent=27 // pred_region
        %p343 = scmp.lt.s32.totalorder %s20, 1
        %s344 = scalar_select %p343, %s20, 1
        %p345 = scmp.lt.s32.totalorder %s22, 0
        %s346 = scalar_select %p345, %s22, 0
        %s347 = sadd.s32 %s346, %s344
        %s348 = scalar_lea.vmem %s6, %s347
      $region44: #{fwd.23} parent=27 // pred_fallthru
        _
    $region28: #{fwd.23} parent=5 // pred_fallthru
      _
    %p349 = scmp.le.s32.totalorder 1, %s13
    %p350 = scmp.lt.s32.totalorder %s13, 3
    %p351 = pnand %p349, %p350
    %p352 = pneg %p351
    // Predicated region
    $region45: #{fwd.23} parent=5 // pred_check
      _
    $region46: #{fwd.23} parent=5 // pred_check_branch
      %354 = sbr.rel (%p351) target = $region48
    $region47: #{fwd.23} parent=5 // pred_region
      %s355 = ssub.s32 %s13, 1
      %s356 = smul.u32 2, %s25
      %p357 = scmp.lt.s32.totalorder %s24, 1
      %s358 = scalar_select %p357, %s24, 1
      %p359 = scmp.lt.s32.totalorder %s356, 1
      %s360 = scalar_select %p359, %s356, 1
      %p361 = scmp.lt.s32.totalorder %s27, 0
      %s362 = scalar_select %p361, %s27, 0
      %s363 = sadd.s32 %s362, %s360
      %s364 = smul.addr %s358, 2
      %s365 = sadd.s32 %s363, %s364
      %s366 = smul.addr %s365, 4
      %s367 = scalar_lea.vmem %s0, %s366
      %p368 = pneg %p69
      %p369 = pneg %p66
      %p370 = scmp.lt.s32.totalorder %s24, 1
      %s371 = scalar_select %p370, %s24, 1
      %p372 = scmp.lt.s32.totalorder %s27, 0
      %s373 = scalar_select %p372, %s27, 0
      %s374 = sadd.s32 %s373, %s371
      %s375 = scalar_lea.vmem %s1, %s374
      %p376 = pneg %p97
      %p377 = pneg %p94
      %s378 = smul.u32 16, %s27
      %p379 = scmp.lt.s32.totalorder %s378, 15
      %s380 = scalar_select %p379, %s378, 15
      %p381 = scmp.lt.s32.totalorder %s26, 0
      %s382 = scalar_select %p381, %s26, 0
      %s383 = sadd.s32 %s382, %s380
      %s384 = smul.addr %s383, 4
      %s385 = scalar_lea.vmem %s2, %s384
      %p386 = pneg %p125
      %p387 = pneg %p122
      %p388 = scmp.lt.s32.totalorder %s26, 0
      %s389 = scalar_select %p388, %s26, 0
      %s390 = scalar_lea.vmem %s3, %s389
      %p391 = pneg %p151
      %p392 = pneg %p148
      %p393 = scmp.lt.s32.totalorder %s26, 0
      %s394 = scalar_select %p393, %s26, 0
      %s395 = scalar_lea.vmem %s4, %s394
      %p396 = pneg %p177
      %p397 = pneg %p174
      %p398 = scmp.lt.s32.totalorder %s24, 1
      %s399 = scalar_select %p398, %s24, 1
      %p400 = scmp.lt.s32.totalorder %s26, 0
      %s401 = scalar_select %p400, %s26, 0
      %s402 = sadd.s32 %s401, %s399
      %s403 = scalar_lea.vmem %s5, %s402
      %p404 = pneg %p205
      %p405 = pneg %p202
      %p406 = scmp.lt.s32.totalorder %s24, 1
      %s407 = scalar_select %p406, %s24, 1
      %p408 = scmp.lt.s32.totalorder %s26, 0
      %s409 = scalar_select %p408, %s26, 0
      %s410 = sadd.s32 %s409, %s407
      %s411 = scalar_lea.vmem %s6, %s410
      %p412 = pneg %p233
      %p413 = pneg %p230
      %p414 = pneg %p263
      %p415 = pneg %p260
      %s416 = smul.u32 2, %s25
      %p417 = scmp.lt.s32.totalorder %s24, 1
      %s418 = scalar_select %p417, %s24, 1
      %p419 = scmp.lt.s32.totalorder %s416, 1
      %s420 = scalar_select %p419, %s416, 1
      %p421 = scmp.lt.s32.totalorder %s26, 0
      %s422 = scalar_select %p421, %s26, 0
      %s423 = sadd.s32 %s422, %s420
      %s424 = smul.addr %s418, 2
      %s425 = sadd.s32 %s423, %s424
      %s426 = smul.addr %s425, 4
      %s427 = scalar_lea.vmem %s7, %s426
      %s428 = smul.u32 2, %s25
      %p429 = scmp.lt.s32.totalorder %s24, 1
      %s430 = scalar_select %p429, %s24, 1
      %p431 = scmp.lt.s32.totalorder %s428, 1
      %s432 = scalar_select %p431, %s428, 1
      %p433 = scmp.lt.s32.totalorder %s27, 0
      %s434 = scalar_select %p433, %s27, 0
      %s435 = sadd.s32 %s434, %s432
      %s436 = smul.addr %s430, 2
      %s437 = sadd.s32 %s435, %s436
      %s438 = smul.addr %s437, 4
      %s439 = scalar_lea.vmem %s0, %s438
      %s440 = smul.u32 2, %s25
      %p441 = scmp.lt.s32.totalorder %s24, 1
      %s442 = scalar_select %p441, %s24, 1
      %p443 = scmp.lt.s32.totalorder %s27, 0
      %s444 = scalar_select %p443, %s27, 0
      %s445 = sadd.s32 %s444, %s442
      %s446 = scalar_lea.vmem %s1, %s445
      %s447 = smul.u32 16, %s27
      %p448 = scmp.lt.s32.totalorder %s447, 15
      %s449 = scalar_select %p448, %s447, 15
      %p450 = scmp.lt.s32.totalorder %s26, 0
      %s451 = scalar_select %p450, %s26, 0
      %s452 = sadd.s32 %s451, %s449
      %s453 = smul.addr %s452, 4
      %s454 = scalar_lea.vmem %s2, %s453
      %s455 = smul.u32 16, %s27
      %p456 = scmp.lt.s32.totalorder %s26, 0
      %s457 = scalar_select %p456, %s26, 0
      %s458 = scalar_lea.vmem %s3, %s457
      %p459 = scmp.lt.s32.totalorder %s26, 0
      %s460 = scalar_select %p459, %s26, 0
      %s461 = scalar_lea.vmem %s4, %s460
      %p462 = scmp.lt.s32.totalorder %s24, 1
      %s463 = scalar_select %p462, %s24, 1
      %p464 = scmp.lt.s32.totalorder %s26, 0
      %s465 = scalar_select %p464, %s26, 0
      %s466 = sadd.s32 %s465, %s463
      %s467 = scalar_lea.vmem %s5, %s466
      %p468 = scmp.lt.s32.totalorder %s24, 1
      %s469 = scalar_select %p468, %s24, 1
      %p470 = scmp.lt.s32.totalorder %s26, 0
      %s471 = scalar_select %p470, %s26, 0
      %s472 = sadd.s32 %s471, %s469
      %s473 = scalar_lea.vmem %s6, %s472
      %s474 = smul.u32 2, %s25
      %p475 = scmp.lt.s32.totalorder %s24, 1
      %s476 = scalar_select %p475, %s24, 1
      %p477 = scmp.lt.s32.totalorder %s474, 1
      %s478 = scalar_select %p477, %s474, 1
      %p479 = scmp.lt.s32.totalorder %s26, 0
      %s480 = scalar_select %p479, %s26, 0
      %s481 = sadd.s32 %s480, %s478
      %s482 = smul.addr %s476, 2
      %s483 = sadd.s32 %s481, %s482
      %s484 = smul.addr %s483, 4
      %s485 = scalar_lea.vmem %s7, %s484
      %s486 = smul.u32 2, %s25
      %p488 = scmp.eq.s32.totalorder %s27, 0
      // Predicated region
      $region49: #{fwd.23} parent=47 // pred_check
        %p489 = pneg %p488
      $region50: #{fwd.23} parent=47 // pred_check_branch
        %491 = sbr.rel (%p489) target = $region52
      $region51: #{fwd.23} parent=47 // pred_region
        %492 = vst [vmem:[#allocation2] sm:$0xff] 0.0
        %493 = vst [vmem:[#allocation2 + $0x8] sm:$0xff] 0.0
      $region52: #{fwd.23} parent=47 // pred_fallthru
        _
      %v494 = vld [vmem:[%s439] sm:$0xf]
      %v495 = vld [vmem:[%s439 + $0x4] sm:$0xf]
      %v496 = vunpack.c.l.bf16 %v494
      %v497 = vunpack.c.l.bf16 %v495
      %v498 = vld [vmem:[%s446] sm:$0x1]
      %v500 = vlaneseq
      %v501 = vshrl.u32 %v500, 7
      %v502 = vsub.s32 0, %v501
      %v503 = vrot.slane %v498, %v502
      %v505 = vmul.f32 %v496, %v503
      %v506 = vmul.f32 %v497, %v503
      %v507 = vld [vmem:[#allocation2] sm:$0xff]
      %v508 = vld [vmem:[#allocation2 + $0x8] sm:$0xff]
      %v509 = vpack.c.bf16 %v506, %v505
      %v510 = vld [vmem:[%s454] sm:$0xf]
      %v511 = vld [vmem:[%s454 + $0x4] sm:$0xf]
      %v512 = vld [vmem:[%s454 + $0x8] sm:$0xf]
      %v513 = vld [vmem:[%s454 + $0xc] sm:$0xf]
      %v514 = vld [vmem:[%s454 + $0x10] sm:$0xf]
      %v515 = vld [vmem:[%s454 + $0x14] sm:$0xf]
      %v516 = vld [vmem:[%s454 + $0x18] sm:$0xf]
      %v517 = vld [vmem:[%s454 + $0x1c] sm:$0xf]
      %v518 = vld [vmem:[%s454 + $0x20] sm:$0xf]
      %v519 = vld [vmem:[%s454 + $0x24] sm:$0xf]
      %v520 = vld [vmem:[%s454 + $0x28] sm:$0xf]
      %v521 = vld [vmem:[%s454 + $0x2c] sm:$0xf]
      %v522 = vld [vmem:[%s454 + $0x30] sm:$0xf]
      %v523 = vld [vmem:[%s454 + $0x34] sm:$0xf]
      %v524 = vld [vmem:[%s454 + $0x38] sm:$0xf]
      %v525 = vld [vmem:[%s454 + $0x3c] sm:$0xf]
      %v542 = vunpack.c.l.b16 %v510
      %v543 = vunpack.c.l.b16 %v511
      %v544 = vunpack.c.l.b16 %v512
      %v545 = vunpack.c.l.b16 %v513
      %v546 = vunpack.c.l.b16 %v514
      %v547 = vunpack.c.l.b16 %v515
      %v548 = vunpack.c.l.b16 %v516
      %v549 = vunpack.c.l.b16 %v517
      %v550 = vunpack.c.l.b16 %v518
      %v551 = vunpack.c.l.b16 %v519
      %v552 = vunpack.c.l.b16 %v520
      %v553 = vunpack.c.l.b16 %v521
      %v554 = vunpack.c.l.b16 %v522
      %v555 = vunpack.c.l.b16 %v523
      %v556 = vunpack.c.l.b16 %v524
      %v557 = vunpack.c.l.b16 %v525
      %v558 = vpack.c.b16 %v543, %v542
      %v559 = vpack.c.b16 %v545, %v544
      %v560 = vpack.c.b16 %v547, %v546
      %v561 = vpack.c.b16 %v549, %v548
      %v562 = vpack.c.b16 %v551, %v550
      %v563 = vpack.c.b16 %v553, %v552
      %v564 = vpack.c.b16 %v555, %v554
      %v565 = vpack.c.b16 %v557, %v556
      %574 = vmatprep.subr.bf16.mxu0 0
      %575 = vmatpush1.bf16.msra.mxu0 %v565
      %576 = vmatprep.subr.bf16.mxu0 0
      %577 = vmatpush1.bf16.msra.mxu0 %v564
      %578 = vmatprep.subr.bf16.mxu0 0
      %579 = vmatpush1.bf16.msra.mxu0 %v563
      %580 = vmatprep.subr.bf16.mxu0 0
      %581 = vmatpush1.bf16.msra.mxu0 %v562
      %582 = vmatprep.subr.bf16.mxu0 0
      %583 = vmatpush1.bf16.msra.mxu0 %v561
      %584 = vmatprep.subr.bf16.mxu0 0
      %585 = vmatpush1.bf16.msra.mxu0 %v560
      %586 = vmatprep.subr.bf16.mxu0 0
      %587 = vmatpush1.bf16.msra.mxu0 %v559
      %588 = vmatprep.subr.bf16.mxu0 0
      %589 = vmatpush1.bf16.msra.mxu0 %v558
      %590 = vmatprep.subr.bf16.mxu0 0
      %591 = vmatpush2.bf16.msra.mxu0 0
      %592 = vmatprep.subr.bf16.mxu0 0
      %593 = vmatpush2.bf16.msra.mxu0 0
      %594 = vmatprep.subr.bf16.mxu0 0
      %595 = vmatpush2.bf16.msra.mxu0 0
      %596 = vmatprep.subr.bf16.mxu0 0
      %597 = vmatpush2.bf16.msra.mxu0 0
      %598 = vmatprep.subr.bf16.mxu0 0
      %599 = vmatpush2.bf16.msra.mxu0 0
      %600 = vmatprep.subr.bf16.mxu0 0
      %601 = vmatpush2.bf16.msra.mxu0 0
      %602 = vmatprep.subr.bf16.mxu0 0
      %603 = vmatpush2.bf16.msra.mxu0 0
      %604 = vmatprep.subr.bf16.mxu0 0
      %605 = vmatpush2.bf16.msra.mxu0 0
      %606 = vmatprep.mubr.bf16.mxu0 0
      %607 = vmatmul.mubr.bf16.gmra.mxu0 %v509
      %v608 = vpop.f32.mrf.mxu0
      %v609 = vadd.f32 0.0, %v608
      %v610 = vpop.f32.mrf.mxu0
      %v611 = vpop.f32.mrf.mxu0
      %v612 = vadd.f32 0.0, %v611
      %v613 = vpop.f32.mrf.mxu0
      %614 = vdwg.mxu0
      %v615 = vadd.f32 %v507, %v609
      %v616 = vadd.f32 %v508, %v612
      %617 = vst [vmem:[#allocation2] sm:$0xff] %v615
      %618 = vst [vmem:[#allocation2 + $0x8] sm:$0xff] %v616
      // Predicated region
      $region53: #{fwd.23} parent=47 // pred_check
        %p619 = pneg %p488
      $region54: #{fwd.23} parent=47 // pred_check_branch
        %621 = sbr.rel (%p619) target = $region56
      $region55: #{fwd.23} parent=47 // pred_region
        %v622 = vld [vmem:[#allocation2] sm:$0xff]
        %v623 = vld [vmem:[#allocation2 + $0x8] sm:$0xff]
        %v624 = vld [vmem:[%s458] sm:$0x1]
        %v626 = vlaneseq
        %v627 = vshrl.u32 %v626, 7
        %v628 = vsub.s32 0, %v627
        %v629 = vrot.slane %v624, %v628
        %v631 = vmul.f32 %v622, %v629
        %v632 = vmul.f32 %v623, %v629
        %v633 = vld [vmem:[%s461] sm:$0x1]
        %v635 = vlaneseq
        %v636 = vshrl.u32 %v635, 7
        %v637 = vsub.s32 0, %v636
        %v638 = vrot.slane %v633, %v637
        %v640 = vadd.f32 %v631, %v638
        %v641 = vadd.f32 %v632, %v638
        %v642 = vld [vmem:[%s467] sm:$0x1]
        %v643 = vadd.f32 %v642, 1.0
        %v645 = vlaneseq
        %v646 = vshrl.u32 %v645, 7
        %v647 = vsub.s32 0, %v646
        %v648 = vrot.slane %v643, %v647
        %v650 = vmul.f32 %v640, %v648
        %v651 = vmul.f32 %v641, %v648
        %v652 = vld [vmem:[%s473] sm:$0x1]
        %v654 = vlaneseq
        %v655 = vshrl.u32 %v654, 7
        %v656 = vsub.s32 0, %v655
        %v657 = vrot.slane %v652, %v656
        %v659 = vadd.f32 %v650, %v657
        %v660 = vadd.f32 %v651, %v657
        %v661 = vpack.c.bf16 %v660, %v659
        %v663 = vunpack.c.l.b16 %v661
        %v664 = vunpack.c.h.b16 %v661
        %v665 = vpack.c.b16 %v663, %v663
        %v666 = vpack.c.b16 %v664, %v664
        %669 = vst [vmem:[%s485] sm:$0xf] %v665
        %670 = vst [vmem:[%s485 + $0x4] sm:$0xf] %v666
      $region56: #{fwd.23} parent=47 // pred_fallthru
        _
      %s671 = smul.u32 2, %s25
      %p672 = scmp.lt.s32.totalorder %s24, 1
      %s673 = scalar_select %p672, %s24, 1
      %p674 = scmp.lt.s32.totalorder %s671, 1
      %s675 = scalar_select %p674, %s671, 1
      %p676 = scmp.lt.s32.totalorder %s26, 0
      %s677 = scalar_select %p676, %s26, 0
      %s678 = sadd.s32 %s677, %s675
      %s679 = smul.addr %s673, 2
      %s680 = sadd.s32 %s678, %s679
      %s681 = smul.addr %s680, 4
      %s682 = scalar_lea.vmem %s7, %s681
      // Predicated region
      $region57: #{fwd.23} parent=47 // pred_check
        %p683 = pneg %p260
      $region58: #{fwd.23} parent=47 // pred_check_branch
        %685 = sbr.rel (%p683) target = $region60
      $region59: #{fwd.23} parent=47 // pred_region
        %s686 = smul.u32 2, %s25
      $region60: #{fwd.23} parent=47 // pred_fallthru
        _
    $region48: #{fwd.23} parent=5 // pred_fallthru
      _
    %p687 = scmp.le.s32.totalorder 2, %s13
    // Predicated region
    $region61: #{fwd.23} parent=5 // pred_check
      %p688 = pneg %p687
    $region62: #{fwd.23} parent=5 // pred_check_branch
      %690 = sbr.rel (%p688) target = $region64
    $region63: #{fwd.23} parent=5 // pred_region
      %s691 = ssub.s32 %s13, 2
      // Predicated region
      $region65: #{fwd.23} parent=63 // pred_check
        %p692 = pneg %p266
      $region66: #{fwd.23} parent=63 // pred_check_branch
        %694 = sbr.rel (%p692) target = $region68
      $region67: #{fwd.23} parent=63 // pred_region
        %s695 = smul.u32 2, %s29
        %p696 = scmp.lt.s32.totalorder %s28, 1
        %s697 = scalar_select %p696, %s28, 1
        %p698 = scmp.lt.s32.totalorder %s695, 1
        %s699 = scalar_select %p698, %s695, 1
        %p700 = scmp.lt.s32.totalorder %s30, 0
        %s701 = scalar_select %p700, %s30, 0
        %s702 = sadd.s32 %s701, %s699
        %s703 = smul.addr %s697, 2
        %s704 = sadd.s32 %s702, %s703
        %s705 = smul.addr %s704, 4
        %s706 = scalar_lea.vmem %s7, %s705
      $region68: #{fwd.23} parent=63 // pred_fallthru
        _
    $region64: #{fwd.23} parent=5 // pred_fallthru
      _
  $region6: #{fwd.23} parent=0 // loop_footer
    %s17 = sadd.s32 1, %s13
  $region7: #{fwd.23} parent=0 // loop_footer_branch
    %12 = sbr.rel target = $region3
  $region8: #{fwd.23} parent=0 // loop_exit
    _

// kernel: fwd.21
$region0: #{fwd.21}
  #allocation0 [shape = 'u32[]', space=smem, size = 0x4, offset = 0x4, fixed_abs, tag = 'smem constant byte address 0x4 - core index']
  #allocation1 [shape = 'u32[144,128]{1,0:T(1,128)}', space=vmem, size = 0x12000, scoped, tag = 'internal scratch']
  %s0 = inlined_call_operand.vmem [shape: bf16[8,5,5,128], index: 0, kind: input, shape index: {}]
  %s1 = inlined_call_operand.vmem [shape: f32[9,128], index: 1, kind: input, shape index: {}]
  %s2 = inlined_call_operand.vmem [shape: f32[1,128], index: 2, kind: input, shape index: {}]
  %s3 = inlined_call_operand.vmem [shape: f32[1,128], index: 3, kind: input, shape index: {}]
  %s4 = inlined_call_operand.vmem [shape: bf16[2,4,4,128], index: 4, kind: output, shape index: {0}]
  %s5 = inlined_call_operand.vmem [shape: f32[2,1,128], index: 5, kind: output, shape index: {1}]
  %6 = xla_tuple %s4, %s5
  %s7 = sld [smem:[#allocation0]]
  $region57: #{fwd.21} parent=0
    _
  %s9 = ssub.s32 1, %s7
  %s10 = scalar_select 0, %s9, %s7
  loop: start=0, step=1, limit=4
  $region2: #{fwd.21} parent=0 // loop_pre_header
    _
  $region3: #{fwd.21} parent=0 // loop_header
    %s12 = sphi 0, %s16
    %p13 = scmp.ge.s32.totalorder %s12, 4
    %s19 = sphi 0, %s31
    %s20 = sphi 0, %s27
    %s21 = sphi 0, %s19
    %s22 = sphi 0, %s20
    %s23 = sphi 0, %s21
    %s24 = sphi 0, %s22
    %s36 = sphi 0, %s38
    %s39 = sphi 0, %s36
    %s40 = sphi 0, %s39
    %s56 = sphi 0, %s40
    %s62 = sphi 0, %s64
    %s65 = sphi 0, %s62
    %s66 = sphi 0, %s65
    %s82 = sphi 0, %s66
    %s88 = sphi 0, %s90
    %s91 = sphi 0, %s88
    %s92 = sphi 0, %s91
    %s108 = sphi 0, %s92
    %s114 = sphi 0, %s116
    %s117 = sphi 0, %s114
    %s118 = sphi 0, %s117
    %s134 = sphi 0, %s118
    %s142 = sphi 0, %s144
    %s145 = sphi 0, %s142
    %s146 = sphi 0, %s145
    %s162 = sphi 0, %s146
    %s170 = sphi 0, %s172
    %s173 = sphi 0, %s170
    %s174 = sphi 0, %s173
    %s190 = sphi 0, %s174
  $region4: #{fwd.21} parent=0 // loop_header_branch
    %15 = sbr.rel (%p13) target = $region8
  $region5: #{fwd.21} parent=0 // loop_body
    %s17 = ssub.s32 %s12, 1
    %s18 = ssub.s32 %s12, 2
    %s25 = sadd.s32 1, %s20
    %p26 = scmp.ge.s32.totalorder %s25, 1
    %s27 = scalar_select %p26, 0, %s25
    %s28 = sadd.s32 1, %s19
    %s29 = scalar_select %p26, %s28, %s19
    %p30 = scmp.ge.s32.totalorder %s29, 2
    %s31 = scalar_select %p30, 0, %s29
    %s32 = ssub.s32 %s19, %s31
    %s33 = ssub.s32 %s20, %s27
    %s34 = sor.u32 %s32, %s33
    %p35 = scmp.eq.s32.totalorder %s34, 0
    %s37 = sadd.s32 %s36, 1
    %s38 = scalar_select %p35, %s36, %s37
    %p41 = pneg %p35
    %p42 = scmp.eq.s32.totalorder %s12, 1
    %p43 = por %p41, %p42
    %p44 = scmp.ne.s32.totalorder %s36, %s39
    %p45 = scmp.eq.s32.totalorder %s12, 0
    %p46 = por %p44, %p45
    %p47 = scmp.ne.s32.totalorder %s36, %s39
    %p48 = scmp.eq.s32.totalorder %s17, 1
    %p49 = por %p47, %p48
    %p50 = scmp.ne.s32.totalorder %s39, %s40
    %p51 = scmp.eq.s32.totalorder %s17, 0
    %p52 = por %p50, %p51
    %p53 = scmp.ne.s32.totalorder %s39, %s40
    %p54 = scmp.eq.s32.totalorder %s18, 1
    %p55 = por %p53, %p54
    %p57 = scmp.ne.s32.totalorder %s40, %s56
    %p58 = scmp.eq.s32.totalorder %s18, 0
    %p59 = por %p57, %p58
    %s60 = ssub.s32 %s20, %s27
    %p61 = scmp.eq.s32.totalorder %s60, 0
    %s63 = sadd.s32 %s62, 1
    %s64 = scalar_select %p61, %s62, %s63
    %p67 = pneg %p61
    %p68 = scmp.eq.s32.totalorder %s12, 1
    %p69 = por %p67, %p68
    %p70 = scmp.ne.s32.totalorder %s62, %s65
    %p71 = scmp.eq.s32.totalorder %s12, 0
    %p72 = por %p70, %p71
    %p73 = scmp.ne.s32.totalorder %s62, %s65
    %p74 = scmp.eq.s32.totalorder %s17, 1
    %p75 = por %p73, %p74
    %p76 = scmp.ne.s32.totalorder %s65, %s66
    %p77 = scmp.eq.s32.totalorder %s17, 0
    %p78 = por %p76, %p77
    %p79 = scmp.ne.s32.totalorder %s65, %s66
    %p80 = scmp.eq.s32.totalorder %s18, 1
    %p81 = por %p79, %p80
    %p83 = scmp.ne.s32.totalorder %s66, %s82
    %p84 = scmp.eq.s32.totalorder %s18, 0
    %p85 = por %p83, %p84
    %s86 = ssub.s32 %s20, %s27
    %p87 = scmp.eq.s32.totalorder %s86, 0
    %s89 = sadd.s32 %s88, 1
    %s90 = scalar_select %p87, %s88, %s89
    %p93 = pneg %p87
    %p94 = scmp.eq.s32.totalorder %s12, 1
    %p95 = por %p93, %p94
    %p96 = scmp.ne.s32.totalorder %s88, %s91
    %p97 = scmp.eq.s32.totalorder %s12, 0
    %p98 = por %p96, %p97
    %p99 = scmp.ne.s32.totalorder %s88, %s91
    %p100 = scmp.eq.s32.totalorder %s17, 1
    %p101 = por %p99, %p100
    %p102 = scmp.ne.s32.totalorder %s91, %s92
    %p103 = scmp.eq.s32.totalorder %s17, 0
    %p104 = por %p102, %p103
    %p105 = scmp.ne.s32.totalorder %s91, %s92
    %p106 = scmp.eq.s32.totalorder %s18, 1
    %p107 = por %p105, %p106
    %p109 = scmp.ne.s32.totalorder %s92, %s108
    %p110 = scmp.eq.s32.totalorder %s18, 0
    %p111 = por %p109, %p110
    %s112 = ssub.s32 %s20, %s27
    %p113 = scmp.eq.s32.totalorder %s112, 0
    %s115 = sadd.s32 %s114, 1
    %s116 = scalar_select %p113, %s114, %s115
    %p119 = pneg %p113
    %p120 = scmp.eq.s32.totalorder %s12, 1
    %p121 = por %p119, %p120
    %p122 = scmp.ne.s32.totalorder %s114, %s117
    %p123 = scmp.eq.s32.totalorder %s12, 0
    %p124 = por %p122, %p123
    %p125 = scmp.ne.s32.totalorder %s114, %s117
    %p126 = scmp.eq.s32.totalorder %s17, 1
    %p127 = por %p125, %p126
    %p128 = scmp.ne.s32.totalorder %s117, %s118
    %p129 = scmp.eq.s32.totalorder %s17, 0
    %p130 = por %p128, %p129
    %p131 = scmp.ne.s32.totalorder %s117, %s118
    %p132 = scmp.eq.s32.totalorder %s18, 1
    %p133 = por %p131, %p132
    %p135 = scmp.ne.s32.totalorder %s118, %s134
    %p136 = scmp.eq.s32.totalorder %s18, 0
    %p137 = por %p135, %p136
    %s138 = ssub.s32 %s19, %s31
    %s139 = ssub.s32 %s20, %s27
    %s140 = sor.u32 %s138, %s139
    %p141 = scmp.eq.s32.totalorder %s140, 0
    %s143 = sadd.s32 %s142, 1
    %s144 = scalar_select %p141, %s142, %s143
    %p147 = pneg %p141
    %p148 = scmp.eq.s32.totalorder %s12, 1
    %p149 = por %p147, %p148
    %p150 = scmp.ne.s32.totalorder %s142, %s145
    %p151 = scmp.eq.s32.totalorder %s12, 0
    %p152 = por %p150, %p151
    %p153 = scmp.ne.s32.totalorder %s142, %s145
    %p154 = scmp.eq.s32.totalorder %s17, 1
    %p155 = por %p153, %p154
    %p156 = scmp.ne.s32.totalorder %s145, %s146
    %p157 = scmp.eq.s32.totalorder %s17, 0
    %p158 = por %p156, %p157
    %p159 = scmp.ne.s32.totalorder %s145, %s146
    %p160 = scmp.eq.s32.totalorder %s18, 1
    %p161 = por %p159, %p160
    %p163 = scmp.ne.s32.totalorder %s146, %s162
    %p164 = scmp.eq.s32.totalorder %s18, 0
    %p165 = por %p163, %p164
    %s166 = ssub.s32 %s19, %s31
    %s167 = ssub.s32 %s20, %s27
    %s168 = sor.u32 %s166, %s167
    %p169 = scmp.eq.s32.totalorder %s168, 0
    %s171 = sadd.s32 %s170, 1
    %s172 = scalar_select %p169, %s170, %s171
    %p175 = pneg %p169
    %p176 = scmp.eq.s32.totalorder %s12, 1
    %p177 = por %p175, %p176
    %p178 = scmp.ne.s32.totalorder %s170, %s173
    %p179 = scmp.eq.s32.totalorder %s12, 0
    %p180 = por %p178, %p179
    %p181 = scmp.ne.s32.totalorder %s170, %s173
    %p182 = scmp.eq.s32.totalorder %s17, 1
    %p183 = por %p181, %p182
    %p184 = scmp.ne.s32.totalorder %s173, %s174
    %p185 = scmp.eq.s32.totalorder %s17, 0
    %p186 = por %p184, %p185
    %p187 = scmp.ne.s32.totalorder %s173, %s174
    %p188 = scmp.eq.s32.totalorder %s18, 1
    %p189 = por %p187, %p188
    %p191 = scmp.ne.s32.totalorder %s174, %s190
    %p192 = scmp.eq.s32.totalorder %s18, 0
    %p193 = por %p191, %p192
    %p194 = scmp.le.s32.totalorder 1, %s12
    %p195 = scmp.lt.s32.totalorder %s12, 3
    %p196 = pnand %p194, %p195
    %p197 = pneg %p196
    // Predicated region
    $region9: #{fwd.21} parent=5 // pred_check
      _
    $region10: #{fwd.21} parent=5 // pred_check_branch
      %199 = sbr.rel (%p196) target = $region12
    $region11: #{fwd.21} parent=5 // pred_region
      %s200 = ssub.s32 %s12, 1
      // Predicated region
      $region13: #{fwd.21} parent=11 // pred_check
        %p201 = pneg %p78
      $region14: #{fwd.21} parent=11 // pred_check_branch
        %203 = sbr.rel (%p201) target = $region16
      $region15: #{fwd.21} parent=11 // pred_region
        %p204 = scmp.lt.s32.totalorder %s22, 0
        %s205 = scalar_select %p204, %s22, 0
        %s206 = smul.addr %s205, 8
        %s207 = scalar_lea.vmem %s1, %s206
      $region16: #{fwd.21} parent=11 // pred_fallthru
        _
      // Predicated region
      $region17: #{fwd.21} parent=11 // pred_check
        %p208 = pneg %p104
      $region18: #{fwd.21} parent=11 // pred_check_branch
        %210 = sbr.rel (%p208) target = $region20
      $region19: #{fwd.21} parent=11 // pred_region
        %p211 = scmp.lt.s32.totalorder %s22, 0
        %s212 = scalar_select %p211, %s22, 0
        %s213 = scalar_lea.vmem %s2, %s212
      $region20: #{fwd.21} parent=11 // pred_fallthru
        _
      // Predicated region
      $region21: #{fwd.21} parent=11 // pred_check
        %p214 = pneg %p130
      $region22: #{fwd.21} parent=11 // pred_check_branch
        %216 = sbr.rel (%p214) target = $region24
      $region23: #{fwd.21} parent=11 // pred_region
        %p217 = scmp.lt.s32.totalorder %s22, 0
        %s218 = scalar_select %p217, %s22, 0
        %s219 = scalar_lea.vmem %s3, %s218
      $region24: #{fwd.21} parent=11 // pred_fallthru
        _
    $region12: #{fwd.21} parent=5 // pred_fallthru
      _
    %p220 = scmp.lt.s32.totalorder %s12, 2
    // Predicated region
    $region25: #{fwd.21} parent=5 // pred_check
      %p221 = pneg %p220
    $region26: #{fwd.21} parent=5 // pred_check_branch
      %223 = sbr.rel (%p221) target = $region28
    $region27: #{fwd.21} parent=5 // pred_region
      // Predicated region
      $region29: #{fwd.21} parent=27 // pred_check
        %p224 = pneg %p46
      $region30: #{fwd.21} parent=27 // pred_check_branch
        %226 = sbr.rel (%p224) target = $region32
      $region31: #{fwd.21} parent=27 // pred_region
        %s227 = smul.u32 4, %s19
        %p228 = scmp.lt.s32.totalorder %s227, 7
        %s229 = scalar_select %p228, %s227, 7
        %p230 = scmp.lt.s32.totalorder %s20, 0
        %s231 = scalar_select %p230, %s20, 0
        %s232 = smul.addr %s229, 5
        %s233 = sadd.s32 %s231, %s232
        %s234 = smul.addr %s233, 4
        %s235 = scalar_lea.vmem %s0, %s234
        %s236 = smul.u32 4, %s19
      $region32: #{fwd.21} parent=27 // pred_fallthru
        _
    $region28: #{fwd.21} parent=5 // pred_fallthru
      _
    %p237 = scmp.le.s32.totalorder 1, %s12
    %p238 = scmp.lt.s32.totalorder %s12, 3
    %p239 = pnand %p237, %p238
    %p240 = pneg %p239
    // Predicated region
    $region33: #{fwd.21} parent=5 // pred_check
      _
    $region34: #{fwd.21} parent=5 // pred_check_branch
      %242 = sbr.rel (%p239) target = $region36
    $region35: #{fwd.21} parent=5 // pred_region
      %s243 = ssub.s32 %s12, 1
      %s244 = smul.u32 4, %s21
      %p245 = scmp.lt.s32.totalorder %s244, 7
      %s246 = scalar_select %p245, %s244, 7
      %p247 = scmp.lt.s32.totalorder %s22, 0
      %s248 = scalar_select %p247, %s22, 0
      %s249 = smul.addr %s246, 5
      %s250 = sadd.s32 %s248, %s249
      %s251 = smul.addr %s250, 4
      %s252 = scalar_lea.vmem %s0, %s251
      %p253 = pneg %p52
      %p254 = pneg %p49
      %p255 = scmp.lt.s32.totalorder %s22, 0
      %s256 = scalar_select %p255, %s22, 0
      %s257 = smul.addr %s256, 8
      %s258 = scalar_lea.vmem %s1, %s257
      %p259 = pneg %p78
      %p260 = pneg %p75
      %p261 = scmp.lt.s32.totalorder %s22, 0
      %s262 = scalar_select %p261, %s22, 0
      %s263 = scalar_lea.vmem %s2, %s262
      %p264 = pneg %p104
      %p265 = pneg %p101
      %p266 = scmp.lt.s32.totalorder %s22, 0
      %s267 = scalar_select %p266, %s22, 0
      %s268 = scalar_lea.vmem %s3, %s267
      %p269 = pneg %p130
      %p270 = pneg %p127
      %p271 = pneg %p158
      %p272 = pneg %p155
      %p273 = scmp.lt.s32.totalorder %s21, 1
      %s274 = scalar_select %p273, %s21, 1
      %p275 = scmp.lt.s32.totalorder %s22, 0
      %s276 = scalar_select %p275, %s22, 0
      %s277 = smul.addr %s274, 4
      %s278 = sadd.s32 %s276, %s277
      %s279 = smul.addr %s278, 2
      %s280 = scalar_lea.vmem %s4, %s279
      %p281 = pneg %p186
      %p282 = pneg %p183
      %p283 = scmp.lt.s32.totalorder %s21, 1
      %s284 = scalar_select %p283, %s21, 1
      %p285 = scmp.lt.s32.totalorder %s22, 0
      %s286 = scalar_select %p285, %s22, 0
      %s287 = sadd.s32 %s286, %s284
      %s288 = scalar_lea.vmem %s5, %s287
      %s289 = smul.u32 4, %s21
      %p290 = scmp.lt.s32.totalorder %s289, 7
      %s291 = scalar_select %p290, %s289, 7
      %p292 = scmp.lt.s32.totalorder %s22, 0
      %s293 = scalar_select %p292, %s22, 0
      %s294 = smul.addr %s291, 5
      %s295 = sadd.s32 %s293, %s294
      %s296 = smul.addr %s295, 4
      %s297 = scalar_lea.vmem %s0, %s296
      %s298 = smul.u32 4, %s21
      %p299 = scmp.lt.s32.totalorder %s22, 0
      %s300 = scalar_select %p299, %s22, 0
      %s301 = smul.addr %s300, 8
      %s302 = scalar_lea.vmem %s1, %s301
      %p303 = scmp.lt.s32.totalorder %s22, 0
      %s304 = scalar_select %p303, %s22, 0
      %s305 = scalar_lea.vmem %s2, %s304
      %p306 = scmp.lt.s32.totalorder %s22, 0
      %s307 = scalar_select %p306, %s22, 0
      %s308 = scalar_lea.vmem %s3, %s307
      %p309 = scmp.lt.s32.totalorder %s21, 1
      %s310 = scalar_select %p309, %s21, 1
      %p311 = scmp.lt.s32.totalorder %s22, 0
      %s312 = scalar_select %p311, %s22, 0
      %s313 = smul.addr %s310, 4
      %s314 = sadd.s32 %s312, %s313
      %s315 = smul.addr %s314, 2
      %s316 = scalar_lea.vmem %s4, %s315
      %p317 = scmp.lt.s32.totalorder %s21, 1
      %s318 = scalar_select %p317, %s21, 1
      %p319 = scmp.lt.s32.totalorder %s22, 0
      %s320 = scalar_select %p319, %s22, 0
      %s321 = sadd.s32 %s320, %s318
      %s322 = scalar_lea.vmem %s5, %s321
      %v323 = vld [vmem:[%s297] sm:$0x3]
      %v324 = vld [vmem:[%s297 + $0x4] sm:$0x3]
      %v325 = vld [vmem:[%s297 + $0x8] sm:$0x3]
      %v326 = vld [vmem:[%s297 + $0xc] sm:$0x3]
      %v327 = vunpack.c.l.bf16 %v323
      %v328 = vunpack.c.l.bf16 %v324
      %v329 = vunpack.c.l.bf16 %v325
      %v330 = vunpack.c.l.bf16 %v326
      %v331 = vld [vmem:[%s302] sm:$0x1]
      %v332 = vlaneseq
      %v333 = vshrl.u32 %v332, 7
      %v334 = vsub.s32 0, %v333
      %v335 = vrot.slane %v331, %v334
      %v336 = vmul.f32 %v327, %v335
      %v337 = vmul.f32 %v328, %v335
      %v338 = vmul.f32 %v329, %v335
      %v339 = vmul.f32 %v330, %v335
      %v340 = vadd.f32 %v336, 0.0
      %v341 = vadd.f32 %v337, 0.0
      %v342 = vadd.f32 %v338, 0.0
      %v343 = vadd.f32 %v339, 0.0
      %s344 = scalar_lea.vmem %s297, 20
      %v345 = vld [vmem:[%s344] sm:$0x3]
      %v346 = vld [vmem:[%s344 + $0x4] sm:$0x3]
      %v347 = vld [vmem:[%s344 + $0x8] sm:$0x3]
      %v348 = vld [vmem:[%s344 + $0xc] sm:$0x3]
      %v349 = vunpack.c.l.bf16 %v345
      %v350 = vunpack.c.l.bf16 %v346
      %v351 = vunpack.c.l.bf16 %v347
      %v352 = vunpack.c.l.bf16 %v348
      %v353 = vld [vmem:[%s302 + $0x1] sm:$0x1]
      %v354 = vlaneseq
      %v355 = vshrl.u32 %v354, 7
      %v356 = vsub.s32 0, %v355
      %v357 = vrot.slane %v353, %v356
      %v358 = vmul.f32 %v349, %v357
      %v359 = vmul.f32 %v350, %v357
      %v360 = vmul.f32 %v351, %v357
      %v361 = vmul.f32 %v352, %v357
      %v362 = vadd.f32 %v340, %v358
      %v363 = vadd.f32 %v341, %v359
      %v364 = vadd.f32 %v342, %v360
      %v365 = vadd.f32 %v343, %v361
      %v366 = vld [vmem:[%s297] sm:$0x7]
      %v367 = vld [vmem:[%s297 + $0x4] sm:$0x7]
      %v368 = vld [vmem:[%s297 + $0x8] sm:$0x7]
      %v369 = vld [vmem:[%s297 + $0xc] sm:$0x7]
      %v370 = vunpack.c.l.bf16 %v366
      %v371 = vunpack.c.l.bf16 %v367
      %v372 = vunpack.c.l.bf16 %v368
      %v373 = vunpack.c.l.bf16 %v369
      %v374 = vld [vmem:[%s302 + $0x2] sm:$0x1]
      %v375 = vlaneseq
      %v376 = vshrl.u32 %v375, 7
      %v377 = vsub.s32 0, %v376
      %v378 = vrot.slane %v374, %v377
      %v379 = vmul.f32 %v370, %v378
      %v380 = vmul.f32 %v371, %v378
      %v381 = vmul.f32 %v372, %v378
      %v382 = vmul.f32 %v373, %v378
      %v387 = vrot.slane %v379, 1
      %v388 = vrot.slane %v380, 1
      %v389 = vrot.slane %v381, 1
      %v390 = vrot.slane %v382, 1
      %v395 = vadd.f32 %v362, %v387
      %v396 = vadd.f32 %v363, %v388
      %v397 = vadd.f32 %v364, %v389
      %v398 = vadd.f32 %v365, %v390
      %s399 = scalar_lea.vmem %s297, 40
      %v400 = vld [vmem:[%s399] sm:$0x3]
      %v401 = vld [vmem:[%s399 + $0x4] sm:$0x3]
      %v402 = vld [vmem:[%s399 + $0x8] sm:$0x3]
      %v403 = vld [vmem:[%s399 + $0xc] sm:$0x3]
      %v404 = vunpack.c.l.bf16 %v400
      %v405 = vunpack.c.l.bf16 %v401
      %v406 = vunpack.c.l.bf16 %v402
      %v407 = vunpack.c.l.bf16 %v403
      %v408 = vld [vmem:[%s302 + $0x3] sm:$0x1]
      %v409 = vlaneseq
      %v410 = vshrl.u32 %v409, 7
      %v411 = vsub.s32 0, %v410
      %v412 = vrot.slane %v408, %v411
      %v413 = vmul.f32 %v404, %v412
      %v414 = vmul.f32 %v405, %v412
      %v415 = vmul.f32 %v406, %v412
      %v416 = vmul.f32 %v407, %v412
      %v417 = vadd.f32 %v395, %v413
      %v418 = vadd.f32 %v396, %v414
      %v419 = vadd.f32 %v397, %v415
      %v420 = vadd.f32 %v398, %v416
      %s421 = scalar_lea.vmem %s297, 60
      %v422 = vld [vmem:[%s421] sm:$0x3]
      %v423 = vld [vmem:[%s421 + $0x4] sm:$0x3]
      %v424 = vld [vmem:[%s421 + $0x8] sm:$0x3]
      %v425 = vld [vmem:[%s421 + $0xc] sm:$0x3]
      %v426 = vunpack.c.l.bf16 %v422
      %v427 = vunpack.c.l.bf16 %v423
      %v428 = vunpack.c.l.bf16 %v424
      %v429 = vunpack.c.l.bf16 %v425
      %v430 = vld [vmem:[%s302 + $0x4] sm:$0x1]
      %v431 = vlaneseq
      %v432 = vshrl.u32 %v431, 7
      %v433 = vsub.s32 0, %v432
      %v434 = vrot.slane %v430, %v433
      %v435 = vmul.f32 %v426, %v434
      %v436 = vmul.f32 %v427, %v434
      %v437 = vmul.f32 %v428, %v434
      %v438 = vmul.f32 %v429, %v434
      %v439 = vadd.f32 %v417, %v435
      %v440 = vadd.f32 %v418, %v436
      %v441 = vadd.f32 %v419, %v437
      %v442 = vadd.f32 %v420, %v438
      %v443 = vld [vmem:[%s399] sm:$0x7]
      %v444 = vld [vmem:[%s399 + $0x4] sm:$0x7]
      %v445 = vld [vmem:[%s399 + $0x8] sm:$0x7]
      %v446 = vld [vmem:[%s399 + $0xc] sm:$0x7]
      %v447 = vunpack.c.l.bf16 %v443
      %v448 = vunpack.c.l.bf16 %v444
      %v449 = vunpack.c.l.bf16 %v445
      %v450 = vunpack.c.l.bf16 %v446
      %v451 = vld [vmem:[%s302 + $0x5] sm:$0x1]
      %v452 = vlaneseq
      %v453 = vshrl.u32 %v452, 7
      %v454 = vsub.s32 0, %v453
      %v455 = vrot.slane %v451, %v454
      %v456 = vmul.f32 %v447, %v455
      %v457 = vmul.f32 %v448, %v455
      %v458 = vmul.f32 %v449, %v455
      %v459 = vmul.f32 %v450, %v455
      %v464 = vrot.slane %v456, 1
      %v465 = vrot.slane %v457, 1
      %v466 = vrot.slane %v458, 1
      %v467 = vrot.slane %v459, 1
      %v472 = vadd.f32 %v439, %v464
      %v473 = vadd.f32 %v440, %v465
      %v474 = vadd.f32 %v441, %v466
      %v475 = vadd.f32 %v442, %v467
      %s476 = scalar_lea.vmem %s297, 4
      %v477 = vld [vmem:[%s476] sm:$0x3]
      %v478 = vld [vmem:[%s476 + $0x4] sm:$0x3]
      %v479 = vld [vmem:[%s476 + $0x8] sm:$0x3]
      %v480 = vld [vmem:[%s476 + $0xc] sm:$0x3]
      %v481 = vunpack.c.l.bf16 %v477
      %v482 = vunpack.c.l.bf16 %v478
      %v483 = vunpack.c.l.bf16 %v479
      %v484 = vunpack.c.l.bf16 %v480
      %v485 = vld [vmem:[%s302 + $0x6] sm:$0x1]
      %v486 = vlaneseq
      %v487 = vshrl.u32 %v486, 7
      %v488 = vsub.s32 0, %v487
      %v489 = vrot.slane %v485, %v488
      %v490 = vmul.f32 %v481, %v489
      %v491 = vmul.f32 %v482, %v489
      %v492 = vmul.f32 %v483, %v489
      %v493 = vmul.f32 %v484, %v489
      %v494 = vadd.f32 %v472, %v490
      %v495 = vadd.f32 %v473, %v491
      %v496 = vadd.f32 %v474, %v492
      %v497 = vadd.f32 %v475, %v493
      %s498 = scalar_lea.vmem %s297, 24
      %v499 = vld [vmem:[%s498] sm:$0x3]
      %v500 = vld [vmem:[%s498 + $0x4] sm:$0x3]
      %v501 = vld [vmem:[%s498 + $0x8] sm:$0x3]
      %v502 = vld [vmem:[%s498 + $0xc] sm:$0x3]
      %v503 = vunpack.c.l.bf16 %v499
      %v504 = vunpack.c.l.bf16 %v500
      %v505 = vunpack.c.l.bf16 %v501
      %v506 = vunpack.c.l.bf16 %v502
      %v507 = vld [vmem:[%s302 + $0x7] sm:$0x1]
      %v508 = vlaneseq
      %v509 = vshrl.u32 %v508, 7
      %v510 = vsub.s32 0, %v509
      %v511 = vrot.slane %v507, %v510
      %v512 = vmul.f32 %v503, %v511
      %v513 = vmul.f32 %v504, %v511
      %v514 = vmul.f32 %v505, %v511
      %v515 = vmul.f32 %v506, %v511
      %v516 = vadd.f32 %v494, %v512
      %v517 = vadd.f32 %v495, %v513
      %v518 = vadd.f32 %v496, %v514
      %v519 = vadd.f32 %v497, %v515
      %v520 = vld [vmem:[%s476] sm:$0x7]
      %v521 = vld [vmem:[%s476 + $0x4] sm:$0x7]
      %v522 = vld [vmem:[%s476 + $0x8] sm:$0x7]
      %v523 = vld [vmem:[%s476 + $0xc] sm:$0x7]
      %v524 = vunpack.c.l.bf16 %v520
      %v525 = vunpack.c.l.bf16 %v521
      %v526 = vunpack.c.l.bf16 %v522
      %v527 = vunpack.c.l.bf16 %v523
      %v528 = vld [vmem:[%s302 + $0x8] sm:$0x1]
      %v529 = vlaneseq
      %v530 = vshrl.u32 %v529, 7
      %v531 = vsub.s32 0, %v530
      %v532 = vrot.slane %v528, %v531
      %v533 = vmul.f32 %v524, %v532
      %v534 = vmul.f32 %v525, %v532
      %v535 = vmul.f32 %v526, %v532
      %v536 = vmul.f32 %v527, %v532
      %v541 = vrot.slane %v533, 1
      %v542 = vrot.slane %v534, 1
      %v543 = vrot.slane %v535, 1
      %v544 = vrot.slane %v536, 1
      %v549 = vadd.f32 %v516, %v541
      %v550 = vadd.f32 %v517, %v542
      %v551 = vadd.f32 %v518, %v543
      %v552 = vadd.f32 %v519, %v544
      %v553 = vld [vmem:[%s305] sm:$0x1]
      %v555 = vlaneseq
      %v556 = vshrl.u32 %v555, 7
      %v557 = vsub.s32 0, %v556
      %v558 = vrot.slane %v553, %v557
      %v560 = vmul.f32 %v549, %v558
      %v561 = vmul.f32 %v550, %v558
      %v562 = vmul.f32 %v551, %v558
      %v563 = vmul.f32 %v552, %v558
      %v564 = vld [vmem:[%s308] sm:$0x1]
      %v566 = vlaneseq
      %v567 = vshrl.u32 %v566, 7
      %v568 = vsub.s32 0, %v567
      %v569 = vrot.slane %v564, %v568
      %v571 = vadd.f32 %v560, %v569
      %v572 = vadd.f32 %v561, %v569
      %v573 = vadd.f32 %v562, %v569
      %v574 = vadd.f32 %v563, %v569
      %v575 = vxor.u32 %v571, 2147483648
      %v576 = vxor.u32 %v572, 2147483648
      %v577 = vxor.u32 %v573, 2147483648
      %v578 = vxor.u32 %v574, 2147483648
      %v579 = vmul.f32 %v575, 1.442695
      %v580 = vpow.pop %v579
      %v581 = vmul.f32 %v576, 1.442695
      %v582 = vpow.pop %v581
      %v583 = vmul.f32 %v577, 1.442695
      %v584 = vpow.pop %v583
      %v585 = vmul.f32 %v578, 1.442695
      %v586 = vpow.pop %v585
      %v587 = vadd.f32 %v580, 1.0
      %v588 = vadd.f32 %v582, 1.0
      %v589 = vadd.f32 %v584, 1.0
      %v590 = vadd.f32 %v586, 1.0
      %v591 = vrcp.pop %v587
      %v592 = vmul.f32 1.0, %v591
      %v593 = vrcp.pop %v588
      %v594 = vmul.f32 1.0, %v593
      %v595 = vrcp.pop %v589
      %v596 = vmul.f32 1.0, %v595
      %v597 = vrcp.pop %v590
      %v598 = vmul.f32 1.0, %v597
      %v599 = vmul.f32 %v571, %v592
      %v600 = vmul.f32 %v572, %v594
      %v601 = vmul.f32 %v573, %v596
      %v602 = vmul.f32 %v574, %v598
      %v603 = vpack.c.bf16 %v599, %v599
      %v604 = vpack.c.bf16 %v600, %v600
      %v605 = vpack.c.bf16 %v601, %v601
      %v606 = vpack.c.bf16 %v602, %v602
      %607 = vst [vmem:[%s316] sm:$0x3] %v603
      %608 = vst [vmem:[%s316 + $0x2] sm:$0x3] %v604
      %609 = vst [vmem:[%s316 + $0x4] sm:$0x3] %v605
      %610 = vst [vmem:[%s316 + $0x6] sm:$0x3] %v606
      %vm611 = vcmask 1043456
      %v612 = vsel %vm611, %v599, 0.0
      %v613 = vsel %vm611, %v600, 0.0
      %v614 = vadd.f32 %v612, %v613
      %v615 = vsel %vm611, %v601, 0.0
      %v616 = vadd.f32 %v614, %v615
      %v617 = vsel %vm611, %v602, 0.0
      %v618 = vadd.f32 %v616, %v617
      %v619 = vrot.slane %v618, 4
      %v620 = vadd.f32 %v618, %v619
      %v621 = vrot.slane %v620, 2
      %v622 = vadd.f32 %v620, %v621
      %v623 = vrot.slane %v622, 1
      %v624 = vadd.f32 %v622, %v623
      %v625 = vrcp.pop 16.0
      %v626 = vmul.f32 %v624, %v625
      %627 = vst [vmem:[%s322] sm:$0x1] %v626
      %p628 = scmp.lt.s32.totalorder %s21, 1
      %s629 = scalar_select %p628, %s21, 1
      %p630 = scmp.lt.s32.totalorder %s22, 0
      %s631 = scalar_select %p630, %s22, 0
      %s632 = smul.addr %s629, 4
      %s633 = sadd.s32 %s631, %s632
      %s634 = smul.addr %s633, 2
      %s635 = scalar_lea.vmem %s4, %s634
      %p636 = scmp.lt.s32.totalorder %s21, 1
      %s637 = scalar_select %p636, %s21, 1
      %p638 = scmp.lt.s32.totalorder %s22, 0
      %s639 = scalar_select %p638, %s22, 0
      %s640 = sadd.s32 %s639, %s637
      %s641 = scalar_lea.vmem %s5, %s640
      // Predicated region
      $region37: #{fwd.21} parent=35 // pred_check
        %p642 = pneg %p155
      $region38: #{fwd.21} parent=35 // pred_check_branch
        %644 = sbr.rel (%p642) target = $region40
      $region39: #{fwd.21} parent=35 // pred_region
        _
      $region40: #{fwd.21} parent=35 // pred_fallthru
        _
      // Predicated region
      $region41: #{fwd.21} parent=35 // pred_check
        %p645 = pneg %p183
      $region42: #{fwd.21} parent=35 // pred_check_branch
        %647 = sbr.rel (%p645) target = $region44
      $region43: #{fwd.21} parent=35 // pred_region
        _
      $region44: #{fwd.21} parent=35 // pred_fallthru
        _
    $region36: #{fwd.21} parent=5 // pred_fallthru
      _
    %p648 = scmp.le.s32.totalorder 2, %s12
    // Predicated region
    $region45: #{fwd.21} parent=5 // pred_check
      %p649 = pneg %p648
    $region46: #{fwd.21} parent=5 // pred_check_branch
      %651 = sbr.rel (%p649) target = $region48
    $region47: #{fwd.21} parent=5 // pred_region
      %s652 = ssub.s32 %s12, 2
      // Predicated region
      $region49: #{fwd.21} parent=47 // pred_check
        %p653 = pneg %p161
      $region50: #{fwd.21} parent=47 // pred_check_branch
        %655 = sbr.rel (%p653) target = $region52
      $region51: #{fwd.21} parent=47 // pred_region
        %p656 = scmp.lt.s32.totalorder %s23, 1
        %s657 = scalar_select %p656, %s23, 1
        %p658 = scmp.lt.s32.totalorder %s24, 0
        %s659 = scalar_select %p658, %s24, 0
        %s660 = smul.addr %s657, 4
        %s661 = sadd.s32 %s659, %s660
        %s662 = smul.addr %s661, 2
        %s663 = scalar_lea.vmem %s4, %s662
      $region52: #{fwd.21} parent=47 // pred_fallthru
        _
      // Predicated region
      $region53: #{fwd.21} parent=47 // pred_check
        %p664 = pneg %p189
      $region54: #{fwd.21} parent=47 // pred_check_branch
        %666 = sbr.rel (%p664) target = $region56
      $region55: #{fwd.21} parent=47 // pred_region
        %p667 = scmp.lt.s32.totalorder %s23, 1
        %s668 = scalar_select %p667, %s23, 1
        %p669 = scmp.lt.s32.totalorder %s24, 0
        %s670 = scalar_select %p669, %s24, 0
        %s671 = sadd.s32 %s670, %s668
        %s672 = scalar_lea.vmem %s5, %s671
      $region56: #{fwd.21} parent=47 // pred_fallthru
        _
    $region48: #{fwd.21} parent=5 // pred_fallthru
      _
  $region6: #{fwd.21} parent=0 // loop_footer
    %s16 = sadd.s32 1, %s12
  $region7: #{fwd.21} parent=0 // loop_footer_branch
    %11 = sbr.rel target = $region3
  $region8: #{fwd.21} parent=0 // loop_exit
    _

// kernel: fwd.24
$region0: #{fwd.24}
  #allocation0 [shape = 'u32[]', space=smem, size = 0x4, offset = 0x4, fixed_abs, tag = 'smem constant byte address 0x4 - core index']
  #allocation1 [shape = 'u32[144,128]{1,0:T(1,128)}', space=vmem, size = 0x12000, scoped, tag = 'internal scratch']
  #allocation2 [shape = 'f32[32,128]{1,0:T(8,128)}', space=vmem, size = 0x4000, scoped, tag = 'scratch operand']
  %s0 = inlined_call_operand.vmem [shape: bf16[32,128], index: 0, kind: input, shape index: {}]
  %s1 = inlined_call_operand.vmem [shape: bf16[128,128], index: 1, kind: input, shape index: {}]
  %s2 = inlined_call_operand.vmem [shape: f32[1,128], index: 2, kind: input, shape index: {}]
  %s3 = inlined_call_operand.vmem [shape: f32[1,128], index: 3, kind: input, shape index: {}]
  %s4 = inlined_call_operand.vmem [shape: bf16[32,128], index: 4, kind: output, shape index: {}]
  %s5 = sld [smem:[#allocation0]]
  $region34: #{fwd.24} parent=0
    _
  %s7 = ssub.s32 1, %s5
  %s8 = scalar_select 0, %s7, %s5
  // Predicated region
  $region2: #{fwd.24} parent=0 // pred_check
    _
  $region3: #{fwd.24} parent=0 // pred_check_branch
    %10 = sbr.rel (0) target = $region5
  $region4: #{fwd.24} parent=0 // pred_region
    _
  $region5: #{fwd.24} parent=0 // pred_fallthru
    _
  // Predicated region
  $region6: #{fwd.24} parent=0 // pred_check
    _
  $region7: #{fwd.24} parent=0 // pred_check_branch
    %12 = sbr.rel (0) target = $region9
  $region8: #{fwd.24} parent=0 // pred_region
    _
  $region9: #{fwd.24} parent=0 // pred_fallthru
    _
  // Predicated region
  $region10: #{fwd.24} parent=0 // pred_check
    _
  $region11: #{fwd.24} parent=0 // pred_check_branch
    %14 = sbr.rel (0) target = $region13
  $region12: #{fwd.24} parent=0 // pred_region
    _
  $region13: #{fwd.24} parent=0 // pred_fallthru
    _
  // Predicated region
  $region14: #{fwd.24} parent=0 // pred_check
    _
  $region15: #{fwd.24} parent=0 // pred_check_branch
    %16 = sbr.rel (0) target = $region17
  $region16: #{fwd.24} parent=0 // pred_region
    _
  $region17: #{fwd.24} parent=0 // pred_fallthru
    _
  %p18 = scmp.eq.s32.totalorder 0, 0
  // Predicated region
  $region18: #{fwd.24} parent=0 // pred_check
    %p19 = pneg %p18
  $region19: #{fwd.24} parent=0 // pred_check_branch
    %21 = sbr.rel (%p19) target = $region21
  $region20: #{fwd.24} parent=0 // pred_region
    %22 = vst [vmem:[#allocation2] sm:$0xff] 0.0
    %23 = vst [vmem:[#allocation2 + $0x8] sm:$0xff] 0.0
    %24 = vst [vmem:[#allocation2 + $0x10] sm:$0xff] 0.0
    %25 = vst [vmem:[#allocation2 + $0x18] sm:$0xff] 0.0
  $region21: #{fwd.24} parent=0 // pred_fallthru
    _
  %v26 = vld [vmem:[#allocation2] sm:$0xff]
  %v27 = vld [vmem:[#allocation2 + $0x8] sm:$0xff]
  %v28 = vld [vmem:[#allocation2 + $0x10] sm:$0xff]
  %v29 = vld [vmem:[#allocation2 + $0x18] sm:$0xff]
  %v30 = vld [vmem:[%s0] sm:$0xf]
  %v31 = vld [vmem:[%s0 + $0x4] sm:$0xf]
  %v32 = vld [vmem:[%s0 + $0x8] sm:$0xf]
  %v33 = vld [vmem:[%s0 + $0xc] sm:$0xf]
  %v34 = vld [vmem:[%s1] sm:$0xf]
  %v35 = vld [vmem:[%s1 + $0x4] sm:$0xf]
  %v36 = vld [vmem:[%s1 + $0x8] sm:$0xf]
  %v37 = vld [vmem:[%s1 + $0xc] sm:$0xf]
  %v38 = vld [vmem:[%s1 + $0x10] sm:$0xf]
  %v39 = vld [vmem:[%s1 + $0x14] sm:$0xf]
  %v40 = vld [vmem:[%s1 + $0x18] sm:$0xf]
  %v41 = vld [vmem:[%s1 + $0x1c] sm:$0xf]
  %v42 = vld [vmem:[%s1 + $0x20] sm:$0xf]
  %v43 = vld [vmem:[%s1 + $0x24] sm:$0xf]
  %v44 = vld [vmem:[%s1 + $0x28] sm:$0xf]
  %v45 = vld [vmem:[%s1 + $0x2c] sm:$0xf]
  %v46 = vld [vmem:[%s1 + $0x30] sm:$0xf]
  %v47 = vld [vmem:[%s1 + $0x34] sm:$0xf]
  %v48 = vld [vmem:[%s1 + $0x38] sm:$0xf]
  %v49 = vld [vmem:[%s1 + $0x3c] sm:$0xf]
  %v54 = vunpack.c.l.b16 %v30
  %v55 = vunpack.c.l.b16 %v31
  %v56 = vunpack.c.l.b16 %v32
  %v57 = vunpack.c.l.b16 %v33
  %v58 = vpack.c.b16 %v55, %v54
  %v59 = vpack.c.b16 %v57, %v56
  %v78 = vunpack.c.l.b16 %v34
  %v79 = vunpack.c.l.b16 %v35
  %v80 = vunpack.c.l.b16 %v36
  %v81 = vunpack.c.l.b16 %v37
  %v82 = vunpack.c.l.b16 %v38
  %v83 = vunpack.c.l.b16 %v39
  %v84 = vunpack.c.l.b16 %v40
  %v85 = vunpack.c.l.b16 %v41
  %v86 = vunpack.c.l.b16 %v42
  %v87 = vunpack.c.l.b16 %v43
  %v88 = vunpack.c.l.b16 %v44
  %v89 = vunpack.c.l.b16 %v45
  %v90 = vunpack.c.l.b16 %v46
  %v91 = vunpack.c.l.b16 %v47
  %v92 = vunpack.c.l.b16 %v48
  %v93 = vunpack.c.l.b16 %v49
  %v94 = vpack.c.b16 %v79, %v78
  %v95 = vpack.c.b16 %v81, %v80
  %v96 = vpack.c.b16 %v83, %v82
  %v97 = vpack.c.b16 %v85, %v84
  %v98 = vpack.c.b16 %v87, %v86
  %v99 = vpack.c.b16 %v89, %v88
  %v100 = vpack.c.b16 %v91, %v90
  %v101 = vpack.c.b16 %v93, %v92
  %110 = vmatprep.subr.bf16.mxu0 0
  %111 = vmatpush1.bf16.msra.mxu0 %v101
  %112 = vmatprep.subr.bf16.mxu0 0
  %113 = vmatpush1.bf16.msra.mxu0 %v100
  %114 = vmatprep.subr.bf16.mxu0 0
  %115 = vmatpush1.bf16.msra.mxu0 %v99
  %116 = vmatprep.subr.bf16.mxu0 0
  %117 = vmatpush1.bf16.msra.mxu0 %v98
  %118 = vmatprep.subr.bf16.mxu0 0
  %119 = vmatpush1.bf16.msra.mxu0 %v97
  %120 = vmatprep.subr.bf16.mxu0 0
  %121 = vmatpush1.bf16.msra.mxu0 %v96
  %122 = vmatprep.subr.bf16.mxu0 0
  %123 = vmatpush1.bf16.msra.mxu0 %v95
  %124 = vmatprep.subr.bf16.mxu0 0
  %125 = vmatpush1.bf16.msra.mxu0 %v94
  %126 = vmatprep.subr.bf16.mxu0 0
  %127 = vmatpush2.bf16.msra.mxu0 0
  %128 = vmatprep.subr.bf16.mxu0 0
  %129 = vmatpush2.bf16.msra.mxu0 0
  %130 = vmatprep.subr.bf16.mxu0 0
  %131 = vmatpush2.bf16.msra.mxu0 0
  %132 = vmatprep.subr.bf16.mxu0 0
  %133 = vmatpush2.bf16.msra.mxu0 0
  %134 = vmatprep.subr.bf16.mxu0 0
  %135 = vmatpush2.bf16.msra.mxu0 0
  %136 = vmatprep.subr.bf16.mxu0 0
  %137 = vmatpush2.bf16.msra.mxu0 0
  %138 = vmatprep.subr.bf16.mxu0 0
  %139 = vmatpush2.bf16.msra.mxu0 0
  %140 = vmatprep.subr.bf16.mxu0 0
  %141 = vmatpush2.bf16.msra.mxu0 0
  %142 = vmatprep.mubr.bf16.mxu0 0
  %143 = vmatmul.mubr.bf16.gmra.mxu0 %v58
  %v144 = vpop.f32.mrf.mxu0
  %v145 = vadd.f32 0.0, %v144
  %v146 = vpop.f32.mrf.mxu0
  %v147 = vpop.f32.mrf.mxu0
  %v148 = vadd.f32 0.0, %v147
  %v149 = vpop.f32.mrf.mxu0
  %150 = vmatprep.mubr.bf16.mxu0 0
  %151 = vmatmul.mubr.bf16.gmra.mxu0 %v59
  %v152 = vpop.f32.mrf.mxu0
  %v153 = vadd.f32 0.0, %v152
  %v154 = vpop.f32.mrf.mxu0
  %v155 = vpop.f32.mrf.mxu0
  %v156 = vadd.f32 0.0, %v155
  %v157 = vpop.f32.mrf.mxu0
  %158 = vdwg.mxu0
  %v159 = vadd.f32 %v26, %v145
  %v160 = vadd.f32 %v27, %v148
  %v161 = vadd.f32 %v28, %v153
  %v162 = vadd.f32 %v29, %v156
  %163 = vst [vmem:[#allocation2] sm:$0xff] %v159
  %164 = vst [vmem:[#allocation2 + $0x8] sm:$0xff] %v160
  %165 = vst [vmem:[#allocation2 + $0x10] sm:$0xff] %v161
  %166 = vst [vmem:[#allocation2 + $0x18] sm:$0xff] %v162
  // Predicated region
  $region22: #{fwd.24} parent=0 // pred_check
    %p167 = pneg %p18
  $region23: #{fwd.24} parent=0 // pred_check_branch
    %169 = sbr.rel (%p167) target = $region25
  $region24: #{fwd.24} parent=0 // pred_region
    %v170 = vld [vmem:[#allocation2] sm:$0xff]
    %v171 = vld [vmem:[#allocation2 + $0x8] sm:$0xff]
    %v172 = vld [vmem:[#allocation2 + $0x10] sm:$0xff]
    %v173 = vld [vmem:[#allocation2 + $0x18] sm:$0xff]
    %v174 = vld [vmem:[%s2] sm:$0x1]
    %v176 = vlaneseq
    %v177 = vshrl.u32 %v176, 7
    %v178 = vsub.s32 0, %v177
    %v179 = vrot.slane %v174, %v178
    %v181 = vmul.f32 %v170, %v179
    %v182 = vmul.f32 %v171, %v179
    %v183 = vmul.f32 %v172, %v179
    %v184 = vmul.f32 %v173, %v179
    %v185 = vld [vmem:[%s3] sm:$0x1]
    %v187 = vlaneseq
    %v188 = vshrl.u32 %v187, 7
    %v189 = vsub.s32 0, %v188
    %v190 = vrot.slane %v185, %v189
    %v192 = vadd.f32 %v181, %v190
    %v193 = vadd.f32 %v182, %v190
    %v194 = vadd.f32 %v183, %v190
    %v195 = vadd.f32 %v184, %v190
    %v196 = vxor.u32 %v192, 2147483648
    %v197 = vxor.u32 %v193, 2147483648
    %v198 = vxor.u32 %v194, 2147483648
    %v199 = vxor.u32 %v195, 2147483648
    %v200 = vmul.f32 %v196, 1.442695
    %v201 = vpow.pop %v200
    %v202 = vmul.f32 %v197, 1.442695
    %v203 = vpow.pop %v202
    %v204 = vmul.f32 %v198, 1.442695
    %v205 = vpow.pop %v204
    %v206 = vmul.f32 %v199, 1.442695
    %v207 = vpow.pop %v206
    %v208 = vadd.f32 %v201, 1.0
    %v209 = vadd.f32 %v203, 1.0
    %v210 = vadd.f32 %v205, 1.0
    %v211 = vadd.f32 %v207, 1.0
    %v212 = vrcp.pop %v208
    %v213 = vmul.f32 1.0, %v212
    %v214 = vrcp.pop %v209
    %v215 = vmul.f32 1.0, %v214
    %v216 = vrcp.pop %v210
    %v217 = vmul.f32 1.0, %v216
    %v218 = vrcp.pop %v211
    %v219 = vmul.f32 1.0, %v218
    %v220 = vmul.f32 %v192, %v213
    %v221 = vmul.f32 %v193, %v215
    %v222 = vmul.f32 %v194, %v217
    %v223 = vmul.f32 %v195, %v219
    %v224 = vpack.c.bf16 %v221, %v220
    %v225 = vpack.c.bf16 %v223, %v222
    %v228 = vunpack.c.l.b16 %v224
    %v229 = vunpack.c.h.b16 %v224
    %v230 = vunpack.c.l.b16 %v225
    %v231 = vunpack.c.h.b16 %v225
    %v232 = vpack.c.b16 %v228, %v228
    %v233 = vpack.c.b16 %v229, %v229
    %v234 = vpack.c.b16 %v230, %v230
    %v235 = vpack.c.b16 %v231, %v231
    %240 = vst [vmem:[%s4] sm:$0xf] %v232
    %241 = vst [vmem:[%s4 + $0x4] sm:$0xf] %v233
    %242 = vst [vmem:[%s4 + $0x8] sm:$0xf] %v234
    %243 = vst [vmem:[%s4 + $0xc] sm:$0xf] %v235
  $region25: #{fwd.24} parent=0 // pred_fallthru
    _
  // Predicated region
  $region26: #{fwd.24} parent=0 // pred_check
    _
  $region27: #{fwd.24} parent=0 // pred_check_branch
    %245 = sbr.rel (0) target = $region29
  $region28: #{fwd.24} parent=0 // pred_region
    _
  $region29: #{fwd.24} parent=0 // pred_fallthru
    _
  // Predicated region
  $region30: #{fwd.24} parent=0 // pred_check
    _
  $region31: #{fwd.24} parent=0 // pred_check_branch
    %247 = sbr.rel (0) target = $region33
  $region32: #{fwd.24} parent=0 // pred_region
    _
  $region33: #{fwd.24} parent=0 // pred_fallthru
    _

// kernel: fwd.25
$region0: #{fwd.25}
  #allocation0 [shape = 'u32[]', space=smem, size = 0x4, offset = 0x4, fixed_abs, tag = 'smem constant byte address 0x4 - core index']
  #allocation1 [shape = 'u32[144,128]{1,0:T(1,128)}', space=vmem, size = 0x12000, scoped, tag = 'internal scratch']
  %s0 = inlined_call_operand.vmem [shape: bf16[2,6,6,128], index: 0, kind: input, shape index: {}]
  %s1 = inlined_call_operand.vmem [shape: f32[9,128], index: 1, kind: input, shape index: {}]
  %s2 = inlined_call_operand.vmem [shape: f32[1,128], index: 2, kind: input, shape index: {}]
  %s3 = inlined_call_operand.vmem [shape: f32[1,128], index: 3, kind: input, shape index: {}]
  %s4 = inlined_call_operand.vmem [shape: bf16[2,4,4,128], index: 4, kind: output, shape index: {0}]
  %s5 = inlined_call_operand.vmem [shape: f32[2,1,128], index: 5, kind: output, shape index: {1}]
  %6 = xla_tuple %s4, %s5
  %s7 = sld [smem:[#allocation0]]
  $region57: #{fwd.25} parent=0
    _
  %s9 = ssub.s32 1, %s7
  %s10 = scalar_select 0, %s9, %s7
  loop: start=0, step=1, limit=4
  $region2: #{fwd.25} parent=0 // loop_pre_header
    _
  $region3: #{fwd.25} parent=0 // loop_header
    %s12 = sphi 0, %s16
    %p13 = scmp.ge.s32.totalorder %s12, 4
    %s19 = sphi 0, %s31
    %s20 = sphi 0, %s27
    %s21 = sphi 0, %s19
    %s22 = sphi 0, %s20
    %s23 = sphi 0, %s21
    %s24 = sphi 0, %s22
    %s36 = sphi 0, %s38
    %s39 = sphi 0, %s36
    %s40 = sphi 0, %s39
    %s56 = sphi 0, %s40
    %s62 = sphi 0, %s64
    %s65 = sphi 0, %s62
    %s66 = sphi 0, %s65
    %s82 = sphi 0, %s66
    %s88 = sphi 0, %s90
    %s91 = sphi 0, %s88
    %s92 = sphi 0, %s91
    %s108 = sphi 0, %s92
    %s114 = sphi 0, %s116
    %s117 = sphi 0, %s114
    %s118 = sphi 0, %s117
    %s134 = sphi 0, %s118
    %s142 = sphi 0, %s144
    %s145 = sphi 0, %s142
    %s146 = sphi 0, %s145
    %s162 = sphi 0, %s146
    %s170 = sphi 0, %s172
    %s173 = sphi 0, %s170
    %s174 = sphi 0, %s173
    %s190 = sphi 0, %s174
  $region4: #{fwd.25} parent=0 // loop_header_branch
    %15 = sbr.rel (%p13) target = $region8
  $region5: #{fwd.25} parent=0 // loop_body
    %s17 = ssub.s32 %s12, 1
    %s18 = ssub.s32 %s12, 2
    %s25 = sadd.s32 1, %s20
    %p26 = scmp.ge.s32.totalorder %s25, 1
    %s27 = scalar_select %p26, 0, %s25
    %s28 = sadd.s32 1, %s19
    %s29 = scalar_select %p26, %s28, %s19
    %p30 = scmp.ge.s32.totalorder %s29, 2
    %s31 = scalar_select %p30, 0, %s29
    %s32 = ssub.s32 %s19, %s31
    %s33 = ssub.s32 %s20, %s27
    %s34 = sor.u32 %s32, %s33
    %p35 = scmp.eq.s32.totalorder %s34, 0
    %s37 = sadd.s32 %s36, 1
    %s38 = scalar_select %p35, %s36, %s37
    %p41 = pneg %p35
    %p42 = scmp.eq.s32.totalorder %s12, 1
    %p43 = por %p41, %p42
    %p44 = scmp.ne.s32.totalorder %s36, %s39
    %p45 = scmp.eq.s32.totalorder %s12, 0
    %p46 = por %p44, %p45
    %p47 = scmp.ne.s32.totalorder %s36, %s39
    %p48 = scmp.eq.s32.totalorder %s17, 1
    %p49 = por %p47, %p48
    %p50 = scmp.ne.s32.totalorder %s39, %s40
    %p51 = scmp.eq.s32.totalorder %s17, 0
    %p52 = por %p50, %p51
    %p53 = scmp.ne.s32.totalorder %s39, %s40
    %p54 = scmp.eq.s32.totalorder %s18, 1
    %p55 = por %p53, %p54
    %p57 = scmp.ne.s32.totalorder %s40, %s56
    %p58 = scmp.eq.s32.totalorder %s18, 0
    %p59 = por %p57, %p58
    %s60 = ssub.s32 %s20, %s27
    %p61 = scmp.eq.s32.totalorder %s60, 0
    %s63 = sadd.s32 %s62, 1
    %s64 = scalar_select %p61, %s62, %s63
    %p67 = pneg %p61
    %p68 = scmp.eq.s32.totalorder %s12, 1
    %p69 = por %p67, %p68
    %p70 = scmp.ne.s32.totalorder %s62, %s65
    %p71 = scmp.eq.s32.totalorder %s12, 0
    %p72 = por %p70, %p71
    %p73 = scmp.ne.s32.totalorder %s62, %s65
    %p74 = scmp.eq.s32.totalorder %s17, 1
    %p75 = por %p73, %p74
    %p76 = scmp.ne.s32.totalorder %s65, %s66
    %p77 = scmp.eq.s32.totalorder %s17, 0
    %p78 = por %p76, %p77
    %p79 = scmp.ne.s32.totalorder %s65, %s66
    %p80 = scmp.eq.s32.totalorder %s18, 1
    %p81 = por %p79, %p80
    %p83 = scmp.ne.s32.totalorder %s66, %s82
    %p84 = scmp.eq.s32.totalorder %s18, 0
    %p85 = por %p83, %p84
    %s86 = ssub.s32 %s20, %s27
    %p87 = scmp.eq.s32.totalorder %s86, 0
    %s89 = sadd.s32 %s88, 1
    %s90 = scalar_select %p87, %s88, %s89
    %p93 = pneg %p87
    %p94 = scmp.eq.s32.totalorder %s12, 1
    %p95 = por %p93, %p94
    %p96 = scmp.ne.s32.totalorder %s88, %s91
    %p97 = scmp.eq.s32.totalorder %s12, 0
    %p98 = por %p96, %p97
    %p99 = scmp.ne.s32.totalorder %s88, %s91
    %p100 = scmp.eq.s32.totalorder %s17, 1
    %p101 = por %p99, %p100
    %p102 = scmp.ne.s32.totalorder %s91, %s92
    %p103 = scmp.eq.s32.totalorder %s17, 0
    %p104 = por %p102, %p103
    %p105 = scmp.ne.s32.totalorder %s91, %s92
    %p106 = scmp.eq.s32.totalorder %s18, 1
    %p107 = por %p105, %p106
    %p109 = scmp.ne.s32.totalorder %s92, %s108
    %p110 = scmp.eq.s32.totalorder %s18, 0
    %p111 = por %p109, %p110
    %s112 = ssub.s32 %s20, %s27
    %p113 = scmp.eq.s32.totalorder %s112, 0
    %s115 = sadd.s32 %s114, 1
    %s116 = scalar_select %p113, %s114, %s115
    %p119 = pneg %p113
    %p120 = scmp.eq.s32.totalorder %s12, 1
    %p121 = por %p119, %p120
    %p122 = scmp.ne.s32.totalorder %s114, %s117
    %p123 = scmp.eq.s32.totalorder %s12, 0
    %p124 = por %p122, %p123
    %p125 = scmp.ne.s32.totalorder %s114, %s117
    %p126 = scmp.eq.s32.totalorder %s17, 1
    %p127 = por %p125, %p126
    %p128 = scmp.ne.s32.totalorder %s117, %s118
    %p129 = scmp.eq.s32.totalorder %s17, 0
    %p130 = por %p128, %p129
    %p131 = scmp.ne.s32.totalorder %s117, %s118
    %p132 = scmp.eq.s32.totalorder %s18, 1
    %p133 = por %p131, %p132
    %p135 = scmp.ne.s32.totalorder %s118, %s134
    %p136 = scmp.eq.s32.totalorder %s18, 0
    %p137 = por %p135, %p136
    %s138 = ssub.s32 %s19, %s31
    %s139 = ssub.s32 %s20, %s27
    %s140 = sor.u32 %s138, %s139
    %p141 = scmp.eq.s32.totalorder %s140, 0
    %s143 = sadd.s32 %s142, 1
    %s144 = scalar_select %p141, %s142, %s143
    %p147 = pneg %p141
    %p148 = scmp.eq.s32.totalorder %s12, 1
    %p149 = por %p147, %p148
    %p150 = scmp.ne.s32.totalorder %s142, %s145
    %p151 = scmp.eq.s32.totalorder %s12, 0
    %p152 = por %p150, %p151
    %p153 = scmp.ne.s32.totalorder %s142, %s145
    %p154 = scmp.eq.s32.totalorder %s17, 1
    %p155 = por %p153, %p154
    %p156 = scmp.ne.s32.totalorder %s145, %s146
    %p157 = scmp.eq.s32.totalorder %s17, 0
    %p158 = por %p156, %p157
    %p159 = scmp.ne.s32.totalorder %s145, %s146
    %p160 = scmp.eq.s32.totalorder %s18, 1
    %p161 = por %p159, %p160
    %p163 = scmp.ne.s32.totalorder %s146, %s162
    %p164 = scmp.eq.s32.totalorder %s18, 0
    %p165 = por %p163, %p164
    %s166 = ssub.s32 %s19, %s31
    %s167 = ssub.s32 %s20, %s27
    %s168 = sor.u32 %s166, %s167
    %p169 = scmp.eq.s32.totalorder %s168, 0
    %s171 = sadd.s32 %s170, 1
    %s172 = scalar_select %p169, %s170, %s171
    %p175 = pneg %p169
    %p176 = scmp.eq.s32.totalorder %s12, 1
    %p177 = por %p175, %p176
    %p178 = scmp.ne.s32.totalorder %s170, %s173
    %p179 = scmp.eq.s32.totalorder %s12, 0
    %p180 = por %p178, %p179
    %p181 = scmp.ne.s32.totalorder %s170, %s173
    %p182 = scmp.eq.s32.totalorder %s17, 1
    %p183 = por %p181, %p182
    %p184 = scmp.ne.s32.totalorder %s173, %s174
    %p185 = scmp.eq.s32.totalorder %s17, 0
    %p186 = por %p184, %p185
    %p187 = scmp.ne.s32.totalorder %s173, %s174
    %p188 = scmp.eq.s32.totalorder %s18, 1
    %p189 = por %p187, %p188
    %p191 = scmp.ne.s32.totalorder %s174, %s190
    %p192 = scmp.eq.s32.totalorder %s18, 0
    %p193 = por %p191, %p192
    %p194 = scmp.le.s32.totalorder 1, %s12
    %p195 = scmp.lt.s32.totalorder %s12, 3
    %p196 = pnand %p194, %p195
    %p197 = pneg %p196
    // Predicated region
    $region9: #{fwd.25} parent=5 // pred_check
      _
    $region10: #{fwd.25} parent=5 // pred_check_branch
      %199 = sbr.rel (%p196) target = $region12
    $region11: #{fwd.25} parent=5 // pred_region
      %s200 = ssub.s32 %s12, 1
      // Predicated region
      $region13: #{fwd.25} parent=11 // pred_check
        %p201 = pneg %p78
      $region14: #{fwd.25} parent=11 // pred_check_branch
        %203 = sbr.rel (%p201) target = $region16
      $region15: #{fwd.25} parent=11 // pred_region
        %p204 = scmp.lt.s32.totalorder %s22, 0
        %s205 = scalar_select %p204, %s22, 0
        %s206 = smul.addr %s205, 8
        %s207 = scalar_lea.vmem %s1, %s206
      $region16: #{fwd.25} parent=11 // pred_fallthru
        _
      // Predicated region
      $region17: #{fwd.25} parent=11 // pred_check
        %p208 = pneg %p104
      $region18: #{fwd.25} parent=11 // pred_check_branch
        %210 = sbr.rel (%p208) target = $region20
      $region19: #{fwd.25} parent=11 // pred_region
        %p211 = scmp.lt.s32.totalorder %s22, 0
        %s212 = scalar_select %p211, %s22, 0
        %s213 = scalar_lea.vmem %s2, %s212
      $region20: #{fwd.25} parent=11 // pred_fallthru
        _
      // Predicated region
      $region21: #{fwd.25} parent=11 // pred_check
        %p214 = pneg %p130
      $region22: #{fwd.25} parent=11 // pred_check_branch
        %216 = sbr.rel (%p214) target = $region24
      $region23: #{fwd.25} parent=11 // pred_region
        %p217 = scmp.lt.s32.totalorder %s22, 0
        %s218 = scalar_select %p217, %s22, 0
        %s219 = scalar_lea.vmem %s3, %s218
      $region24: #{fwd.25} parent=11 // pred_fallthru
        _
    $region12: #{fwd.25} parent=5 // pred_fallthru
      _
    %p220 = scmp.lt.s32.totalorder %s12, 2
    // Predicated region
    $region25: #{fwd.25} parent=5 // pred_check
      %p221 = pneg %p220
    $region26: #{fwd.25} parent=5 // pred_check_branch
      %223 = sbr.rel (%p221) target = $region28
    $region27: #{fwd.25} parent=5 // pred_region
      // Predicated region
      $region29: #{fwd.25} parent=27 // pred_check
        %p224 = pneg %p46
      $region30: #{fwd.25} parent=27 // pred_check_branch
        %226 = sbr.rel (%p224) target = $region32
      $region31: #{fwd.25} parent=27 // pred_region
        %p227 = scmp.lt.s32.totalorder %s19, 1
        %s228 = scalar_select %p227, %s19, 1
        %p229 = scmp.lt.s32.totalorder %s20, 0
        %s230 = scalar_select %p229, %s20, 0
        %s231 = smul.addr %s228, 6
        %s232 = sadd.s32 %s230, %s231
        %s233 = smul.addr %s232, 4
        %s234 = scalar_lea.vmem %s0, %s233
      $region32: #{fwd.25} parent=27 // pred_fallthru
        _
    $region28: #{fwd.25} parent=5 // pred_fallthru
      _
    %p235 = scmp.le.s32.totalorder 1, %s12
    %p236 = scmp.lt.s32.totalorder %s12, 3
    %p237 = pnand %p235, %p236
    %p238 = pneg %p237
    // Predicated region
    $region33: #{fwd.25} parent=5 // pred_check
      _
    $region34: #{fwd.25} parent=5 // pred_check_branch
      %240 = sbr.rel (%p237) target = $region36
    $region35: #{fwd.25} parent=5 // pred_region
      %s241 = ssub.s32 %s12, 1
      %p242 = scmp.lt.s32.totalorder %s21, 1
      %s243 = scalar_select %p242, %s21, 1
      %p244 = scmp.lt.s32.totalorder %s22, 0
      %s245 = scalar_select %p244, %s22, 0
      %s246 = smul.addr %s243, 6
      %s247 = sadd.s32 %s245, %s246
      %s248 = smul.addr %s247, 4
      %s249 = scalar_lea.vmem %s0, %s248
      %p250 = pneg %p52
      %p251 = pneg %p49
      %p252 = scmp.lt.s32.totalorder %s22, 0
      %s253 = scalar_select %p252, %s22, 0
      %s254 = smul.addr %s253, 8
      %s255 = scalar_lea.vmem %s1, %s254
      %p256 = pneg %p78
      %p257 = pneg %p75
      %p258 = scmp.lt.s32.totalorder %s22, 0
      %s259 = scalar_select %p258, %s22, 0
      %s260 = scalar_lea.vmem %s2, %s259
      %p261 = pneg %p104
      %p262 = pneg %p101
      %p263 = scmp.lt.s32.totalorder %s22, 0
      %s264 = scalar_select %p263, %s22, 0
      %s265 = scalar_lea.vmem %s3, %s264
      %p266 = pneg %p130
      %p267 = pneg %p127
      %p268 = pneg %p158
      %p269 = pneg %p155
      %p270 = scmp.lt.s32.totalorder %s21, 1
      %s271 = scalar_select %p270, %s21, 1
      %p272 = scmp.lt.s32.totalorder %s22, 0
      %s273 = scalar_select %p272, %s22, 0
      %s274 = smul.addr %s271, 4
      %s275 = sadd.s32 %s273, %s274
      %s276 = smul.addr %s275, 2
      %s277 = scalar_lea.vmem %s4, %s276
      %p278 = pneg %p186
      %p279 = pneg %p183
      %p280 = scmp.lt.s32.totalorder %s21, 1
      %s281 = scalar_select %p280, %s21, 1
      %p282 = scmp.lt.s32.totalorder %s22, 0
      %s283 = scalar_select %p282, %s22, 0
      %s284 = sadd.s32 %s283, %s281
      %s285 = scalar_lea.vmem %s5, %s284
      %p286 = scmp.lt.s32.totalorder %s21, 1
      %s287 = scalar_select %p286, %s21, 1
      %p288 = scmp.lt.s32.totalorder %s22, 0
      %s289 = scalar_select %p288, %s22, 0
      %s290 = smul.addr %s287, 6
      %s291 = sadd.s32 %s289, %s290
      %s292 = smul.addr %s291, 4
      %s293 = scalar_lea.vmem %s0, %s292
      %p294 = scmp.lt.s32.totalorder %s22, 0
      %s295 = scalar_select %p294, %s22, 0
      %s296 = smul.addr %s295, 8
      %s297 = scalar_lea.vmem %s1, %s296
      %p298 = scmp.lt.s32.totalorder %s22, 0
      %s299 = scalar_select %p298, %s22, 0
      %s300 = scalar_lea.vmem %s2, %s299
      %p301 = scmp.lt.s32.totalorder %s22, 0
      %s302 = scalar_select %p301, %s22, 0
      %s303 = scalar_lea.vmem %s3, %s302
      %p304 = scmp.lt.s32.totalorder %s21, 1
      %s305 = scalar_select %p304, %s21, 1
      %p306 = scmp.lt.s32.totalorder %s22, 0
      %s307 = scalar_select %p306, %s22, 0
      %s308 = smul.addr %s305, 4
      %s309 = sadd.s32 %s307, %s308
      %s310 = smul.addr %s309, 2
      %s311 = scalar_lea.vmem %s4, %s310
      %p312 = scmp.lt.s32.totalorder %s21, 1
      %s313 = scalar_select %p312, %s21, 1
      %p314 = scmp.lt.s32.totalorder %s22, 0
      %s315 = scalar_select %p314, %s22, 0
      %s316 = sadd.s32 %s315, %s313
      %s317 = scalar_lea.vmem %s5, %s316
      %v318 = vld [vmem:[%s293] sm:$0x3]
      %v319 = vld [vmem:[%s293 + $0x4] sm:$0x3]
      %v320 = vld [vmem:[%s293 + $0x8] sm:$0x3]
      %v321 = vld [vmem:[%s293 + $0xc] sm:$0x3]
      %v322 = vunpack.c.l.bf16 %v318
      %v323 = vunpack.c.l.bf16 %v319
      %v324 = vunpack.c.l.bf16 %v320
      %v325 = vunpack.c.l.bf16 %v321
      %v326 = vld [vmem:[%s297] sm:$0x1]
      %v327 = vlaneseq
      %v328 = vshrl.u32 %v327, 7
      %v329 = vsub.s32 0, %v328
      %v330 = vrot.slane %v326, %v329
      %v331 = vmul.f32 %v322, %v330
      %v332 = vmul.f32 %v323, %v330
      %v333 = vmul.f32 %v324, %v330
      %v334 = vmul.f32 %v325, %v330
      %v335 = vadd.f32 %v331, 0.0
      %v336 = vadd.f32 %v332, 0.0
      %v337 = vadd.f32 %v333, 0.0
      %v338 = vadd.f32 %v334, 0.0
      %v339 = vld [vmem:[%s293] sm:$0x7]
      %v340 = vld [vmem:[%s293 + $0x4] sm:$0x7]
      %v341 = vld [vmem:[%s293 + $0x8] sm:$0x7]
      %v342 = vld [vmem:[%s293 + $0xc] sm:$0x7]
      %v343 = vunpack.c.l.bf16 %v339
      %v344 = vunpack.c.l.bf16 %v340
      %v345 = vunpack.c.l.bf16 %v341
      %v346 = vunpack.c.l.bf16 %v342
      %v347 = vld [vmem:[%s297 + $0x1] sm:$0x1]
      %v348 = vlaneseq
      %v349 = vshrl.u32 %v348, 7
      %v350 = vsub.s32 0, %v349
      %v351 = vrot.slane %v347, %v350
      %v352 = vmul.f32 %v343, %v351
      %v353 = vmul.f32 %v344, %v351
      %v354 = vmul.f32 %v345, %v351
      %v355 = vmul.f32 %v346, %v351
      %v360 = vrot.slane %v352, 1
      %v361 = vrot.slane %v353, 1
      %v362 = vrot.slane %v354, 1
      %v363 = vrot.slane %v355, 1
      %v368 = vadd.f32 %v335, %v360
      %v369 = vadd.f32 %v336, %v361
      %v370 = vadd.f32 %v337, %v362
      %v371 = vadd.f32 %v338, %v363
      %v372 = vld [vmem:[%s293] sm:$0x6]
      %v373 = vld [vmem:[%s293 + $0x4] sm:$0x6]
      %v374 = vld [vmem:[%s293 + $0x8] sm:$0x6]
      %v375 = vld [vmem:[%s293 + $0xc] sm:$0x6]
      %v376 = vunpack.c.l.bf16 %v372
      %v377 = vunpack.c.l.bf16 %v373
      %v378 = vunpack.c.l.bf16 %v374
      %v379 = vunpack.c.l.bf16 %v375
      %v380 = vld [vmem:[%s297 + $0x2] sm:$0x1]
      %v381 = vlaneseq
      %v382 = vshrl.u32 %v381, 7
      %v383 = vsub.s32 0, %v382
      %v384 = vrot.slane %v380, %v383
      %v385 = vmul.f32 %v376, %v384
      %v386 = vmul.f32 %v377, %v384
      %v387 = vmul.f32 %v378, %v384
      %v388 = vmul.f32 %v379, %v384
      %v393 = vrot.slane %v385, 2
      %v394 = vrot.slane %v386, 2
      %v395 = vrot.slane %v387, 2
      %v396 = vrot.slane %v388, 2
      %v401 = vadd.f32 %v368, %v393
      %v402 = vadd.f32 %v369, %v394
      %v403 = vadd.f32 %v370, %v395
      %v404 = vadd.f32 %v371, %v396
      %s405 = scalar_lea.vmem %s293, 4
      %v406 = vld [vmem:[%s405] sm:$0x3]
      %v407 = vld [vmem:[%s405 + $0x4] sm:$0x3]
      %v408 = vld [vmem:[%s405 + $0x8] sm:$0x3]
      %v409 = vld [vmem:[%s405 + $0xc] sm:$0x3]
      %v410 = vunpack.c.l.bf16 %v406
      %v411 = vunpack.c.l.bf16 %v407
      %v412 = vunpack.c.l.bf16 %v408
      %v413 = vunpack.c.l.bf16 %v409
      %v414 = vld [vmem:[%s297 + $0x3] sm:$0x1]
      %v415 = vlaneseq
      %v416 = vshrl.u32 %v415, 7
      %v417 = vsub.s32 0, %v416
      %v418 = vrot.slane %v414, %v417
      %v419 = vmul.f32 %v410, %v418
      %v420 = vmul.f32 %v411, %v418
      %v421 = vmul.f32 %v412, %v418
      %v422 = vmul.f32 %v413, %v418
      %v423 = vadd.f32 %v401, %v419
      %v424 = vadd.f32 %v402, %v420
      %v425 = vadd.f32 %v403, %v421
      %v426 = vadd.f32 %v404, %v422
      %v427 = vld [vmem:[%s405] sm:$0x7]
      %v428 = vld [vmem:[%s405 + $0x4] sm:$0x7]
      %v429 = vld [vmem:[%s405 + $0x8] sm:$0x7]
      %v430 = vld [vmem:[%s405 + $0xc] sm:$0x7]
      %v431 = vunpack.c.l.bf16 %v427
      %v432 = vunpack.c.l.bf16 %v428
      %v433 = vunpack.c.l.bf16 %v429
      %v434 = vunpack.c.l.bf16 %v430
      %v435 = vld [vmem:[%s297 + $0x4] sm:$0x1]
      %v436 = vlaneseq
      %v437 = vshrl.u32 %v436, 7
      %v438 = vsub.s32 0, %v437
      %v439 = vrot.slane %v435, %v438
      %v440 = vmul.f32 %v431, %v439
      %v441 = vmul.f32 %v432, %v439
      %v442 = vmul.f32 %v433, %v439
      %v443 = vmul.f32 %v434, %v439
      %v448 = vrot.slane %v440, 1
      %v449 = vrot.slane %v441, 1
      %v450 = vrot.slane %v442, 1
      %v451 = vrot.slane %v443, 1
      %v456 = vadd.f32 %v423, %v448
      %v457 = vadd.f32 %v424, %v449
      %v458 = vadd.f32 %v425, %v450
      %v459 = vadd.f32 %v426, %v451
      %v460 = vld [vmem:[%s405] sm:$0x6]
      %v461 = vld [vmem:[%s405 + $0x4] sm:$0x6]
      %v462 = vld [vmem:[%s405 + $0x8] sm:$0x6]
      %v463 = vld [vmem:[%s405 + $0xc] sm:$0x6]
      %v464 = vunpack.c.l.bf16 %v460
      %v465 = vunpack.c.l.bf16 %v461
      %v466 = vunpack.c.l.bf16 %v462
      %v467 = vunpack.c.l.bf16 %v463
      %v468 = vld [vmem:[%s297 + $0x5] sm:$0x1]
      %v469 = vlaneseq
      %v470 = vshrl.u32 %v469, 7
      %v471 = vsub.s32 0, %v470
      %v472 = vrot.slane %v468, %v471
      %v473 = vmul.f32 %v464, %v472
      %v474 = vmul.f32 %v465, %v472
      %v475 = vmul.f32 %v466, %v472
      %v476 = vmul.f32 %v467, %v472
      %v481 = vrot.slane %v473, 2
      %v482 = vrot.slane %v474, 2
      %v483 = vrot.slane %v475, 2
      %v484 = vrot.slane %v476, 2
      %v489 = vadd.f32 %v456, %v481
      %v490 = vadd.f32 %v457, %v482
      %v491 = vadd.f32 %v458, %v483
      %v492 = vadd.f32 %v459, %v484
      %s493 = scalar_lea.vmem %s293, 8
      %v494 = vld [vmem:[%s493] sm:$0x3]
      %v495 = vld [vmem:[%s493 + $0x4] sm:$0x3]
      %v496 = vld [vmem:[%s493 + $0x8] sm:$0x3]
      %v497 = vld [vmem:[%s493 + $0xc] sm:$0x3]
      %v498 = vunpack.c.l.bf16 %v494
      %v499 = vunpack.c.l.bf16 %v495
      %v500 = vunpack.c.l.bf16 %v496
      %v501 = vunpack.c.l.bf16 %v497
      %v502 = vld [vmem:[%s297 + $0x6] sm:$0x1]
      %v503 = vlaneseq
      %v504 = vshrl.u32 %v503, 7
      %v505 = vsub.s32 0, %v504
      %v506 = vrot.slane %v502, %v505
      %v507 = vmul.f32 %v498, %v506
      %v508 = vmul.f32 %v499, %v506
      %v509 = vmul.f32 %v500, %v506
      %v510 = vmul.f32 %v501, %v506
      %v511 = vadd.f32 %v489, %v507
      %v512 = vadd.f32 %v490, %v508
      %v513 = vadd.f32 %v491, %v509
      %v514 = vadd.f32 %v492, %v510
      %v515 = vld [vmem:[%s493] sm:$0x7]
      %v516 = vld [vmem:[%s493 + $0x4] sm:$0x7]
      %v517 = vld [vmem:[%s493 + $0x8] sm:$0x7]
      %v518 = vld [vmem:[%s493 + $0xc] sm:$0x7]
      %v519 = vunpack.c.l.bf16 %v515
      %v520 = vunpack.c.l.bf16 %v516
      %v521 = vunpack.c.l.bf16 %v517
      %v522 = vunpack.c.l.bf16 %v518
      %v523 = vld [vmem:[%s297 + $0x7] sm:$0x1]
      %v524 = vlaneseq
      %v525 = vshrl.u32 %v524, 7
      %v526 = vsub.s32 0, %v525
      %v527 = vrot.slane %v523, %v526
      %v528 = vmul.f32 %v519, %v527
      %v529 = vmul.f32 %v520, %v527
      %v530 = vmul.f32 %v521, %v527
      %v531 = vmul.f32 %v522, %v527
      %v536 = vrot.slane %v528, 1
      %v537 = vrot.slane %v529, 1
      %v538 = vrot.slane %v530, 1
      %v539 = vrot.slane %v531, 1
      %v544 = vadd.f32 %v511, %v536
      %v545 = vadd.f32 %v512, %v537
      %v546 = vadd.f32 %v513, %v538
      %v547 = vadd.f32 %v514, %v539
      %v548 = vld [vmem:[%s493] sm:$0x6]
      %v549 = vld [vmem:[%s493 + $0x4] sm:$0x6]
      %v550 = vld [vmem:[%s493 + $0x8] sm:$0x6]
      %v551 = vld [vmem:[%s493 + $0xc] sm:$0x6]
      %v552 = vunpack.c.l.bf16 %v548
      %v553 = vunpack.c.l.bf16 %v549
      %v554 = vunpack.c.l.bf16 %v550
      %v555 = vunpack.c.l.bf16 %v551
      %v556 = vld [vmem:[%s297 + $0x8] sm:$0x1]
      %v557 = vlaneseq
      %v558 = vshrl.u32 %v557, 7
      %v559 = vsub.s32 0, %v558
      %v560 = vrot.slane %v556, %v559
      %v561 = vmul.f32 %v552, %v560
      %v562 = vmul.f32 %v553, %v560
      %v563 = vmul.f32 %v554, %v560
      %v564 = vmul.f32 %v555, %v560
      %v569 = vrot.slane %v561, 2
      %v570 = vrot.slane %v562, 2
      %v571 = vrot.slane %v563, 2
      %v572 = vrot.slane %v564, 2
      %v577 = vadd.f32 %v544, %v569
      %v578 = vadd.f32 %v545, %v570
      %v579 = vadd.f32 %v546, %v571
      %v580 = vadd.f32 %v547, %v572
      %v581 = vld [vmem:[%s300] sm:$0x1]
      %v583 = vlaneseq
      %v584 = vshrl.u32 %v583, 7
      %v585 = vsub.s32 0, %v584
      %v586 = vrot.slane %v581, %v585
      %v588 = vmul.f32 %v577, %v586
      %v589 = vmul.f32 %v578, %v586
      %v590 = vmul.f32 %v579, %v586
      %v591 = vmul.f32 %v580, %v586
      %v592 = vld [vmem:[%s303] sm:$0x1]
      %v594 = vlaneseq
      %v595 = vshrl.u32 %v594, 7
      %v596 = vsub.s32 0, %v595
      %v597 = vrot.slane %v592, %v596
      %v599 = vadd.f32 %v588, %v597
      %v600 = vadd.f32 %v589, %v597
      %v601 = vadd.f32 %v590, %v597
      %v602 = vadd.f32 %v591, %v597
      %v603 = vxor.u32 %v599, 2147483648
      %v604 = vxor.u32 %v600, 2147483648
      %v605 = vxor.u32 %v601, 2147483648
      %v606 = vxor.u32 %v602, 2147483648
      %v607 = vmul.f32 %v603, 1.442695
      %v608 = vpow.pop %v607
      %v609 = vmul.f32 %v604, 1.442695
      %v610 = vpow.pop %v609
      %v611 = vmul.f32 %v605, 1.442695
      %v612 = vpow.pop %v611
      %v613 = vmul.f32 %v606, 1.442695
      %v614 = vpow.pop %v613
      %v615 = vadd.f32 %v608, 1.0
      %v616 = vadd.f32 %v610, 1.0
      %v617 = vadd.f32 %v612, 1.0
      %v618 = vadd.f32 %v614, 1.0
      %v619 = vrcp.pop %v615
      %v620 = vmul.f32 1.0, %v619
      %v621 = vrcp.pop %v616
      %v622 = vmul.f32 1.0, %v621
      %v623 = vrcp.pop %v617
      %v624 = vmul.f32 1.0, %v623
      %v625 = vrcp.pop %v618
      %v626 = vmul.f32 1.0, %v625
      %v627 = vmul.f32 %v599, %v620
      %v628 = vmul.f32 %v600, %v622
      %v629 = vmul.f32 %v601, %v624
      %v630 = vmul.f32 %v602, %v626
      %v631 = vpack.c.bf16 %v627, %v627
      %v632 = vpack.c.bf16 %v628, %v628
      %v633 = vpack.c.bf16 %v629, %v629
      %v634 = vpack.c.bf16 %v630, %v630
      %635 = vst [vmem:[%s311] sm:$0x3] %v631
      %636 = vst [vmem:[%s311 + $0x2] sm:$0x3] %v632
      %637 = vst [vmem:[%s311 + $0x4] sm:$0x3] %v633
      %638 = vst [vmem:[%s311 + $0x6] sm:$0x3] %v634
      %vm639 = vcmask 1043456
      %v640 = vsel %vm639, %v627, 0.0
      %v641 = vsel %vm639, %v628, 0.0
      %v642 = vadd.f32 %v640, %v641
      %v643 = vsel %vm639, %v629, 0.0
      %v644 = vadd.f32 %v642, %v643
      %v645 = vsel %vm639, %v630, 0.0
      %v646 = vadd.f32 %v644, %v645
      %v647 = vrot.slane %v646, 4
      %v648 = vadd.f32 %v646, %v647
      %v649 = vrot.slane %v648, 2
      %v650 = vadd.f32 %v648, %v649
      %v651 = vrot.slane %v650, 1
      %v652 = vadd.f32 %v650, %v651
      %v653 = vrcp.pop 16.0
      %v654 = vmul.f32 %v652, %v653
      %655 = vst [vmem:[%s317] sm:$0x1] %v654
      %p656 = scmp.lt.s32.totalorder %s21, 1
      %s657 = scalar_select %p656, %s21, 1
      %p658 = scmp.lt.s32.totalorder %s22, 0
      %s659 = scalar_select %p658, %s22, 0
      %s660 = smul.addr %s657, 4
      %s661 = sadd.s32 %s659, %s660
      %s662 = smul.addr %s661, 2
      %s663 = scalar_lea.vmem %s4, %s662
      %p664 = scmp.lt.s32.totalorder %s21, 1
      %s665 = scalar_select %p664, %s21, 1
      %p666 = scmp.lt.s32.totalorder %s22, 0
      %s667 = scalar_select %p666, %s22, 0
      %s668 = sadd.s32 %s667, %s665
      %s669 = scalar_lea.vmem %s5, %s668
      // Predicated region
      $region37: #{fwd.25} parent=35 // pred_check
        %p670 = pneg %p155
      $region38: #{fwd.25} parent=35 // pred_check_branch
        %672 = sbr.rel (%p670) target = $region40
      $region39: #{fwd.25} parent=35 // pred_region
        _
      $region40: #{fwd.25} parent=35 // pred_fallthru
        _
      // Predicated region
      $region41: #{fwd.25} parent=35 // pred_check
        %p673 = pneg %p183
      $region42: #{fwd.25} parent=35 // pred_check_branch
        %675 = sbr.rel (%p673) target = $region44
      $region43: #{fwd.25} parent=35 // pred_region
        _
      $region44: #{fwd.25} parent=35 // pred_fallthru
        _
    $region36: #{fwd.25} parent=5 // pred_fallthru
      _
    %p676 = scmp.le.s32.totalorder 2, %s12
    // Predicated region
    $region45: #{fwd.25} parent=5 // pred_check
      %p677 = pneg %p676
    $region46: #{fwd.25} parent=5 // pred_check_branch
      %679 = sbr.rel (%p677) target = $region48
    $region47: #{fwd.25} parent=5 // pred_region
      %s680 = ssub.s32 %s12, 2
      // Predicated region
      $region49: #{fwd.25} parent=47 // pred_check
        %p681 = pneg %p161
      $region50: #{fwd.25} parent=47 // pred_check_branch
        %683 = sbr.rel (%p681) target = $region52
      $region51: #{fwd.25} parent=47 // pred_region
        %p684 = scmp.lt.s32.totalorder %s23, 1
        %s685 = scalar_select %p684, %s23, 1
        %p686 = scmp.lt.s32.totalorder %s24, 0
        %s687 = scalar_select %p686, %s24, 0
        %s688 = smul.addr %s685, 4
        %s689 = sadd.s32 %s687, %s688
        %s690 = smul.addr %s689, 2
        %s691 = scalar_lea.vmem %s4, %s690
      $region52: #{fwd.25} parent=47 // pred_fallthru
        _
      // Predicated region
      $region53: #{fwd.25} parent=47 // pred_check
        %p692 = pneg %p189
      $region54: #{fwd.25} parent=47 // pred_check_branch
        %694 = sbr.rel (%p692) target = $region56
      $region55: #{fwd.25} parent=47 // pred_region
        %p695 = scmp.lt.s32.totalorder %s23, 1
        %s696 = scalar_select %p695, %s23, 1
        %p697 = scmp.lt.s32.totalorder %s24, 0
        %s698 = scalar_select %p697, %s24, 0
        %s699 = sadd.s32 %s698, %s696
        %s700 = scalar_lea.vmem %s5, %s699
      $region56: #{fwd.25} parent=47 // pred_fallthru
        _
    $region48: #{fwd.25} parent=5 // pred_fallthru
      _
  $region6: #{fwd.25} parent=0 // loop_footer
    %s16 = sadd.s32 1, %s12
  $region7: #{fwd.25} parent=0 // loop_footer_branch
    %11 = sbr.rel target = $region3
  $region8: #{fwd.25} parent=0 // loop_exit
    _

// kernel: fwd.27
$region0: #{fwd.27}
  #allocation0 [shape = 'u32[]', space=smem, size = 0x4, offset = 0x4, fixed_abs, tag = 'smem constant byte address 0x4 - core index']
  #allocation1 [shape = 'u32[144,128]{1,0:T(1,128)}', space=vmem, size = 0x12000, scoped, tag = 'internal scratch']
  #allocation2 [shape = 'f32[16,128]{1,0:T(8,128)}', space=vmem, size = 0x2000, scoped, tag = 'scratch operand']
  %s0 = inlined_call_operand.vmem [shape: bf16[2,16,128], index: 0, kind: input, shape index: {}]
  %s1 = inlined_call_operand.vmem [shape: f32[2,1,128], index: 1, kind: input, shape index: {}]
  %s2 = inlined_call_operand.vmem [shape: bf16[128,128], index: 2, kind: input, shape index: {}]
  %s3 = inlined_call_operand.vmem [shape: f32[1,128], index: 3, kind: input, shape index: {}]
  %s4 = inlined_call_operand.vmem [shape: f32[1,128], index: 4, kind: input, shape index: {}]
  %s5 = inlined_call_operand.vmem [shape: f32[2,1,128], index: 5, kind: input, shape index: {}]
  %s6 = inlined_call_operand.vmem [shape: f32[2,1,128], index: 6, kind: input, shape index: {}]
  %s7 = inlined_call_operand.vmem [shape: bf16[2,16,128], index: 7, kind: input, shape index: {}]
  %s8 = inlined_call_operand.vmem [shape: bf16[2,16,128], index: 8, kind: output, shape index: {}]
  %s9 = sld [smem:[#allocation0]]
  $region73: #{fwd.27} parent=0
    _
  %s11 = ssub.s32 1, %s9
  %s12 = scalar_select 0, %s11, %s9
  loop: start=0, step=1, limit=4
  $region2: #{fwd.27} parent=0 // loop_pre_header
    _
  $region3: #{fwd.27} parent=0 // loop_header
    %s14 = sphi 0, %s18
    %p15 = scmp.ge.s32.totalorder %s14, 4
    %s21 = sphi 0, %s47
    %s22 = sphi 0, %s43
    %s23 = sphi 0, %s39
    %s24 = sphi 0, %s35
    %s25 = sphi 0, %s21
    %s26 = sphi 0, %s22
    %s27 = sphi 0, %s23
    %s28 = sphi 0, %s24
    %s29 = sphi 0, %s25
    %s30 = sphi 0, %s26
    %s31 = sphi 0, %s27
    %s32 = sphi 0, %s28
    %s54 = sphi 0, %s56
    %s57 = sphi 0, %s54
    %s58 = sphi 0, %s57
    %s74 = sphi 0, %s58
    %s82 = sphi 0, %s84
    %s85 = sphi 0, %s82
    %s86 = sphi 0, %s85
    %s102 = sphi 0, %s86
    %s110 = sphi 0, %s112
    %s113 = sphi 0, %s110
    %s114 = sphi 0, %s113
    %s130 = sphi 0, %s114
    %s136 = sphi 0, %s138
    %s139 = sphi 0, %s136
    %s140 = sphi 0, %s139
    %s156 = sphi 0, %s140
    %s162 = sphi 0, %s164
    %s165 = sphi 0, %s162
    %s166 = sphi 0, %s165
    %s182 = sphi 0, %s166
    %s190 = sphi 0, %s192
    %s193 = sphi 0, %s190
    %s194 = sphi 0, %s193
    %s210 = sphi 0, %s194
    %s218 = sphi 0, %s220
    %s221 = sphi 0, %s218
    %s222 = sphi 0, %s221
    %s238 = sphi 0, %s222
    %s248 = sphi 0, %s250
    %s251 = sphi 0, %s248
    %s252 = sphi 0, %s251
    %s268 = sphi 0, %s252
    %s278 = sphi 0, %s280
    %s281 = sphi 0, %s278
    %s282 = sphi 0, %s281
    %s298 = sphi 0, %s282
  $region4: #{fwd.27} parent=0 // loop_header_branch
    %17 = sbr.rel (%p15) target = $region8
  $region5: #{fwd.27} parent=0 // loop_body
    %s19 = ssub.s32 %s14, 1
    %s20 = ssub.s32 %s14, 2
    %s33 = sadd.s32 1, %s24
    %p34 = scmp.ge.s32.totalorder %s33, 1
    %s35 = scalar_select %p34, 0, %s33
    %s36 = sadd.s32 1, %s23
    %s37 = scalar_select %p34, %s36, %s23
    %p38 = scmp.ge.s32.totalorder %s37, 1
    %s39 = scalar_select %p38, 0, %s37
    %s40 = sadd.s32 1, %s22
    %s41 = scalar_select %p38, %s40, %s22
    %p42 = scmp.ge.s32.totalorder %s41, 1
    %s43 = scalar_select %p42, 0, %s41
    %s44 = sadd.s32 1, %s21
    %s45 = scalar_select %p42, %s44, %s21
    %p46 = scmp.ge.s32.totalorder %s45, 2
    %s47 = scalar_select %p46, 0, %s45
    %s48 = ssub.s32 %s21, %s47
    %s49 = ssub.s32 %s22, %s43
    %s50 = sor.u32 %s48, %s49
    %s51 = ssub.s32 %s24, %s35
    %s52 = sor.u32 %s50, %s51
    %p53 = scmp.eq.s32.totalorder %s52, 0
    %s55 = sadd.s32 %s54, 1
    %s56 = scalar_select %p53, %s54, %s55
    %p59 = pneg %p53
    %p60 = scmp.eq.s32.totalorder %s14, 1
    %p61 = por %p59, %p60
    %p62 = scmp.ne.s32.totalorder %s54, %s57
    %p63 = scmp.eq.s32.totalorder %s14, 0
    %p64 = por %p62, %p63
    %p65 = scmp.ne.s32.totalorder %s54, %s57
    %p66 = scmp.eq.s32.totalorder %s19, 1
    %p67 = por %p65, %p66
    %p68 = scmp.ne.s32.totalorder %s57, %s58
    %p69 = scmp.eq.s32.totalorder %s19, 0
    %p70 = por %p68, %p69
    %p71 = scmp.ne.s32.totalorder %s57, %s58
    %p72 = scmp.eq.s32.totalorder %s20, 1
    %p73 = por %p71, %p72
    %p75 = scmp.ne.s32.totalorder %s58, %s74
    %p76 = scmp.eq.s32.totalorder %s20, 0
    %p77 = por %p75, %p76
    %s78 = ssub.s32 %s21, %s47
    %s79 = ssub.s32 %s24, %s35
    %s80 = sor.u32 %s78, %s79
    %p81 = scmp.eq.s32.totalorder %s80, 0
    %s83 = sadd.s32 %s82, 1
    %s84 = scalar_select %p81, %s82, %s83
    %p87 = pneg %p81
    %p88 = scmp.eq.s32.totalorder %s14, 1
    %p89 = por %p87, %p88
    %p90 = scmp.ne.s32.totalorder %s82, %s85
    %p91 = scmp.eq.s32.totalorder %s14, 0
    %p92 = por %p90, %p91
    %p93 = scmp.ne.s32.totalorder %s82, %s85
    %p94 = scmp.eq.s32.totalorder %s19, 1
    %p95 = por %p93, %p94
    %p96 = scmp.ne.s32.totalorder %s85, %s86
    %p97 = scmp.eq.s32.totalorder %s19, 0
    %p98 = por %p96, %p97
    %p99 = scmp.ne.s32.totalorder %s85, %s86
    %p100 = scmp.eq.s32.totalorder %s20, 1
    %p101 = por %p99, %p100
    %p103 = scmp.ne.s32.totalorder %s86, %s102
    %p104 = scmp.eq.s32.totalorder %s20, 0
    %p105 = por %p103, %p104
    %s106 = ssub.s32 %s24, %s35
    %s107 = ssub.s32 %s23, %s39
    %s108 = sor.u32 %s106, %s107
    %p109 = scmp.eq.s32.totalorder %s108, 0
    %s111 = sadd.s32 %s110, 1
    %s112 = scalar_select %p109, %s110, %s111
    %p115 = pneg %p109
    %p116 = scmp.eq.s32.totalorder %s14, 1
    %p117 = por %p115, %p116
    %p118 = scmp.ne.s32.totalorder %s110, %s113
    %p119 = scmp.eq.s32.totalorder %s14, 0
    %p120 = por %p118, %p119
    %p121 = scmp.ne.s32.totalorder %s110, %s113
    %p122 = scmp.eq.s32.totalorder %s19, 1
    %p123 = por %p121, %p122
    %p124 = scmp.ne.s32.totalorder %s113, %s114
    %p125 = scmp.eq.s32.totalorder %s19, 0
    %p126 = por %p124, %p125
    %p127 = scmp.ne.s32.totalorder %s113, %s114
    %p128 = scmp.eq.s32.totalorder %s20, 1
    %p129 = por %p127, %p128
    %p131 = scmp.ne.s32.totalorder %s114, %s130
    %p132 = scmp.eq.s32.totalorder %s20, 0
    %p133 = por %p131, %p132
    %s134 = ssub.s32 %s23, %s39
    %p135 = scmp.eq.s32.totalorder %s134, 0
    %s137 = sadd.s32 %s136, 1
    %s138 = scalar_select %p135, %s136, %s137
    %p141 = pneg %p135
    %p142 = scmp.eq.s32.totalorder %s14, 1
    %p143 = por %p141, %p142
    %p144 = scmp.ne.s32.totalorder %s136, %s139
    %p145 = scmp.eq.s32.totalorder %s14, 0
    %p146 = por %p144, %p145
    %p147 = scmp.ne.s32.totalorder %s136, %s139
    %p148 = scmp.eq.s32.totalorder %s19, 1
    %p149 = por %p147, %p148
    %p150 = scmp.ne.s32.totalorder %s139, %s140
    %p151 = scmp.eq.s32.totalorder %s19, 0
    %p152 = por %p150, %p151
    %p153 = scmp.ne.s32.totalorder %s139, %s140
    %p154 = scmp.eq.s32.totalorder %s20, 1
    %p155 = por %p153, %p154
    %p157 = scmp.ne.s32.totalorder %s140, %s156
    %p158 = scmp.eq.s32.totalorder %s20, 0
    %p159 = por %p157, %p158
    %s160 = ssub.s32 %s23, %s39
    %p161 = scmp.eq.s32.totalorder %s160, 0
    %s163 = sadd.s32 %s162, 1
    %s164 = scalar_select %p161, %s162, %s163
    %p167 = pneg %p161
    %p168 = scmp.eq.s32.totalorder %s14, 1
    %p169 = por %p167, %p168
    %p170 = scmp.ne.s32.totalorder %s162, %s165
    %p171 = scmp.eq.s32.totalorder %s14, 0
    %p172 = por %p170, %p171
    %p173 = scmp.ne.s32.totalorder %s162, %s165
    %p174 = scmp.eq.s32.totalorder %s19, 1
    %p175 = por %p173, %p174
    %p176 = scmp.ne.s32.totalorder %s165, %s166
    %p177 = scmp.eq.s32.totalorder %s19, 0
    %p178 = por %p176, %p177
    %p179 = scmp.ne.s32.totalorder %s165, %s166
    %p180 = scmp.eq.s32.totalorder %s20, 1
    %p181 = por %p179, %p180
    %p183 = scmp.ne.s32.totalorder %s166, %s182
    %p184 = scmp.eq.s32.totalorder %s20, 0
    %p185 = por %p183, %p184
    %s186 = ssub.s32 %s21, %s47
    %s187 = ssub.s32 %s23, %s39
    %s188 = sor.u32 %s186, %s187
    %p189 = scmp.eq.s32.totalorder %s188, 0
    %s191 = sadd.s32 %s190, 1
    %s192 = scalar_select %p189, %s190, %s191
    %p195 = pneg %p189
    %p196 = scmp.eq.s32.totalorder %s14, 1
    %p197 = por %p195, %p196
    %p198 = scmp.ne.s32.totalorder %s190, %s193
    %p199 = scmp.eq.s32.totalorder %s14, 0
    %p200 = por %p198, %p199
    %p201 = scmp.ne.s32.totalorder %s190, %s193
    %p202 = scmp.eq.s32.totalorder %s19, 1
    %p203 = por %p201, %p202
    %p204 = scmp.ne.s32.totalorder %s193, %s194
    %p205 = scmp.eq.s32.totalorder %s19, 0
    %p206 = por %p204, %p205
    %p207 = scmp.ne.s32.totalorder %s193, %s194
    %p208 = scmp.eq.s32.totalorder %s20, 1
    %p209 = por %p207, %p208
    %p211 = scmp.ne.s32.totalorder %s194, %s210
    %p212 = scmp.eq.s32.totalorder %s20, 0
    %p213 = por %p211, %p212
    %s214 = ssub.s32 %s21, %s47
    %s215 = ssub.s32 %s23, %s39
    %s216 = sor.u32 %s214, %s215
    %p217 = scmp.eq.s32.totalorder %s216, 0
    %s219 = sadd.s32 %s218, 1
    %s220 = scalar_select %p217, %s218, %s219
    %p223 = pneg %p217
    %p224 = scmp.eq.s32.totalorder %s14, 1
    %p225 = por %p223, %p224
    %p226 = scmp.ne.s32.totalorder %s218, %s221
    %p227 = scmp.eq.s32.totalorder %s14, 0
    %p228 = por %p226, %p227
    %p229 = scmp.ne.s32.totalorder %s218, %s221
    %p230 = scmp.eq.s32.totalorder %s19, 1
    %p231 = por %p229, %p230
    %p232 = scmp.ne.s32.totalorder %s221, %s222
    %p233 = scmp.eq.s32.totalorder %s19, 0
    %p234 = por %p232, %p233
    %p235 = scmp.ne.s32.totalorder %s221, %s222
    %p236 = scmp.eq.s32.totalorder %s20, 1
    %p237 = por %p235, %p236
    %p239 = scmp.ne.s32.totalorder %s222, %s238
    %p240 = scmp.eq.s32.totalorder %s20, 0
    %p241 = por %p239, %p240
    %s242 = ssub.s32 %s21, %s47
    %s243 = ssub.s32 %s22, %s43
    %s244 = sor.u32 %s242, %s243
    %s245 = ssub.s32 %s23, %s39
    %s246 = sor.u32 %s244, %s245
    %p247 = scmp.eq.s32.totalorder %s246, 0
    %s249 = sadd.s32 %s248, 1
    %s250 = scalar_select %p247, %s248, %s249
    %p253 = pneg %p247
    %p254 = scmp.eq.s32.totalorder %s14, 1
    %p255 = por %p253, %p254
    %p256 = scmp.ne.s32.totalorder %s248, %s251
    %p257 = scmp.eq.s32.totalorder %s14, 0
    %p258 = por %p256, %p257
    %p259 = scmp.ne.s32.totalorder %s248, %s251
    %p260 = scmp.eq.s32.totalorder %s19, 1
    %p261 = por %p259, %p260
    %p262 = scmp.ne.s32.totalorder %s251, %s252
    %p263 = scmp.eq.s32.totalorder %s19, 0
    %p264 = por %p262, %p263
    %p265 = scmp.ne.s32.totalorder %s251, %s252
    %p266 = scmp.eq.s32.totalorder %s20, 1
    %p267 = por %p265, %p266
    %p269 = scmp.ne.s32.totalorder %s252, %s268
    %p270 = scmp.eq.s32.totalorder %s20, 0
    %p271 = por %p269, %p270
    %s272 = ssub.s32 %s21, %s47
    %s273 = ssub.s32 %s22, %s43
    %s274 = sor.u32 %s272, %s273
    %s275 = ssub.s32 %s23, %s39
    %s276 = sor.u32 %s274, %s275
    %p277 = scmp.eq.s32.totalorder %s276, 0
    %s279 = sadd.s32 %s278, 1
    %s280 = scalar_select %p277, %s278, %s279
    %p283 = pneg %p277
    %p284 = scmp.eq.s32.totalorder %s14, 1
    %p285 = por %p283, %p284
    %p286 = scmp.ne.s32.totalorder %s278, %s281
    %p287 = scmp.eq.s32.totalorder %s14, 0
    %p288 = por %p286, %p287
    %p289 = scmp.ne.s32.totalorder %s278, %s281
    %p290 = scmp.eq.s32.totalorder %s19, 1
    %p291 = por %p289, %p290
    %p292 = scmp.ne.s32.totalorder %s281, %s282
    %p293 = scmp.eq.s32.totalorder %s19, 0
    %p294 = por %p292, %p293
    %p295 = scmp.ne.s32.totalorder %s281, %s282
    %p296 = scmp.eq.s32.totalorder %s20, 1
    %p297 = por %p295, %p296
    %p299 = scmp.ne.s32.totalorder %s282, %s298
    %p300 = scmp.eq.s32.totalorder %s20, 0
    %p301 = por %p299, %p300
    %p302 = scmp.le.s32.totalorder 1, %s14
    %p303 = scmp.lt.s32.totalorder %s14, 3
    %p304 = pnand %p302, %p303
    %p305 = pneg %p304
    // Predicated region
    $region9: #{fwd.27} parent=5 // pred_check
      _
    $region10: #{fwd.27} parent=5 // pred_check_branch
      %307 = sbr.rel (%p304) target = $region12
    $region11: #{fwd.27} parent=5 // pred_region
      %s308 = ssub.s32 %s14, 1
      // Predicated region
      $region13: #{fwd.27} parent=11 // pred_check
        %p309 = pneg %p126
      $region14: #{fwd.27} parent=11 // pred_check_branch
        %311 = sbr.rel (%p309) target = $region16
      $region15: #{fwd.27} parent=11 // pred_region
        %s312 = smul.u32 16, %s28
        %p313 = scmp.lt.s32.totalorder %s312, 15
        %s314 = scalar_select %p313, %s312, 15
        %p315 = scmp.lt.s32.totalorder %s27, 0
        %s316 = scalar_select %p315, %s27, 0
        %s317 = sadd.s32 %s316, %s314
        %s318 = smul.addr %s317, 4
        %s319 = scalar_lea.vmem %s2, %s318
        %s320 = smul.u32 16, %s28
      $region16: #{fwd.27} parent=11 // pred_fallthru
        _
      // Predicated region
      $region17: #{fwd.27} parent=11 // pred_check
        %p321 = pneg %p152
      $region18: #{fwd.27} parent=11 // pred_check_branch
        %323 = sbr.rel (%p321) target = $region20
      $region19: #{fwd.27} parent=11 // pred_region
        %p324 = scmp.lt.s32.totalorder %s27, 0
        %s325 = scalar_select %p324, %s27, 0
        %s326 = scalar_lea.vmem %s3, %s325
      $region20: #{fwd.27} parent=11 // pred_fallthru
        _
      // Predicated region
      $region21: #{fwd.27} parent=11 // pred_check
        %p327 = pneg %p178
      $region22: #{fwd.27} parent=11 // pred_check_branch
        %329 = sbr.rel (%p327) target = $region24
      $region23: #{fwd.27} parent=11 // pred_region
        %p330 = scmp.lt.s32.totalorder %s27, 0
        %s331 = scalar_select %p330, %s27, 0
        %s332 = scalar_lea.vmem %s4, %s331
      $region24: #{fwd.27} parent=11 // pred_fallthru
        _
    $region12: #{fwd.27} parent=5 // pred_fallthru
      _
    %p333 = scmp.lt.s32.totalorder %s14, 2
    // Predicated region
    $region25: #{fwd.27} parent=5 // pred_check
      %p334 = pneg %p333
    $region26: #{fwd.27} parent=5 // pred_check_branch
      %336 = sbr.rel (%p334) target = $region28
    $region27: #{fwd.27} parent=5 // pred_region
      // Predicated region
      $region29: #{fwd.27} parent=27 // pred_check
        %p337 = pneg %p64
      $region30: #{fwd.27} parent=27 // pred_check_branch
        %339 = sbr.rel (%p337) target = $region32
      $region31: #{fwd.27} parent=27 // pred_region
        %s340 = smul.u32 2, %s22
        %p341 = scmp.lt.s32.totalorder %s21, 1
        %s342 = scalar_select %p341, %s21, 1
        %p343 = scmp.lt.s32.totalorder %s340, 1
        %s344 = scalar_select %p343, %s340, 1
        %p345 = scmp.lt.s32.totalorder %s24, 0
        %s346 = scalar_select %p345, %s24, 0
        %s347 = sadd.s32 %s346, %s344
        %s348 = smul.addr %s342, 2
        %s349 = sadd.s32 %s347, %s348
        %s350 = smul.addr %s349, 4
        %s351 = scalar_lea.vmem %s0, %s350
        %s352 = smul.u32 2, %s22
      $region32: #{fwd.27} parent=27 // pred_fallthru
        _
      // Predicated region
      $region33: #{fwd.27} parent=27 // pred_check
        %p353 = pneg %p92
      $region34: #{fwd.27} parent=27 // pred_check_branch
        %355 = sbr.rel (%p353) target = $region36
      $region35: #{fwd.27} parent=27 // pred_region
        %p356 = scmp.lt.s32.totalorder %s21, 1
        %s357 = scalar_select %p356, %s21, 1
        %p358 = scmp.lt.s32.totalorder %s24, 0
        %s359 = scalar_select %p358, %s24, 0
        %s360 = sadd.s32 %s359, %s357
        %s361 = scalar_lea.vmem %s1, %s360
      $region36: #{fwd.27} parent=27 // pred_fallthru
        _
      // Predicated region
      $region37: #{fwd.27} parent=27 // pred_check
        %p362 = pneg %p200
      $region38: #{fwd.27} parent=27 // pred_check_branch
        %364 = sbr.rel (%p362) target = $region40
      $region39: #{fwd.27} parent=27 // pred_region
        %p365 = scmp.lt.s32.totalorder %s21, 1
        %s366 = scalar_select %p365, %s21, 1
        %p367 = scmp.lt.s32.totalorder %s23, 0
        %s368 = scalar_select %p367, %s23, 0
        %s369 = sadd.s32 %s368, %s366
        %s370 = scalar_lea.vmem %s5, %s369
      $region40: #{fwd.27} parent=27 // pred_fallthru
        _
      // Predicated region
      $region41: #{fwd.27} parent=27 // pred_check
        %p371 = pneg %p228
      $region42: #{fwd.27} parent=27 // pred_check_branch
        %373 = sbr.rel (%p371) target = $region44
      $region43: #{fwd.27} parent=27 // pred_region
        %p374 = scmp.lt.s32.totalorder %s21, 1
        %s375 = scalar_select %p374, %s21, 1
        %p376 = scmp.lt.s32.totalorder %s23, 0
        %s377 = scalar_select %p376, %s23, 0
        %s378 = sadd.s32 %s377, %s375
        %s379 = scalar_lea.vmem %s6, %s378
      $region44: #{fwd.27} parent=27 // pred_fallthru
        _
      // Predicated region
      $region45: #{fwd.27} parent=27 // pred_check
        %p380 = pneg %p258
      $region46: #{fwd.27} parent=27 // pred_check_branch
        %382 = sbr.rel (%p380) target = $region48
      $region47: #{fwd.27} parent=27 // pred_region
        %s383 = smul.u32 2, %s22
        %p384 = scmp.lt.s32.totalorder %s21, 1
        %s385 = scalar_select %p384, %s21, 1
        %p386 = scmp.lt.s32.totalorder %s383, 1
        %s387 = scalar_select %p386, %s383, 1
        %p388 = scmp.lt.s32.totalorder %s23, 0
        %s389 = scalar_select %p388, %s23, 0
        %s390 = sadd.s32 %s389, %s387
        %s391 = smul.addr %s385, 2
        %s392 = sadd.s32 %s390, %s391
        %s393 = smul.addr %s392, 4
        %s394 = scalar_lea.vmem %s7, %s393
        %s395 = smul.u32 2, %s22
      $region48: #{fwd.27} parent=27 // pred_fallthru
        _
    $region28: #{fwd.27} parent=5 // pred_fallthru
      _
    %p396 = scmp.le.s32.totalorder 1, %s14
    %p397 = scmp.lt.s32.totalorder %s14, 3
    %p398 = pnand %p396, %p397
    %p399 = pneg %p398
    // Predicated region
    $region49: #{fwd.27} parent=5 // pred_check
      _
    $region50: #{fwd.27} parent=5 // pred_check_branch
      %401 = sbr.rel (%p398) target = $region52
    $region51: #{fwd.27} parent=5 // pred_region
      %s402 = ssub.s32 %s14, 1
      %s403 = smul.u32 2, %s26
      %p404 = scmp.lt.s32.totalorder %s25, 1
      %s405 = scalar_select %p404, %s25, 1
      %p406 = scmp.lt.s32.totalorder %s403, 1
      %s407 = scalar_select %p406, %s403, 1
      %p408 = scmp.lt.s32.totalorder %s28, 0
      %s409 = scalar_select %p408, %s28, 0
      %s410 = sadd.s32 %s409, %s407
      %s411 = smul.addr %s405, 2
      %s412 = sadd.s32 %s410, %s411
      %s413 = smul.addr %s412, 4
      %s414 = scalar_lea.vmem %s0, %s413
      %p415 = pneg %p70
      %p416 = pneg %p67
      %p417 = scmp.lt.s32.totalorder %s25, 1
      %s418 = scalar_select %p417, %s25, 1
      %p419 = scmp.lt.s32.totalorder %s28, 0
      %s420 = scalar_select %p419, %s28, 0
      %s421 = sadd.s32 %s420, %s418
      %s422 = scalar_lea.vmem %s1, %s421
      %p423 = pneg %p98
      %p424 = pneg %p95
      %s425 = smul.u32 16, %s28
      %p426 = scmp.lt.s32.totalorder %s425, 15
      %s427 = scalar_select %p426, %s425, 15
      %p428 = scmp.lt.s32.totalorder %s27, 0
      %s429 = scalar_select %p428, %s27, 0
      %s430 = sadd.s32 %s429, %s427
      %s431 = smul.addr %s430, 4
      %s432 = scalar_lea.vmem %s2, %s431
      %p433 = pneg %p126
      %p434 = pneg %p123
      %p435 = scmp.lt.s32.totalorder %s27, 0
      %s436 = scalar_select %p435, %s27, 0
      %s437 = scalar_lea.vmem %s3, %s436
      %p438 = pneg %p152
      %p439 = pneg %p149
      %p440 = scmp.lt.s32.totalorder %s27, 0
      %s441 = scalar_select %p440, %s27, 0
      %s442 = scalar_lea.vmem %s4, %s441
      %p443 = pneg %p178
      %p444 = pneg %p175
      %p445 = scmp.lt.s32.totalorder %s25, 1
      %s446 = scalar_select %p445, %s25, 1
      %p447 = scmp.lt.s32.totalorder %s27, 0
      %s448 = scalar_select %p447, %s27, 0
      %s449 = sadd.s32 %s448, %s446
      %s450 = scalar_lea.vmem %s5, %s449
      %p451 = pneg %p206
      %p452 = pneg %p203
      %p453 = scmp.lt.s32.totalorder %s25, 1
      %s454 = scalar_select %p453, %s25, 1
      %p455 = scmp.lt.s32.totalorder %s27, 0
      %s456 = scalar_select %p455, %s27, 0
      %s457 = sadd.s32 %s456, %s454
      %s458 = scalar_lea.vmem %s6, %s457
      %p459 = pneg %p234
      %p460 = pneg %p231
      %s461 = smul.u32 2, %s26
      %p462 = scmp.lt.s32.totalorder %s25, 1
      %s463 = scalar_select %p462, %s25, 1
      %p464 = scmp.lt.s32.totalorder %s461, 1
      %s465 = scalar_select %p464, %s461, 1
      %p466 = scmp.lt.s32.totalorder %s27, 0
      %s467 = scalar_select %p466, %s27, 0
      %s468 = sadd.s32 %s467, %s465
      %s469 = smul.addr %s463, 2
      %s470 = sadd.s32 %s468, %s469
      %s471 = smul.addr %s470, 4
      %s472 = scalar_lea.vmem %s7, %s471
      %p473 = pneg %p264
      %p474 = pneg %p261
      %p475 = pneg %p294
      %p476 = pneg %p291
      %s477 = smul.u32 2, %s26
      %p478 = scmp.lt.s32.totalorder %s25, 1
      %s479 = scalar_select %p478, %s25, 1
      %p480 = scmp.lt.s32.totalorder %s477, 1
      %s481 = scalar_select %p480, %s477, 1
      %p482 = scmp.lt.s32.totalorder %s27, 0
      %s483 = scalar_select %p482, %s27, 0
      %s484 = sadd.s32 %s483, %s481
      %s485 = smul.addr %s479, 2
      %s486 = sadd.s32 %s484, %s485
      %s487 = smul.addr %s486, 4
      %s488 = scalar_lea.vmem %s8, %s487
      %s489 = smul.u32 2, %s26
      %p490 = scmp.lt.s32.totalorder %s25, 1
      %s491 = scalar_select %p490, %s25, 1
      %p492 = scmp.lt.s32.totalorder %s489, 1
      %s493 = scalar_select %p492, %s489, 1
      %p494 = scmp.lt.s32.totalorder %s28, 0
      %s495 = scalar_select %p494, %s28, 0
      %s496 = sadd.s32 %s495, %s493
      %s497 = smul.addr %s491, 2
      %s498 = sadd.s32 %s496, %s497
      %s499 = smul.addr %s498, 4
      %s500 = scalar_lea.vmem %s0, %s499
      %s501 = smul.u32 2, %s26
      %p502 = scmp.lt.s32.totalorder %s25, 1
      %s503 = scalar_select %p502, %s25, 1
      %p504 = scmp.lt.s32.totalorder %s28, 0
      %s505 = scalar_select %p504, %s28, 0
      %s506 = sadd.s32 %s505, %s503
      %s507 = scalar_lea.vmem %s1, %s506
      %s508 = smul.u32 16, %s28
      %p509 = scmp.lt.s32.totalorder %s508, 15
      %s510 = scalar_select %p509, %s508, 15
      %p511 = scmp.lt.s32.totalorder %s27, 0
      %s512 = scalar_select %p511, %s27, 0
      %s513 = sadd.s32 %s512, %s510
      %s514 = smul.addr %s513, 4
      %s515 = scalar_lea.vmem %s2, %s514
      %s516 = smul.u32 16, %s28
      %p517 = scmp.lt.s32.totalorder %s27, 0
      %s518 = scalar_select %p517, %s27, 0
      %s519 = scalar_lea.vmem %s3, %s518
      %p520 = scmp.lt.s32.totalorder %s27, 0
      %s521 = scalar_select %p520, %s27, 0
      %s522 = scalar_lea.vmem %s4, %s521
      %p523 = scmp.lt.s32.totalorder %s25, 1
      %s524 = scalar_select %p523, %s25, 1
      %p525 = scmp.lt.s32.totalorder %s27, 0
      %s526 = scalar_select %p525, %s27, 0
      %s527 = sadd.s32 %s526, %s524
      %s528 = scalar_lea.vmem %s5, %s527
      %p529 = scmp.lt.s32.totalorder %s25, 1
      %s530 = scalar_select %p529, %s25, 1
      %p531 = scmp.lt.s32.totalorder %s27, 0
      %s532 = scalar_select %p531, %s27, 0
      %s533 = sadd.s32 %s532, %s530
      %s534 = scalar_lea.vmem %s6, %s533
      %s535 = smul.u32 2, %s26
      %p536 = scmp.lt.s32.totalorder %s25, 1
      %s537 = scalar_select %p536, %s25, 1
      %p538 = scmp.lt.s32.totalorder %s535, 1
      %s539 = scalar_select %p538, %s535, 1
      %p540 = scmp.lt.s32.totalorder %s27, 0
      %s541 = scalar_select %p540, %s27, 0
      %s542 = sadd.s32 %s541, %s539
      %s543 = smul.addr %s537, 2
      %s544 = sadd.s32 %s542, %s543
      %s545 = smul.addr %s544, 4
      %s546 = scalar_lea.vmem %s7, %s545
      %s547 = smul.u32 2, %s26
      %s548 = smul.u32 2, %s26
      %p549 = scmp.lt.s32.totalorder %s25, 1
      %s550 = scalar_select %p549, %s25, 1
      %p551 = scmp.lt.s32.totalorder %s548, 1
      %s552 = scalar_select %p551, %s548, 1
      %p553 = scmp.lt.s32.totalorder %s27, 0
      %s554 = scalar_select %p553, %s27, 0
      %s555 = sadd.s32 %s554, %s552
      %s556 = smul.addr %s550, 2
      %s557 = sadd.s32 %s555, %s556
      %s558 = smul.addr %s557, 4
      %s559 = scalar_lea.vmem %s8, %s558
      %s560 = smul.u32 2, %s26
      %p562 = scmp.eq.s32.totalorder %s28, 0
      // Predicated region
      $region53: #{fwd.27} parent=51 // pred_check
        %p563 = pneg %p562
      $region54: #{fwd.27} parent=51 // pred_check_branch
        %565 = sbr.rel (%p563) target = $region56
      $region55: #{fwd.27} parent=51 // pred_region
        %566 = vst [vmem:[#allocation2] sm:$0xff] 0.0
        %567 = vst [vmem:[#allocation2 + $0x8] sm:$0xff] 0.0
      $region56: #{fwd.27} parent=51 // pred_fallthru
        _
      %v568 = vld [vmem:[%s500] sm:$0xf]
      %v569 = vld [vmem:[%s500 + $0x4] sm:$0xf]
      %v570 = vunpack.c.l.bf16 %v568
      %v571 = vunpack.c.l.bf16 %v569
      %v572 = vld [vmem:[%s507] sm:$0x1]
      %v574 = vlaneseq
      %v575 = vshrl.u32 %v574, 7
      %v576 = vsub.s32 0, %v575
      %v577 = vrot.slane %v572, %v576
      %v579 = vmul.f32 %v570, %v577
      %v580 = vmul.f32 %v571, %v577
      %v581 = vld [vmem:[#allocation2] sm:$0xff]
      %v582 = vld [vmem:[#allocation2 + $0x8] sm:$0xff]
      %v583 = vpack.c.bf16 %v580, %v579
      %v584 = vld [vmem:[%s515] sm:$0xf]
      %v585 = vld [vmem:[%s515 + $0x4] sm:$0xf]
      %v586 = vld [vmem:[%s515 + $0x8] sm:$0xf]
      %v587 = vld [vmem:[%s515 + $0xc] sm:$0xf]
      %v588 = vld [vmem:[%s515 + $0x10] sm:$0xf]
      %v589 = vld [vmem:[%s515 + $0x14] sm:$0xf]
      %v590 = vld [vmem:[%s515 + $0x18] sm:$0xf]
      %v591 = vld [vmem:[%s515 + $0x1c] sm:$0xf]
      %v592 = vld [vmem:[%s515 + $0x20] sm:$0xf]
      %v593 = vld [vmem:[%s515 + $0x24] sm:$0xf]
      %v594 = vld [vmem:[%s515 + $0x28] sm:$0xf]
      %v595 = vld [vmem:[%s515 + $0x2c] sm:$0xf]
      %v596 = vld [vmem:[%s515 + $0x30] sm:$0xf]
      %v597 = vld [vmem:[%s515 + $0x34] sm:$0xf]
      %v598 = vld [vmem:[%s515 + $0x38] sm:$0xf]
      %v599 = vld [vmem:[%s515 + $0x3c] sm:$0xf]
      %v616 = vunpack.c.l.b16 %v584
      %v617 = vunpack.c.l.b16 %v585
      %v618 = vunpack.c.l.b16 %v586
      %v619 = vunpack.c.l.b16 %v587
      %v620 = vunpack.c.l.b16 %v588
      %v621 = vunpack.c.l.b16 %v589
      %v622 = vunpack.c.l.b16 %v590
      %v623 = vunpack.c.l.b16 %v591
      %v624 = vunpack.c.l.b16 %v592
      %v625 = vunpack.c.l.b16 %v593
      %v626 = vunpack.c.l.b16 %v594
      %v627 = vunpack.c.l.b16 %v595
      %v628 = vunpack.c.l.b16 %v596
      %v629 = vunpack.c.l.b16 %v597
      %v630 = vunpack.c.l.b16 %v598
      %v631 = vunpack.c.l.b16 %v599
      %v632 = vpack.c.b16 %v617, %v616
      %v633 = vpack.c.b16 %v619, %v618
      %v634 = vpack.c.b16 %v621, %v620
      %v635 = vpack.c.b16 %v623, %v622
      %v636 = vpack.c.b16 %v625, %v624
      %v637 = vpack.c.b16 %v627, %v626
      %v638 = vpack.c.b16 %v629, %v628
      %v639 = vpack.c.b16 %v631, %v630
      %648 = vmatprep.subr.bf16.mxu0 0
      %649 = vmatpush1.bf16.msra.mxu0 %v639
      %650 = vmatprep.subr.bf16.mxu0 0
      %651 = vmatpush1.bf16.msra.mxu0 %v638
      %652 = vmatprep.subr.bf16.mxu0 0
      %653 = vmatpush1.bf16.msra.mxu0 %v637
      %654 = vmatprep.subr.bf16.mxu0 0
      %655 = vmatpush1.bf16.msra.mxu0 %v636
      %656 = vmatprep.subr.bf16.mxu0 0
      %657 = vmatpush1.bf16.msra.mxu0 %v635
      %658 = vmatprep.subr.bf16.mxu0 0
      %659 = vmatpush1.bf16.msra.mxu0 %v634
      %660 = vmatprep.subr.bf16.mxu0 0
      %661 = vmatpush1.bf16.msra.mxu0 %v633
      %662 = vmatprep.subr.bf16.mxu0 0
      %663 = vmatpush1.bf16.msra.mxu0 %v632
      %664 = vmatprep.subr.bf16.mxu0 0
      %665 = vmatpush2.bf16.msra.mxu0 0
      %666 = vmatprep.subr.bf16.mxu0 0
      %667 = vmatpush2.bf16.msra.mxu0 0
      %668 = vmatprep.subr.bf16.mxu0 0
      %669 = vmatpush2.bf16.msra.mxu0 0
      %670 = vmatprep.subr.bf16.mxu0 0
      %671 = vmatpush2.bf16.msra.mxu0 0
      %672 = vmatprep.subr.bf16.mxu0 0
      %673 = vmatpush2.bf16.msra.mxu0 0
      %674 = vmatprep.subr.bf16.mxu0 0
      %675 = vmatpush2.bf16.msra.mxu0 0
      %676 = vmatprep.subr.bf16.mxu0 0
      %677 = vmatpush2.bf16.msra.mxu0 0
      %678 = vmatprep.subr.bf16.mxu0 0
      %679 = vmatpush2.bf16.msra.mxu0 0
      %680 = vmatprep.mubr.bf16.mxu0 0
      %681 = vmatmul.mubr.bf16.gmra.mxu0 %v583
      %v682 = vpop.f32.mrf.mxu0
      %v683 = vadd.f32 0.0, %v682
      %v684 = vpop.f32.mrf.mxu0
      %v685 = vpop.f32.mrf.mxu0
      %v686 = vadd.f32 0.0, %v685
      %v687 = vpop.f32.mrf.mxu0
      %688 = vdwg.mxu0
      %v689 = vadd.f32 %v581, %v683
      %v690 = vadd.f32 %v582, %v686
      %691 = vst [vmem:[#allocation2] sm:$0xff] %v689
      %692 = vst [vmem:[#allocation2 + $0x8] sm:$0xff] %v690
      // Predicated region
      $region57: #{fwd.27} parent=51 // pred_check
        %p693 = pneg %p562
      $region58: #{fwd.27} parent=51 // pred_check_branch
        %695 = sbr.rel (%p693) target = $region60
      $region59: #{fwd.27} parent=51 // pred_region
        %v696 = vld [vmem:[#allocation2] sm:$0xff]
        %v697 = vld [vmem:[#allocation2 + $0x8] sm:$0xff]
        %v698 = vld [vmem:[%s519] sm:$0x1]
        %v700 = vlaneseq
        %v701 = vshrl.u32 %v700, 7
        %v702 = vsub.s32 0, %v701
        %v703 = vrot.slane %v698, %v702
        %v705 = vmul.f32 %v696, %v703
        %v706 = vmul.f32 %v697, %v703
        %v707 = vld [vmem:[%s522] sm:$0x1]
        %v709 = vlaneseq
        %v710 = vshrl.u32 %v709, 7
        %v711 = vsub.s32 0, %v710
        %v712 = vrot.slane %v707, %v711
        %v714 = vadd.f32 %v705, %v712
        %v715 = vadd.f32 %v706, %v712
        %v716 = vld [vmem:[%s546] sm:$0xf]
        %v717 = vld [vmem:[%s546 + $0x4] sm:$0xf]
        %v718 = vunpack.c.l.bf16 %v716
        %v719 = vunpack.c.l.bf16 %v717
        %v720 = vadd.f32 %v714, %v718
        %v721 = vadd.f32 %v715, %v719
        %v722 = vld [vmem:[%s528] sm:$0x1]
        %v723 = vadd.f32 %v722, 1.0
        %v725 = vlaneseq
        %v726 = vshrl.u32 %v725, 7
        %v727 = vsub.s32 0, %v726
        %v728 = vrot.slane %v723, %v727
        %v730 = vmul.f32 %v720, %v728
        %v731 = vmul.f32 %v721, %v728
        %v732 = vld [vmem:[%s534] sm:$0x1]
        %v734 = vlaneseq
        %v735 = vshrl.u32 %v734, 7
        %v736 = vsub.s32 0, %v735
        %v737 = vrot.slane %v732, %v736
        %v739 = vadd.f32 %v730, %v737
        %v740 = vadd.f32 %v731, %v737
        %v741 = vpack.c.bf16 %v740, %v739
        %v743 = vunpack.c.l.b16 %v741
        %v744 = vunpack.c.h.b16 %v741
        %v745 = vpack.c.b16 %v743, %v743
        %v746 = vpack.c.b16 %v744, %v744
        %749 = vst [vmem:[%s559] sm:$0xf] %v745
        %750 = vst [vmem:[%s559 + $0x4] sm:$0xf] %v746
      $region60: #{fwd.27} parent=51 // pred_fallthru
        _
      %s751 = smul.u32 2, %s26
      %p752 = scmp.lt.s32.totalorder %s25, 1
      %s753 = scalar_select %p752, %s25, 1
      %p754 = scmp.lt.s32.totalorder %s751, 1
      %s755 = scalar_select %p754, %s751, 1
      %p756 = scmp.lt.s32.totalorder %s27, 0
      %s757 = scalar_select %p756, %s27, 0
      %s758 = sadd.s32 %s757, %s755
      %s759 = smul.addr %s753, 2
      %s760 = sadd.s32 %s758, %s759
      %s761 = smul.addr %s760, 4
      %s762 = scalar_lea.vmem %s8, %s761
      // Predicated region
      $region61: #{fwd.27} parent=51 // pred_check
        %p763 = pneg %p291
      $region62: #{fwd.27} parent=51 // pred_check_branch
        %765 = sbr.rel (%p763) target = $region64
      $region63: #{fwd.27} parent=51 // pred_region
        %s766 = smul.u32 2, %s26
      $region64: #{fwd.27} parent=51 // pred_fallthru
        _
    $region52: #{fwd.27} parent=5 // pred_fallthru
      _
    %p767 = scmp.le.s32.totalorder 2, %s14
    // Predicated region
    $region65: #{fwd.27} parent=5 // pred_check
      %p768 = pneg %p767
    $region66: #{fwd.27} parent=5 // pred_check_branch
      %770 = sbr.rel (%p768) target = $region68
    $region67: #{fwd.27} parent=5 // pred_region
      %s771 = ssub.s32 %s14, 2
      // Predicated region
      $region69: #{fwd.27} parent=67 // pred_check
        %p772 = pneg %p297
      $region70: #{fwd.27} parent=67 // pred_check_branch
        %774 = sbr.rel (%p772) target = $region72
      $region71: #{fwd.27} parent=67 // pred_region
        %s775 = smul.u32 2, %s30
        %p776 = scmp.lt.s32.totalorder %s29, 1
        %s777 = scalar_select %p776, %s29, 1
        %p778 = scmp.lt.s32.totalorder %s775, 1
        %s779 = scalar_select %p778, %s775, 1
        %p780 = scmp.lt.s32.totalorder %s31, 0
        %s781 = scalar_select %p780, %s31, 0
        %s782 = sadd.s32 %s781, %s779
        %s783 = smul.addr %s777, 2
        %s784 = sadd.s32 %s782, %s783
        %s785 = smul.addr %s784, 4
        %s786 = scalar_lea.vmem %s8, %s785
      $region72: #{fwd.27} parent=67 // pred_fallthru
        _
    $region68: #{fwd.27} parent=5 // pred_fallthru
      _
  $region6: #{fwd.27} parent=0 // loop_footer
    %s18 = sadd.s32 1, %s14
  $region7: #{fwd.27} parent=0 // loop_footer_branch
    %13 = sbr.rel target = $region3
  $region8: #{fwd.27} parent=0 // loop_exit
    _

// kernel: fwd.29
$region0: #{fwd.29}
  #allocation0 [shape = 'u32[]', space=smem, size = 0x4, offset = 0x4, fixed_abs, tag = 'smem constant byte address 0x4 - core index']
  #allocation1 [shape = 'u32[144,128]{1,0:T(1,128)}', space=vmem, size = 0x12000, scoped, tag = 'internal scratch']
  #allocation2 [shape = 'f32[8,128]{1,0:T(8,128)}', space=vmem, size = 0x1000, scoped, tag = 'scratch operand']
  %s0 = inlined_call_operand.vmem [shape: bf16[8,128], index: 0, kind: input, shape index: {}]
  %s1 = inlined_call_operand.vmem [shape: bf16[128,128], index: 1, kind: input, shape index: {}]
  %s2 = inlined_call_operand.vmem [shape: f32[1,128], index: 2, kind: input, shape index: {}]
  %s3 = inlined_call_operand.vmem [shape: f32[8,128], index: 3, kind: output, shape index: {}]
  %s4 = sld [smem:[#allocation0]]
  $region30: #{fwd.29} parent=0
    _
  %s6 = ssub.s32 1, %s4
  %s7 = scalar_select 0, %s6, %s4
  // Predicated region
  $region2: #{fwd.29} parent=0 // pred_check
    _
  $region3: #{fwd.29} parent=0 // pred_check_branch
    %9 = sbr.rel (0) target = $region5
  $region4: #{fwd.29} parent=0 // pred_region
    _
  $region5: #{fwd.29} parent=0 // pred_fallthru
    _
  // Predicated region
  $region6: #{fwd.29} parent=0 // pred_check
    _
  $region7: #{fwd.29} parent=0 // pred_check_branch
    %11 = sbr.rel (0) target = $region9
  $region8: #{fwd.29} parent=0 // pred_region
    _
  $region9: #{fwd.29} parent=0 // pred_fallthru
    _
  // Predicated region
  $region10: #{fwd.29} parent=0 // pred_check
    _
  $region11: #{fwd.29} parent=0 // pred_check_branch
    %13 = sbr.rel (0) target = $region13
  $region12: #{fwd.29} parent=0 // pred_region
    _
  $region13: #{fwd.29} parent=0 // pred_fallthru
    _
  %p15 = scmp.eq.s32.totalorder 0, 0
  // Predicated region
  $region14: #{fwd.29} parent=0 // pred_check
    %p16 = pneg %p15
  $region15: #{fwd.29} parent=0 // pred_check_branch
    %18 = sbr.rel (%p16) target = $region17
  $region16: #{fwd.29} parent=0 // pred_region
    %19 = vst [vmem:[#allocation2] sm:$0xff] 0.0
  $region17: #{fwd.29} parent=0 // pred_fallthru
    _
  %v20 = vld [vmem:[#allocation2] sm:$0xff]
  %v21 = vld [vmem:[%s0] sm:$0xf]
  %v22 = vld [vmem:[%s1] sm:$0xf]
  %v23 = vld [vmem:[%s1 + $0x4] sm:$0xf]
  %v24 = vld [vmem:[%s1 + $0x8] sm:$0xf]
  %v25 = vld [vmem:[%s1 + $0xc] sm:$0xf]
  %v26 = vld [vmem:[%s1 + $0x10] sm:$0xf]
  %v27 = vld [vmem:[%s1 + $0x14] sm:$0xf]
  %v28 = vld [vmem:[%s1 + $0x18] sm:$0xf]
  %v29 = vld [vmem:[%s1 + $0x1c] sm:$0xf]
  %v30 = vld [vmem:[%s1 + $0x20] sm:$0xf]
  %v31 = vld [vmem:[%s1 + $0x24] sm:$0xf]
  %v32 = vld [vmem:[%s1 + $0x28] sm:$0xf]
  %v33 = vld [vmem:[%s1 + $0x2c] sm:$0xf]
  %v34 = vld [vmem:[%s1 + $0x30] sm:$0xf]
  %v35 = vld [vmem:[%s1 + $0x34] sm:$0xf]
  %v36 = vld [vmem:[%s1 + $0x38] sm:$0xf]
  %v37 = vld [vmem:[%s1 + $0x3c] sm:$0xf]
  %v54 = vunpack.c.l.b16 %v22
  %v55 = vunpack.c.l.b16 %v23
  %v56 = vunpack.c.l.b16 %v24
  %v57 = vunpack.c.l.b16 %v25
  %v58 = vunpack.c.l.b16 %v26
  %v59 = vunpack.c.l.b16 %v27
  %v60 = vunpack.c.l.b16 %v28
  %v61 = vunpack.c.l.b16 %v29
  %v62 = vunpack.c.l.b16 %v30
  %v63 = vunpack.c.l.b16 %v31
  %v64 = vunpack.c.l.b16 %v32
  %v65 = vunpack.c.l.b16 %v33
  %v66 = vunpack.c.l.b16 %v34
  %v67 = vunpack.c.l.b16 %v35
  %v68 = vunpack.c.l.b16 %v36
  %v69 = vunpack.c.l.b16 %v37
  %v70 = vpack.c.b16 %v55, %v54
  %v71 = vpack.c.b16 %v57, %v56
  %v72 = vpack.c.b16 %v59, %v58
  %v73 = vpack.c.b16 %v61, %v60
  %v74 = vpack.c.b16 %v63, %v62
  %v75 = vpack.c.b16 %v65, %v64
  %v76 = vpack.c.b16 %v67, %v66
  %v77 = vpack.c.b16 %v69, %v68
  %86 = vmatprep.subr.bf16.mxu0 0
  %87 = vmatpush1.bf16.msra.mxu0 %v77
  %88 = vmatprep.subr.bf16.mxu0 0
  %89 = vmatpush1.bf16.msra.mxu0 %v76
  %90 = vmatprep.subr.bf16.mxu0 0
  %91 = vmatpush1.bf16.msra.mxu0 %v75
  %92 = vmatprep.subr.bf16.mxu0 0
  %93 = vmatpush1.bf16.msra.mxu0 %v74
  %94 = vmatprep.subr.bf16.mxu0 0
  %95 = vmatpush1.bf16.msra.mxu0 %v73
  %96 = vmatprep.subr.bf16.mxu0 0
  %97 = vmatpush1.bf16.msra.mxu0 %v72
  %98 = vmatprep.subr.bf16.mxu0 0
  %99 = vmatpush1.bf16.msra.mxu0 %v71
  %100 = vmatprep.subr.bf16.mxu0 0
  %101 = vmatpush1.bf16.msra.mxu0 %v70
  %102 = vmatprep.subr.bf16.mxu0 0
  %103 = vmatpush2.bf16.msra.mxu0 0
  %104 = vmatprep.subr.bf16.mxu0 0
  %105 = vmatpush2.bf16.msra.mxu0 0
  %106 = vmatprep.subr.bf16.mxu0 0
  %107 = vmatpush2.bf16.msra.mxu0 0
  %108 = vmatprep.subr.bf16.mxu0 0
  %109 = vmatpush2.bf16.msra.mxu0 0
  %110 = vmatprep.subr.bf16.mxu0 0
  %111 = vmatpush2.bf16.msra.mxu0 0
  %112 = vmatprep.subr.bf16.mxu0 0
  %113 = vmatpush2.bf16.msra.mxu0 0
  %114 = vmatprep.subr.bf16.mxu0 0
  %115 = vmatpush2.bf16.msra.mxu0 0
  %116 = vmatprep.subr.bf16.mxu0 0
  %117 = vmatpush2.bf16.msra.mxu0 0
  %118 = vmatprep.mubr.bf16.mxu0 0
  %119 = vmatmul.mubr.bf16.gmra.mxu0 %v21
  %v120 = vpop.f32.mrf.mxu0
  %v121 = vadd.f32 0.0, %v120
  %v122 = vpop.f32.mrf.mxu0
  %v123 = vpop.f32.mrf.mxu0
  %v124 = vpop.f32.mrf.mxu0
  %125 = vdwg.mxu0
  %v126 = vadd.f32 %v20, %v121
  %127 = vst [vmem:[#allocation2] sm:$0xff] %v126
  // Predicated region
  $region18: #{fwd.29} parent=0 // pred_check
    %p128 = pneg %p15
  $region19: #{fwd.29} parent=0 // pred_check_branch
    %130 = sbr.rel (%p128) target = $region21
  $region20: #{fwd.29} parent=0 // pred_region
    %v131 = vld [vmem:[#allocation2] sm:$0xff]
    %v132 = vld [vmem:[%s2] sm:$0x1]
    %v134 = vlaneseq
    %v135 = vshrl.u32 %v134, 7
    %v136 = vsub.s32 0, %v135
    %v137 = vrot.slane %v132, %v136
    %v139 = vadd.f32 %v131, %v137
    %140 = vst [vmem:[%s3] sm:$0xff] %v139
  $region21: #{fwd.29} parent=0 // pred_fallthru
    _
  // Predicated region
  $region22: #{fwd.29} parent=0 // pred_check
    _
  $region23: #{fwd.29} parent=0 // pred_check_branch
    %142 = sbr.rel (0) target = $region25
  $region24: #{fwd.29} parent=0 // pred_region
    _
  $region25: #{fwd.29} parent=0 // pred_fallthru
    _
  // Predicated region
  $region26: #{fwd.29} parent=0 // pred_check
    _
  $region27: #{fwd.29} parent=0 // pred_check_branch
    %144 = sbr.rel (0) target = $region29
  $region28: #{fwd.29} parent=0 // pred_region
    _
  $region29: #{fwd.29} parent=0 // pred_fallthru
    _

// kernel: fwd.28
$region0: #{fwd.28}
  #allocation0 [shape = 'u32[]', space=smem, size = 0x4, offset = 0x4, fixed_abs, tag = 'smem constant byte address 0x4 - core index']
  #allocation1 [shape = 'u32[144,128]{1,0:T(1,128)}', space=vmem, size = 0x12000, scoped, tag = 'internal scratch']
  #allocation2 [shape = 'f32[16,128]{1,0:T(8,128)}', space=vmem, size = 0x2000, scoped, tag = 'scratch operand']
  %s0 = inlined_call_operand.vmem [shape: bf16[2,16,128], index: 0, kind: input, shape index: {}]
  %s1 = inlined_call_operand.vmem [shape: bf16[128,128], index: 1, kind: input, shape index: {}]
  %s2 = inlined_call_operand.vmem [shape: f32[1,128], index: 2, kind: input, shape index: {}]
  %s3 = inlined_call_operand.vmem [shape: f32[1,128], index: 3, kind: input, shape index: {}]
  %s4 = inlined_call_operand.vmem [shape: f32[2,1,128], index: 4, kind: output, shape index: {}]
  %s5 = sld [smem:[#allocation0]]
  $region57: #{fwd.28} parent=0
    _
  %s7 = ssub.s32 1, %s5
  %s8 = scalar_select 0, %s7, %s5
  loop: start=0, step=1, limit=4
  $region2: #{fwd.28} parent=0 // loop_pre_header
    _
  $region3: #{fwd.28} parent=0 // loop_header
    %s10 = sphi 0, %s14
    %p11 = scmp.ge.s32.totalorder %s10, 4
    %s17 = sphi 0, %s36
    %s18 = sphi 0, %s32
    %s19 = sphi 0, %s28
    %s20 = sphi 0, %s17
    %s21 = sphi 0, %s18
    %s22 = sphi 0, %s19
    %s23 = sphi 0, %s20
    %s24 = sphi 0, %s21
    %s25 = sphi 0, %s22
    %s41 = sphi 0, %s43
    %s44 = sphi 0, %s41
    %s45 = sphi 0, %s44
    %s61 = sphi 0, %s45
    %s69 = sphi 0, %s71
    %s72 = sphi 0, %s69
    %s73 = sphi 0, %s72
    %s89 = sphi 0, %s73
    %s95 = sphi 0, %s97
    %s98 = sphi 0, %s95
    %s99 = sphi 0, %s98
    %s115 = sphi 0, %s99
    %s121 = sphi 0, %s123
    %s124 = sphi 0, %s121
    %s125 = sphi 0, %s124
    %s141 = sphi 0, %s125
    %s149 = sphi 0, %s151
    %s152 = sphi 0, %s149
    %s153 = sphi 0, %s152
    %s169 = sphi 0, %s153
  $region4: #{fwd.28} parent=0 // loop_header_branch
    %13 = sbr.rel (%p11) target = $region8
  $region5: #{fwd.28} parent=0 // loop_body
    %s15 = ssub.s32 %s10, 1
    %s16 = ssub.s32 %s10, 2
    %s26 = sadd.s32 1, %s19
    %p27 = scmp.ge.s32.totalorder %s26, 1
    %s28 = scalar_select %p27, 0, %s26
    %s29 = sadd.s32 1, %s18
    %s30 = scalar_select %p27, %s29, %s18
    %p31 = scmp.ge.s32.totalorder %s30, 1
    %s32 = scalar_select %p31, 0, %s30
    %s33 = sadd.s32 1, %s17
    %s34 = scalar_select %p31, %s33, %s17
    %p35 = scmp.ge.s32.totalorder %s34, 2
    %s36 = scalar_select %p35, 0, %s34
    %s37 = ssub.s32 %s17, %s36
    %s38 = ssub.s32 %s19, %s28
    %s39 = sor.u32 %s37, %s38
    %p40 = scmp.eq.s32.totalorder %s39, 0
    %s42 = sadd.s32 %s41, 1
    %s43 = scalar_select %p40, %s41, %s42
    %p46 = pneg %p40
    %p47 = scmp.eq.s32.totalorder %s10, 1
    %p48 = por %p46, %p47
    %p49 = scmp.ne.s32.totalorder %s41, %s44
    %p50 = scmp.eq.s32.totalorder %s10, 0
    %p51 = por %p49, %p50
    %p52 = scmp.ne.s32.totalorder %s41, %s44
    %p53 = scmp.eq.s32.totalorder %s15, 1
    %p54 = por %p52, %p53
    %p55 = scmp.ne.s32.totalorder %s44, %s45
    %p56 = scmp.eq.s32.totalorder %s15, 0
    %p57 = por %p55, %p56
    %p58 = scmp.ne.s32.totalorder %s44, %s45
    %p59 = scmp.eq.s32.totalorder %s16, 1
    %p60 = por %p58, %p59
    %p62 = scmp.ne.s32.totalorder %s45, %s61
    %p63 = scmp.eq.s32.totalorder %s16, 0
    %p64 = por %p62, %p63
    %s65 = ssub.s32 %s19, %s28
    %s66 = ssub.s32 %s18, %s32
    %s67 = sor.u32 %s65, %s66
    %p68 = scmp.eq.s32.totalorder %s67, 0
    %s70 = sadd.s32 %s69, 1
    %s71 = scalar_select %p68, %s69, %s70
    %p74 = pneg %p68
    %p75 = scmp.eq.s32.totalorder %s10, 1
    %p76 = por %p74, %p75
    %p77 = scmp.ne.s32.totalorder %s69, %s72
    %p78 = scmp.eq.s32.totalorder %s10, 0
    %p79 = por %p77, %p78
    %p80 = scmp.ne.s32.totalorder %s69, %s72
    %p81 = scmp.eq.s32.totalorder %s15, 1
    %p82 = por %p80, %p81
    %p83 = scmp.ne.s32.totalorder %s72, %s73
    %p84 = scmp.eq.s32.totalorder %s15, 0
    %p85 = por %p83, %p84
    %p86 = scmp.ne.s32.totalorder %s72, %s73
    %p87 = scmp.eq.s32.totalorder %s16, 1
    %p88 = por %p86, %p87
    %p90 = scmp.ne.s32.totalorder %s73, %s89
    %p91 = scmp.eq.s32.totalorder %s16, 0
    %p92 = por %p90, %p91
    %s93 = ssub.s32 %s18, %s32
    %p94 = scmp.eq.s32.totalorder %s93, 0
    %s96 = sadd.s32 %s95, 1
    %s97 = scalar_select %p94, %s95, %s96
    %p100 = pneg %p94
    %p101 = scmp.eq.s32.totalorder %s10, 1
    %p102 = por %p100, %p101
    %p103 = scmp.ne.s32.totalorder %s95, %s98
    %p104 = scmp.eq.s32.totalorder %s10, 0
    %p105 = por %p103, %p104
    %p106 = scmp.ne.s32.totalorder %s95, %s98
    %p107 = scmp.eq.s32.totalorder %s15, 1
    %p108 = por %p106, %p107
    %p109 = scmp.ne.s32.totalorder %s98, %s99
    %p110 = scmp.eq.s32.totalorder %s15, 0
    %p111 = por %p109, %p110
    %p112 = scmp.ne.s32.totalorder %s98, %s99
    %p113 = scmp.eq.s32.totalorder %s16, 1
    %p114 = por %p112, %p113
    %p116 = scmp.ne.s32.totalorder %s99, %s115
    %p117 = scmp.eq.s32.totalorder %s16, 0
    %p118 = por %p116, %p117
    %s119 = ssub.s32 %s18, %s32
    %p120 = scmp.eq.s32.totalorder %s119, 0
    %s122 = sadd.s32 %s121, 1
    %s123 = scalar_select %p120, %s121, %s122
    %p126 = pneg %p120
    %p127 = scmp.eq.s32.totalorder %s10, 1
    %p128 = por %p126, %p127
    %p129 = scmp.ne.s32.totalorder %s121, %s124
    %p130 = scmp.eq.s32.totalorder %s10, 0
    %p131 = por %p129, %p130
    %p132 = scmp.ne.s32.totalorder %s121, %s124
    %p133 = scmp.eq.s32.totalorder %s15, 1
    %p134 = por %p132, %p133
    %p135 = scmp.ne.s32.totalorder %s124, %s125
    %p136 = scmp.eq.s32.totalorder %s15, 0
    %p137 = por %p135, %p136
    %p138 = scmp.ne.s32.totalorder %s124, %s125
    %p139 = scmp.eq.s32.totalorder %s16, 1
    %p140 = por %p138, %p139
    %p142 = scmp.ne.s32.totalorder %s125, %s141
    %p143 = scmp.eq.s32.totalorder %s16, 0
    %p144 = por %p142, %p143
    %s145 = ssub.s32 %s17, %s36
    %s146 = ssub.s32 %s18, %s32
    %s147 = sor.u32 %s145, %s146
    %p148 = scmp.eq.s32.totalorder %s147, 0
    %s150 = sadd.s32 %s149, 1
    %s151 = scalar_select %p148, %s149, %s150
    %p154 = pneg %p148
    %p155 = scmp.eq.s32.totalorder %s10, 1
    %p156 = por %p154, %p155
    %p157 = scmp.ne.s32.totalorder %s149, %s152
    %p158 = scmp.eq.s32.totalorder %s10, 0
    %p159 = por %p157, %p158
    %p160 = scmp.ne.s32.totalorder %s149, %s152
    %p161 = scmp.eq.s32.totalorder %s15, 1
    %p162 = por %p160, %p161
    %p163 = scmp.ne.s32.totalorder %s152, %s153
    %p164 = scmp.eq.s32.totalorder %s15, 0
    %p165 = por %p163, %p164
    %p166 = scmp.ne.s32.totalorder %s152, %s153
    %p167 = scmp.eq.s32.totalorder %s16, 1
    %p168 = por %p166, %p167
    %p170 = scmp.ne.s32.totalorder %s153, %s169
    %p171 = scmp.eq.s32.totalorder %s16, 0
    %p172 = por %p170, %p171
    %p173 = scmp.le.s32.totalorder 1, %s10
    %p174 = scmp.lt.s32.totalorder %s10, 3
    %p175 = pnand %p173, %p174
    %p176 = pneg %p175
    // Predicated region
    $region9: #{fwd.28} parent=5 // pred_check
      _
    $region10: #{fwd.28} parent=5 // pred_check_branch
      %178 = sbr.rel (%p175) target = $region12
    $region11: #{fwd.28} parent=5 // pred_region
      %s179 = ssub.s32 %s10, 1
      // Predicated region
      $region13: #{fwd.28} parent=11 // pred_check
        %p180 = pneg %p85
      $region14: #{fwd.28} parent=11 // pred_check_branch
        %182 = sbr.rel (%p180) target = $region16
      $region15: #{fwd.28} parent=11 // pred_region
        %s183 = smul.u32 16, %s22
        %p184 = scmp.lt.s32.totalorder %s183, 15
        %s185 = scalar_select %p184, %s183, 15
        %p186 = scmp.lt.s32.totalorder %s21, 0
        %s187 = scalar_select %p186, %s21, 0
        %s188 = sadd.s32 %s187, %s185
        %s189 = smul.addr %s188, 4
        %s190 = scalar_lea.vmem %s1, %s189
        %s191 = smul.u32 16, %s22
      $region16: #{fwd.28} parent=11 // pred_fallthru
        _
      // Predicated region
      $region17: #{fwd.28} parent=11 // pred_check
        %p192 = pneg %p111
      $region18: #{fwd.28} parent=11 // pred_check_branch
        %194 = sbr.rel (%p192) target = $region20
      $region19: #{fwd.28} parent=11 // pred_region
        %p195 = scmp.lt.s32.totalorder %s21, 0
        %s196 = scalar_select %p195, %s21, 0
        %s197 = scalar_lea.vmem %s2, %s196
      $region20: #{fwd.28} parent=11 // pred_fallthru
        _
      // Predicated region
      $region21: #{fwd.28} parent=11 // pred_check
        %p198 = pneg %p137
      $region22: #{fwd.28} parent=11 // pred_check_branch
        %200 = sbr.rel (%p198) target = $region24
      $region23: #{fwd.28} parent=11 // pred_region
        %p201 = scmp.lt.s32.totalorder %s21, 0
        %s202 = scalar_select %p201, %s21, 0
        %s203 = scalar_lea.vmem %s3, %s202
      $region24: #{fwd.28} parent=11 // pred_fallthru
        _
    $region12: #{fwd.28} parent=5 // pred_fallthru
      _
    %p204 = scmp.lt.s32.totalorder %s10, 2
    // Predicated region
    $region25: #{fwd.28} parent=5 // pred_check
      %p205 = pneg %p204
    $region26: #{fwd.28} parent=5 // pred_check_branch
      %207 = sbr.rel (%p205) target = $region28
    $region27: #{fwd.28} parent=5 // pred_region
      // Predicated region
      $region29: #{fwd.28} parent=27 // pred_check
        %p208 = pneg %p51
      $region30: #{fwd.28} parent=27 // pred_check_branch
        %210 = sbr.rel (%p208) target = $region32
      $region31: #{fwd.28} parent=27 // pred_region
        %p211 = scmp.lt.s32.totalorder %s17, 1
        %s212 = scalar_select %p211, %s17, 1
        %p213 = scmp.lt.s32.totalorder %s19, 0
        %s214 = scalar_select %p213, %s19, 0
        %s215 = smul.addr %s212, 2
        %s216 = sadd.s32 %s214, %s215
        %s217 = smul.addr %s216, 4
        %s218 = scalar_lea.vmem %s0, %s217
      $region32: #{fwd.28} parent=27 // pred_fallthru
        _
    $region28: #{fwd.28} parent=5 // pred_fallthru
      _
    %p219 = scmp.le.s32.totalorder 1, %s10
    %p220 = scmp.lt.s32.totalorder %s10, 3
    %p221 = pnand %p219, %p220
    %p222 = pneg %p221
    // Predicated region
    $region33: #{fwd.28} parent=5 // pred_check
      _
    $region34: #{fwd.28} parent=5 // pred_check_branch
      %224 = sbr.rel (%p221) target = $region36
    $region35: #{fwd.28} parent=5 // pred_region
      %s225 = ssub.s32 %s10, 1
      %p226 = scmp.lt.s32.totalorder %s20, 1
      %s227 = scalar_select %p226, %s20, 1
      %p228 = scmp.lt.s32.totalorder %s22, 0
      %s229 = scalar_select %p228, %s22, 0
      %s230 = smul.addr %s227, 2
      %s231 = sadd.s32 %s229, %s230
      %s232 = smul.addr %s231, 4
      %s233 = scalar_lea.vmem %s0, %s232
      %p234 = pneg %p57
      %p235 = pneg %p54
      %s236 = smul.u32 16, %s22
      %p237 = scmp.lt.s32.totalorder %s236, 15
      %s238 = scalar_select %p237, %s236, 15
      %p239 = scmp.lt.s32.totalorder %s21, 0
      %s240 = scalar_select %p239, %s21, 0
      %s241 = sadd.s32 %s240, %s238
      %s242 = smul.addr %s241, 4
      %s243 = scalar_lea.vmem %s1, %s242
      %p244 = pneg %p85
      %p245 = pneg %p82
      %p246 = scmp.lt.s32.totalorder %s21, 0
      %s247 = scalar_select %p246, %s21, 0
      %s248 = scalar_lea.vmem %s2, %s247
      %p249 = pneg %p111
      %p250 = pneg %p108
      %p251 = scmp.lt.s32.totalorder %s21, 0
      %s252 = scalar_select %p251, %s21, 0
      %s253 = scalar_lea.vmem %s3, %s252
      %p254 = pneg %p137
      %p255 = pneg %p134
      %p256 = pneg %p165
      %p257 = pneg %p162
      %p258 = scmp.lt.s32.totalorder %s20, 1
      %s259 = scalar_select %p258, %s20, 1
      %p260 = scmp.lt.s32.totalorder %s21, 0
      %s261 = scalar_select %p260, %s21, 0
      %s262 = sadd.s32 %s261, %s259
      %s263 = scalar_lea.vmem %s4, %s262
      %p264 = scmp.lt.s32.totalorder %s20, 1
      %s265 = scalar_select %p264, %s20, 1
      %p266 = scmp.lt.s32.totalorder %s22, 0
      %s267 = scalar_select %p266, %s22, 0
      %s268 = smul.addr %s265, 2
      %s269 = sadd.s32 %s267, %s268
      %s270 = smul.addr %s269, 4
      %s271 = scalar_lea.vmem %s0, %s270
      %s272 = smul.u32 16, %s22
      %p273 = scmp.lt.s32.totalorder %s272, 15
      %s274 = scalar_select %p273, %s272, 15
      %p275 = scmp.lt.s32.totalorder %s21, 0
      %s276 = scalar_select %p275, %s21, 0
      %s277 = sadd.s32 %s276, %s274
      %s278 = smul.addr %s277, 4
      %s279 = scalar_lea.vmem %s1, %s278
      %s280 = smul.u32 16, %s22
      %p281 = scmp.lt.s32.totalorder %s21, 0
      %s282 = scalar_select %p281, %s21, 0
      %s283 = scalar_lea.vmem %s2, %s282
      %p284 = scmp.lt.s32.totalorder %s21, 0
      %s285 = scalar_select %p284, %s21, 0
      %s286 = scalar_lea.vmem %s3, %s285
      %p287 = scmp.lt.s32.totalorder %s20, 1
      %s288 = scalar_select %p287, %s20, 1
      %p289 = scmp.lt.s32.totalorder %s21, 0
      %s290 = scalar_select %p289, %s21, 0
      %s291 = sadd.s32 %s290, %s288
      %s292 = scalar_lea.vmem %s4, %s291
      %p294 = scmp.eq.s32.totalorder %s22, 0
      // Predicated region
      $region37: #{fwd.28} parent=35 // pred_check
        %p295 = pneg %p294
      $region38: #{fwd.28} parent=35 // pred_check_branch
        %297 = sbr.rel (%p295) target = $region40
      $region39: #{fwd.28} parent=35 // pred_region
        %298 = vst [vmem:[#allocation2] sm:$0xff] 0.0
        %299 = vst [vmem:[#allocation2 + $0x8] sm:$0xff] 0.0
      $region40: #{fwd.28} parent=35 // pred_fallthru
        _
      %v300 = vld [vmem:[#allocation2] sm:$0xff]
      %v301 = vld [vmem:[#allocation2 + $0x8] sm:$0xff]
      %v302 = vld [vmem:[%s271] sm:$0xf]
      %v303 = vld [vmem:[%s271 + $0x4] sm:$0xf]
      %v304 = vld [vmem:[%s279] sm:$0xf]
      %v305 = vld [vmem:[%s279 + $0x4] sm:$0xf]
      %v306 = vld [vmem:[%s279 + $0x8] sm:$0xf]
      %v307 = vld [vmem:[%s279 + $0xc] sm:$0xf]
      %v308 = vld [vmem:[%s279 + $0x10] sm:$0xf]
      %v309 = vld [vmem:[%s279 + $0x14] sm:$0xf]
      %v310 = vld [vmem:[%s279 + $0x18] sm:$0xf]
      %v311 = vld [vmem:[%s279 + $0x1c] sm:$0xf]
      %v312 = vld [vmem:[%s279 + $0x20] sm:$0xf]
      %v313 = vld [vmem:[%s279 + $0x24] sm:$0xf]
      %v314 = vld [vmem:[%s279 + $0x28] sm:$0xf]
      %v315 = vld [vmem:[%s279 + $0x2c] sm:$0xf]
      %v316 = vld [vmem:[%s279 + $0x30] sm:$0xf]
      %v317 = vld [vmem:[%s279 + $0x34] sm:$0xf]
      %v318 = vld [vmem:[%s279 + $0x38] sm:$0xf]
      %v319 = vld [vmem:[%s279 + $0x3c] sm:$0xf]
      %v322 = vunpack.c.l.b16 %v302
      %v323 = vunpack.c.l.b16 %v303
      %v324 = vpack.c.b16 %v323, %v322
      %v342 = vunpack.c.l.b16 %v304
      %v343 = vunpack.c.l.b16 %v305
      %v344 = vunpack.c.l.b16 %v306
      %v345 = vunpack.c.l.b16 %v307
      %v346 = vunpack.c.l.b16 %v308
      %v347 = vunpack.c.l.b16 %v309
      %v348 = vunpack.c.l.b16 %v310
      %v349 = vunpack.c.l.b16 %v311
      %v350 = vunpack.c.l.b16 %v312
      %v351 = vunpack.c.l.b16 %v313
      %v352 = vunpack.c.l.b16 %v314
      %v353 = vunpack.c.l.b16 %v315
      %v354 = vunpack.c.l.b16 %v316
      %v355 = vunpack.c.l.b16 %v317
      %v356 = vunpack.c.l.b16 %v318
      %v357 = vunpack.c.l.b16 %v319
      %v358 = vpack.c.b16 %v343, %v342
      %v359 = vpack.c.b16 %v345, %v344
      %v360 = vpack.c.b16 %v347, %v346
      %v361 = vpack.c.b16 %v349, %v348
      %v362 = vpack.c.b16 %v351, %v350
      %v363 = vpack.c.b16 %v353, %v352
      %v364 = vpack.c.b16 %v355, %v354
      %v365 = vpack.c.b16 %v357, %v356
      %374 = vmatprep.subr.bf16.mxu0 0
      %375 = vmatpush1.bf16.msra.mxu0 %v365
      %376 = vmatprep.subr.bf16.mxu0 0
      %377 = vmatpush1.bf16.msra.mxu0 %v364
      %378 = vmatprep.subr.bf16.mxu0 0
      %379 = vmatpush1.bf16.msra.mxu0 %v363
      %380 = vmatprep.subr.bf16.mxu0 0
      %381 = vmatpush1.bf16.msra.mxu0 %v362
      %382 = vmatprep.subr.bf16.mxu0 0
      %383 = vmatpush1.bf16.msra.mxu0 %v361
      %384 = vmatprep.subr.bf16.mxu0 0
      %385 = vmatpush1.bf16.msra.mxu0 %v360
      %386 = vmatprep.subr.bf16.mxu0 0
      %387 = vmatpush1.bf16.msra.mxu0 %v359
      %388 = vmatprep.subr.bf16.mxu0 0
      %389 = vmatpush1.bf16.msra.mxu0 %v358
      %390 = vmatprep.subr.bf16.mxu0 0
      %391 = vmatpush2.bf16.msra.mxu0 0
      %392 = vmatprep.subr.bf16.mxu0 0
      %393 = vmatpush2.bf16.msra.mxu0 0
      %394 = vmatprep.subr.bf16.mxu0 0
      %395 = vmatpush2.bf16.msra.mxu0 0
      %396 = vmatprep.subr.bf16.mxu0 0
      %397 = vmatpush2.bf16.msra.mxu0 0
      %398 = vmatprep.subr.bf16.mxu0 0
      %399 = vmatpush2.bf16.msra.mxu0 0
      %400 = vmatprep.subr.bf16.mxu0 0
      %401 = vmatpush2.bf16.msra.mxu0 0
      %402 = vmatprep.subr.bf16.mxu0 0
      %403 = vmatpush2.bf16.msra.mxu0 0
      %404 = vmatprep.subr.bf16.mxu0 0
      %405 = vmatpush2.bf16.msra.mxu0 0
      %406 = vmatprep.mubr.bf16.mxu0 0
      %407 = vmatmul.mubr.bf16.gmra.mxu0 %v324
      %v408 = vpop.f32.mrf.mxu0
      %v409 = vadd.f32 0.0, %v408
      %v410 = vpop.f32.mrf.mxu0
      %v411 = vpop.f32.mrf.mxu0
      %v412 = vadd.f32 0.0, %v411
      %v413 = vpop.f32.mrf.mxu0
      %414 = vdwg.mxu0
      %v415 = vadd.f32 %v300, %v409
      %v416 = vadd.f32 %v301, %v412
      %417 = vst [vmem:[#allocation2] sm:$0xff] %v415
      %418 = vst [vmem:[#allocation2 + $0x8] sm:$0xff] %v416
      // Predicated region
      $region41: #{fwd.28} parent=35 // pred_check
        %p419 = pneg %p294
      $region42: #{fwd.28} parent=35 // pred_check_branch
        %421 = sbr.rel (%p419) target = $region44
      $region43: #{fwd.28} parent=35 // pred_region
        %v422 = vld [vmem:[#allocation2] sm:$0xff]
        %v423 = vld [vmem:[#allocation2 + $0x8] sm:$0xff]
        %v424 = vld [vmem:[%s283] sm:$0x1]
        %v426 = vlaneseq
        %v427 = vshrl.u32 %v426, 7
        %v428 = vsub.s32 0, %v427
        %v429 = vrot.slane %v424, %v428
        %v431 = vmul.f32 %v422, %v429
        %v432 = vmul.f32 %v423, %v429
        %v433 = vld [vmem:[%s286] sm:$0x1]
        %v435 = vlaneseq
        %v436 = vshrl.u32 %v435, 7
        %v437 = vsub.s32 0, %v436
        %v438 = vrot.slane %v433, %v437
        %v440 = vadd.f32 %v431, %v438
        %v441 = vadd.f32 %v432, %v438
        %v442 = vxor.u32 %v440, 2147483648
        %v443 = vxor.u32 %v441, 2147483648
        %v444 = vmul.f32 %v442, 1.442695
        %v445 = vpow.pop %v444
        %v446 = vmul.f32 %v443, 1.442695
        %v447 = vpow.pop %v446
        %v448 = vadd.f32 %v445, 1.0
        %v449 = vadd.f32 %v447, 1.0
        %v450 = vrcp.pop %v448
        %v451 = vmul.f32 1.0, %v450
        %v452 = vrcp.pop %v449
        %v453 = vmul.f32 1.0, %v452
        %v454 = vmul.f32 %v440, %v451
        %v455 = vmul.f32 %v441, %v453
        %v456 = vadd.f32 %v454, %v455
        %v457 = vrot.slane %v456, 4
        %v458 = vadd.f32 %v456, %v457
        %v459 = vrot.slane %v458, 2
        %v460 = vadd.f32 %v458, %v459
        %v461 = vrot.slane %v460, 1
        %v462 = vadd.f32 %v460, %v461
        %v463 = vrcp.pop 16.0
        %v464 = vmul.f32 %v462, %v463
        %465 = vst [vmem:[%s292] sm:$0x1] %v464
      $region44: #{fwd.28} parent=35 // pred_fallthru
        _
      %p466 = scmp.lt.s32.totalorder %s20, 1
      %s467 = scalar_select %p466, %s20, 1
      %p468 = scmp.lt.s32.totalorder %s21, 0
      %s469 = scalar_select %p468, %s21, 0
      %s470 = sadd.s32 %s469, %s467
      %s471 = scalar_lea.vmem %s4, %s470
      // Predicated region
      $region45: #{fwd.28} parent=35 // pred_check
        %p472 = pneg %p162
      $region46: #{fwd.28} parent=35 // pred_check_branch
        %474 = sbr.rel (%p472) target = $region48
      $region47: #{fwd.28} parent=35 // pred_region
        _
      $region48: #{fwd.28} parent=35 // pred_fallthru
        _
    $region36: #{fwd.28} parent=5 // pred_fallthru
      _
    %p475 = scmp.le.s32.totalorder 2, %s10
    // Predicated region
    $region49: #{fwd.28} parent=5 // pred_check
      %p476 = pneg %p475
    $region50: #{fwd.28} parent=5 // pred_check_branch
      %478 = sbr.rel (%p476) target = $region52
    $region51: #{fwd.28} parent=5 // pred_region
      %s479 = ssub.s32 %s10, 2
      // Predicated region
      $region53: #{fwd.28} parent=51 // pred_check
        %p480 = pneg %p168
      $region54: #{fwd.28} parent=51 // pred_check_branch
        %482 = sbr.rel (%p480) target = $region56
      $region55: #{fwd.28} parent=51 // pred_region
        %p483 = scmp.lt.s32.totalorder %s23, 1
        %s484 = scalar_select %p483, %s23, 1
        %p485 = scmp.lt.s32.totalorder %s24, 0
        %s486 = scalar_select %p485, %s24, 0
        %s487 = sadd.s32 %s486, %s484
        %s488 = scalar_lea.vmem %s4, %s487
      $region56: #{fwd.28} parent=51 // pred_fallthru
        _
    $region52: #{fwd.28} parent=5 // pred_fallthru
      _
  $region6: #{fwd.28} parent=0 // loop_footer
    %s14 = sadd.s32 1, %s10
  $region7: #{fwd.28} parent=0 // loop_footer_branch
    %9 = sbr.rel target = $region3
  $region8: #{fwd.28} parent=0 // loop_exit
    _

</llo_original>
